<compile_context>
chip_gen: v7x
topology: tpu7x:2x2x1
jax: 0.10.0
libtpu: 0.0.40
codegen_flags: <defaults>
</compile_context>

<pallas_src>
import numpy as np
import jax
import jax.numpy as jnp
from jax import lax
from jax.experimental import pallas as pl
from jax.experimental.pallas import tpu as pltpu


# ----------------------------------------------------------------------------
# Fused encoder + greedy decoder kernel (single invocation, everything in VMEM).
# ----------------------------------------------------------------------------
def seq2seq_kernel(x_ref, h0_ref,
                   enc_emb_ref, enc_wih_ref, enc_whh_ref, enc_b_ref,
                   dec_emb_ref, dec_wih_ref, dec_whh_ref, dec_b_ref,
                   wout_t_ref, bout_ref,
                   out_ref):
    L, n, h = h0_ref.shape
    v = dec_emb_ref.shape[0]
    t = x_ref.shape[1]
    max_len = out_ref.shape[1]
    f32, bf16 = jnp.float32, jnp.bfloat16

    # Hoisted constants / broadcasts (JAX does not CSE broadcast_in_dim inside loops).
    lane_ids = lax.broadcasted_iota(jnp.int32, (n, v), 1)               # vocab lane ids
    enc_bias = [jnp.broadcast_to(enc_b_ref[l], (n, h)) for l in range(L)]
    dec_bias = [jnp.broadcast_to(dec_b_ref[l], (n, h)) for l in range(L)]
    out_bias = jnp.broadcast_to(bout_ref[...], (n, v))

    # Fuse embedding lookup with the layer-0 input projection once:
    #   onehot @ (E @ Wih0^T) == embedding(tok) @ Wih0^T
    # For the decoder this removes one matmul per step from the recurrent chain.
    enc_ew0 = jnp.dot(enc_emb_ref[...], enc_wih_ref[0],
                      preferred_element_type=f32).astype(bf16)          # (v, h)
    dec_ew0 = jnp.dot(dec_emb_ref[...], dec_wih_ref[0],
                      preferred_element_type=f32).astype(bf16)          # (v, h)

    # Hidden state carried in bf16 (cast once at production; f32 matmul accumulation).
    hid = [h0_ref[l].astype(bf16) for l in range(L)]

    # -------------------- Encoder (fully unrolled, t static) --------------------
    for ti in range(t):
        tok_col = x_ref[:, ti:ti + 1]                                   # (n, 1) int32
        onehot = (tok_col == lane_ids).astype(bf16)                     # (n, v), off-chain
        # layer 0: fused embed+input-proj dot + recurrent dot (two independent matmuls)
        pre = (jnp.dot(onehot, enc_ew0, preferred_element_type=f32)
               + jnp.dot(hid[0], enc_whh_ref[0], preferred_element_type=f32)
               + enc_bias[0])
        hid[0] = jnp.tanh(pre).astype(bf16)
        x = hid[0]
        for l in range(1, L):
            pre = (jnp.dot(x, enc_wih_ref[l], preferred_element_type=f32)
                   + jnp.dot(hid[l], enc_whh_ref[l], preferred_element_type=f32)
                   + enc_bias[l])
            hid[l] = jnp.tanh(pre).astype(bf16)
            x = hid[l]

    # -------------------- Decoder (greedy, fully unrolled) --------------------
    # decoder_hidden = encoder_hidden (never leaves the kernel).
    # decoder_input = zeros((n, 1)) -> one-hot of token 0.
    onehot = (lane_ids == 0).astype(bf16)                               # (n, v)
    toks = []
    for _ in range(max_len):
        # layer 0: onehot @ (E @ Wih0^T) replaces embedding + input projection
        pre = (jnp.dot(onehot, dec_ew0, preferred_element_type=f32)
               + jnp.dot(hid[0], dec_whh_ref[0], preferred_element_type=f32)
               + dec_bias[0])
        hid[0] = jnp.tanh(pre).astype(bf16)
        x = hid[0]
        for l in range(1, L):
            pre = (jnp.dot(x, dec_wih_ref[l], preferred_element_type=f32)
                   + jnp.dot(hid[l], dec_whh_ref[l], preferred_element_type=f32)
                   + dec_bias[l])
            hid[l] = jnp.tanh(pre).astype(bf16)
            x = hid[l]
        logits = (jnp.dot(x, wout_t_ref[...], preferred_element_type=f32)
                  + out_bias)                                           # (n, v) f32
        mx = jnp.max(logits, axis=-1, keepdims=True)                    # on-chain XLU reduce
        is_max = logits == mx                                           # on-chain VPU compare
        # Feedback path only needs the one-hot (exact ties are measure-zero with f32 logits;
        # the emitted token below still uses exact first-occurrence torch.argmax semantics).
        onehot = is_max.astype(bf16)
        # Off the recurrent chain: first-occurrence argmax for the output buffer only.
        tok = jnp.min(jnp.where(is_max, lane_ids, v), axis=-1, keepdims=True)   # (n, 1) int32
        toks.append(tok)

    # Single lane-dense store of all tokens (no per-step 1-lane masked stores).
    out_ref[...] = jnp.concatenate(toks, axis=1)


def seq2seq_fused(x_nt, h0,
                  enc_emb, enc_wih_t, enc_whh_t, enc_b,
                  dec_emb, dec_wih_t, dec_whh_t, dec_b,
                  wout_t, bout, max_len):
    L, n, h = h0.shape
    t = x_nt.shape[1]
    v = dec_emb.shape[0]

    def full(shape):
        return pl.BlockSpec(shape, lambda i, _s=shape: (0,) * len(_s))

    return pl.pallas_call(
        seq2seq_kernel,
        out_shape=jax.ShapeDtypeStruct((n, max_len), jnp.int32),
        grid_spec=pltpu.PrefetchScalarGridSpec(
            num_scalar_prefetch=0,
            grid=(1,),
            in_specs=[
                full((n, t)),          # encoder token ids (batch-major) int32
                full((L, n, h)),       # encoder h0
                full((v, h)),          # encoder embedding table (bf16)
                full((L, h, h)),       # encoder Wih^T (bf16)
                full((L, h, h)),       # encoder Whh^T (bf16)
                full((L, 1, h)),       # encoder fused bias (b_ih + b_hh)
                full((v, h)),          # decoder embedding table (bf16)
                full((L, h, h)),       # decoder Wih^T (bf16)
                full((L, h, h)),       # decoder Whh^T (bf16)
                full((L, 1, h)),       # decoder fused bias
                full((h, v)),          # output layer W^T (bf16)
                full((1, v)),          # output layer bias
            ],
            out_specs=full((n, max_len)),
        ),
        compiler_params=pltpu.CompilerParams(dimension_semantics=("arbitrary",)),
    )(x_nt, h0, enc_emb, enc_wih_t, enc_whh_t, enc_b,
      dec_emb, dec_wih_t, dec_whh_t, dec_b, wout_t, bout)


# ----------------------------------------------------------------------------
# Parameter init (deterministic, PyTorch-like scales).
# ----------------------------------------------------------------------------
def init_params(key, v, h, L, n):
    ks = jax.random.split(key, 13)
    s = 1.0 / np.sqrt(h)
    u = lambda k, shape: jax.random.uniform(k, shape, jnp.float32, -s, s)

    def pack_rnn(k_ih, k_hh, k_bih, k_bhh):
        wih = u(k_ih, (L, h, h))
        whh = u(k_hh, (L, h, h))
        bih = u(k_bih, (L, 1, h))
        bhh = u(k_bhh, (L, 1, h))
        # Keep Wih^T / Whh^T separate: two independent dots per layer, no in-kernel concat.
        return (jnp.transpose(wih, (0, 2, 1)).astype(jnp.bfloat16),
                jnp.transpose(whh, (0, 2, 1)).astype(jnp.bfloat16),
                bih + bhh)

    enc_wih_t, enc_whh_t, enc_b = pack_rnn(ks[1], ks[2], ks[3], ks[4])
    dec_wih_t, dec_whh_t, dec_b = pack_rnn(ks[7], ks[8], ks[9], ks[10])
    return dict(
        enc_emb=jax.random.normal(ks[0], (v, h), jnp.float32).astype(jnp.bfloat16),
        enc_wih_t=enc_wih_t, enc_whh_t=enc_whh_t, enc_b=enc_b,
        enc_h0=jax.random.normal(ks[5], (L, n, h), jnp.float32),  # deterministic stand-in for th.randn
        dec_emb=jax.random.normal(ks[6], (v, h), jnp.float32).astype(jnp.bfloat16),
        dec_wih_t=dec_wih_t, dec_whh_t=dec_whh_t, dec_b=dec_b,
        dec_wout_t=jnp.transpose(u(ks[11], (v, h)), (1, 0)).astype(jnp.bfloat16),
        dec_bout=u(ks[12], (1, v)),
    )


def seq2seq_forward(params, x, max_len=10):
    # x: (t, n) int32 token ids.  Everything (embedding, encoder RNN, greedy decoder) runs
    # inside the single fused Pallas kernel; the only host ops are a tiny int32 transpose
    # of x and the final layout transpose/cast of the generated tokens.
    tokens_nm = seq2seq_fused(x.T, params["enc_h0"],
                              params["enc_emb"], params["enc_wih_t"],
                              params["enc_whh_t"], params["enc_b"],
                              params["dec_emb"], params["dec_wih_t"],
                              params["dec_whh_t"], params["dec_b"],
                              params["dec_wout_t"], params["dec_bout"],
                              max_len)                              # (n, max_len) int32
    return tokens_nm.T.astype(jnp.float32)                          # (max_len, n) float token ids


if __name__ == "__main__":
    v, h, L = 64, 32, 3          # vocab, hidden, num_layers
    t, n = 8, 8                  # sequence length, batch (n=8 fills the sublane dim of a vreg tile)
    max_len = 10

    key = jax.random.PRNGKey(0)
    pkey, xkey = jax.random.split(key)
    params = init_params(pkey, v, h, L, n)
    x = jax.random.randint(xkey, (t, n), 0, v, dtype=jnp.int32)     # (t, n) token ids

    out = seq2seq_forward(params, x, max_len=max_len)
    out = jax.block_until_ready(out)
    assert out.shape == (max_len, n) and out.dtype == jnp.float32
    assert bool(jnp.all((out >= 0) & (out < v)))
    print("KERNEL_OK")
</pallas_src>

<mosaic_0001>
module attributes {stable_mosaic.version = 11 : i64} {
  func.func @seq2seq_kernel(%arg0: i32, %arg1: memref<8x8xi32, #tpu.memory_space<vmem>>, %arg2: memref<3x8x32xf32, #tpu.memory_space<vmem>>, %arg3: memref<64x32xbf16, #tpu.memory_space<vmem>>, %arg4: memref<3x32x32xbf16, #tpu.memory_space<vmem>>, %arg5: memref<3x32x32xbf16, #tpu.memory_space<vmem>>, %arg6: memref<3x1x32xf32, #tpu.memory_space<vmem>>, %arg7: memref<64x32xbf16, #tpu.memory_space<vmem>>, %arg8: memref<3x32x32xbf16, #tpu.memory_space<vmem>>, %arg9: memref<3x32x32xbf16, #tpu.memory_space<vmem>>, %arg10: memref<3x1x32xf32, #tpu.memory_space<vmem>>, %arg11: memref<32x64xbf16, #tpu.memory_space<vmem>>, %arg12: memref<1x64xf32, #tpu.memory_space<vmem>>, %arg13: memref<8x10xi32, #tpu.memory_space<vmem>>) attributes {dimension_semantics = [#tpu.dimension_semantics<arbitrary>], iteration_bounds = array<i64: 1>, scalar_prefetch = 0 : i64, scratch_operands = 0 : i64, tpu.core_type = #tpu.core_type<tc>, window_params = [{pipeline_mode = #tpu.pipeline_mode<synchronous>, transform_indices = @transform_0, window_bounds = array<i64: 8, 8>}, {pipeline_mode = #tpu.pipeline_mode<synchronous>, transform_indices = @transform_1, window_bounds = array<i64: 3, 8, 32>}, {pipeline_mode = #tpu.pipeline_mode<synchronous>, transform_indices = @transform_2, window_bounds = array<i64: 64, 32>}, {pipeline_mode = #tpu.pipeline_mode<synchronous>, transform_indices = @transform_3, window_bounds = array<i64: 3, 32, 32>}, {pipeline_mode = #tpu.pipeline_mode<synchronous>, transform_indices = @transform_4, window_bounds = array<i64: 3, 32, 32>}, {pipeline_mode = #tpu.pipeline_mode<synchronous>, transform_indices = @transform_5, window_bounds = array<i64: 3, 1, 32>}, {pipeline_mode = #tpu.pipeline_mode<synchronous>, transform_indices = @transform_6, window_bounds = array<i64: 64, 32>}, {pipeline_mode = #tpu.pipeline_mode<synchronous>, transform_indices = @transform_7, window_bounds = array<i64: 3, 32, 32>}, {pipeline_mode = #tpu.pipeline_mode<synchronous>, transform_indices = @transform_8, window_bounds = array<i64: 3, 32, 32>}, {pipeline_mode = #tpu.pipeline_mode<synchronous>, transform_indices = @transform_9, window_bounds = array<i64: 3, 1, 32>}, {pipeline_mode = #tpu.pipeline_mode<synchronous>, transform_indices = @transform_10, window_bounds = array<i64: 32, 64>}, {pipeline_mode = #tpu.pipeline_mode<synchronous>, transform_indices = @transform_11, window_bounds = array<i64: 1, 64>}, {pipeline_mode = #tpu.pipeline_mode<synchronous>, transform_indices = @transform_12, window_bounds = array<i64: 8, 10>}]} {
    %0 = tpu.iota {dimensions = array<i32: 1>} : vector<8x64xi32>
    %c0 = arith.constant 0 : index
    %c0_0 = arith.constant 0 : index
    %c0_1 = arith.constant 0 : index
    %1 = vector.load %arg6[%c0, %c0_0, %c0_1] : memref<3x1x32xf32, #tpu.memory_space<vmem>>, vector<1x1x32xf32>
    %2 = vector.shape_cast %1 : vector<1x1x32xf32> to vector<1x32xf32>
    %3 = vector.shape_cast %2 : vector<1x32xf32> to vector<1x32xf32>
    %4 = vector.broadcast %3 : vector<1x32xf32> to vector<8x32xf32>
    %c1 = arith.constant 1 : index
    %c0_2 = arith.constant 0 : index
    %c0_3 = arith.constant 0 : index
    %5 = vector.load %arg6[%c1, %c0_2, %c0_3] : memref<3x1x32xf32, #tpu.memory_space<vmem>>, vector<1x1x32xf32>
    %6 = vector.shape_cast %5 : vector<1x1x32xf32> to vector<1x32xf32>
    %7 = vector.shape_cast %6 : vector<1x32xf32> to vector<1x32xf32>
    %8 = vector.broadcast %7 : vector<1x32xf32> to vector<8x32xf32>
    %c2 = arith.constant 2 : index
    %c0_4 = arith.constant 0 : index
    %c0_5 = arith.constant 0 : index
    %9 = vector.load %arg6[%c2, %c0_4, %c0_5] : memref<3x1x32xf32, #tpu.memory_space<vmem>>, vector<1x1x32xf32>
    %10 = vector.shape_cast %9 : vector<1x1x32xf32> to vector<1x32xf32>
    %11 = vector.shape_cast %10 : vector<1x32xf32> to vector<1x32xf32>
    %12 = vector.broadcast %11 : vector<1x32xf32> to vector<8x32xf32>
    %c0_6 = arith.constant 0 : index
    %c0_7 = arith.constant 0 : index
    %c0_8 = arith.constant 0 : index
    %13 = vector.load %arg10[%c0_6, %c0_7, %c0_8] : memref<3x1x32xf32, #tpu.memory_space<vmem>>, vector<1x1x32xf32>
    %14 = vector.shape_cast %13 : vector<1x1x32xf32> to vector<1x32xf32>
    %15 = vector.shape_cast %14 : vector<1x32xf32> to vector<1x32xf32>
    %16 = vector.broadcast %15 : vector<1x32xf32> to vector<8x32xf32>
    %c1_9 = arith.constant 1 : index
    %c0_10 = arith.constant 0 : index
    %c0_11 = arith.constant 0 : index
    %17 = vector.load %arg10[%c1_9, %c0_10, %c0_11] : memref<3x1x32xf32, #tpu.memory_space<vmem>>, vector<1x1x32xf32>
    %18 = vector.shape_cast %17 : vector<1x1x32xf32> to vector<1x32xf32>
    %19 = vector.shape_cast %18 : vector<1x32xf32> to vector<1x32xf32>
    %20 = vector.broadcast %19 : vector<1x32xf32> to vector<8x32xf32>
    %c2_12 = arith.constant 2 : index
    %c0_13 = arith.constant 0 : index
    %c0_14 = arith.constant 0 : index
    %21 = vector.load %arg10[%c2_12, %c0_13, %c0_14] : memref<3x1x32xf32, #tpu.memory_space<vmem>>, vector<1x1x32xf32>
    %22 = vector.shape_cast %21 : vector<1x1x32xf32> to vector<1x32xf32>
    %23 = vector.shape_cast %22 : vector<1x32xf32> to vector<1x32xf32>
    %24 = vector.broadcast %23 : vector<1x32xf32> to vector<8x32xf32>
    %c0_15 = arith.constant 0 : index
    %c0_16 = arith.constant 0 : index
    %25 = vector.load %arg12[%c0_15, %c0_16] : memref<1x64xf32, #tpu.memory_space<vmem>>, vector<1x64xf32>
    %26 = vector.shape_cast %25 : vector<1x64xf32> to vector<1x64xf32>
    %27 = vector.broadcast %26 : vector<1x64xf32> to vector<8x64xf32>
    %c0_17 = arith.constant 0 : index
    %c0_18 = arith.constant 0 : index
    %28 = vector.load %arg3[%c0_17, %c0_18] : memref<64x32xbf16, #tpu.memory_space<vmem>>, vector<64x32xbf16>
    %c0_19 = arith.constant 0 : index
    %c0_20 = arith.constant 0 : index
    %c0_21 = arith.constant 0 : index
    %29 = vector.load %arg4[%c0_19, %c0_20, %c0_21] : memref<3x32x32xbf16, #tpu.memory_space<vmem>>, vector<1x32x32xbf16>
    %30 = vector.shape_cast %29 : vector<1x32x32xbf16> to vector<32x32xbf16>
    %cst = arith.constant dense<0.000000e+00> : vector<64x32xf32>
    %31 = tpu.matmul %28, %30, %cst {dimension_numbers = #tpu.dot_dimension_numbers<[1], [0], [0], [1], [0, 0, 1, 1], [], []>} : vector<64x32xbf16>, vector<32x32xbf16>, vector<64x32xf32> -> vector<64x32xf32>
    %32 = arith.truncf %31 : vector<64x32xf32> to vector<64x32xbf16>
    %c0_22 = arith.constant 0 : index
    %c0_23 = arith.constant 0 : index
    %33 = vector.load %arg7[%c0_22, %c0_23] : memref<64x32xbf16, #tpu.memory_space<vmem>>, vector<64x32xbf16>
    %c0_24 = arith.constant 0 : index
    %c0_25 = arith.constant 0 : index
    %c0_26 = arith.constant 0 : index
    %34 = vector.load %arg8[%c0_24, %c0_25, %c0_26] : memref<3x32x32xbf16, #tpu.memory_space<vmem>>, vector<1x32x32xbf16>
    %35 = vector.shape_cast %34 : vector<1x32x32xbf16> to vector<32x32xbf16>
    %cst_27 = arith.constant dense<0.000000e+00> : vector<64x32xf32>
    %36 = tpu.matmul %33, %35, %cst_27 {dimension_numbers = #tpu.dot_dimension_numbers<[1], [0], [0], [1], [0, 0, 1, 1], [], []>} : vector<64x32xbf16>, vector<32x32xbf16>, vector<64x32xf32> -> vector<64x32xf32>
    %37 = arith.truncf %36 : vector<64x32xf32> to vector<64x32xbf16>
    %c0_28 = arith.constant 0 : index
    %c0_29 = arith.constant 0 : index
    %c0_30 = arith.constant 0 : index
    %38 = vector.load %arg2[%c0_28, %c0_29, %c0_30] : memref<3x8x32xf32, #tpu.memory_space<vmem>>, vector<1x8x32xf32>
    %39 = vector.shape_cast %38 : vector<1x8x32xf32> to vector<8x32xf32>
    %40 = arith.truncf %39 : vector<8x32xf32> to vector<8x32xbf16>
    %c1_31 = arith.constant 1 : index
    %c0_32 = arith.constant 0 : index
    %c0_33 = arith.constant 0 : index
    %41 = vector.load %arg2[%c1_31, %c0_32, %c0_33] : memref<3x8x32xf32, #tpu.memory_space<vmem>>, vector<1x8x32xf32>
    %42 = vector.shape_cast %41 : vector<1x8x32xf32> to vector<8x32xf32>
    %43 = arith.truncf %42 : vector<8x32xf32> to vector<8x32xbf16>
    %c2_34 = arith.constant 2 : index
    %c0_35 = arith.constant 0 : index
    %c0_36 = arith.constant 0 : index
    %44 = vector.load %arg2[%c2_34, %c0_35, %c0_36] : memref<3x8x32xf32, #tpu.memory_space<vmem>>, vector<1x8x32xf32>
    %45 = vector.shape_cast %44 : vector<1x8x32xf32> to vector<8x32xf32>
    %46 = arith.truncf %45 : vector<8x32xf32> to vector<8x32xbf16>
    %c0_37 = arith.constant 0 : index
    %c0_38 = arith.constant 0 : index
    %47 = vector.load %arg1[%c0_37, %c0_38] : memref<8x8xi32, #tpu.memory_space<vmem>>, vector<8x1xi32>
    %48 = vector.broadcast %47 : vector<8x1xi32> to vector<8x64xi32>
    %49 = arith.cmpi eq, %48, %0 : vector<8x64xi32>
    %50 = arith.extui %49 : vector<8x64xi1> to vector<8x64xi32>
    %51 = arith.sitofp %50 : vector<8x64xi32> to vector<8x64xf32>
    %52 = arith.truncf %51 : vector<8x64xf32> to vector<8x64xbf16>
    %cst_39 = arith.constant dense<0.000000e+00> : vector<8x32xf32>
    %53 = tpu.matmul %52, %32, %cst_39 {dimension_numbers = #tpu.dot_dimension_numbers<[1], [0], [0], [1], [0, 0, 1, 1], [], []>} : vector<8x64xbf16>, vector<64x32xbf16>, vector<8x32xf32> -> vector<8x32xf32>
    %c0_40 = arith.constant 0 : index
    %c0_41 = arith.constant 0 : index
    %c0_42 = arith.constant 0 : index
    %54 = vector.load %arg5[%c0_40, %c0_41, %c0_42] : memref<3x32x32xbf16, #tpu.memory_space<vmem>>, vector<1x32x32xbf16>
    %55 = vector.shape_cast %54 : vector<1x32x32xbf16> to vector<32x32xbf16>
    %cst_43 = arith.constant dense<0.000000e+00> : vector<8x32xf32>
    %56 = tpu.matmul %40, %55, %cst_43 {dimension_numbers = #tpu.dot_dimension_numbers<[1], [0], [0], [1], [0, 0, 1, 1], [], []>} : vector<8x32xbf16>, vector<32x32xbf16>, vector<8x32xf32> -> vector<8x32xf32>
    %57 = arith.addf %53, %56 : vector<8x32xf32>
    %58 = arith.addf %57, %4 : vector<8x32xf32>
    %59 = math.tanh %58 : vector<8x32xf32>
    %60 = arith.truncf %59 : vector<8x32xf32> to vector<8x32xbf16>
    %c1_44 = arith.constant 1 : index
    %c0_45 = arith.constant 0 : index
    %c0_46 = arith.constant 0 : index
    %61 = vector.load %arg4[%c1_44, %c0_45, %c0_46] : memref<3x32x32xbf16, #tpu.memory_space<vmem>>, vector<1x32x32xbf16>
    %62 = vector.shape_cast %61 : vector<1x32x32xbf16> to vector<32x32xbf16>
    %cst_47 = arith.constant dense<0.000000e+00> : vector<8x32xf32>
    %63 = tpu.matmul %60, %62, %cst_47 {dimension_numbers = #tpu.dot_dimension_numbers<[1], [0], [0], [1], [0, 0, 1, 1], [], []>} : vector<8x32xbf16>, vector<32x32xbf16>, vector<8x32xf32> -> vector<8x32xf32>
    %c1_48 = arith.constant 1 : index
    %c0_49 = arith.constant 0 : index
    %c0_50 = arith.constant 0 : index
    %64 = vector.load %arg5[%c1_48, %c0_49, %c0_50] : memref<3x32x32xbf16, #tpu.memory_space<vmem>>, vector<1x32x32xbf16>
    %65 = vector.shape_cast %64 : vector<1x32x32xbf16> to vector<32x32xbf16>
    %cst_51 = arith.constant dense<0.000000e+00> : vector<8x32xf32>
    %66 = tpu.matmul %43, %65, %cst_51 {dimension_numbers = #tpu.dot_dimension_numbers<[1], [0], [0], [1], [0, 0, 1, 1], [], []>} : vector<8x32xbf16>, vector<32x32xbf16>, vector<8x32xf32> -> vector<8x32xf32>
    %67 = arith.addf %63, %66 : vector<8x32xf32>
    %68 = arith.addf %67, %8 : vector<8x32xf32>
    %69 = math.tanh %68 : vector<8x32xf32>
    %70 = arith.truncf %69 : vector<8x32xf32> to vector<8x32xbf16>
    %c2_52 = arith.constant 2 : index
    %c0_53 = arith.constant 0 : index
    %c0_54 = arith.constant 0 : index
    %71 = vector.load %arg4[%c2_52, %c0_53, %c0_54] : memref<3x32x32xbf16, #tpu.memory_space<vmem>>, vector<1x32x32xbf16>
    %72 = vector.shape_cast %71 : vector<1x32x32xbf16> to vector<32x32xbf16>
    %cst_55 = arith.constant dense<0.000000e+00> : vector<8x32xf32>
    %73 = tpu.matmul %70, %72, %cst_55 {dimension_numbers = #tpu.dot_dimension_numbers<[1], [0], [0], [1], [0, 0, 1, 1], [], []>} : vector<8x32xbf16>, vector<32x32xbf16>, vector<8x32xf32> -> vector<8x32xf32>
    %c2_56 = arith.constant 2 : index
    %c0_57 = arith.constant 0 : index
    %c0_58 = arith.constant 0 : index
    %74 = vector.load %arg5[%c2_56, %c0_57, %c0_58] : memref<3x32x32xbf16, #tpu.memory_space<vmem>>, vector<1x32x32xbf16>
    %75 = vector.shape_cast %74 : vector<1x32x32xbf16> to vector<32x32xbf16>
    %cst_59 = arith.constant dense<0.000000e+00> : vector<8x32xf32>
    %76 = tpu.matmul %46, %75, %cst_59 {dimension_numbers = #tpu.dot_dimension_numbers<[1], [0], [0], [1], [0, 0, 1, 1], [], []>} : vector<8x32xbf16>, vector<32x32xbf16>, vector<8x32xf32> -> vector<8x32xf32>
    %77 = arith.addf %73, %76 : vector<8x32xf32>
    %78 = arith.addf %77, %12 : vector<8x32xf32>
    %79 = math.tanh %78 : vector<8x32xf32>
    %80 = arith.truncf %79 : vector<8x32xf32> to vector<8x32xbf16>
    %c0_60 = arith.constant 0 : index
    %c1_61 = arith.constant 1 : index
    %81 = vector.load %arg1[%c0_60, %c1_61] : memref<8x8xi32, #tpu.memory_space<vmem>>, vector<8x1xi32>
    %82 = vector.broadcast %81 : vector<8x1xi32> to vector<8x64xi32>
    %83 = arith.cmpi eq, %82, %0 : vector<8x64xi32>
    %84 = arith.extui %83 : vector<8x64xi1> to vector<8x64xi32>
    %85 = arith.sitofp %84 : vector<8x64xi32> to vector<8x64xf32>
    %86 = arith.truncf %85 : vector<8x64xf32> to vector<8x64xbf16>
    %cst_62 = arith.constant dense<0.000000e+00> : vector<8x32xf32>
    %87 = tpu.matmul %86, %32, %cst_62 {dimension_numbers = #tpu.dot_dimension_numbers<[1], [0], [0], [1], [0, 0, 1, 1], [], []>} : vector<8x64xbf16>, vector<64x32xbf16>, vector<8x32xf32> -> vector<8x32xf32>
    %c0_63 = arith.constant 0 : index
    %c0_64 = arith.constant 0 : index
    %c0_65 = arith.constant 0 : index
    %88 = vector.load %arg5[%c0_63, %c0_64, %c0_65] : memref<3x32x32xbf16, #tpu.memory_space<vmem>>, vector<1x32x32xbf16>
    %89 = vector.shape_cast %88 : vector<1x32x32xbf16> to vector<32x32xbf16>
    %cst_66 = arith.constant dense<0.000000e+00> : vector<8x32xf32>
    %90 = tpu.matmul %60, %89, %cst_66 {dimension_numbers = #tpu.dot_dimension_numbers<[1], [0], [0], [1], [0, 0, 1, 1], [], []>} : vector<8x32xbf16>, vector<32x32xbf16>, vector<8x32xf32> -> vector<8x32xf32>
    %91 = arith.addf %87, %90 : vector<8x32xf32>
    %92 = arith.addf %91, %4 : vector<8x32xf32>
    %93 = math.tanh %92 : vector<8x32xf32>
    %94 = arith.truncf %93 : vector<8x32xf32> to vector<8x32xbf16>
    %c1_67 = arith.constant 1 : index
    %c0_68 = arith.constant 0 : index
    %c0_69 = arith.constant 0 : index
    %95 = vector.load %arg4[%c1_67, %c0_68, %c0_69] : memref<3x32x32xbf16, #tpu.memory_space<vmem>>, vector<1x32x32xbf16>
    %96 = vector.shape_cast %95 : vector<1x32x32xbf16> to vector<32x32xbf16>
    %cst_70 = arith.constant dense<0.000000e+00> : vector<8x32xf32>
    %97 = tpu.matmul %94, %96, %cst_70 {dimension_numbers = #tpu.dot_dimension_numbers<[1], [0], [0], [1], [0, 0, 1, 1], [], []>} : vector<8x32xbf16>, vector<32x32xbf16>, vector<8x32xf32> -> vector<8x32xf32>
    %c1_71 = arith.constant 1 : index
    %c0_72 = arith.constant 0 : index
    %c0_73 = arith.constant 0 : index
    %98 = vector.load %arg5[%c1_71, %c0_72, %c0_73] : memref<3x32x32xbf16, #tpu.memory_space<vmem>>, vector<1x32x32xbf16>
    %99 = vector.shape_cast %98 : vector<1x32x32xbf16> to vector<32x32xbf16>
    %cst_74 = arith.constant dense<0.000000e+00> : vector<8x32xf32>
    %100 = tpu.matmul %70, %99, %cst_74 {dimension_numbers = #tpu.dot_dimension_numbers<[1], [0], [0], [1], [0, 0, 1, 1], [], []>} : vector<8x32xbf16>, vector<32x32xbf16>, vector<8x32xf32> -> vector<8x32xf32>
    %101 = arith.addf %97, %100 : vector<8x32xf32>
    %102 = arith.addf %101, %8 : vector<8x32xf32>
    %103 = math.tanh %102 : vector<8x32xf32>
    %104 = arith.truncf %103 : vector<8x32xf32> to vector<8x32xbf16>
    %c2_75 = arith.constant 2 : index
    %c0_76 = arith.constant 0 : index
    %c0_77 = arith.constant 0 : index
    %105 = vector.load %arg4[%c2_75, %c0_76, %c0_77] : memref<3x32x32xbf16, #tpu.memory_space<vmem>>, vector<1x32x32xbf16>
    %106 = vector.shape_cast %105 : vector<1x32x32xbf16> to vector<32x32xbf16>
    %cst_78 = arith.constant dense<0.000000e+00> : vector<8x32xf32>
    %107 = tpu.matmul %104, %106, %cst_78 {dimension_numbers = #tpu.dot_dimension_numbers<[1], [0], [0], [1], [0, 0, 1, 1], [], []>} : vector<8x32xbf16>, vector<32x32xbf16>, vector<8x32xf32> -> vector<8x32xf32>
    %c2_79 = arith.constant 2 : index
    %c0_80 = arith.constant 0 : index
    %c0_81 = arith.constant 0 : index
    %108 = vector.load %arg5[%c2_79, %c0_80, %c0_81] : memref<3x32x32xbf16, #tpu.memory_space<vmem>>, vector<1x32x32xbf16>
    %109 = vector.shape_cast %108 : vector<1x32x32xbf16> to vector<32x32xbf16>
    %cst_82 = arith.constant dense<0.000000e+00> : vector<8x32xf32>
    %110 = tpu.matmul %80, %109, %cst_82 {dimension_numbers = #tpu.dot_dimension_numbers<[1], [0], [0], [1], [0, 0, 1, 1], [], []>} : vector<8x32xbf16>, vector<32x32xbf16>, vector<8x32xf32> -> vector<8x32xf32>
    %111 = arith.addf %107, %110 : vector<8x32xf32>
    %112 = arith.addf %111, %12 : vector<8x32xf32>
    %113 = math.tanh %112 : vector<8x32xf32>
    %114 = arith.truncf %113 : vector<8x32xf32> to vector<8x32xbf16>
    %c0_83 = arith.constant 0 : index
    %c2_84 = arith.constant 2 : index
    %115 = vector.load %arg1[%c0_83, %c2_84] : memref<8x8xi32, #tpu.memory_space<vmem>>, vector<8x1xi32>
    %116 = vector.broadcast %115 : vector<8x1xi32> to vector<8x64xi32>
    %117 = arith.cmpi eq, %116, %0 : vector<8x64xi32>
    %118 = arith.extui %117 : vector<8x64xi1> to vector<8x64xi32>
    %119 = arith.sitofp %118 : vector<8x64xi32> to vector<8x64xf32>
    %120 = arith.truncf %119 : vector<8x64xf32> to vector<8x64xbf16>
    %cst_85 = arith.constant dense<0.000000e+00> : vector<8x32xf32>
    %121 = tpu.matmul %120, %32, %cst_85 {dimension_numbers = #tpu.dot_dimension_numbers<[1], [0], [0], [1], [0, 0, 1, 1], [], []>} : vector<8x64xbf16>, vector<64x32xbf16>, vector<8x32xf32> -> vector<8x32xf32>
    %c0_86 = arith.constant 0 : index
    %c0_87 = arith.constant 0 : index
    %c0_88 = arith.constant 0 : index
    %122 = vector.load %arg5[%c0_86, %c0_87, %c0_88] : memref<3x32x32xbf16, #tpu.memory_space<vmem>>, vector<1x32x32xbf16>
    %123 = vector.shape_cast %122 : vector<1x32x32xbf16> to vector<32x32xbf16>
    %cst_89 = arith.constant dense<0.000000e+00> : vector<8x32xf32>
    %124 = tpu.matmul %94, %123, %cst_89 {dimension_numbers = #tpu.dot_dimension_numbers<[1], [0], [0], [1], [0, 0, 1, 1], [], []>} : vector<8x32xbf16>, vector<32x32xbf16>, vector<8x32xf32> -> vector<8x32xf32>
    %125 = arith.addf %121, %124 : vector<8x32xf32>
    %126 = arith.addf %125, %4 : vector<8x32xf32>
    %127 = math.tanh %126 : vector<8x32xf32>
    %128 = arith.truncf %127 : vector<8x32xf32> to vector<8x32xbf16>
    %c1_90 = arith.constant 1 : index
    %c0_91 = arith.constant 0 : index
    %c0_92 = arith.constant 0 : index
    %129 = vector.load %arg4[%c1_90, %c0_91, %c0_92] : memref<3x32x32xbf16, #tpu.memory_space<vmem>>, vector<1x32x32xbf16>
    %130 = vector.shape_cast %129 : vector<1x32x32xbf16> to vector<32x32xbf16>
    %cst_93 = arith.constant dense<0.000000e+00> : vector<8x32xf32>
    %131 = tpu.matmul %128, %130, %cst_93 {dimension_numbers = #tpu.dot_dimension_numbers<[1], [0], [0], [1], [0, 0, 1, 1], [], []>} : vector<8x32xbf16>, vector<32x32xbf16>, vector<8x32xf32> -> vector<8x32xf32>
    %c1_94 = arith.constant 1 : index
    %c0_95 = arith.constant 0 : index
    %c0_96 = arith.constant 0 : index
    %132 = vector.load %arg5[%c1_94, %c0_95, %c0_96] : memref<3x32x32xbf16, #tpu.memory_space<vmem>>, vector<1x32x32xbf16>
    %133 = vector.shape_cast %132 : vector<1x32x32xbf16> to vector<32x32xbf16>
    %cst_97 = arith.constant dense<0.000000e+00> : vector<8x32xf32>
    %134 = tpu.matmul %104, %133, %cst_97 {dimension_numbers = #tpu.dot_dimension_numbers<[1], [0], [0], [1], [0, 0, 1, 1], [], []>} : vector<8x32xbf16>, vector<32x32xbf16>, vector<8x32xf32> -> vector<8x32xf32>
    %135 = arith.addf %131, %134 : vector<8x32xf32>
    %136 = arith.addf %135, %8 : vector<8x32xf32>
    %137 = math.tanh %136 : vector<8x32xf32>
    %138 = arith.truncf %137 : vector<8x32xf32> to vector<8x32xbf16>
    %c2_98 = arith.constant 2 : index
    %c0_99 = arith.constant 0 : index
    %c0_100 = arith.constant 0 : index
    %139 = vector.load %arg4[%c2_98, %c0_99, %c0_100] : memref<3x32x32xbf16, #tpu.memory_space<vmem>>, vector<1x32x32xbf16>
    %140 = vector.shape_cast %139 : vector<1x32x32xbf16> to vector<32x32xbf16>
    %cst_101 = arith.constant dense<0.000000e+00> : vector<8x32xf32>
    %141 = tpu.matmul %138, %140, %cst_101 {dimension_numbers = #tpu.dot_dimension_numbers<[1], [0], [0], [1], [0, 0, 1, 1], [], []>} : vector<8x32xbf16>, vector<32x32xbf16>, vector<8x32xf32> -> vector<8x32xf32>
    %c2_102 = arith.constant 2 : index
    %c0_103 = arith.constant 0 : index
    %c0_104 = arith.constant 0 : index
    %142 = vector.load %arg5[%c2_102, %c0_103, %c0_104] : memref<3x32x32xbf16, #tpu.memory_space<vmem>>, vector<1x32x32xbf16>
    %143 = vector.shape_cast %142 : vector<1x32x32xbf16> to vector<32x32xbf16>
    %cst_105 = arith.constant dense<0.000000e+00> : vector<8x32xf32>
    %144 = tpu.matmul %114, %143, %cst_105 {dimension_numbers = #tpu.dot_dimension_numbers<[1], [0], [0], [1], [0, 0, 1, 1], [], []>} : vector<8x32xbf16>, vector<32x32xbf16>, vector<8x32xf32> -> vector<8x32xf32>
    %145 = arith.addf %141, %144 : vector<8x32xf32>
    %146 = arith.addf %145, %12 : vector<8x32xf32>
    %147 = math.tanh %146 : vector<8x32xf32>
    %148 = arith.truncf %147 : vector<8x32xf32> to vector<8x32xbf16>
    %c0_106 = arith.constant 0 : index
    %c3 = arith.constant 3 : index
    %149 = vector.load %arg1[%c0_106, %c3] : memref<8x8xi32, #tpu.memory_space<vmem>>, vector<8x1xi32>
    %150 = vector.broadcast %149 : vector<8x1xi32> to vector<8x64xi32>
    %151 = arith.cmpi eq, %150, %0 : vector<8x64xi32>
    %152 = arith.extui %151 : vector<8x64xi1> to vector<8x64xi32>
    %153 = arith.sitofp %152 : vector<8x64xi32> to vector<8x64xf32>
    %154 = arith.truncf %153 : vector<8x64xf32> to vector<8x64xbf16>
    %cst_107 = arith.constant dense<0.000000e+00> : vector<8x32xf32>
    %155 = tpu.matmul %154, %32, %cst_107 {dimension_numbers = #tpu.dot_dimension_numbers<[1], [0], [0], [1], [0, 0, 1, 1], [], []>} : vector<8x64xbf16>, vector<64x32xbf16>, vector<8x32xf32> -> vector<8x32xf32>
    %c0_108 = arith.constant 0 : index
    %c0_109 = arith.constant 0 : index
    %c0_110 = arith.constant 0 : index
    %156 = vector.load %arg5[%c0_108, %c0_109, %c0_110] : memref<3x32x32xbf16, #tpu.memory_space<vmem>>, vector<1x32x32xbf16>
    %157 = vector.shape_cast %156 : vector<1x32x32xbf16> to vector<32x32xbf16>
    %cst_111 = arith.constant dense<0.000000e+00> : vector<8x32xf32>
    %158 = tpu.matmul %128, %157, %cst_111 {dimension_numbers = #tpu.dot_dimension_numbers<[1], [0], [0], [1], [0, 0, 1, 1], [], []>} : vector<8x32xbf16>, vector<32x32xbf16>, vector<8x32xf32> -> vector<8x32xf32>
    %159 = arith.addf %155, %158 : vector<8x32xf32>
    %160 = arith.addf %159, %4 : vector<8x32xf32>
    %161 = math.tanh %160 : vector<8x32xf32>
    %162 = arith.truncf %161 : vector<8x32xf32> to vector<8x32xbf16>
    %c1_112 = arith.constant 1 : index
    %c0_113 = arith.constant 0 : index
    %c0_114 = arith.constant 0 : index
    %163 = vector.load %arg4[%c1_112, %c0_113, %c0_114] : memref<3x32x32xbf16, #tpu.memory_space<vmem>>, vector<1x32x32xbf16>
    %164 = vector.shape_cast %163 : vector<1x32x32xbf16> to vector<32x32xbf16>
    %cst_115 = arith.constant dense<0.000000e+00> : vector<8x32xf32>
    %165 = tpu.matmul %162, %164, %cst_115 {dimension_numbers = #tpu.dot_dimension_numbers<[1], [0], [0], [1], [0, 0, 1, 1], [], []>} : vector<8x32xbf16>, vector<32x32xbf16>, vector<8x32xf32> -> vector<8x32xf32>
    %c1_116 = arith.constant 1 : index
    %c0_117 = arith.constant 0 : index
    %c0_118 = arith.constant 0 : index
    %166 = vector.load %arg5[%c1_116, %c0_117, %c0_118] : memref<3x32x32xbf16, #tpu.memory_space<vmem>>, vector<1x32x32xbf16>
    %167 = vector.shape_cast %166 : vector<1x32x32xbf16> to vector<32x32xbf16>
    %cst_119 = arith.constant dense<0.000000e+00> : vector<8x32xf32>
    %168 = tpu.matmul %138, %167, %cst_119 {dimension_numbers = #tpu.dot_dimension_numbers<[1], [0], [0], [1], [0, 0, 1, 1], [], []>} : vector<8x32xbf16>, vector<32x32xbf16>, vector<8x32xf32> -> vector<8x32xf32>
    %169 = arith.addf %165, %168 : vector<8x32xf32>
    %170 = arith.addf %169, %8 : vector<8x32xf32>
    %171 = math.tanh %170 : vector<8x32xf32>
    %172 = arith.truncf %171 : vector<8x32xf32> to vector<8x32xbf16>
    %c2_120 = arith.constant 2 : index
    %c0_121 = arith.constant 0 : index
    %c0_122 = arith.constant 0 : index
    %173 = vector.load %arg4[%c2_120, %c0_121, %c0_122] : memref<3x32x32xbf16, #tpu.memory_space<vmem>>, vector<1x32x32xbf16>
    %174 = vector.shape_cast %173 : vector<1x32x32xbf16> to vector<32x32xbf16>
    %cst_123 = arith.constant dense<0.000000e+00> : vector<8x32xf32>
    %175 = tpu.matmul %172, %174, %cst_123 {dimension_numbers = #tpu.dot_dimension_numbers<[1], [0], [0], [1], [0, 0, 1, 1], [], []>} : vector<8x32xbf16>, vector<32x32xbf16>, vector<8x32xf32> -> vector<8x32xf32>
    %c2_124 = arith.constant 2 : index
    %c0_125 = arith.constant 0 : index
    %c0_126 = arith.constant 0 : index
    %176 = vector.load %arg5[%c2_124, %c0_125, %c0_126] : memref<3x32x32xbf16, #tpu.memory_space<vmem>>, vector<1x32x32xbf16>
    %177 = vector.shape_cast %176 : vector<1x32x32xbf16> to vector<32x32xbf16>
    %cst_127 = arith.constant dense<0.000000e+00> : vector<8x32xf32>
    %178 = tpu.matmul %148, %177, %cst_127 {dimension_numbers = #tpu.dot_dimension_numbers<[1], [0], [0], [1], [0, 0, 1, 1], [], []>} : vector<8x32xbf16>, vector<32x32xbf16>, vector<8x32xf32> -> vector<8x32xf32>
    %179 = arith.addf %175, %178 : vector<8x32xf32>
    %180 = arith.addf %179, %12 : vector<8x32xf32>
    %181 = math.tanh %180 : vector<8x32xf32>
    %182 = arith.truncf %181 : vector<8x32xf32> to vector<8x32xbf16>
    %c0_128 = arith.constant 0 : index
    %c4 = arith.constant 4 : index
    %183 = vector.load %arg1[%c0_128, %c4] : memref<8x8xi32, #tpu.memory_space<vmem>>, vector<8x1xi32>
    %184 = vector.broadcast %183 : vector<8x1xi32> to vector<8x64xi32>
    %185 = arith.cmpi eq, %184, %0 : vector<8x64xi32>
    %186 = arith.extui %185 : vector<8x64xi1> to vector<8x64xi32>
    %187 = arith.sitofp %186 : vector<8x64xi32> to vector<8x64xf32>
    %188 = arith.truncf %187 : vector<8x64xf32> to vector<8x64xbf16>
    %cst_129 = arith.constant dense<0.000000e+00> : vector<8x32xf32>
    %189 = tpu.matmul %188, %32, %cst_129 {dimension_numbers = #tpu.dot_dimension_numbers<[1], [0], [0], [1], [0, 0, 1, 1], [], []>} : vector<8x64xbf16>, vector<64x32xbf16>, vector<8x32xf32> -> vector<8x32xf32>
    %c0_130 = arith.constant 0 : index
    %c0_131 = arith.constant 0 : index
    %c0_132 = arith.constant 0 : index
    %190 = vector.load %arg5[%c0_130, %c0_131, %c0_132] : memref<3x32x32xbf16, #tpu.memory_space<vmem>>, vector<1x32x32xbf16>
    %191 = vector.shape_cast %190 : vector<1x32x32xbf16> to vector<32x32xbf16>
    %cst_133 = arith.constant dense<0.000000e+00> : vector<8x32xf32>
    %192 = tpu.matmul %162, %191, %cst_133 {dimension_numbers = #tpu.dot_dimension_numbers<[1], [0], [0], [1], [0, 0, 1, 1], [], []>} : vector<8x32xbf16>, vector<32x32xbf16>, vector<8x32xf32> -> vector<8x32xf32>
    %193 = arith.addf %189, %192 : vector<8x32xf32>
    %194 = arith.addf %193, %4 : vector<8x32xf32>
    %195 = math.tanh %194 : vector<8x32xf32>
    %196 = arith.truncf %195 : vector<8x32xf32> to vector<8x32xbf16>
    %c1_134 = arith.constant 1 : index
    %c0_135 = arith.constant 0 : index
    %c0_136 = arith.constant 0 : index
    %197 = vector.load %arg4[%c1_134, %c0_135, %c0_136] : memref<3x32x32xbf16, #tpu.memory_space<vmem>>, vector<1x32x32xbf16>
    %198 = vector.shape_cast %197 : vector<1x32x32xbf16> to vector<32x32xbf16>
    %cst_137 = arith.constant dense<0.000000e+00> : vector<8x32xf32>
    %199 = tpu.matmul %196, %198, %cst_137 {dimension_numbers = #tpu.dot_dimension_numbers<[1], [0], [0], [1], [0, 0, 1, 1], [], []>} : vector<8x32xbf16>, vector<32x32xbf16>, vector<8x32xf32> -> vector<8x32xf32>
    %c1_138 = arith.constant 1 : index
    %c0_139 = arith.constant 0 : index
    %c0_140 = arith.constant 0 : index
    %200 = vector.load %arg5[%c1_138, %c0_139, %c0_140] : memref<3x32x32xbf16, #tpu.memory_space<vmem>>, vector<1x32x32xbf16>
    %201 = vector.shape_cast %200 : vector<1x32x32xbf16> to vector<32x32xbf16>
    %cst_141 = arith.constant dense<0.000000e+00> : vector<8x32xf32>
    %202 = tpu.matmul %172, %201, %cst_141 {dimension_numbers = #tpu.dot_dimension_numbers<[1], [0], [0], [1], [0, 0, 1, 1], [], []>} : vector<8x32xbf16>, vector<32x32xbf16>, vector<8x32xf32> -> vector<8x32xf32>
    %203 = arith.addf %199, %202 : vector<8x32xf32>
    %204 = arith.addf %203, %8 : vector<8x32xf32>
    %205 = math.tanh %204 : vector<8x32xf32>
    %206 = arith.truncf %205 : vector<8x32xf32> to vector<8x32xbf16>
    %c2_142 = arith.constant 2 : index
    %c0_143 = arith.constant 0 : index
    %c0_144 = arith.constant 0 : index
    %207 = vector.load %arg4[%c2_142, %c0_143, %c0_144] : memref<3x32x32xbf16, #tpu.memory_space<vmem>>, vector<1x32x32xbf16>
    %208 = vector.shape_cast %207 : vector<1x32x32xbf16> to vector<32x32xbf16>
    %cst_145 = arith.constant dense<0.000000e+00> : vector<8x32xf32>
    %209 = tpu.matmul %206, %208, %cst_145 {dimension_numbers = #tpu.dot_dimension_numbers<[1], [0], [0], [1], [0, 0, 1, 1], [], []>} : vector<8x32xbf16>, vector<32x32xbf16>, vector<8x32xf32> -> vector<8x32xf32>
    %c2_146 = arith.constant 2 : index
    %c0_147 = arith.constant 0 : index
    %c0_148 = arith.constant 0 : index
    %210 = vector.load %arg5[%c2_146, %c0_147, %c0_148] : memref<3x32x32xbf16, #tpu.memory_space<vmem>>, vector<1x32x32xbf16>
    %211 = vector.shape_cast %210 : vector<1x32x32xbf16> to vector<32x32xbf16>
    %cst_149 = arith.constant dense<0.000000e+00> : vector<8x32xf32>
    %212 = tpu.matmul %182, %211, %cst_149 {dimension_numbers = #tpu.dot_dimension_numbers<[1], [0], [0], [1], [0, 0, 1, 1], [], []>} : vector<8x32xbf16>, vector<32x32xbf16>, vector<8x32xf32> -> vector<8x32xf32>
    %213 = arith.addf %209, %212 : vector<8x32xf32>
    %214 = arith.addf %213, %12 : vector<8x32xf32>
    %215 = math.tanh %214 : vector<8x32xf32>
    %216 = arith.truncf %215 : vector<8x32xf32> to vector<8x32xbf16>
    %c0_150 = arith.constant 0 : index
    %c5 = arith.constant 5 : index
    %217 = vector.load %arg1[%c0_150, %c5] : memref<8x8xi32, #tpu.memory_space<vmem>>, vector<8x1xi32>
    %218 = vector.broadcast %217 : vector<8x1xi32> to vector<8x64xi32>
    %219 = arith.cmpi eq, %218, %0 : vector<8x64xi32>
    %220 = arith.extui %219 : vector<8x64xi1> to vector<8x64xi32>
    %221 = arith.sitofp %220 : vector<8x64xi32> to vector<8x64xf32>
    %222 = arith.truncf %221 : vector<8x64xf32> to vector<8x64xbf16>
    %cst_151 = arith.constant dense<0.000000e+00> : vector<8x32xf32>
    %223 = tpu.matmul %222, %32, %cst_151 {dimension_numbers = #tpu.dot_dimension_numbers<[1], [0], [0], [1], [0, 0, 1, 1], [], []>} : vector<8x64xbf16>, vector<64x32xbf16>, vector<8x32xf32> -> vector<8x32xf32>
    %c0_152 = arith.constant 0 : index
    %c0_153 = arith.constant 0 : index
    %c0_154 = arith.constant 0 : index
    %224 = vector.load %arg5[%c0_152, %c0_153, %c0_154] : memref<3x32x32xbf16, #tpu.memory_space<vmem>>, vector<1x32x32xbf16>
    %225 = vector.shape_cast %224 : vector<1x32x32xbf16> to vector<32x32xbf16>
    %cst_155 = arith.constant dense<0.000000e+00> : vector<8x32xf32>
    %226 = tpu.matmul %196, %225, %cst_155 {dimension_numbers = #tpu.dot_dimension_numbers<[1], [0], [0], [1], [0, 0, 1, 1], [], []>} : vector<8x32xbf16>, vector<32x32xbf16>, vector<8x32xf32> -> vector<8x32xf32>
    %227 = arith.addf %223, %226 : vector<8x32xf32>
    %228 = arith.addf %227, %4 : vector<8x32xf32>
    %229 = math.tanh %228 : vector<8x32xf32>
    %230 = arith.truncf %229 : vector<8x32xf32> to vector<8x32xbf16>
    %c1_156 = arith.constant 1 : index
    %c0_157 = arith.constant 0 : index
    %c0_158 = arith.constant 0 : index
    %231 = vector.load %arg4[%c1_156, %c0_157, %c0_158] : memref<3x32x32xbf16, #tpu.memory_space<vmem>>, vector<1x32x32xbf16>
    %232 = vector.shape_cast %231 : vector<1x32x32xbf16> to vector<32x32xbf16>
    %cst_159 = arith.constant dense<0.000000e+00> : vector<8x32xf32>
    %233 = tpu.matmul %230, %232, %cst_159 {dimension_numbers = #tpu.dot_dimension_numbers<[1], [0], [0], [1], [0, 0, 1, 1], [], []>} : vector<8x32xbf16>, vector<32x32xbf16>, vector<8x32xf32> -> vector<8x32xf32>
    %c1_160 = arith.constant 1 : index
    %c0_161 = arith.constant 0 : index
    %c0_162 = arith.constant 0 : index
    %234 = vector.load %arg5[%c1_160, %c0_161, %c0_162] : memref<3x32x32xbf16, #tpu.memory_space<vmem>>, vector<1x32x32xbf16>
    %235 = vector.shape_cast %234 : vector<1x32x32xbf16> to vector<32x32xbf16>
    %cst_163 = arith.constant dense<0.000000e+00> : vector<8x32xf32>
    %236 = tpu.matmul %206, %235, %cst_163 {dimension_numbers = #tpu.dot_dimension_numbers<[1], [0], [0], [1], [0, 0, 1, 1], [], []>} : vector<8x32xbf16>, vector<32x32xbf16>, vector<8x32xf32> -> vector<8x32xf32>
    %237 = arith.addf %233, %236 : vector<8x32xf32>
    %238 = arith.addf %237, %8 : vector<8x32xf32>
    %239 = math.tanh %238 : vector<8x32xf32>
    %240 = arith.truncf %239 : vector<8x32xf32> to vector<8x32xbf16>
    %c2_164 = arith.constant 2 : index
    %c0_165 = arith.constant 0 : index
    %c0_166 = arith.constant 0 : index
    %241 = vector.load %arg4[%c2_164, %c0_165, %c0_166] : memref<3x32x32xbf16, #tpu.memory_space<vmem>>, vector<1x32x32xbf16>
    %242 = vector.shape_cast %241 : vector<1x32x32xbf16> to vector<32x32xbf16>
    %cst_167 = arith.constant dense<0.000000e+00> : vector<8x32xf32>
    %243 = tpu.matmul %240, %242, %cst_167 {dimension_numbers = #tpu.dot_dimension_numbers<[1], [0], [0], [1], [0, 0, 1, 1], [], []>} : vector<8x32xbf16>, vector<32x32xbf16>, vector<8x32xf32> -> vector<8x32xf32>
    %c2_168 = arith.constant 2 : index
    %c0_169 = arith.constant 0 : index
    %c0_170 = arith.constant 0 : index
    %244 = vector.load %arg5[%c2_168, %c0_169, %c0_170] : memref<3x32x32xbf16, #tpu.memory_space<vmem>>, vector<1x32x32xbf16>
    %245 = vector.shape_cast %244 : vector<1x32x32xbf16> to vector<32x32xbf16>
    %cst_171 = arith.constant dense<0.000000e+00> : vector<8x32xf32>
    %246 = tpu.matmul %216, %245, %cst_171 {dimension_numbers = #tpu.dot_dimension_numbers<[1], [0], [0], [1], [0, 0, 1, 1], [], []>} : vector<8x32xbf16>, vector<32x32xbf16>, vector<8x32xf32> -> vector<8x32xf32>
    %247 = arith.addf %243, %246 : vector<8x32xf32>
    %248 = arith.addf %247, %12 : vector<8x32xf32>
    %249 = math.tanh %248 : vector<8x32xf32>
    %250 = arith.truncf %249 : vector<8x32xf32> to vector<8x32xbf16>
    %c0_172 = arith.constant 0 : index
    %c6 = arith.constant 6 : index
    %251 = vector.load %arg1[%c0_172, %c6] : memref<8x8xi32, #tpu.memory_space<vmem>>, vector<8x1xi32>
    %252 = vector.broadcast %251 : vector<8x1xi32> to vector<8x64xi32>
    %253 = arith.cmpi eq, %252, %0 : vector<8x64xi32>
    %254 = arith.extui %253 : vector<8x64xi1> to vector<8x64xi32>
    %255 = arith.sitofp %254 : vector<8x64xi32> to vector<8x64xf32>
    %256 = arith.truncf %255 : vector<8x64xf32> to vector<8x64xbf16>
    %cst_173 = arith.constant dense<0.000000e+00> : vector<8x32xf32>
    %257 = tpu.matmul %256, %32, %cst_173 {dimension_numbers = #tpu.dot_dimension_numbers<[1], [0], [0], [1], [0, 0, 1, 1], [], []>} : vector<8x64xbf16>, vector<64x32xbf16>, vector<8x32xf32> -> vector<8x32xf32>
    %c0_174 = arith.constant 0 : index
    %c0_175 = arith.constant 0 : index
    %c0_176 = arith.constant 0 : index
    %258 = vector.load %arg5[%c0_174, %c0_175, %c0_176] : memref<3x32x32xbf16, #tpu.memory_space<vmem>>, vector<1x32x32xbf16>
    %259 = vector.shape_cast %258 : vector<1x32x32xbf16> to vector<32x32xbf16>
    %cst_177 = arith.constant dense<0.000000e+00> : vector<8x32xf32>
    %260 = tpu.matmul %230, %259, %cst_177 {dimension_numbers = #tpu.dot_dimension_numbers<[1], [0], [0], [1], [0, 0, 1, 1], [], []>} : vector<8x32xbf16>, vector<32x32xbf16>, vector<8x32xf32> -> vector<8x32xf32>
    %261 = arith.addf %257, %260 : vector<8x32xf32>
    %262 = arith.addf %261, %4 : vector<8x32xf32>
    %263 = math.tanh %262 : vector<8x32xf32>
    %264 = arith.truncf %263 : vector<8x32xf32> to vector<8x32xbf16>
    %c1_178 = arith.constant 1 : index
    %c0_179 = arith.constant 0 : index
    %c0_180 = arith.constant 0 : index
    %265 = vector.load %arg4[%c1_178, %c0_179, %c0_180] : memref<3x32x32xbf16, #tpu.memory_space<vmem>>, vector<1x32x32xbf16>
    %266 = vector.shape_cast %265 : vector<1x32x32xbf16> to vector<32x32xbf16>
    %cst_181 = arith.constant dense<0.000000e+00> : vector<8x32xf32>
    %267 = tpu.matmul %264, %266, %cst_181 {dimension_numbers = #tpu.dot_dimension_numbers<[1], [0], [0], [1], [0, 0, 1, 1], [], []>} : vector<8x32xbf16>, vector<32x32xbf16>, vector<8x32xf32> -> vector<8x32xf32>
    %c1_182 = arith.constant 1 : index
    %c0_183 = arith.constant 0 : index
    %c0_184 = arith.constant 0 : index
    %268 = vector.load %arg5[%c1_182, %c0_183, %c0_184] : memref<3x32x32xbf16, #tpu.memory_space<vmem>>, vector<1x32x32xbf16>
    %269 = vector.shape_cast %268 : vector<1x32x32xbf16> to vector<32x32xbf16>
    %cst_185 = arith.constant dense<0.000000e+00> : vector<8x32xf32>
    %270 = tpu.matmul %240, %269, %cst_185 {dimension_numbers = #tpu.dot_dimension_numbers<[1], [0], [0], [1], [0, 0, 1, 1], [], []>} : vector<8x32xbf16>, vector<32x32xbf16>, vector<8x32xf32> -> vector<8x32xf32>
    %271 = arith.addf %267, %270 : vector<8x32xf32>
    %272 = arith.addf %271, %8 : vector<8x32xf32>
    %273 = math.tanh %272 : vector<8x32xf32>
    %274 = arith.truncf %273 : vector<8x32xf32> to vector<8x32xbf16>
    %c2_186 = arith.constant 2 : index
    %c0_187 = arith.constant 0 : index
    %c0_188 = arith.constant 0 : index
    %275 = vector.load %arg4[%c2_186, %c0_187, %c0_188] : memref<3x32x32xbf16, #tpu.memory_space<vmem>>, vector<1x32x32xbf16>
    %276 = vector.shape_cast %275 : vector<1x32x32xbf16> to vector<32x32xbf16>
    %cst_189 = arith.constant dense<0.000000e+00> : vector<8x32xf32>
    %277 = tpu.matmul %274, %276, %cst_189 {dimension_numbers = #tpu.dot_dimension_numbers<[1], [0], [0], [1], [0, 0, 1, 1], [], []>} : vector<8x32xbf16>, vector<32x32xbf16>, vector<8x32xf32> -> vector<8x32xf32>
    %c2_190 = arith.constant 2 : index
    %c0_191 = arith.constant 0 : index
    %c0_192 = arith.constant 0 : index
    %278 = vector.load %arg5[%c2_190, %c0_191, %c0_192] : memref<3x32x32xbf16, #tpu.memory_space<vmem>>, vector<1x32x32xbf16>
    %279 = vector.shape_cast %278 : vector<1x32x32xbf16> to vector<32x32xbf16>
    %cst_193 = arith.constant dense<0.000000e+00> : vector<8x32xf32>
    %280 = tpu.matmul %250, %279, %cst_193 {dimension_numbers = #tpu.dot_dimension_numbers<[1], [0], [0], [1], [0, 0, 1, 1], [], []>} : vector<8x32xbf16>, vector<32x32xbf16>, vector<8x32xf32> -> vector<8x32xf32>
    %281 = arith.addf %277, %280 : vector<8x32xf32>
    %282 = arith.addf %281, %12 : vector<8x32xf32>
    %283 = math.tanh %282 : vector<8x32xf32>
    %284 = arith.truncf %283 : vector<8x32xf32> to vector<8x32xbf16>
    %c0_194 = arith.constant 0 : index
    %c7 = arith.constant 7 : index
    %285 = vector.load %arg1[%c0_194, %c7] : memref<8x8xi32, #tpu.memory_space<vmem>>, vector<8x1xi32>
    %286 = vector.broadcast %285 : vector<8x1xi32> to vector<8x64xi32>
    %287 = arith.cmpi eq, %286, %0 : vector<8x64xi32>
    %288 = arith.extui %287 : vector<8x64xi1> to vector<8x64xi32>
    %289 = arith.sitofp %288 : vector<8x64xi32> to vector<8x64xf32>
    %290 = arith.truncf %289 : vector<8x64xf32> to vector<8x64xbf16>
    %cst_195 = arith.constant dense<0.000000e+00> : vector<8x32xf32>
    %291 = tpu.matmul %290, %32, %cst_195 {dimension_numbers = #tpu.dot_dimension_numbers<[1], [0], [0], [1], [0, 0, 1, 1], [], []>} : vector<8x64xbf16>, vector<64x32xbf16>, vector<8x32xf32> -> vector<8x32xf32>
    %c0_196 = arith.constant 0 : index
    %c0_197 = arith.constant 0 : index
    %c0_198 = arith.constant 0 : index
    %292 = vector.load %arg5[%c0_196, %c0_197, %c0_198] : memref<3x32x32xbf16, #tpu.memory_space<vmem>>, vector<1x32x32xbf16>
    %293 = vector.shape_cast %292 : vector<1x32x32xbf16> to vector<32x32xbf16>
    %cst_199 = arith.constant dense<0.000000e+00> : vector<8x32xf32>
    %294 = tpu.matmul %264, %293, %cst_199 {dimension_numbers = #tpu.dot_dimension_numbers<[1], [0], [0], [1], [0, 0, 1, 1], [], []>} : vector<8x32xbf16>, vector<32x32xbf16>, vector<8x32xf32> -> vector<8x32xf32>
    %295 = arith.addf %291, %294 : vector<8x32xf32>
    %296 = arith.addf %295, %4 : vector<8x32xf32>
    %297 = math.tanh %296 : vector<8x32xf32>
    %298 = arith.truncf %297 : vector<8x32xf32> to vector<8x32xbf16>
    %c1_200 = arith.constant 1 : index
    %c0_201 = arith.constant 0 : index
    %c0_202 = arith.constant 0 : index
    %299 = vector.load %arg4[%c1_200, %c0_201, %c0_202] : memref<3x32x32xbf16, #tpu.memory_space<vmem>>, vector<1x32x32xbf16>
    %300 = vector.shape_cast %299 : vector<1x32x32xbf16> to vector<32x32xbf16>
    %cst_203 = arith.constant dense<0.000000e+00> : vector<8x32xf32>
    %301 = tpu.matmul %298, %300, %cst_203 {dimension_numbers = #tpu.dot_dimension_numbers<[1], [0], [0], [1], [0, 0, 1, 1], [], []>} : vector<8x32xbf16>, vector<32x32xbf16>, vector<8x32xf32> -> vector<8x32xf32>
    %c1_204 = arith.constant 1 : index
    %c0_205 = arith.constant 0 : index
    %c0_206 = arith.constant 0 : index
    %302 = vector.load %arg5[%c1_204, %c0_205, %c0_206] : memref<3x32x32xbf16, #tpu.memory_space<vmem>>, vector<1x32x32xbf16>
    %303 = vector.shape_cast %302 : vector<1x32x32xbf16> to vector<32x32xbf16>
    %cst_207 = arith.constant dense<0.000000e+00> : vector<8x32xf32>
    %304 = tpu.matmul %274, %303, %cst_207 {dimension_numbers = #tpu.dot_dimension_numbers<[1], [0], [0], [1], [0, 0, 1, 1], [], []>} : vector<8x32xbf16>, vector<32x32xbf16>, vector<8x32xf32> -> vector<8x32xf32>
    %305 = arith.addf %301, %304 : vector<8x32xf32>
    %306 = arith.addf %305, %8 : vector<8x32xf32>
    %307 = math.tanh %306 : vector<8x32xf32>
    %308 = arith.truncf %307 : vector<8x32xf32> to vector<8x32xbf16>
    %c2_208 = arith.constant 2 : index
    %c0_209 = arith.constant 0 : index
    %c0_210 = arith.constant 0 : index
    %309 = vector.load %arg4[%c2_208, %c0_209, %c0_210] : memref<3x32x32xbf16, #tpu.memory_space<vmem>>, vector<1x32x32xbf16>
    %310 = vector.shape_cast %309 : vector<1x32x32xbf16> to vector<32x32xbf16>
    %cst_211 = arith.constant dense<0.000000e+00> : vector<8x32xf32>
    %311 = tpu.matmul %308, %310, %cst_211 {dimension_numbers = #tpu.dot_dimension_numbers<[1], [0], [0], [1], [0, 0, 1, 1], [], []>} : vector<8x32xbf16>, vector<32x32xbf16>, vector<8x32xf32> -> vector<8x32xf32>
    %c2_212 = arith.constant 2 : index
    %c0_213 = arith.constant 0 : index
    %c0_214 = arith.constant 0 : index
    %312 = vector.load %arg5[%c2_212, %c0_213, %c0_214] : memref<3x32x32xbf16, #tpu.memory_space<vmem>>, vector<1x32x32xbf16>
    %313 = vector.shape_cast %312 : vector<1x32x32xbf16> to vector<32x32xbf16>
    %cst_215 = arith.constant dense<0.000000e+00> : vector<8x32xf32>
    %314 = tpu.matmul %284, %313, %cst_215 {dimension_numbers = #tpu.dot_dimension_numbers<[1], [0], [0], [1], [0, 0, 1, 1], [], []>} : vector<8x32xbf16>, vector<32x32xbf16>, vector<8x32xf32> -> vector<8x32xf32>
    %315 = arith.addf %311, %314 : vector<8x32xf32>
    %316 = arith.addf %315, %12 : vector<8x32xf32>
    %317 = math.tanh %316 : vector<8x32xf32>
    %318 = arith.truncf %317 : vector<8x32xf32> to vector<8x32xbf16>
    %c0_i32 = arith.constant 0 : i32
    %319 = vector.broadcast %c0_i32 : i32 to vector<8x64xi32>
    %320 = arith.cmpi eq, %0, %319 : vector<8x64xi32>
    %321 = arith.extui %320 : vector<8x64xi1> to vector<8x64xi32>
    %322 = arith.sitofp %321 : vector<8x64xi32> to vector<8x64xf32>
    %323 = arith.truncf %322 : vector<8x64xf32> to vector<8x64xbf16>
    %cst_216 = arith.constant dense<0.000000e+00> : vector<8x32xf32>
    %324 = tpu.matmul %323, %37, %cst_216 {dimension_numbers = #tpu.dot_dimension_numbers<[1], [0], [0], [1], [0, 0, 1, 1], [], []>} : vector<8x64xbf16>, vector<64x32xbf16>, vector<8x32xf32> -> vector<8x32xf32>
    %c0_217 = arith.constant 0 : index
    %c0_218 = arith.constant 0 : index
    %c0_219 = arith.constant 0 : index
    %325 = vector.load %arg9[%c0_217, %c0_218, %c0_219] : memref<3x32x32xbf16, #tpu.memory_space<vmem>>, vector<1x32x32xbf16>
    %326 = vector.shape_cast %325 : vector<1x32x32xbf16> to vector<32x32xbf16>
    %cst_220 = arith.constant dense<0.000000e+00> : vector<8x32xf32>
    %327 = tpu.matmul %298, %326, %cst_220 {dimension_numbers = #tpu.dot_dimension_numbers<[1], [0], [0], [1], [0, 0, 1, 1], [], []>} : vector<8x32xbf16>, vector<32x32xbf16>, vector<8x32xf32> -> vector<8x32xf32>
    %328 = arith.addf %324, %327 : vector<8x32xf32>
    %329 = arith.addf %328, %16 : vector<8x32xf32>
    %330 = math.tanh %329 : vector<8x32xf32>
    %331 = arith.truncf %330 : vector<8x32xf32> to vector<8x32xbf16>
    %c1_221 = arith.constant 1 : index
    %c0_222 = arith.constant 0 : index
    %c0_223 = arith.constant 0 : index
    %332 = vector.load %arg8[%c1_221, %c0_222, %c0_223] : memref<3x32x32xbf16, #tpu.memory_space<vmem>>, vector<1x32x32xbf16>
    %333 = vector.shape_cast %332 : vector<1x32x32xbf16> to vector<32x32xbf16>
    %cst_224 = arith.constant dense<0.000000e+00> : vector<8x32xf32>
    %334 = tpu.matmul %331, %333, %cst_224 {dimension_numbers = #tpu.dot_dimension_numbers<[1], [0], [0], [1], [0, 0, 1, 1], [], []>} : vector<8x32xbf16>, vector<32x32xbf16>, vector<8x32xf32> -> vector<8x32xf32>
    %c1_225 = arith.constant 1 : index
    %c0_226 = arith.constant 0 : index
    %c0_227 = arith.constant 0 : index
    %335 = vector.load %arg9[%c1_225, %c0_226, %c0_227] : memref<3x32x32xbf16, #tpu.memory_space<vmem>>, vector<1x32x32xbf16>
    %336 = vector.shape_cast %335 : vector<1x32x32xbf16> to vector<32x32xbf16>
    %cst_228 = arith.constant dense<0.000000e+00> : vector<8x32xf32>
    %337 = tpu.matmul %308, %336, %cst_228 {dimension_numbers = #tpu.dot_dimension_numbers<[1], [0], [0], [1], [0, 0, 1, 1], [], []>} : vector<8x32xbf16>, vector<32x32xbf16>, vector<8x32xf32> -> vector<8x32xf32>
    %338 = arith.addf %334, %337 : vector<8x32xf32>
    %339 = arith.addf %338, %20 : vector<8x32xf32>
    %340 = math.tanh %339 : vector<8x32xf32>
    %341 = arith.truncf %340 : vector<8x32xf32> to vector<8x32xbf16>
    %c2_229 = arith.constant 2 : index
    %c0_230 = arith.constant 0 : index
    %c0_231 = arith.constant 0 : index
    %342 = vector.load %arg8[%c2_229, %c0_230, %c0_231] : memref<3x32x32xbf16, #tpu.memory_space<vmem>>, vector<1x32x32xbf16>
    %343 = vector.shape_cast %342 : vector<1x32x32xbf16> to vector<32x32xbf16>
    %cst_232 = arith.constant dense<0.000000e+00> : vector<8x32xf32>
    %344 = tpu.matmul %341, %343, %cst_232 {dimension_numbers = #tpu.dot_dimension_numbers<[1], [0], [0], [1], [0, 0, 1, 1], [], []>} : vector<8x32xbf16>, vector<32x32xbf16>, vector<8x32xf32> -> vector<8x32xf32>
    %c2_233 = arith.constant 2 : index
    %c0_234 = arith.constant 0 : index
    %c0_235 = arith.constant 0 : index
    %345 = vector.load %arg9[%c2_233, %c0_234, %c0_235] : memref<3x32x32xbf16, #tpu.memory_space<vmem>>, vector<1x32x32xbf16>
    %346 = vector.shape_cast %345 : vector<1x32x32xbf16> to vector<32x32xbf16>
    %cst_236 = arith.constant dense<0.000000e+00> : vector<8x32xf32>
    %347 = tpu.matmul %318, %346, %cst_236 {dimension_numbers = #tpu.dot_dimension_numbers<[1], [0], [0], [1], [0, 0, 1, 1], [], []>} : vector<8x32xbf16>, vector<32x32xbf16>, vector<8x32xf32> -> vector<8x32xf32>
    %348 = arith.addf %344, %347 : vector<8x32xf32>
    %349 = arith.addf %348, %24 : vector<8x32xf32>
    %350 = math.tanh %349 : vector<8x32xf32>
    %351 = arith.truncf %350 : vector<8x32xf32> to vector<8x32xbf16>
    %c0_237 = arith.constant 0 : index
    %c0_238 = arith.constant 0 : index
    %352 = vector.load %arg11[%c0_237, %c0_238] : memref<32x64xbf16, #tpu.memory_space<vmem>>, vector<32x64xbf16>
    %cst_239 = arith.constant dense<0.000000e+00> : vector<8x64xf32>
    %353 = tpu.matmul %351, %352, %cst_239 {dimension_numbers = #tpu.dot_dimension_numbers<[1], [0], [0], [1], [0, 0, 1, 1], [], []>} : vector<8x32xbf16>, vector<32x64xbf16>, vector<8x64xf32> -> vector<8x64xf32>
    %354 = arith.addf %353, %27 : vector<8x64xf32>
    %cst_240 = arith.constant dense<0xFF800000> : vector<8xf32>
    %355 = vector.multi_reduction <maximumf>, %354, %cst_240 [1] : vector<8x64xf32> to vector<8xf32>
    %356 = vector.shape_cast %355 : vector<8xf32> to vector<8x1xf32>
    %357 = vector.broadcast %356 : vector<8x1xf32> to vector<8x64xf32>
    %358 = arith.cmpf oeq, %354, %357 : vector<8x64xf32>
    %359 = arith.extui %358 : vector<8x64xi1> to vector<8x64xi32>
    %360 = arith.sitofp %359 : vector<8x64xi32> to vector<8x64xf32>
    %361 = arith.truncf %360 : vector<8x64xf32> to vector<8x64xbf16>
    %c64_i32 = arith.constant 64 : i32
    %362 = vector.broadcast %c64_i32 : i32 to vector<8x64xi32>
    %363 = arith.select %358, %0, %362 : vector<8x64xi1>, vector<8x64xi32>
    %cst_241 = arith.constant dense<2147483647> : vector<8xi32>
    %364 = vector.multi_reduction <minsi>, %363, %cst_241 [1] : vector<8x64xi32> to vector<8xi32>
    %365 = vector.shape_cast %364 : vector<8xi32> to vector<8x1xi32>
    %cst_242 = arith.constant dense<0.000000e+00> : vector<8x32xf32>
    %366 = tpu.matmul %361, %37, %cst_242 {dimension_numbers = #tpu.dot_dimension_numbers<[1], [0], [0], [1], [0, 0, 1, 1], [], []>} : vector<8x64xbf16>, vector<64x32xbf16>, vector<8x32xf32> -> vector<8x32xf32>
    %c0_243 = arith.constant 0 : index
    %c0_244 = arith.constant 0 : index
    %c0_245 = arith.constant 0 : index
    %367 = vector.load %arg9[%c0_243, %c0_244, %c0_245] : memref<3x32x32xbf16, #tpu.memory_space<vmem>>, vector<1x32x32xbf16>
    %368 = vector.shape_cast %367 : vector<1x32x32xbf16> to vector<32x32xbf16>
    %cst_246 = arith.constant dense<0.000000e+00> : vector<8x32xf32>
    %369 = tpu.matmul %331, %368, %cst_246 {dimension_numbers = #tpu.dot_dimension_numbers<[1], [0], [0], [1], [0, 0, 1, 1], [], []>} : vector<8x32xbf16>, vector<32x32xbf16>, vector<8x32xf32> -> vector<8x32xf32>
    %370 = arith.addf %366, %369 : vector<8x32xf32>
    %371 = arith.addf %370, %16 : vector<8x32xf32>
    %372 = math.tanh %371 : vector<8x32xf32>
    %373 = arith.truncf %372 : vector<8x32xf32> to vector<8x32xbf16>
    %c1_247 = arith.constant 1 : index
    %c0_248 = arith.constant 0 : index
    %c0_249 = arith.constant 0 : index
    %374 = vector.load %arg8[%c1_247, %c0_248, %c0_249] : memref<3x32x32xbf16, #tpu.memory_space<vmem>>, vector<1x32x32xbf16>
    %375 = vector.shape_cast %374 : vector<1x32x32xbf16> to vector<32x32xbf16>
    %cst_250 = arith.constant dense<0.000000e+00> : vector<8x32xf32>
    %376 = tpu.matmul %373, %375, %cst_250 {dimension_numbers = #tpu.dot_dimension_numbers<[1], [0], [0], [1], [0, 0, 1, 1], [], []>} : vector<8x32xbf16>, vector<32x32xbf16>, vector<8x32xf32> -> vector<8x32xf32>
    %c1_251 = arith.constant 1 : index
    %c0_252 = arith.constant 0 : index
    %c0_253 = arith.constant 0 : index
    %377 = vector.load %arg9[%c1_251, %c0_252, %c0_253] : memref<3x32x32xbf16, #tpu.memory_space<vmem>>, vector<1x32x32xbf16>
    %378 = vector.shape_cast %377 : vector<1x32x32xbf16> to vector<32x32xbf16>
    %cst_254 = arith.constant dense<0.000000e+00> : vector<8x32xf32>
    %379 = tpu.matmul %341, %378, %cst_254 {dimension_numbers = #tpu.dot_dimension_numbers<[1], [0], [0], [1], [0, 0, 1, 1], [], []>} : vector<8x32xbf16>, vector<32x32xbf16>, vector<8x32xf32> -> vector<8x32xf32>
    %380 = arith.addf %376, %379 : vector<8x32xf32>
    %381 = arith.addf %380, %20 : vector<8x32xf32>
    %382 = math.tanh %381 : vector<8x32xf32>
    %383 = arith.truncf %382 : vector<8x32xf32> to vector<8x32xbf16>
    %c2_255 = arith.constant 2 : index
    %c0_256 = arith.constant 0 : index
    %c0_257 = arith.constant 0 : index
    %384 = vector.load %arg8[%c2_255, %c0_256, %c0_257] : memref<3x32x32xbf16, #tpu.memory_space<vmem>>, vector<1x32x32xbf16>
    %385 = vector.shape_cast %384 : vector<1x32x32xbf16> to vector<32x32xbf16>
    %cst_258 = arith.constant dense<0.000000e+00> : vector<8x32xf32>
    %386 = tpu.matmul %383, %385, %cst_258 {dimension_numbers = #tpu.dot_dimension_numbers<[1], [0], [0], [1], [0, 0, 1, 1], [], []>} : vector<8x32xbf16>, vector<32x32xbf16>, vector<8x32xf32> -> vector<8x32xf32>
    %c2_259 = arith.constant 2 : index
    %c0_260 = arith.constant 0 : index
    %c0_261 = arith.constant 0 : index
    %387 = vector.load %arg9[%c2_259, %c0_260, %c0_261] : memref<3x32x32xbf16, #tpu.memory_space<vmem>>, vector<1x32x32xbf16>
    %388 = vector.shape_cast %387 : vector<1x32x32xbf16> to vector<32x32xbf16>
    %cst_262 = arith.constant dense<0.000000e+00> : vector<8x32xf32>
    %389 = tpu.matmul %351, %388, %cst_262 {dimension_numbers = #tpu.dot_dimension_numbers<[1], [0], [0], [1], [0, 0, 1, 1], [], []>} : vector<8x32xbf16>, vector<32x32xbf16>, vector<8x32xf32> -> vector<8x32xf32>
    %390 = arith.addf %386, %389 : vector<8x32xf32>
    %391 = arith.addf %390, %24 : vector<8x32xf32>
    %392 = math.tanh %391 : vector<8x32xf32>
    %393 = arith.truncf %392 : vector<8x32xf32> to vector<8x32xbf16>
    %c0_263 = arith.constant 0 : index
    %c0_264 = arith.constant 0 : index
    %394 = vector.load %arg11[%c0_263, %c0_264] : memref<32x64xbf16, #tpu.memory_space<vmem>>, vector<32x64xbf16>
    %cst_265 = arith.constant dense<0.000000e+00> : vector<8x64xf32>
    %395 = tpu.matmul %393, %394, %cst_265 {dimension_numbers = #tpu.dot_dimension_numbers<[1], [0], [0], [1], [0, 0, 1, 1], [], []>} : vector<8x32xbf16>, vector<32x64xbf16>, vector<8x64xf32> -> vector<8x64xf32>
    %396 = arith.addf %395, %27 : vector<8x64xf32>
    %cst_266 = arith.constant dense<0xFF800000> : vector<8xf32>
    %397 = vector.multi_reduction <maximumf>, %396, %cst_266 [1] : vector<8x64xf32> to vector<8xf32>
    %398 = vector.shape_cast %397 : vector<8xf32> to vector<8x1xf32>
    %399 = vector.broadcast %398 : vector<8x1xf32> to vector<8x64xf32>
    %400 = arith.cmpf oeq, %396, %399 : vector<8x64xf32>
    %401 = arith.extui %400 : vector<8x64xi1> to vector<8x64xi32>
    %402 = arith.sitofp %401 : vector<8x64xi32> to vector<8x64xf32>
    %403 = arith.truncf %402 : vector<8x64xf32> to vector<8x64xbf16>
    %c64_i32_267 = arith.constant 64 : i32
    %404 = vector.broadcast %c64_i32_267 : i32 to vector<8x64xi32>
    %405 = arith.select %400, %0, %404 : vector<8x64xi1>, vector<8x64xi32>
    %cst_268 = arith.constant dense<2147483647> : vector<8xi32>
    %406 = vector.multi_reduction <minsi>, %405, %cst_268 [1] : vector<8x64xi32> to vector<8xi32>
    %407 = vector.shape_cast %406 : vector<8xi32> to vector<8x1xi32>
    %cst_269 = arith.constant dense<0.000000e+00> : vector<8x32xf32>
    %408 = tpu.matmul %403, %37, %cst_269 {dimension_numbers = #tpu.dot_dimension_numbers<[1], [0], [0], [1], [0, 0, 1, 1], [], []>} : vector<8x64xbf16>, vector<64x32xbf16>, vector<8x32xf32> -> vector<8x32xf32>
    %c0_270 = arith.constant 0 : index
    %c0_271 = arith.constant 0 : index
    %c0_272 = arith.constant 0 : index
    %409 = vector.load %arg9[%c0_270, %c0_271, %c0_272] : memref<3x32x32xbf16, #tpu.memory_space<vmem>>, vector<1x32x32xbf16>
    %410 = vector.shape_cast %409 : vector<1x32x32xbf16> to vector<32x32xbf16>
    %cst_273 = arith.constant dense<0.000000e+00> : vector<8x32xf32>
    %411 = tpu.matmul %373, %410, %cst_273 {dimension_numbers = #tpu.dot_dimension_numbers<[1], [0], [0], [1], [0, 0, 1, 1], [], []>} : vector<8x32xbf16>, vector<32x32xbf16>, vector<8x32xf32> -> vector<8x32xf32>
    %412 = arith.addf %408, %411 : vector<8x32xf32>
    %413 = arith.addf %412, %16 : vector<8x32xf32>
    %414 = math.tanh %413 : vector<8x32xf32>
    %415 = arith.truncf %414 : vector<8x32xf32> to vector<8x32xbf16>
    %c1_274 = arith.constant 1 : index
    %c0_275 = arith.constant 0 : index
    %c0_276 = arith.constant 0 : index
    %416 = vector.load %arg8[%c1_274, %c0_275, %c0_276] : memref<3x32x32xbf16, #tpu.memory_space<vmem>>, vector<1x32x32xbf16>
    %417 = vector.shape_cast %416 : vector<1x32x32xbf16> to vector<32x32xbf16>
    %cst_277 = arith.constant dense<0.000000e+00> : vector<8x32xf32>
    %418 = tpu.matmul %415, %417, %cst_277 {dimension_numbers = #tpu.dot_dimension_numbers<[1], [0], [0], [1], [0, 0, 1, 1], [], []>} : vector<8x32xbf16>, vector<32x32xbf16>, vector<8x32xf32> -> vector<8x32xf32>
    %c1_278 = arith.constant 1 : index
    %c0_279 = arith.constant 0 : index
    %c0_280 = arith.constant 0 : index
    %419 = vector.load %arg9[%c1_278, %c0_279, %c0_280] : memref<3x32x32xbf16, #tpu.memory_space<vmem>>, vector<1x32x32xbf16>
    %420 = vector.shape_cast %419 : vector<1x32x32xbf16> to vector<32x32xbf16>
    %cst_281 = arith.constant dense<0.000000e+00> : vector<8x32xf32>
    %421 = tpu.matmul %383, %420, %cst_281 {dimension_numbers = #tpu.dot_dimension_numbers<[1], [0], [0], [1], [0, 0, 1, 1], [], []>} : vector<8x32xbf16>, vector<32x32xbf16>, vector<8x32xf32> -> vector<8x32xf32>
    %422 = arith.addf %418, %421 : vector<8x32xf32>
    %423 = arith.addf %422, %20 : vector<8x32xf32>
    %424 = math.tanh %423 : vector<8x32xf32>
    %425 = arith.truncf %424 : vector<8x32xf32> to vector<8x32xbf16>
    %c2_282 = arith.constant 2 : index
    %c0_283 = arith.constant 0 : index
    %c0_284 = arith.constant 0 : index
    %426 = vector.load %arg8[%c2_282, %c0_283, %c0_284] : memref<3x32x32xbf16, #tpu.memory_space<vmem>>, vector<1x32x32xbf16>
    %427 = vector.shape_cast %426 : vector<1x32x32xbf16> to vector<32x32xbf16>
    %cst_285 = arith.constant dense<0.000000e+00> : vector<8x32xf32>
    %428 = tpu.matmul %425, %427, %cst_285 {dimension_numbers = #tpu.dot_dimension_numbers<[1], [0], [0], [1], [0, 0, 1, 1], [], []>} : vector<8x32xbf16>, vector<32x32xbf16>, vector<8x32xf32> -> vector<8x32xf32>
    %c2_286 = arith.constant 2 : index
    %c0_287 = arith.constant 0 : index
    %c0_288 = arith.constant 0 : index
    %429 = vector.load %arg9[%c2_286, %c0_287, %c0_288] : memref<3x32x32xbf16, #tpu.memory_space<vmem>>, vector<1x32x32xbf16>
    %430 = vector.shape_cast %429 : vector<1x32x32xbf16> to vector<32x32xbf16>
    %cst_289 = arith.constant dense<0.000000e+00> : vector<8x32xf32>
    %431 = tpu.matmul %393, %430, %cst_289 {dimension_numbers = #tpu.dot_dimension_numbers<[1], [0], [0], [1], [0, 0, 1, 1], [], []>} : vector<8x32xbf16>, vector<32x32xbf16>, vector<8x32xf32> -> vector<8x32xf32>
    %432 = arith.addf %428, %431 : vector<8x32xf32>
    %433 = arith.addf %432, %24 : vector<8x32xf32>
    %434 = math.tanh %433 : vector<8x32xf32>
    %435 = arith.truncf %434 : vector<8x32xf32> to vector<8x32xbf16>
    %c0_290 = arith.constant 0 : index
    %c0_291 = arith.constant 0 : index
    %436 = vector.load %arg11[%c0_290, %c0_291] : memref<32x64xbf16, #tpu.memory_space<vmem>>, vector<32x64xbf16>
    %cst_292 = arith.constant dense<0.000000e+00> : vector<8x64xf32>
    %437 = tpu.matmul %435, %436, %cst_292 {dimension_numbers = #tpu.dot_dimension_numbers<[1], [0], [0], [1], [0, 0, 1, 1], [], []>} : vector<8x32xbf16>, vector<32x64xbf16>, vector<8x64xf32> -> vector<8x64xf32>
    %438 = arith.addf %437, %27 : vector<8x64xf32>
    %cst_293 = arith.constant dense<0xFF800000> : vector<8xf32>
    %439 = vector.multi_reduction <maximumf>, %438, %cst_293 [1] : vector<8x64xf32> to vector<8xf32>
    %440 = vector.shape_cast %439 : vector<8xf32> to vector<8x1xf32>
    %441 = vector.broadcast %440 : vector<8x1xf32> to vector<8x64xf32>
    %442 = arith.cmpf oeq, %438, %441 : vector<8x64xf32>
    %443 = arith.extui %442 : vector<8x64xi1> to vector<8x64xi32>
    %444 = arith.sitofp %443 : vector<8x64xi32> to vector<8x64xf32>
    %445 = arith.truncf %444 : vector<8x64xf32> to vector<8x64xbf16>
    %c64_i32_294 = arith.constant 64 : i32
    %446 = vector.broadcast %c64_i32_294 : i32 to vector<8x64xi32>
    %447 = arith.select %442, %0, %446 : vector<8x64xi1>, vector<8x64xi32>
    %cst_295 = arith.constant dense<2147483647> : vector<8xi32>
    %448 = vector.multi_reduction <minsi>, %447, %cst_295 [1] : vector<8x64xi32> to vector<8xi32>
    %449 = vector.shape_cast %448 : vector<8xi32> to vector<8x1xi32>
    %cst_296 = arith.constant dense<0.000000e+00> : vector<8x32xf32>
    %450 = tpu.matmul %445, %37, %cst_296 {dimension_numbers = #tpu.dot_dimension_numbers<[1], [0], [0], [1], [0, 0, 1, 1], [], []>} : vector<8x64xbf16>, vector<64x32xbf16>, vector<8x32xf32> -> vector<8x32xf32>
    %c0_297 = arith.constant 0 : index
    %c0_298 = arith.constant 0 : index
    %c0_299 = arith.constant 0 : index
    %451 = vector.load %arg9[%c0_297, %c0_298, %c0_299] : memref<3x32x32xbf16, #tpu.memory_space<vmem>>, vector<1x32x32xbf16>
    %452 = vector.shape_cast %451 : vector<1x32x32xbf16> to vector<32x32xbf16>
    %cst_300 = arith.constant dense<0.000000e+00> : vector<8x32xf32>
    %453 = tpu.matmul %415, %452, %cst_300 {dimension_numbers = #tpu.dot_dimension_numbers<[1], [0], [0], [1], [0, 0, 1, 1], [], []>} : vector<8x32xbf16>, vector<32x32xbf16>, vector<8x32xf32> -> vector<8x32xf32>
    %454 = arith.addf %450, %453 : vector<8x32xf32>
    %455 = arith.addf %454, %16 : vector<8x32xf32>
    %456 = math.tanh %455 : vector<8x32xf32>
    %457 = arith.truncf %456 : vector<8x32xf32> to vector<8x32xbf16>
    %c1_301 = arith.constant 1 : index
    %c0_302 = arith.constant 0 : index
    %c0_303 = arith.constant 0 : index
    %458 = vector.load %arg8[%c1_301, %c0_302, %c0_303] : memref<3x32x32xbf16, #tpu.memory_space<vmem>>, vector<1x32x32xbf16>
    %459 = vector.shape_cast %458 : vector<1x32x32xbf16> to vector<32x32xbf16>
    %cst_304 = arith.constant dense<0.000000e+00> : vector<8x32xf32>
    %460 = tpu.matmul %457, %459, %cst_304 {dimension_numbers = #tpu.dot_dimension_numbers<[1], [0], [0], [1], [0, 0, 1, 1], [], []>} : vector<8x32xbf16>, vector<32x32xbf16>, vector<8x32xf32> -> vector<8x32xf32>
    %c1_305 = arith.constant 1 : index
    %c0_306 = arith.constant 0 : index
    %c0_307 = arith.constant 0 : index
    %461 = vector.load %arg9[%c1_305, %c0_306, %c0_307] : memref<3x32x32xbf16, #tpu.memory_space<vmem>>, vector<1x32x32xbf16>
    %462 = vector.shape_cast %461 : vector<1x32x32xbf16> to vector<32x32xbf16>
    %cst_308 = arith.constant dense<0.000000e+00> : vector<8x32xf32>
    %463 = tpu.matmul %425, %462, %cst_308 {dimension_numbers = #tpu.dot_dimension_numbers<[1], [0], [0], [1], [0, 0, 1, 1], [], []>} : vector<8x32xbf16>, vector<32x32xbf16>, vector<8x32xf32> -> vector<8x32xf32>
    %464 = arith.addf %460, %463 : vector<8x32xf32>
    %465 = arith.addf %464, %20 : vector<8x32xf32>
    %466 = math.tanh %465 : vector<8x32xf32>
    %467 = arith.truncf %466 : vector<8x32xf32> to vector<8x32xbf16>
    %c2_309 = arith.constant 2 : index
    %c0_310 = arith.constant 0 : index
    %c0_311 = arith.constant 0 : index
    %468 = vector.load %arg8[%c2_309, %c0_310, %c0_311] : memref<3x32x32xbf16, #tpu.memory_space<vmem>>, vector<1x32x32xbf16>
    %469 = vector.shape_cast %468 : vector<1x32x32xbf16> to vector<32x32xbf16>
    %cst_312 = arith.constant dense<0.000000e+00> : vector<8x32xf32>
    %470 = tpu.matmul %467, %469, %cst_312 {dimension_numbers = #tpu.dot_dimension_numbers<[1], [0], [0], [1], [0, 0, 1, 1], [], []>} : vector<8x32xbf16>, vector<32x32xbf16>, vector<8x32xf32> -> vector<8x32xf32>
    %c2_313 = arith.constant 2 : index
    %c0_314 = arith.constant 0 : index
    %c0_315 = arith.constant 0 : index
    %471 = vector.load %arg9[%c2_313, %c0_314, %c0_315] : memref<3x32x32xbf16, #tpu.memory_space<vmem>>, vector<1x32x32xbf16>
    %472 = vector.shape_cast %471 : vector<1x32x32xbf16> to vector<32x32xbf16>
    %cst_316 = arith.constant dense<0.000000e+00> : vector<8x32xf32>
    %473 = tpu.matmul %435, %472, %cst_316 {dimension_numbers = #tpu.dot_dimension_numbers<[1], [0], [0], [1], [0, 0, 1, 1], [], []>} : vector<8x32xbf16>, vector<32x32xbf16>, vector<8x32xf32> -> vector<8x32xf32>
    %474 = arith.addf %470, %473 : vector<8x32xf32>
    %475 = arith.addf %474, %24 : vector<8x32xf32>
    %476 = math.tanh %475 : vector<8x32xf32>
    %477 = arith.truncf %476 : vector<8x32xf32> to vector<8x32xbf16>
    %c0_317 = arith.constant 0 : index
    %c0_318 = arith.constant 0 : index
    %478 = vector.load %arg11[%c0_317, %c0_318] : memref<32x64xbf16, #tpu.memory_space<vmem>>, vector<32x64xbf16>
    %cst_319 = arith.constant dense<0.000000e+00> : vector<8x64xf32>
    %479 = tpu.matmul %477, %478, %cst_319 {dimension_numbers = #tpu.dot_dimension_numbers<[1], [0], [0], [1], [0, 0, 1, 1], [], []>} : vector<8x32xbf16>, vector<32x64xbf16>, vector<8x64xf32> -> vector<8x64xf32>
    %480 = arith.addf %479, %27 : vector<8x64xf32>
    %cst_320 = arith.constant dense<0xFF800000> : vector<8xf32>
    %481 = vector.multi_reduction <maximumf>, %480, %cst_320 [1] : vector<8x64xf32> to vector<8xf32>
    %482 = vector.shape_cast %481 : vector<8xf32> to vector<8x1xf32>
    %483 = vector.broadcast %482 : vector<8x1xf32> to vector<8x64xf32>
    %484 = arith.cmpf oeq, %480, %483 : vector<8x64xf32>
    %485 = arith.extui %484 : vector<8x64xi1> to vector<8x64xi32>
    %486 = arith.sitofp %485 : vector<8x64xi32> to vector<8x64xf32>
    %487 = arith.truncf %486 : vector<8x64xf32> to vector<8x64xbf16>
    %c64_i32_321 = arith.constant 64 : i32
    %488 = vector.broadcast %c64_i32_321 : i32 to vector<8x64xi32>
    %489 = arith.select %484, %0, %488 : vector<8x64xi1>, vector<8x64xi32>
    %cst_322 = arith.constant dense<2147483647> : vector<8xi32>
    %490 = vector.multi_reduction <minsi>, %489, %cst_322 [1] : vector<8x64xi32> to vector<8xi32>
    %491 = vector.shape_cast %490 : vector<8xi32> to vector<8x1xi32>
    %cst_323 = arith.constant dense<0.000000e+00> : vector<8x32xf32>
    %492 = tpu.matmul %487, %37, %cst_323 {dimension_numbers = #tpu.dot_dimension_numbers<[1], [0], [0], [1], [0, 0, 1, 1], [], []>} : vector<8x64xbf16>, vector<64x32xbf16>, vector<8x32xf32> -> vector<8x32xf32>
    %c0_324 = arith.constant 0 : index
    %c0_325 = arith.constant 0 : index
    %c0_326 = arith.constant 0 : index
    %493 = vector.load %arg9[%c0_324, %c0_325, %c0_326] : memref<3x32x32xbf16, #tpu.memory_space<vmem>>, vector<1x32x32xbf16>
    %494 = vector.shape_cast %493 : vector<1x32x32xbf16> to vector<32x32xbf16>
    %cst_327 = arith.constant dense<0.000000e+00> : vector<8x32xf32>
    %495 = tpu.matmul %457, %494, %cst_327 {dimension_numbers = #tpu.dot_dimension_numbers<[1], [0], [0], [1], [0, 0, 1, 1], [], []>} : vector<8x32xbf16>, vector<32x32xbf16>, vector<8x32xf32> -> vector<8x32xf32>
    %496 = arith.addf %492, %495 : vector<8x32xf32>
    %497 = arith.addf %496, %16 : vector<8x32xf32>
    %498 = math.tanh %497 : vector<8x32xf32>
    %499 = arith.truncf %498 : vector<8x32xf32> to vector<8x32xbf16>
    %c1_328 = arith.constant 1 : index
    %c0_329 = arith.constant 0 : index
    %c0_330 = arith.constant 0 : index
    %500 = vector.load %arg8[%c1_328, %c0_329, %c0_330] : memref<3x32x32xbf16, #tpu.memory_space<vmem>>, vector<1x32x32xbf16>
    %501 = vector.shape_cast %500 : vector<1x32x32xbf16> to vector<32x32xbf16>
    %cst_331 = arith.constant dense<0.000000e+00> : vector<8x32xf32>
    %502 = tpu.matmul %499, %501, %cst_331 {dimension_numbers = #tpu.dot_dimension_numbers<[1], [0], [0], [1], [0, 0, 1, 1], [], []>} : vector<8x32xbf16>, vector<32x32xbf16>, vector<8x32xf32> -> vector<8x32xf32>
    %c1_332 = arith.constant 1 : index
    %c0_333 = arith.constant 0 : index
    %c0_334 = arith.constant 0 : index
    %503 = vector.load %arg9[%c1_332, %c0_333, %c0_334] : memref<3x32x32xbf16, #tpu.memory_space<vmem>>, vector<1x32x32xbf16>
    %504 = vector.shape_cast %503 : vector<1x32x32xbf16> to vector<32x32xbf16>
    %cst_335 = arith.constant dense<0.000000e+00> : vector<8x32xf32>
    %505 = tpu.matmul %467, %504, %cst_335 {dimension_numbers = #tpu.dot_dimension_numbers<[1], [0], [0], [1], [0, 0, 1, 1], [], []>} : vector<8x32xbf16>, vector<32x32xbf16>, vector<8x32xf32> -> vector<8x32xf32>
    %506 = arith.addf %502, %505 : vector<8x32xf32>
    %507 = arith.addf %506, %20 : vector<8x32xf32>
    %508 = math.tanh %507 : vector<8x32xf32>
    %509 = arith.truncf %508 : vector<8x32xf32> to vector<8x32xbf16>
    %c2_336 = arith.constant 2 : index
    %c0_337 = arith.constant 0 : index
    %c0_338 = arith.constant 0 : index
    %510 = vector.load %arg8[%c2_336, %c0_337, %c0_338] : memref<3x32x32xbf16, #tpu.memory_space<vmem>>, vector<1x32x32xbf16>
    %511 = vector.shape_cast %510 : vector<1x32x32xbf16> to vector<32x32xbf16>
    %cst_339 = arith.constant dense<0.000000e+00> : vector<8x32xf32>
    %512 = tpu.matmul %509, %511, %cst_339 {dimension_numbers = #tpu.dot_dimension_numbers<[1], [0], [0], [1], [0, 0, 1, 1], [], []>} : vector<8x32xbf16>, vector<32x32xbf16>, vector<8x32xf32> -> vector<8x32xf32>
    %c2_340 = arith.constant 2 : index
    %c0_341 = arith.constant 0 : index
    %c0_342 = arith.constant 0 : index
    %513 = vector.load %arg9[%c2_340, %c0_341, %c0_342] : memref<3x32x32xbf16, #tpu.memory_space<vmem>>, vector<1x32x32xbf16>
    %514 = vector.shape_cast %513 : vector<1x32x32xbf16> to vector<32x32xbf16>
    %cst_343 = arith.constant dense<0.000000e+00> : vector<8x32xf32>
    %515 = tpu.matmul %477, %514, %cst_343 {dimension_numbers = #tpu.dot_dimension_numbers<[1], [0], [0], [1], [0, 0, 1, 1], [], []>} : vector<8x32xbf16>, vector<32x32xbf16>, vector<8x32xf32> -> vector<8x32xf32>
    %516 = arith.addf %512, %515 : vector<8x32xf32>
    %517 = arith.addf %516, %24 : vector<8x32xf32>
    %518 = math.tanh %517 : vector<8x32xf32>
    %519 = arith.truncf %518 : vector<8x32xf32> to vector<8x32xbf16>
    %c0_344 = arith.constant 0 : index
    %c0_345 = arith.constant 0 : index
    %520 = vector.load %arg11[%c0_344, %c0_345] : memref<32x64xbf16, #tpu.memory_space<vmem>>, vector<32x64xbf16>
    %cst_346 = arith.constant dense<0.000000e+00> : vector<8x64xf32>
    %521 = tpu.matmul %519, %520, %cst_346 {dimension_numbers = #tpu.dot_dimension_numbers<[1], [0], [0], [1], [0, 0, 1, 1], [], []>} : vector<8x32xbf16>, vector<32x64xbf16>, vector<8x64xf32> -> vector<8x64xf32>
    %522 = arith.addf %521, %27 : vector<8x64xf32>
    %cst_347 = arith.constant dense<0xFF800000> : vector<8xf32>
    %523 = vector.multi_reduction <maximumf>, %522, %cst_347 [1] : vector<8x64xf32> to vector<8xf32>
    %524 = vector.shape_cast %523 : vector<8xf32> to vector<8x1xf32>
    %525 = vector.broadcast %524 : vector<8x1xf32> to vector<8x64xf32>
    %526 = arith.cmpf oeq, %522, %525 : vector<8x64xf32>
    %527 = arith.extui %526 : vector<8x64xi1> to vector<8x64xi32>
    %528 = arith.sitofp %527 : vector<8x64xi32> to vector<8x64xf32>
    %529 = arith.truncf %528 : vector<8x64xf32> to vector<8x64xbf16>
    %c64_i32_348 = arith.constant 64 : i32
    %530 = vector.broadcast %c64_i32_348 : i32 to vector<8x64xi32>
    %531 = arith.select %526, %0, %530 : vector<8x64xi1>, vector<8x64xi32>
    %cst_349 = arith.constant dense<2147483647> : vector<8xi32>
    %532 = vector.multi_reduction <minsi>, %531, %cst_349 [1] : vector<8x64xi32> to vector<8xi32>
    %533 = vector.shape_cast %532 : vector<8xi32> to vector<8x1xi32>
    %cst_350 = arith.constant dense<0.000000e+00> : vector<8x32xf32>
    %534 = tpu.matmul %529, %37, %cst_350 {dimension_numbers = #tpu.dot_dimension_numbers<[1], [0], [0], [1], [0, 0, 1, 1], [], []>} : vector<8x64xbf16>, vector<64x32xbf16>, vector<8x32xf32> -> vector<8x32xf32>
    %c0_351 = arith.constant 0 : index
    %c0_352 = arith.constant 0 : index
    %c0_353 = arith.constant 0 : index
    %535 = vector.load %arg9[%c0_351, %c0_352, %c0_353] : memref<3x32x32xbf16, #tpu.memory_space<vmem>>, vector<1x32x32xbf16>
    %536 = vector.shape_cast %535 : vector<1x32x32xbf16> to vector<32x32xbf16>
    %cst_354 = arith.constant dense<0.000000e+00> : vector<8x32xf32>
    %537 = tpu.matmul %499, %536, %cst_354 {dimension_numbers = #tpu.dot_dimension_numbers<[1], [0], [0], [1], [0, 0, 1, 1], [], []>} : vector<8x32xbf16>, vector<32x32xbf16>, vector<8x32xf32> -> vector<8x32xf32>
    %538 = arith.addf %534, %537 : vector<8x32xf32>
    %539 = arith.addf %538, %16 : vector<8x32xf32>
    %540 = math.tanh %539 : vector<8x32xf32>
    %541 = arith.truncf %540 : vector<8x32xf32> to vector<8x32xbf16>
    %c1_355 = arith.constant 1 : index
    %c0_356 = arith.constant 0 : index
    %c0_357 = arith.constant 0 : index
    %542 = vector.load %arg8[%c1_355, %c0_356, %c0_357] : memref<3x32x32xbf16, #tpu.memory_space<vmem>>, vector<1x32x32xbf16>
    %543 = vector.shape_cast %542 : vector<1x32x32xbf16> to vector<32x32xbf16>
    %cst_358 = arith.constant dense<0.000000e+00> : vector<8x32xf32>
    %544 = tpu.matmul %541, %543, %cst_358 {dimension_numbers = #tpu.dot_dimension_numbers<[1], [0], [0], [1], [0, 0, 1, 1], [], []>} : vector<8x32xbf16>, vector<32x32xbf16>, vector<8x32xf32> -> vector<8x32xf32>
    %c1_359 = arith.constant 1 : index
    %c0_360 = arith.constant 0 : index
    %c0_361 = arith.constant 0 : index
    %545 = vector.load %arg9[%c1_359, %c0_360, %c0_361] : memref<3x32x32xbf16, #tpu.memory_space<vmem>>, vector<1x32x32xbf16>
    %546 = vector.shape_cast %545 : vector<1x32x32xbf16> to vector<32x32xbf16>
    %cst_362 = arith.constant dense<0.000000e+00> : vector<8x32xf32>
    %547 = tpu.matmul %509, %546, %cst_362 {dimension_numbers = #tpu.dot_dimension_numbers<[1], [0], [0], [1], [0, 0, 1, 1], [], []>} : vector<8x32xbf16>, vector<32x32xbf16>, vector<8x32xf32> -> vector<8x32xf32>
    %548 = arith.addf %544, %547 : vector<8x32xf32>
    %549 = arith.addf %548, %20 : vector<8x32xf32>
    %550 = math.tanh %549 : vector<8x32xf32>
    %551 = arith.truncf %550 : vector<8x32xf32> to vector<8x32xbf16>
    %c2_363 = arith.constant 2 : index
    %c0_364 = arith.constant 0 : index
    %c0_365 = arith.constant 0 : index
    %552 = vector.load %arg8[%c2_363, %c0_364, %c0_365] : memref<3x32x32xbf16, #tpu.memory_space<vmem>>, vector<1x32x32xbf16>
    %553 = vector.shape_cast %552 : vector<1x32x32xbf16> to vector<32x32xbf16>
    %cst_366 = arith.constant dense<0.000000e+00> : vector<8x32xf32>
    %554 = tpu.matmul %551, %553, %cst_366 {dimension_numbers = #tpu.dot_dimension_numbers<[1], [0], [0], [1], [0, 0, 1, 1], [], []>} : vector<8x32xbf16>, vector<32x32xbf16>, vector<8x32xf32> -> vector<8x32xf32>
    %c2_367 = arith.constant 2 : index
    %c0_368 = arith.constant 0 : index
    %c0_369 = arith.constant 0 : index
    %555 = vector.load %arg9[%c2_367, %c0_368, %c0_369] : memref<3x32x32xbf16, #tpu.memory_space<vmem>>, vector<1x32x32xbf16>
    %556 = vector.shape_cast %555 : vector<1x32x32xbf16> to vector<32x32xbf16>
    %cst_370 = arith.constant dense<0.000000e+00> : vector<8x32xf32>
    %557 = tpu.matmul %519, %556, %cst_370 {dimension_numbers = #tpu.dot_dimension_numbers<[1], [0], [0], [1], [0, 0, 1, 1], [], []>} : vector<8x32xbf16>, vector<32x32xbf16>, vector<8x32xf32> -> vector<8x32xf32>
    %558 = arith.addf %554, %557 : vector<8x32xf32>
    %559 = arith.addf %558, %24 : vector<8x32xf32>
    %560 = math.tanh %559 : vector<8x32xf32>
    %561 = arith.truncf %560 : vector<8x32xf32> to vector<8x32xbf16>
    %c0_371 = arith.constant 0 : index
    %c0_372 = arith.constant 0 : index
    %562 = vector.load %arg11[%c0_371, %c0_372] : memref<32x64xbf16, #tpu.memory_space<vmem>>, vector<32x64xbf16>
    %cst_373 = arith.constant dense<0.000000e+00> : vector<8x64xf32>
    %563 = tpu.matmul %561, %562, %cst_373 {dimension_numbers = #tpu.dot_dimension_numbers<[1], [0], [0], [1], [0, 0, 1, 1], [], []>} : vector<8x32xbf16>, vector<32x64xbf16>, vector<8x64xf32> -> vector<8x64xf32>
    %564 = arith.addf %563, %27 : vector<8x64xf32>
    %cst_374 = arith.constant dense<0xFF800000> : vector<8xf32>
    %565 = vector.multi_reduction <maximumf>, %564, %cst_374 [1] : vector<8x64xf32> to vector<8xf32>
    %566 = vector.shape_cast %565 : vector<8xf32> to vector<8x1xf32>
    %567 = vector.broadcast %566 : vector<8x1xf32> to vector<8x64xf32>
    %568 = arith.cmpf oeq, %564, %567 : vector<8x64xf32>
    %569 = arith.extui %568 : vector<8x64xi1> to vector<8x64xi32>
    %570 = arith.sitofp %569 : vector<8x64xi32> to vector<8x64xf32>
    %571 = arith.truncf %570 : vector<8x64xf32> to vector<8x64xbf16>
    %c64_i32_375 = arith.constant 64 : i32
    %572 = vector.broadcast %c64_i32_375 : i32 to vector<8x64xi32>
    %573 = arith.select %568, %0, %572 : vector<8x64xi1>, vector<8x64xi32>
    %cst_376 = arith.constant dense<2147483647> : vector<8xi32>
    %574 = vector.multi_reduction <minsi>, %573, %cst_376 [1] : vector<8x64xi32> to vector<8xi32>
    %575 = vector.shape_cast %574 : vector<8xi32> to vector<8x1xi32>
    %cst_377 = arith.constant dense<0.000000e+00> : vector<8x32xf32>
    %576 = tpu.matmul %571, %37, %cst_377 {dimension_numbers = #tpu.dot_dimension_numbers<[1], [0], [0], [1], [0, 0, 1, 1], [], []>} : vector<8x64xbf16>, vector<64x32xbf16>, vector<8x32xf32> -> vector<8x32xf32>
    %c0_378 = arith.constant 0 : index
    %c0_379 = arith.constant 0 : index
    %c0_380 = arith.constant 0 : index
    %577 = vector.load %arg9[%c0_378, %c0_379, %c0_380] : memref<3x32x32xbf16, #tpu.memory_space<vmem>>, vector<1x32x32xbf16>
    %578 = vector.shape_cast %577 : vector<1x32x32xbf16> to vector<32x32xbf16>
    %cst_381 = arith.constant dense<0.000000e+00> : vector<8x32xf32>
    %579 = tpu.matmul %541, %578, %cst_381 {dimension_numbers = #tpu.dot_dimension_numbers<[1], [0], [0], [1], [0, 0, 1, 1], [], []>} : vector<8x32xbf16>, vector<32x32xbf16>, vector<8x32xf32> -> vector<8x32xf32>
    %580 = arith.addf %576, %579 : vector<8x32xf32>
    %581 = arith.addf %580, %16 : vector<8x32xf32>
    %582 = math.tanh %581 : vector<8x32xf32>
    %583 = arith.truncf %582 : vector<8x32xf32> to vector<8x32xbf16>
    %c1_382 = arith.constant 1 : index
    %c0_383 = arith.constant 0 : index
    %c0_384 = arith.constant 0 : index
    %584 = vector.load %arg8[%c1_382, %c0_383, %c0_384] : memref<3x32x32xbf16, #tpu.memory_space<vmem>>, vector<1x32x32xbf16>
    %585 = vector.shape_cast %584 : vector<1x32x32xbf16> to vector<32x32xbf16>
    %cst_385 = arith.constant dense<0.000000e+00> : vector<8x32xf32>
    %586 = tpu.matmul %583, %585, %cst_385 {dimension_numbers = #tpu.dot_dimension_numbers<[1], [0], [0], [1], [0, 0, 1, 1], [], []>} : vector<8x32xbf16>, vector<32x32xbf16>, vector<8x32xf32> -> vector<8x32xf32>
    %c1_386 = arith.constant 1 : index
    %c0_387 = arith.constant 0 : index
    %c0_388 = arith.constant 0 : index
    %587 = vector.load %arg9[%c1_386, %c0_387, %c0_388] : memref<3x32x32xbf16, #tpu.memory_space<vmem>>, vector<1x32x32xbf16>
    %588 = vector.shape_cast %587 : vector<1x32x32xbf16> to vector<32x32xbf16>
    %cst_389 = arith.constant dense<0.000000e+00> : vector<8x32xf32>
    %589 = tpu.matmul %551, %588, %cst_389 {dimension_numbers = #tpu.dot_dimension_numbers<[1], [0], [0], [1], [0, 0, 1, 1], [], []>} : vector<8x32xbf16>, vector<32x32xbf16>, vector<8x32xf32> -> vector<8x32xf32>
    %590 = arith.addf %586, %589 : vector<8x32xf32>
    %591 = arith.addf %590, %20 : vector<8x32xf32>
    %592 = math.tanh %591 : vector<8x32xf32>
    %593 = arith.truncf %592 : vector<8x32xf32> to vector<8x32xbf16>
    %c2_390 = arith.constant 2 : index
    %c0_391 = arith.constant 0 : index
    %c0_392 = arith.constant 0 : index
    %594 = vector.load %arg8[%c2_390, %c0_391, %c0_392] : memref<3x32x32xbf16, #tpu.memory_space<vmem>>, vector<1x32x32xbf16>
    %595 = vector.shape_cast %594 : vector<1x32x32xbf16> to vector<32x32xbf16>
    %cst_393 = arith.constant dense<0.000000e+00> : vector<8x32xf32>
    %596 = tpu.matmul %593, %595, %cst_393 {dimension_numbers = #tpu.dot_dimension_numbers<[1], [0], [0], [1], [0, 0, 1, 1], [], []>} : vector<8x32xbf16>, vector<32x32xbf16>, vector<8x32xf32> -> vector<8x32xf32>
    %c2_394 = arith.constant 2 : index
    %c0_395 = arith.constant 0 : index
    %c0_396 = arith.constant 0 : index
    %597 = vector.load %arg9[%c2_394, %c0_395, %c0_396] : memref<3x32x32xbf16, #tpu.memory_space<vmem>>, vector<1x32x32xbf16>
    %598 = vector.shape_cast %597 : vector<1x32x32xbf16> to vector<32x32xbf16>
    %cst_397 = arith.constant dense<0.000000e+00> : vector<8x32xf32>
    %599 = tpu.matmul %561, %598, %cst_397 {dimension_numbers = #tpu.dot_dimension_numbers<[1], [0], [0], [1], [0, 0, 1, 1], [], []>} : vector<8x32xbf16>, vector<32x32xbf16>, vector<8x32xf32> -> vector<8x32xf32>
    %600 = arith.addf %596, %599 : vector<8x32xf32>
    %601 = arith.addf %600, %24 : vector<8x32xf32>
    %602 = math.tanh %601 : vector<8x32xf32>
    %603 = arith.truncf %602 : vector<8x32xf32> to vector<8x32xbf16>
    %c0_398 = arith.constant 0 : index
    %c0_399 = arith.constant 0 : index
    %604 = vector.load %arg11[%c0_398, %c0_399] : memref<32x64xbf16, #tpu.memory_space<vmem>>, vector<32x64xbf16>
    %cst_400 = arith.constant dense<0.000000e+00> : vector<8x64xf32>
    %605 = tpu.matmul %603, %604, %cst_400 {dimension_numbers = #tpu.dot_dimension_numbers<[1], [0], [0], [1], [0, 0, 1, 1], [], []>} : vector<8x32xbf16>, vector<32x64xbf16>, vector<8x64xf32> -> vector<8x64xf32>
    %606 = arith.addf %605, %27 : vector<8x64xf32>
    %cst_401 = arith.constant dense<0xFF800000> : vector<8xf32>
    %607 = vector.multi_reduction <maximumf>, %606, %cst_401 [1] : vector<8x64xf32> to vector<8xf32>
    %608 = vector.shape_cast %607 : vector<8xf32> to vector<8x1xf32>
    %609 = vector.broadcast %608 : vector<8x1xf32> to vector<8x64xf32>
    %610 = arith.cmpf oeq, %606, %609 : vector<8x64xf32>
    %611 = arith.extui %610 : vector<8x64xi1> to vector<8x64xi32>
    %612 = arith.sitofp %611 : vector<8x64xi32> to vector<8x64xf32>
    %613 = arith.truncf %612 : vector<8x64xf32> to vector<8x64xbf16>
    %c64_i32_402 = arith.constant 64 : i32
    %614 = vector.broadcast %c64_i32_402 : i32 to vector<8x64xi32>
    %615 = arith.select %610, %0, %614 : vector<8x64xi1>, vector<8x64xi32>
    %cst_403 = arith.constant dense<2147483647> : vector<8xi32>
    %616 = vector.multi_reduction <minsi>, %615, %cst_403 [1] : vector<8x64xi32> to vector<8xi32>
    %617 = vector.shape_cast %616 : vector<8xi32> to vector<8x1xi32>
    %cst_404 = arith.constant dense<0.000000e+00> : vector<8x32xf32>
    %618 = tpu.matmul %613, %37, %cst_404 {dimension_numbers = #tpu.dot_dimension_numbers<[1], [0], [0], [1], [0, 0, 1, 1], [], []>} : vector<8x64xbf16>, vector<64x32xbf16>, vector<8x32xf32> -> vector<8x32xf32>
    %c0_405 = arith.constant 0 : index
    %c0_406 = arith.constant 0 : index
    %c0_407 = arith.constant 0 : index
    %619 = vector.load %arg9[%c0_405, %c0_406, %c0_407] : memref<3x32x32xbf16, #tpu.memory_space<vmem>>, vector<1x32x32xbf16>
    %620 = vector.shape_cast %619 : vector<1x32x32xbf16> to vector<32x32xbf16>
    %cst_408 = arith.constant dense<0.000000e+00> : vector<8x32xf32>
    %621 = tpu.matmul %583, %620, %cst_408 {dimension_numbers = #tpu.dot_dimension_numbers<[1], [0], [0], [1], [0, 0, 1, 1], [], []>} : vector<8x32xbf16>, vector<32x32xbf16>, vector<8x32xf32> -> vector<8x32xf32>
    %622 = arith.addf %618, %621 : vector<8x32xf32>
    %623 = arith.addf %622, %16 : vector<8x32xf32>
    %624 = math.tanh %623 : vector<8x32xf32>
    %625 = arith.truncf %624 : vector<8x32xf32> to vector<8x32xbf16>
    %c1_409 = arith.constant 1 : index
    %c0_410 = arith.constant 0 : index
    %c0_411 = arith.constant 0 : index
    %626 = vector.load %arg8[%c1_409, %c0_410, %c0_411] : memref<3x32x32xbf16, #tpu.memory_space<vmem>>, vector<1x32x32xbf16>
    %627 = vector.shape_cast %626 : vector<1x32x32xbf16> to vector<32x32xbf16>
    %cst_412 = arith.constant dense<0.000000e+00> : vector<8x32xf32>
    %628 = tpu.matmul %625, %627, %cst_412 {dimension_numbers = #tpu.dot_dimension_numbers<[1], [0], [0], [1], [0, 0, 1, 1], [], []>} : vector<8x32xbf16>, vector<32x32xbf16>, vector<8x32xf32> -> vector<8x32xf32>
    %c1_413 = arith.constant 1 : index
    %c0_414 = arith.constant 0 : index
    %c0_415 = arith.constant 0 : index
    %629 = vector.load %arg9[%c1_413, %c0_414, %c0_415] : memref<3x32x32xbf16, #tpu.memory_space<vmem>>, vector<1x32x32xbf16>
    %630 = vector.shape_cast %629 : vector<1x32x32xbf16> to vector<32x32xbf16>
    %cst_416 = arith.constant dense<0.000000e+00> : vector<8x32xf32>
    %631 = tpu.matmul %593, %630, %cst_416 {dimension_numbers = #tpu.dot_dimension_numbers<[1], [0], [0], [1], [0, 0, 1, 1], [], []>} : vector<8x32xbf16>, vector<32x32xbf16>, vector<8x32xf32> -> vector<8x32xf32>
    %632 = arith.addf %628, %631 : vector<8x32xf32>
    %633 = arith.addf %632, %20 : vector<8x32xf32>
    %634 = math.tanh %633 : vector<8x32xf32>
    %635 = arith.truncf %634 : vector<8x32xf32> to vector<8x32xbf16>
    %c2_417 = arith.constant 2 : index
    %c0_418 = arith.constant 0 : index
    %c0_419 = arith.constant 0 : index
    %636 = vector.load %arg8[%c2_417, %c0_418, %c0_419] : memref<3x32x32xbf16, #tpu.memory_space<vmem>>, vector<1x32x32xbf16>
    %637 = vector.shape_cast %636 : vector<1x32x32xbf16> to vector<32x32xbf16>
    %cst_420 = arith.constant dense<0.000000e+00> : vector<8x32xf32>
    %638 = tpu.matmul %635, %637, %cst_420 {dimension_numbers = #tpu.dot_dimension_numbers<[1], [0], [0], [1], [0, 0, 1, 1], [], []>} : vector<8x32xbf16>, vector<32x32xbf16>, vector<8x32xf32> -> vector<8x32xf32>
    %c2_421 = arith.constant 2 : index
    %c0_422 = arith.constant 0 : index
    %c0_423 = arith.constant 0 : index
    %639 = vector.load %arg9[%c2_421, %c0_422, %c0_423] : memref<3x32x32xbf16, #tpu.memory_space<vmem>>, vector<1x32x32xbf16>
    %640 = vector.shape_cast %639 : vector<1x32x32xbf16> to vector<32x32xbf16>
    %cst_424 = arith.constant dense<0.000000e+00> : vector<8x32xf32>
    %641 = tpu.matmul %603, %640, %cst_424 {dimension_numbers = #tpu.dot_dimension_numbers<[1], [0], [0], [1], [0, 0, 1, 1], [], []>} : vector<8x32xbf16>, vector<32x32xbf16>, vector<8x32xf32> -> vector<8x32xf32>
    %642 = arith.addf %638, %641 : vector<8x32xf32>
    %643 = arith.addf %642, %24 : vector<8x32xf32>
    %644 = math.tanh %643 : vector<8x32xf32>
    %645 = arith.truncf %644 : vector<8x32xf32> to vector<8x32xbf16>
    %c0_425 = arith.constant 0 : index
    %c0_426 = arith.constant 0 : index
    %646 = vector.load %arg11[%c0_425, %c0_426] : memref<32x64xbf16, #tpu.memory_space<vmem>>, vector<32x64xbf16>
    %cst_427 = arith.constant dense<0.000000e+00> : vector<8x64xf32>
    %647 = tpu.matmul %645, %646, %cst_427 {dimension_numbers = #tpu.dot_dimension_numbers<[1], [0], [0], [1], [0, 0, 1, 1], [], []>} : vector<8x32xbf16>, vector<32x64xbf16>, vector<8x64xf32> -> vector<8x64xf32>
    %648 = arith.addf %647, %27 : vector<8x64xf32>
    %cst_428 = arith.constant dense<0xFF800000> : vector<8xf32>
    %649 = vector.multi_reduction <maximumf>, %648, %cst_428 [1] : vector<8x64xf32> to vector<8xf32>
    %650 = vector.shape_cast %649 : vector<8xf32> to vector<8x1xf32>
    %651 = vector.broadcast %650 : vector<8x1xf32> to vector<8x64xf32>
    %652 = arith.cmpf oeq, %648, %651 : vector<8x64xf32>
    %653 = arith.extui %652 : vector<8x64xi1> to vector<8x64xi32>
    %654 = arith.sitofp %653 : vector<8x64xi32> to vector<8x64xf32>
    %655 = arith.truncf %654 : vector<8x64xf32> to vector<8x64xbf16>
    %c64_i32_429 = arith.constant 64 : i32
    %656 = vector.broadcast %c64_i32_429 : i32 to vector<8x64xi32>
    %657 = arith.select %652, %0, %656 : vector<8x64xi1>, vector<8x64xi32>
    %cst_430 = arith.constant dense<2147483647> : vector<8xi32>
    %658 = vector.multi_reduction <minsi>, %657, %cst_430 [1] : vector<8x64xi32> to vector<8xi32>
    %659 = vector.shape_cast %658 : vector<8xi32> to vector<8x1xi32>
    %cst_431 = arith.constant dense<0.000000e+00> : vector<8x32xf32>
    %660 = tpu.matmul %655, %37, %cst_431 {dimension_numbers = #tpu.dot_dimension_numbers<[1], [0], [0], [1], [0, 0, 1, 1], [], []>} : vector<8x64xbf16>, vector<64x32xbf16>, vector<8x32xf32> -> vector<8x32xf32>
    %c0_432 = arith.constant 0 : index
    %c0_433 = arith.constant 0 : index
    %c0_434 = arith.constant 0 : index
    %661 = vector.load %arg9[%c0_432, %c0_433, %c0_434] : memref<3x32x32xbf16, #tpu.memory_space<vmem>>, vector<1x32x32xbf16>
    %662 = vector.shape_cast %661 : vector<1x32x32xbf16> to vector<32x32xbf16>
    %cst_435 = arith.constant dense<0.000000e+00> : vector<8x32xf32>
    %663 = tpu.matmul %625, %662, %cst_435 {dimension_numbers = #tpu.dot_dimension_numbers<[1], [0], [0], [1], [0, 0, 1, 1], [], []>} : vector<8x32xbf16>, vector<32x32xbf16>, vector<8x32xf32> -> vector<8x32xf32>
    %664 = arith.addf %660, %663 : vector<8x32xf32>
    %665 = arith.addf %664, %16 : vector<8x32xf32>
    %666 = math.tanh %665 : vector<8x32xf32>
    %667 = arith.truncf %666 : vector<8x32xf32> to vector<8x32xbf16>
    %c1_436 = arith.constant 1 : index
    %c0_437 = arith.constant 0 : index
    %c0_438 = arith.constant 0 : index
    %668 = vector.load %arg8[%c1_436, %c0_437, %c0_438] : memref<3x32x32xbf16, #tpu.memory_space<vmem>>, vector<1x32x32xbf16>
    %669 = vector.shape_cast %668 : vector<1x32x32xbf16> to vector<32x32xbf16>
    %cst_439 = arith.constant dense<0.000000e+00> : vector<8x32xf32>
    %670 = tpu.matmul %667, %669, %cst_439 {dimension_numbers = #tpu.dot_dimension_numbers<[1], [0], [0], [1], [0, 0, 1, 1], [], []>} : vector<8x32xbf16>, vector<32x32xbf16>, vector<8x32xf32> -> vector<8x32xf32>
    %c1_440 = arith.constant 1 : index
    %c0_441 = arith.constant 0 : index
    %c0_442 = arith.constant 0 : index
    %671 = vector.load %arg9[%c1_440, %c0_441, %c0_442] : memref<3x32x32xbf16, #tpu.memory_space<vmem>>, vector<1x32x32xbf16>
    %672 = vector.shape_cast %671 : vector<1x32x32xbf16> to vector<32x32xbf16>
    %cst_443 = arith.constant dense<0.000000e+00> : vector<8x32xf32>
    %673 = tpu.matmul %635, %672, %cst_443 {dimension_numbers = #tpu.dot_dimension_numbers<[1], [0], [0], [1], [0, 0, 1, 1], [], []>} : vector<8x32xbf16>, vector<32x32xbf16>, vector<8x32xf32> -> vector<8x32xf32>
    %674 = arith.addf %670, %673 : vector<8x32xf32>
    %675 = arith.addf %674, %20 : vector<8x32xf32>
    %676 = math.tanh %675 : vector<8x32xf32>
    %677 = arith.truncf %676 : vector<8x32xf32> to vector<8x32xbf16>
    %c2_444 = arith.constant 2 : index
    %c0_445 = arith.constant 0 : index
    %c0_446 = arith.constant 0 : index
    %678 = vector.load %arg8[%c2_444, %c0_445, %c0_446] : memref<3x32x32xbf16, #tpu.memory_space<vmem>>, vector<1x32x32xbf16>
    %679 = vector.shape_cast %678 : vector<1x32x32xbf16> to vector<32x32xbf16>
    %cst_447 = arith.constant dense<0.000000e+00> : vector<8x32xf32>
    %680 = tpu.matmul %677, %679, %cst_447 {dimension_numbers = #tpu.dot_dimension_numbers<[1], [0], [0], [1], [0, 0, 1, 1], [], []>} : vector<8x32xbf16>, vector<32x32xbf16>, vector<8x32xf32> -> vector<8x32xf32>
    %c2_448 = arith.constant 2 : index
    %c0_449 = arith.constant 0 : index
    %c0_450 = arith.constant 0 : index
    %681 = vector.load %arg9[%c2_448, %c0_449, %c0_450] : memref<3x32x32xbf16, #tpu.memory_space<vmem>>, vector<1x32x32xbf16>
    %682 = vector.shape_cast %681 : vector<1x32x32xbf16> to vector<32x32xbf16>
    %cst_451 = arith.constant dense<0.000000e+00> : vector<8x32xf32>
    %683 = tpu.matmul %645, %682, %cst_451 {dimension_numbers = #tpu.dot_dimension_numbers<[1], [0], [0], [1], [0, 0, 1, 1], [], []>} : vector<8x32xbf16>, vector<32x32xbf16>, vector<8x32xf32> -> vector<8x32xf32>
    %684 = arith.addf %680, %683 : vector<8x32xf32>
    %685 = arith.addf %684, %24 : vector<8x32xf32>
    %686 = math.tanh %685 : vector<8x32xf32>
    %687 = arith.truncf %686 : vector<8x32xf32> to vector<8x32xbf16>
    %c0_452 = arith.constant 0 : index
    %c0_453 = arith.constant 0 : index
    %688 = vector.load %arg11[%c0_452, %c0_453] : memref<32x64xbf16, #tpu.memory_space<vmem>>, vector<32x64xbf16>
    %cst_454 = arith.constant dense<0.000000e+00> : vector<8x64xf32>
    %689 = tpu.matmul %687, %688, %cst_454 {dimension_numbers = #tpu.dot_dimension_numbers<[1], [0], [0], [1], [0, 0, 1, 1], [], []>} : vector<8x32xbf16>, vector<32x64xbf16>, vector<8x64xf32> -> vector<8x64xf32>
    %690 = arith.addf %689, %27 : vector<8x64xf32>
    %cst_455 = arith.constant dense<0xFF800000> : vector<8xf32>
    %691 = vector.multi_reduction <maximumf>, %690, %cst_455 [1] : vector<8x64xf32> to vector<8xf32>
    %692 = vector.shape_cast %691 : vector<8xf32> to vector<8x1xf32>
    %693 = vector.broadcast %692 : vector<8x1xf32> to vector<8x64xf32>
    %694 = arith.cmpf oeq, %690, %693 : vector<8x64xf32>
    %695 = arith.extui %694 : vector<8x64xi1> to vector<8x64xi32>
    %696 = arith.sitofp %695 : vector<8x64xi32> to vector<8x64xf32>
    %697 = arith.truncf %696 : vector<8x64xf32> to vector<8x64xbf16>
    %c64_i32_456 = arith.constant 64 : i32
    %698 = vector.broadcast %c64_i32_456 : i32 to vector<8x64xi32>
    %699 = arith.select %694, %0, %698 : vector<8x64xi1>, vector<8x64xi32>
    %cst_457 = arith.constant dense<2147483647> : vector<8xi32>
    %700 = vector.multi_reduction <minsi>, %699, %cst_457 [1] : vector<8x64xi32> to vector<8xi32>
    %701 = vector.shape_cast %700 : vector<8xi32> to vector<8x1xi32>
    %cst_458 = arith.constant dense<0.000000e+00> : vector<8x32xf32>
    %702 = tpu.matmul %697, %37, %cst_458 {dimension_numbers = #tpu.dot_dimension_numbers<[1], [0], [0], [1], [0, 0, 1, 1], [], []>} : vector<8x64xbf16>, vector<64x32xbf16>, vector<8x32xf32> -> vector<8x32xf32>
    %c0_459 = arith.constant 0 : index
    %c0_460 = arith.constant 0 : index
    %c0_461 = arith.constant 0 : index
    %703 = vector.load %arg9[%c0_459, %c0_460, %c0_461] : memref<3x32x32xbf16, #tpu.memory_space<vmem>>, vector<1x32x32xbf16>
    %704 = vector.shape_cast %703 : vector<1x32x32xbf16> to vector<32x32xbf16>
    %cst_462 = arith.constant dense<0.000000e+00> : vector<8x32xf32>
    %705 = tpu.matmul %667, %704, %cst_462 {dimension_numbers = #tpu.dot_dimension_numbers<[1], [0], [0], [1], [0, 0, 1, 1], [], []>} : vector<8x32xbf16>, vector<32x32xbf16>, vector<8x32xf32> -> vector<8x32xf32>
    %706 = arith.addf %702, %705 : vector<8x32xf32>
    %707 = arith.addf %706, %16 : vector<8x32xf32>
    %708 = math.tanh %707 : vector<8x32xf32>
    %709 = arith.truncf %708 : vector<8x32xf32> to vector<8x32xbf16>
    %c1_463 = arith.constant 1 : index
    %c0_464 = arith.constant 0 : index
    %c0_465 = arith.constant 0 : index
    %710 = vector.load %arg8[%c1_463, %c0_464, %c0_465] : memref<3x32x32xbf16, #tpu.memory_space<vmem>>, vector<1x32x32xbf16>
    %711 = vector.shape_cast %710 : vector<1x32x32xbf16> to vector<32x32xbf16>
    %cst_466 = arith.constant dense<0.000000e+00> : vector<8x32xf32>
    %712 = tpu.matmul %709, %711, %cst_466 {dimension_numbers = #tpu.dot_dimension_numbers<[1], [0], [0], [1], [0, 0, 1, 1], [], []>} : vector<8x32xbf16>, vector<32x32xbf16>, vector<8x32xf32> -> vector<8x32xf32>
    %c1_467 = arith.constant 1 : index
    %c0_468 = arith.constant 0 : index
    %c0_469 = arith.constant 0 : index
    %713 = vector.load %arg9[%c1_467, %c0_468, %c0_469] : memref<3x32x32xbf16, #tpu.memory_space<vmem>>, vector<1x32x32xbf16>
    %714 = vector.shape_cast %713 : vector<1x32x32xbf16> to vector<32x32xbf16>
    %cst_470 = arith.constant dense<0.000000e+00> : vector<8x32xf32>
    %715 = tpu.matmul %677, %714, %cst_470 {dimension_numbers = #tpu.dot_dimension_numbers<[1], [0], [0], [1], [0, 0, 1, 1], [], []>} : vector<8x32xbf16>, vector<32x32xbf16>, vector<8x32xf32> -> vector<8x32xf32>
    %716 = arith.addf %712, %715 : vector<8x32xf32>
    %717 = arith.addf %716, %20 : vector<8x32xf32>
    %718 = math.tanh %717 : vector<8x32xf32>
    %719 = arith.truncf %718 : vector<8x32xf32> to vector<8x32xbf16>
    %c2_471 = arith.constant 2 : index
    %c0_472 = arith.constant 0 : index
    %c0_473 = arith.constant 0 : index
    %720 = vector.load %arg8[%c2_471, %c0_472, %c0_473] : memref<3x32x32xbf16, #tpu.memory_space<vmem>>, vector<1x32x32xbf16>
    %721 = vector.shape_cast %720 : vector<1x32x32xbf16> to vector<32x32xbf16>
    %cst_474 = arith.constant dense<0.000000e+00> : vector<8x32xf32>
    %722 = tpu.matmul %719, %721, %cst_474 {dimension_numbers = #tpu.dot_dimension_numbers<[1], [0], [0], [1], [0, 0, 1, 1], [], []>} : vector<8x32xbf16>, vector<32x32xbf16>, vector<8x32xf32> -> vector<8x32xf32>
    %c2_475 = arith.constant 2 : index
    %c0_476 = arith.constant 0 : index
    %c0_477 = arith.constant 0 : index
    %723 = vector.load %arg9[%c2_475, %c0_476, %c0_477] : memref<3x32x32xbf16, #tpu.memory_space<vmem>>, vector<1x32x32xbf16>
    %724 = vector.shape_cast %723 : vector<1x32x32xbf16> to vector<32x32xbf16>
    %cst_478 = arith.constant dense<0.000000e+00> : vector<8x32xf32>
    %725 = tpu.matmul %687, %724, %cst_478 {dimension_numbers = #tpu.dot_dimension_numbers<[1], [0], [0], [1], [0, 0, 1, 1], [], []>} : vector<8x32xbf16>, vector<32x32xbf16>, vector<8x32xf32> -> vector<8x32xf32>
    %726 = arith.addf %722, %725 : vector<8x32xf32>
    %727 = arith.addf %726, %24 : vector<8x32xf32>
    %728 = math.tanh %727 : vector<8x32xf32>
    %729 = arith.truncf %728 : vector<8x32xf32> to vector<8x32xbf16>
    %c0_479 = arith.constant 0 : index
    %c0_480 = arith.constant 0 : index
    %730 = vector.load %arg11[%c0_479, %c0_480] : memref<32x64xbf16, #tpu.memory_space<vmem>>, vector<32x64xbf16>
    %cst_481 = arith.constant dense<0.000000e+00> : vector<8x64xf32>
    %731 = tpu.matmul %729, %730, %cst_481 {dimension_numbers = #tpu.dot_dimension_numbers<[1], [0], [0], [1], [0, 0, 1, 1], [], []>} : vector<8x32xbf16>, vector<32x64xbf16>, vector<8x64xf32> -> vector<8x64xf32>
    %732 = arith.addf %731, %27 : vector<8x64xf32>
    %cst_482 = arith.constant dense<0xFF800000> : vector<8xf32>
    %733 = vector.multi_reduction <maximumf>, %732, %cst_482 [1] : vector<8x64xf32> to vector<8xf32>
    %734 = vector.shape_cast %733 : vector<8xf32> to vector<8x1xf32>
    %735 = vector.broadcast %734 : vector<8x1xf32> to vector<8x64xf32>
    %736 = arith.cmpf oeq, %732, %735 : vector<8x64xf32>
    %c64_i32_483 = arith.constant 64 : i32
    %737 = vector.broadcast %c64_i32_483 : i32 to vector<8x64xi32>
    %738 = arith.select %736, %0, %737 : vector<8x64xi1>, vector<8x64xi32>
    %cst_484 = arith.constant dense<2147483647> : vector<8xi32>
    %739 = vector.multi_reduction <minsi>, %738, %cst_484 [1] : vector<8x64xi32> to vector<8xi32>
    %740 = vector.shape_cast %739 : vector<8xi32> to vector<8x1xi32>
    %741 = tpu.concatenate %365, %407, %449, %491, %533, %575, %617, %659, %701, %740 in 1 : vector<8x1xi32>, vector<8x1xi32>, vector<8x1xi32>, vector<8x1xi32>, vector<8x1xi32>, vector<8x1xi32>, vector<8x1xi32>, vector<8x1xi32>, vector<8x1xi32>, vector<8x1xi32> -> vector<8x10xi32>
    %c0_485 = arith.constant 0 : index
    %c0_486 = arith.constant 0 : index
    %742 = vector.load %arg13[%c0_485, %c0_486] : memref<8x10xi32, #tpu.memory_space<vmem>>, vector<8x10xi32>
    tpu.vector_store %arg13[%c0_485, %c0_486], %741 {strides = array<i32>} : memref<8x10xi32, #tpu.memory_space<vmem>>, vector<8x10xi32>,
    return
  }
  func.func @transform_0(%arg0: i32) -> (i32, i32) {
    %c0_i32 = arith.constant 0 : i32
    %c0_i32_0 = arith.constant 0 : i32
    %c0_i32_1 = arith.constant 0 : i32
    return %c0_i32, %c0_i32_0 : i32, i32
  }
  func.func @transform_1(%arg0: i32) -> (i32, i32, i32) {
    %c0_i32 = arith.constant 0 : i32
    %c0_i32_0 = arith.constant 0 : i32
    %c0_i32_1 = arith.constant 0 : i32
    %c0_i32_2 = arith.constant 0 : i32
    return %c0_i32, %c0_i32_0, %c0_i32_1 : i32, i32, i32
  }
  func.func @transform_2(%arg0: i32) -> (i32, i32) {
    %c0_i32 = arith.constant 0 : i32
    %c0_i32_0 = arith.constant 0 : i32
    %c0_i32_1 = arith.constant 0 : i32
    return %c0_i32, %c0_i32_0 : i32, i32
  }
  func.func @transform_3(%arg0: i32) -> (i32, i32, i32) {
    %c0_i32 = arith.constant 0 : i32
    %c0_i32_0 = arith.constant 0 : i32
    %c0_i32_1 = arith.constant 0 : i32
    %c0_i32_2 = arith.constant 0 : i32
    return %c0_i32, %c0_i32_0, %c0_i32_1 : i32, i32, i32
  }
  func.func @transform_4(%arg0: i32) -> (i32, i32, i32) {
    %c0_i32 = arith.constant 0 : i32
    %c0_i32_0 = arith.constant 0 : i32
    %c0_i32_1 = arith.constant 0 : i32
    %c0_i32_2 = arith.constant 0 : i32
    return %c0_i32, %c0_i32_0, %c0_i32_1 : i32, i32, i32
  }
  func.func @transform_5(%arg0: i32) -> (i32, i32, i32) {
    %c0_i32 = arith.constant 0 : i32
    %c0_i32_0 = arith.constant 0 : i32
    %c0_i32_1 = arith.constant 0 : i32
    %c0_i32_2 = arith.constant 0 : i32
    return %c0_i32, %c0_i32_0, %c0_i32_1 : i32, i32, i32
  }
  func.func @transform_6(%arg0: i32) -> (i32, i32) {
    %c0_i32 = arith.constant 0 : i32
    %c0_i32_0 = arith.constant 0 : i32
    %c0_i32_1 = arith.constant 0 : i32
    return %c0_i32, %c0_i32_0 : i32, i32
  }
  func.func @transform_7(%arg0: i32) -> (i32, i32, i32) {
    %c0_i32 = arith.constant 0 : i32
    %c0_i32_0 = arith.constant 0 : i32
    %c0_i32_1 = arith.constant 0 : i32
    %c0_i32_2 = arith.constant 0 : i32
    return %c0_i32, %c0_i32_0, %c0_i32_1 : i32, i32, i32
  }
  func.func @transform_8(%arg0: i32) -> (i32, i32, i32) {
    %c0_i32 = arith.constant 0 : i32
    %c0_i32_0 = arith.constant 0 : i32
    %c0_i32_1 = arith.constant 0 : i32
    %c0_i32_2 = arith.constant 0 : i32
    return %c0_i32, %c0_i32_0, %c0_i32_1 : i32, i32, i32
  }
  func.func @transform_9(%arg0: i32) -> (i32, i32, i32) {
    %c0_i32 = arith.constant 0 : i32
    %c0_i32_0 = arith.constant 0 : i32
    %c0_i32_1 = arith.constant 0 : i32
    %c0_i32_2 = arith.constant 0 : i32
    return %c0_i32, %c0_i32_0, %c0_i32_1 : i32, i32, i32
  }
  func.func @transform_10(%arg0: i32) -> (i32, i32) {
    %c0_i32 = arith.constant 0 : i32
    %c0_i32_0 = arith.constant 0 : i32
    %c0_i32_1 = arith.constant 0 : i32
    return %c0_i32, %c0_i32_0 : i32, i32
  }
  func.func @transform_11(%arg0: i32) -> (i32, i32) {
    %c0_i32 = arith.constant 0 : i32
    %c0_i32_0 = arith.constant 0 : i32
    %c0_i32_1 = arith.constant 0 : i32
    return %c0_i32, %c0_i32_0 : i32, i32
  }
  func.func @transform_12(%arg0: i32) -> (i32, i32) {
    %c0_i32 = arith.constant 0 : i32
    %c0_i32_0 = arith.constant 0 : i32
    %c0_i32_1 = arith.constant 0 : i32
    return %c0_i32, %c0_i32_0 : i32, i32
  }
}

</mosaic_0001>

<llo_original>
// kernel: tpu_custom_call.1
$region0: #{tpu_custom_call.1}
  #allocation0 [shape = 'u32[]', space=smem, size = 0x4, offset = 0x4, fixed_abs, tag = 'smem constant byte address 0x4 - core index']
  #allocation1 [shape = 'u32[144,128]{1,0:T(1,128)}', space=vmem, size = 0x12000, scoped, tag = 'internal scratch']
  %s0 = inlined_call_operand.hbm [shape: s32[8,8], index: 0, kind: input, shape index: {}]
  %s1 = inlined_call_operand.hbm [shape: f32[3,8,32], index: 1, kind: input, shape index: {}]
  %s2 = inlined_call_operand.vmem [shape: bf16[64,32], index: 2, kind: input, shape index: {}]
  %s3 = inlined_call_operand.vmem [shape: bf16[3,32,32], index: 3, kind: input, shape index: {}]
  %s4 = inlined_call_operand.vmem [shape: bf16[3,32,32], index: 4, kind: input, shape index: {}]
  %s5 = inlined_call_operand.hbm [shape: f32[3,1,32], index: 5, kind: input, shape index: {}]
  %s6 = inlined_call_operand.vmem [shape: bf16[64,32], index: 6, kind: input, shape index: {}]
  %s7 = inlined_call_operand.hbm [shape: bf16[3,32,32], index: 7, kind: input, shape index: {}]
  %s8 = inlined_call_operand.hbm [shape: bf16[3,32,32], index: 8, kind: input, shape index: {}]
  %s9 = inlined_call_operand.hbm [shape: f32[3,1,32], index: 9, kind: input, shape index: {}]
  %s10 = inlined_call_operand.vmem [shape: bf16[32,64], index: 10, kind: input, shape index: {}]
  %s11 = inlined_call_operand.vmem [shape: f32[1,64], index: 11, kind: input, shape index: {}]
  %s12 = inlined_call_operand.hbm [shape: s32[8,10], index: 12, kind: output, shape index: {}]
  %s13 = sld [smem:[#allocation0]]
  $region82: #{tpu_custom_call.1} parent=0
    _
  %s15 = ssub.s32 1, %s13
  %s16 = scalar_select 0, %s15, %s13
  $region1: #{tpu_custom_call.1} parent=0
    #allocation2 [shape = 'u8[4096]{0}', space=vmem, size = 0x1000, scoped, tag = 'input window, operand 0, single buffered']
    #allocation3 [shape = 's32[1]{0}', space=sflag, size = 0x4, scoped, tag = 'scoped memory for tpu_custom_call.1']
    #allocation4 [shape = 's32[1]{0}', space=sflag, size = 0x4, scoped, tag = 'scoped memory for tpu_custom_call.1']
    #allocation5 [shape = 'u8[12288]{0}', space=vmem, size = 0x3000, scoped, tag = 'input window, operand 1, single buffered']
    #allocation6 [shape = 's32[1]{0}', space=sflag, size = 0x4, scoped, tag = 'scoped memory for tpu_custom_call.1']
    #allocation7 [shape = 'u8[1536]{0}', space=vmem, size = 0x800, scoped, tag = 'input window, operand 5, single buffered']
    #allocation8 [shape = 'u8[24576]{0}', space=vmem, size = 0x6000, scoped, tag = 'input window, operand 7, single buffered']
    #allocation9 [shape = 's32[1]{0}', space=sflag, size = 0x4, scoped, tag = 'scoped memory for tpu_custom_call.1']
    #allocation10 [shape = 'u8[24576]{0}', space=vmem, size = 0x6000, scoped, tag = 'input window, operand 8, single buffered']
    #allocation11 [shape = 'u8[1536]{0}', space=vmem, size = 0x800, scoped, tag = 'input window, operand 9, single buffered']
    #allocation12 [shape = 's32[1]{0}', space=sflag, size = 0x4, scoped, tag = 'scoped memory for tpu_custom_call.1']
    #allocation13 [shape = 'u8[4096]{0}', space=vmem, size = 0x1000, scoped, tag = 'output window, operand 0, single buffered']
    %17 = vsyncpa [#allocation3], 0
    %18 = vsyncpa [#allocation6], 0
    %19 = vsyncpa [#allocation9], 0
    %20 = vsyncpa [#allocation12], 0
    %21 = vsyncpa [#allocation4], 0
    // Predicated region
    $region2: #{tpu_custom_call.1} parent=1 // pred_check
      _
    $region3: #{tpu_custom_call.1} parent=1 // pred_check_branch
      %23 = sbr.rel (0) target = $region5
    $region4: #{tpu_custom_call.1} parent=1 // pred_region
      %s25 = ssub.s32 128, 128
      %26 = vsyncadd [#allocation3], %s25
      %s28 = sshll.u32 [#allocation2], 4
      %s29 = int_to_ptr.vmem [resolvable:$true] %s28
      %31 = dma.hbm_to_vmem [thread:$0]  %s0, 128, %s29, [#allocation3]
    $region5: #{tpu_custom_call.1} parent=1 // pred_fallthru
      _
    // Predicated region
    $region6: #{tpu_custom_call.1} parent=1 // pred_check
      _
    $region7: #{tpu_custom_call.1} parent=1 // pred_check_branch
      %33 = sbr.rel (0) target = $region9
    $region8: #{tpu_custom_call.1} parent=1 // pred_region
      %s35 = ssub.s32 384, 384
      %36 = vsyncadd [#allocation6], %s35
      %s37 = sshll.u32 [#allocation5], 4
      %s38 = int_to_ptr.vmem [resolvable:$true] %s37
      %43 = dma.hbm_to_vmem [thread:$0]  %s1, 384, %s38, [#allocation6], 128, 128, 8
    $region9: #{tpu_custom_call.1} parent=1 // pred_fallthru
      _
    // Predicated region
    $region10: #{tpu_custom_call.1} parent=1 // pred_check
      _
    $region11: #{tpu_custom_call.1} parent=1 // pred_check_branch
      %45 = sbr.rel (0) target = $region13
    $region12: #{tpu_custom_call.1} parent=1 // pred_region
      _
    $region13: #{tpu_custom_call.1} parent=1 // pred_fallthru
      _
    // Predicated region
    $region14: #{tpu_custom_call.1} parent=1 // pred_check
      _
    $region15: #{tpu_custom_call.1} parent=1 // pred_check_branch
      %47 = sbr.rel (0) target = $region17
    $region16: #{tpu_custom_call.1} parent=1 // pred_region
      _
    $region17: #{tpu_custom_call.1} parent=1 // pred_fallthru
      _
    // Predicated region
    $region18: #{tpu_custom_call.1} parent=1 // pred_check
      _
    $region19: #{tpu_custom_call.1} parent=1 // pred_check_branch
      %49 = sbr.rel (0) target = $region21
    $region20: #{tpu_custom_call.1} parent=1 // pred_region
      _
    $region21: #{tpu_custom_call.1} parent=1 // pred_fallthru
      _
    // Predicated region
    $region22: #{tpu_custom_call.1} parent=1 // pred_check
      _
    $region23: #{tpu_custom_call.1} parent=1 // pred_check_branch
      %51 = sbr.rel (0) target = $region25
    $region24: #{tpu_custom_call.1} parent=1 // pred_region
      %s53 = ssub.s32 48, 48
      %54 = vsyncadd [#allocation6], %s53
      %s55 = sshll.u32 [#allocation7], 4
      %s56 = int_to_ptr.vmem [resolvable:$true] %s55
      %61 = dma.hbm_to_vmem [thread:$0]  %s5, 48, %s56, [#allocation6], 16, 16, 1
    $region25: #{tpu_custom_call.1} parent=1 // pred_fallthru
      _
    // Predicated region
    $region26: #{tpu_custom_call.1} parent=1 // pred_check
      _
    $region27: #{tpu_custom_call.1} parent=1 // pred_check_branch
      %63 = sbr.rel (0) target = $region29
    $region28: #{tpu_custom_call.1} parent=1 // pred_region
      _
    $region29: #{tpu_custom_call.1} parent=1 // pred_fallthru
      _
    // Predicated region
    $region30: #{tpu_custom_call.1} parent=1 // pred_check
      _
    $region31: #{tpu_custom_call.1} parent=1 // pred_check_branch
      %65 = sbr.rel (0) target = $region33
    $region32: #{tpu_custom_call.1} parent=1 // pred_region
      %s67 = ssub.s32 768, 768
      %68 = vsyncadd [#allocation9], %s67
      %s69 = sshll.u32 [#allocation8], 4
      %s70 = int_to_ptr.vmem [resolvable:$true] %s69
      %75 = dma.hbm_to_vmem [thread:$0]  %s7, 768, %s70, [#allocation9], 64, 64, 4
    $region33: #{tpu_custom_call.1} parent=1 // pred_fallthru
      _
    // Predicated region
    $region34: #{tpu_custom_call.1} parent=1 // pred_check
      _
    $region35: #{tpu_custom_call.1} parent=1 // pred_check_branch
      %77 = sbr.rel (0) target = $region37
    $region36: #{tpu_custom_call.1} parent=1 // pred_region
      %s79 = ssub.s32 768, 768
      %80 = vsyncadd [#allocation9], %s79
      %s81 = sshll.u32 [#allocation10], 4
      %s82 = int_to_ptr.vmem [resolvable:$true] %s81
      %87 = dma.hbm_to_vmem [thread:$0]  %s8, 768, %s82, [#allocation9], 64, 64, 4
    $region37: #{tpu_custom_call.1} parent=1 // pred_fallthru
      _
    // Predicated region
    $region38: #{tpu_custom_call.1} parent=1 // pred_check
      _
    $region39: #{tpu_custom_call.1} parent=1 // pred_check_branch
      %89 = sbr.rel (0) target = $region41
    $region40: #{tpu_custom_call.1} parent=1 // pred_region
      %s91 = ssub.s32 48, 48
      %92 = vsyncadd [#allocation12], %s91
      %s93 = sshll.u32 [#allocation11], 4
      %s94 = int_to_ptr.vmem [resolvable:$true] %s93
      %99 = dma.hbm_to_vmem [thread:$0]  %s9, 48, %s94, [#allocation12], 16, 16, 1
    $region41: #{tpu_custom_call.1} parent=1 // pred_fallthru
      _
    // Predicated region
    $region42: #{tpu_custom_call.1} parent=1 // pred_check
      _
    $region43: #{tpu_custom_call.1} parent=1 // pred_check_branch
      %101 = sbr.rel (0) target = $region45
    $region44: #{tpu_custom_call.1} parent=1 // pred_region
      _
    $region45: #{tpu_custom_call.1} parent=1 // pred_fallthru
      _
    // Predicated region
    $region46: #{tpu_custom_call.1} parent=1 // pred_check
      _
    $region47: #{tpu_custom_call.1} parent=1 // pred_check_branch
      %103 = sbr.rel (0) target = $region49
    $region48: #{tpu_custom_call.1} parent=1 // pred_region
      _
    $region49: #{tpu_custom_call.1} parent=1 // pred_fallthru
      _
    // Predicated region
    $region50: #{tpu_custom_call.1} parent=1 // pred_check
      _
    $region51: #{tpu_custom_call.1} parent=1 // pred_check_branch
      %105 = sbr.rel (0) target = $region53
    $region52: #{tpu_custom_call.1} parent=1 // pred_region
      %106 = dma.done [#allocation3], 128
    $region53: #{tpu_custom_call.1} parent=1 // pred_fallthru
      _
    // Predicated region
    $region54: #{tpu_custom_call.1} parent=1 // pred_check
      _
    $region55: #{tpu_custom_call.1} parent=1 // pred_check_branch
      %108 = sbr.rel (0) target = $region57
    $region56: #{tpu_custom_call.1} parent=1 // pred_region
      %109 = dma.done [#allocation6], 384
    $region57: #{tpu_custom_call.1} parent=1 // pred_fallthru
      _
    // Predicated region
    $region58: #{tpu_custom_call.1} parent=1 // pred_check
      _
    $region59: #{tpu_custom_call.1} parent=1 // pred_check_branch
      %111 = sbr.rel (0) target = $region61
    $region60: #{tpu_custom_call.1} parent=1 // pred_region
      %112 = dma.done [#allocation6], 48
    $region61: #{tpu_custom_call.1} parent=1 // pred_fallthru
      _
    // Predicated region
    $region62: #{tpu_custom_call.1} parent=1 // pred_check
      _
    $region63: #{tpu_custom_call.1} parent=1 // pred_check_branch
      %114 = sbr.rel (0) target = $region65
    $region64: #{tpu_custom_call.1} parent=1 // pred_region
      %115 = dma.done [#allocation9], 768
    $region65: #{tpu_custom_call.1} parent=1 // pred_fallthru
      _
    // Predicated region
    $region66: #{tpu_custom_call.1} parent=1 // pred_check
      _
    $region67: #{tpu_custom_call.1} parent=1 // pred_check_branch
      %117 = sbr.rel (0) target = $region69
    $region68: #{tpu_custom_call.1} parent=1 // pred_region
      %118 = dma.done [#allocation9], 768
    $region69: #{tpu_custom_call.1} parent=1 // pred_fallthru
      _
    // Predicated region
    $region70: #{tpu_custom_call.1} parent=1 // pred_check
      _
    $region71: #{tpu_custom_call.1} parent=1 // pred_check_branch
      %120 = sbr.rel (0) target = $region73
    $region72: #{tpu_custom_call.1} parent=1 // pred_region
      %121 = dma.done [#allocation12], 48
    $region73: #{tpu_custom_call.1} parent=1 // pred_fallthru
      _
    %v123 = vlaneseq
    %v124 = vand.u32 %v123, 127
    %v125 = vld [vmem:[#allocation7] sm:$0x1]
    %v127 = vlaneseq
    %v128 = vshrl.u32 %v127, 7
    %v129 = vsub.s32 0, %v128
    %v130 = vrot.slane %v125, %v129
    %s132 = scalar_lea.vmem [#allocation7], 1
    %v133 = vld [vmem:[%s132] sm:$0x1]
    %v135 = vlaneseq
    %v136 = vshrl.u32 %v135, 7
    %v137 = vsub.s32 0, %v136
    %v138 = vrot.slane %v133, %v137
    %s140 = scalar_lea.vmem [#allocation7], 2
    %v141 = vld [vmem:[%s140] sm:$0x1]
    %v143 = vlaneseq
    %v144 = vshrl.u32 %v143, 7
    %v145 = vsub.s32 0, %v144
    %v146 = vrot.slane %v141, %v145
    %v148 = vld [vmem:[#allocation11] sm:$0x1]
    %v150 = vlaneseq
    %v151 = vshrl.u32 %v150, 7
    %v152 = vsub.s32 0, %v151
    %v153 = vrot.slane %v148, %v152
    %s155 = scalar_lea.vmem [#allocation11], 1
    %v156 = vld [vmem:[%s155] sm:$0x1]
    %v158 = vlaneseq
    %v159 = vshrl.u32 %v158, 7
    %v160 = vsub.s32 0, %v159
    %v161 = vrot.slane %v156, %v160
    %s163 = scalar_lea.vmem [#allocation11], 2
    %v164 = vld [vmem:[%s163] sm:$0x1]
    %v166 = vlaneseq
    %v167 = vshrl.u32 %v166, 7
    %v168 = vsub.s32 0, %v167
    %v169 = vrot.slane %v164, %v168
    %v171 = vld [vmem:[%s11] sm:$0x1]
    %v173 = vlaneseq
    %v174 = vshrl.u32 %v173, 7
    %v175 = vsub.s32 0, %v174
    %v176 = vrot.slane %v171, %v175
    %v178 = vld [vmem:[%s2] sm:$0xf]
    %v179 = vld [vmem:[%s2 + $0x4] sm:$0xf]
    %v180 = vld [vmem:[%s2 + $0x8] sm:$0xf]
    %v181 = vld [vmem:[%s2 + $0xc] sm:$0xf]
    %v182 = vld [vmem:[%s2 + $0x10] sm:$0xf]
    %v183 = vld [vmem:[%s2 + $0x14] sm:$0xf]
    %v184 = vld [vmem:[%s2 + $0x18] sm:$0xf]
    %v185 = vld [vmem:[%s2 + $0x1c] sm:$0xf]
    %v186 = vld [vmem:[%s3] sm:$0xf]
    %v187 = vld [vmem:[%s3 + $0x4] sm:$0xf]
    %v188 = vld [vmem:[%s3 + $0x8] sm:$0xf]
    %v189 = vld [vmem:[%s3 + $0xc] sm:$0xf]
    %v198 = vunpack.c.l.b16 %v178
    %v199 = vunpack.c.l.b16 %v179
    %v200 = vunpack.c.l.b16 %v180
    %v201 = vunpack.c.l.b16 %v181
    %v202 = vunpack.c.l.b16 %v182
    %v203 = vunpack.c.l.b16 %v183
    %v204 = vunpack.c.l.b16 %v184
    %v205 = vunpack.c.l.b16 %v185
    %v206 = vpack.c.b16 %v199, %v198
    %v207 = vpack.c.b16 %v201, %v200
    %v208 = vpack.c.b16 %v203, %v202
    %v209 = vpack.c.b16 %v205, %v204
    %v214 = vunpack.c.l.b16 %v186
    %v215 = vunpack.c.l.b16 %v187
    %v216 = vunpack.c.l.b16 %v188
    %v217 = vunpack.c.l.b16 %v189
    %v218 = vpack.c.b16 %v215, %v214
    %v219 = vpack.c.b16 %v217, %v216
    %vm222 = vcmask 261120
    %v224 = vsel %vm222, %v206, 0
    %v227 = vsel %vm222, %v207, 0
    %v230 = vsel %vm222, %v208, 0
    %v233 = vsel %vm222, %v209, 0
    %235 = vmatprep.subr.bf16.mxu0 0
    %236 = vmatpush1.bf16.msra.mxu0 %v218
    %237 = vmatprep.subr.bf16.mxu0 0
    %238 = vmatpush1.bf16.msra.mxu0 %v219
    %239 = vmatprep.subr.bf16.mxu0 0
    %240 = vmatpush1.bf16.msra.mxu0 0
    %241 = vmatprep.subr.bf16.mxu0 0
    %242 = vmatpush1.bf16.msra.mxu0 0
    %243 = vmatprep.subr.bf16.mxu0 0
    %244 = vmatpush1.bf16.msra.mxu0 0
    %245 = vmatprep.subr.bf16.mxu0 0
    %246 = vmatpush1.bf16.msra.mxu0 0
    %247 = vmatprep.subr.bf16.mxu0 0
    %248 = vmatpush1.bf16.msra.mxu0 0
    %249 = vmatprep.subr.bf16.mxu0 0
    %250 = vmatpush1.bf16.msra.mxu0 0
    %251 = vmatprep.subr.bf16.mxu0 0
    %252 = vmatpush1.bf16.msra.mxu0 0
    %253 = vmatprep.subr.bf16.mxu0 0
    %254 = vmatpush1.bf16.msra.mxu0 0
    %255 = vmatprep.subr.bf16.mxu0 0
    %256 = vmatpush1.bf16.msra.mxu0 0
    %257 = vmatprep.subr.bf16.mxu0 0
    %258 = vmatpush1.bf16.msra.mxu0 0
    %259 = vmatprep.subr.bf16.mxu0 0
    %260 = vmatpush1.bf16.msra.mxu0 0
    %261 = vmatprep.subr.bf16.mxu0 0
    %262 = vmatpush1.bf16.msra.mxu0 0
    %263 = vmatprep.subr.bf16.mxu0 0
    %264 = vmatpush1.bf16.msra.mxu0 0
    %265 = vmatprep.subr.bf16.mxu0 0
    %266 = vmatpush1.bf16.msra.mxu0 0
    %267 = vmatprep.mubr.bf16.mxu0 0
    %268 = vmatmul.mubr.bf16.gmra.mrb[0].mxu0 %v224
    %v269 = vpop.f32.mrb[0].mxu0
    %v270 = vadd.f32 0.0, %v269
    %v271 = vpop.f32.mrb[0].mxu0
    %v272 = vpop.f32.mrb[0].mxu0
    %v273 = vadd.f32 0.0, %v272
    %v274 = vpop.f32.mrb[0].mxu0
    %275 = vmatprep.mubr.bf16.mxu0 0
    %276 = vmatmul.mubr.bf16.gmra.mrb[0].mxu0 %v227
    %v277 = vpop.f32.mrb[0].mxu0
    %v278 = vadd.f32 0.0, %v277
    %v279 = vpop.f32.mrb[0].mxu0
    %v280 = vpop.f32.mrb[0].mxu0
    %v281 = vadd.f32 0.0, %v280
    %v282 = vpop.f32.mrb[0].mxu0
    %283 = vmatprep.mubr.bf16.mxu0 0
    %284 = vmatmul.mubr.bf16.gmra.mrb[0].mxu0 %v230
    %v285 = vpop.f32.mrb[0].mxu0
    %v286 = vadd.f32 0.0, %v285
    %v287 = vpop.f32.mrb[0].mxu0
    %v288 = vpop.f32.mrb[0].mxu0
    %v289 = vadd.f32 0.0, %v288
    %v290 = vpop.f32.mrb[0].mxu0
    %291 = vmatprep.mubr.bf16.mxu0 0
    %292 = vmatmul.mubr.bf16.gmra.mrb[0].mxu0 %v233
    %v293 = vpop.f32.mrb[0].mxu0
    %v294 = vadd.f32 0.0, %v293
    %v295 = vpop.f32.mrb[0].mxu0
    %v296 = vpop.f32.mrb[0].mxu0
    %v297 = vadd.f32 0.0, %v296
    %v298 = vpop.f32.mrb[0].mxu0
    %299 = vdwg.mxu0
    %v300 = vpack.c.bf16 %v273, %v270
    %v301 = vpack.c.bf16 %v281, %v278
    %v302 = vpack.c.bf16 %v289, %v286
    %v303 = vpack.c.bf16 %v297, %v294
    %v304 = vld [vmem:[%s6] sm:$0xf]
    %v305 = vld [vmem:[%s6 + $0x4] sm:$0xf]
    %v306 = vld [vmem:[%s6 + $0x8] sm:$0xf]
    %v307 = vld [vmem:[%s6 + $0xc] sm:$0xf]
    %v308 = vld [vmem:[%s6 + $0x10] sm:$0xf]
    %v309 = vld [vmem:[%s6 + $0x14] sm:$0xf]
    %v310 = vld [vmem:[%s6 + $0x18] sm:$0xf]
    %v311 = vld [vmem:[%s6 + $0x1c] sm:$0xf]
    %v312 = vld [vmem:[#allocation8] sm:$0xf]
    %v313 = vld [vmem:[#allocation8 + $0x4] sm:$0xf]
    %v314 = vld [vmem:[#allocation8 + $0x8] sm:$0xf]
    %v315 = vld [vmem:[#allocation8 + $0xc] sm:$0xf]
    %v324 = vunpack.c.l.b16 %v304
    %v325 = vunpack.c.l.b16 %v305
    %v326 = vunpack.c.l.b16 %v306
    %v327 = vunpack.c.l.b16 %v307
    %v328 = vunpack.c.l.b16 %v308
    %v329 = vunpack.c.l.b16 %v309
    %v330 = vunpack.c.l.b16 %v310
    %v331 = vunpack.c.l.b16 %v311
    %v332 = vpack.c.b16 %v325, %v324
    %v333 = vpack.c.b16 %v327, %v326
    %v334 = vpack.c.b16 %v329, %v328
    %v335 = vpack.c.b16 %v331, %v330
    %v340 = vunpack.c.l.b16 %v312
    %v341 = vunpack.c.l.b16 %v313
    %v342 = vunpack.c.l.b16 %v314
    %v343 = vunpack.c.l.b16 %v315
    %v344 = vpack.c.b16 %v341, %v340
    %v345 = vpack.c.b16 %v343, %v342
    %v349 = vsel %vm222, %v332, 0
    %v352 = vsel %vm222, %v333, 0
    %v355 = vsel %vm222, %v334, 0
    %v358 = vsel %vm222, %v335, 0
    %360 = vmatprep.subr.bf16.mxu0 0
    %361 = vmatpush1.bf16.msra.mxu0 %v344
    %362 = vmatprep.subr.bf16.mxu0 0
    %363 = vmatpush1.bf16.msra.mxu0 %v345
    %364 = vmatprep.subr.bf16.mxu0 0
    %365 = vmatpush1.bf16.msra.mxu0 0
    %366 = vmatprep.subr.bf16.mxu0 0
    %367 = vmatpush1.bf16.msra.mxu0 0
    %368 = vmatprep.subr.bf16.mxu0 0
    %369 = vmatpush1.bf16.msra.mxu0 0
    %370 = vmatprep.subr.bf16.mxu0 0
    %371 = vmatpush1.bf16.msra.mxu0 0
    %372 = vmatprep.subr.bf16.mxu0 0
    %373 = vmatpush1.bf16.msra.mxu0 0
    %374 = vmatprep.subr.bf16.mxu0 0
    %375 = vmatpush1.bf16.msra.mxu0 0
    %376 = vmatprep.subr.bf16.mxu0 0
    %377 = vmatpush1.bf16.msra.mxu0 0
    %378 = vmatprep.subr.bf16.mxu0 0
    %379 = vmatpush1.bf16.msra.mxu0 0
    %380 = vmatprep.subr.bf16.mxu0 0
    %381 = vmatpush1.bf16.msra.mxu0 0
    %382 = vmatprep.subr.bf16.mxu0 0
    %383 = vmatpush1.bf16.msra.mxu0 0
    %384 = vmatprep.subr.bf16.mxu0 0
    %385 = vmatpush1.bf16.msra.mxu0 0
    %386 = vmatprep.subr.bf16.mxu0 0
    %387 = vmatpush1.bf16.msra.mxu0 0
    %388 = vmatprep.subr.bf16.mxu0 0
    %389 = vmatpush1.bf16.msra.mxu0 0
    %390 = vmatprep.subr.bf16.mxu0 0
    %391 = vmatpush1.bf16.msra.mxu0 0
    %392 = vmatprep.mubr.bf16.mxu0 0
    %393 = vmatmul.mubr.bf16.gmra.mrb[0].mxu0 %v349
    %v394 = vpop.f32.mrb[0].mxu0
    %v395 = vadd.f32 0.0, %v394
    %v396 = vpop.f32.mrb[0].mxu0
    %v397 = vpop.f32.mrb[0].mxu0
    %v398 = vadd.f32 0.0, %v397
    %v399 = vpop.f32.mrb[0].mxu0
    %400 = vmatprep.mubr.bf16.mxu0 0
    %401 = vmatmul.mubr.bf16.gmra.mrb[0].mxu0 %v352
    %v402 = vpop.f32.mrb[0].mxu0
    %v403 = vadd.f32 0.0, %v402
    %v404 = vpop.f32.mrb[0].mxu0
    %v405 = vpop.f32.mrb[0].mxu0
    %v406 = vadd.f32 0.0, %v405
    %v407 = vpop.f32.mrb[0].mxu0
    %408 = vmatprep.mubr.bf16.mxu0 0
    %409 = vmatmul.mubr.bf16.gmra.mrb[0].mxu0 %v355
    %v410 = vpop.f32.mrb[0].mxu0
    %v411 = vadd.f32 0.0, %v410
    %v412 = vpop.f32.mrb[0].mxu0
    %v413 = vpop.f32.mrb[0].mxu0
    %v414 = vadd.f32 0.0, %v413
    %v415 = vpop.f32.mrb[0].mxu0
    %416 = vmatprep.mubr.bf16.mxu0 0
    %417 = vmatmul.mubr.bf16.gmra.mrb[0].mxu0 %v358
    %v418 = vpop.f32.mrb[0].mxu0
    %v419 = vadd.f32 0.0, %v418
    %v420 = vpop.f32.mrb[0].mxu0
    %v421 = vpop.f32.mrb[0].mxu0
    %v422 = vadd.f32 0.0, %v421
    %v423 = vpop.f32.mrb[0].mxu0
    %424 = vdwg.mxu0
    %v425 = vpack.c.bf16 %v398, %v395
    %v426 = vpack.c.bf16 %v406, %v403
    %v427 = vpack.c.bf16 %v414, %v411
    %v428 = vpack.c.bf16 %v422, %v419
    %v429 = vld [vmem:[#allocation5] sm:$0xff]
    %v430 = vpack.c.bf16 %v429, %v429
    %s431 = scalar_lea.vmem [#allocation5], 8
    %v432 = vld [vmem:[%s431] sm:$0xff]
    %v433 = vpack.c.bf16 %v432, %v432
    %s434 = scalar_lea.vmem [#allocation5], 16
    %v435 = vld [vmem:[%s434] sm:$0xff]
    %v436 = vpack.c.bf16 %v435, %v435
    %v437 = vld [vmem:[#allocation2] sm:$0xff]
    %438 = vset.pattern.permute.xlu0 0
    %439 = vperm.xlu0 %438, %v437
    %v440 = vpop.permute.xlu0 %439
    %vm441 = vcmp.eq.s32.totalorder %v440, %v124
    %v442 = vsel %vm441, 1, 0
    %v443 = vcvt.s32.f32 %v442
    %v444 = vpack.c.bf16 %v443, %v443
    %v445 = vld [vmem:[%s4] sm:$0xf]
    %v446 = vld [vmem:[%s4 + $0x4] sm:$0xf]
    %v447 = vld [vmem:[%s4 + $0x8] sm:$0xf]
    %v448 = vld [vmem:[%s4 + $0xc] sm:$0xf]
    %v453 = vunpack.c.l.b16 %v445
    %v454 = vunpack.c.l.b16 %v446
    %v455 = vunpack.c.l.b16 %v447
    %v456 = vunpack.c.l.b16 %v448
    %v457 = vpack.c.b16 %v454, %v453
    %v458 = vpack.c.b16 %v456, %v455
    %v462 = vsel %vm222, %v430, 0
    %464 = vmatprep.subr.bf16.mxu0 0
    %465 = vmatpush1.bf16.msra.mxu0 %v457
    %466 = vmatprep.subr.bf16.mxu0 0
    %467 = vmatpush1.bf16.msra.mxu0 %v458
    %468 = vmatprep.subr.bf16.mxu0 0
    %469 = vmatpush1.bf16.msra.mxu0 0
    %470 = vmatprep.subr.bf16.mxu0 0
    %471 = vmatpush1.bf16.msra.mxu0 0
    %472 = vmatprep.subr.bf16.mxu0 0
    %473 = vmatpush1.bf16.msra.mxu0 0
    %474 = vmatprep.subr.bf16.mxu0 0
    %475 = vmatpush1.bf16.msra.mxu0 0
    %476 = vmatprep.subr.bf16.mxu0 0
    %477 = vmatpush1.bf16.msra.mxu0 0
    %478 = vmatprep.subr.bf16.mxu0 0
    %479 = vmatpush1.bf16.msra.mxu0 0
    %480 = vmatprep.subr.bf16.mxu0 0
    %481 = vmatpush1.bf16.msra.mxu0 0
    %482 = vmatprep.subr.bf16.mxu0 0
    %483 = vmatpush1.bf16.msra.mxu0 0
    %484 = vmatprep.subr.bf16.mxu0 0
    %485 = vmatpush1.bf16.msra.mxu0 0
    %486 = vmatprep.subr.bf16.mxu0 0
    %487 = vmatpush1.bf16.msra.mxu0 0
    %488 = vmatprep.subr.bf16.mxu0 0
    %489 = vmatpush1.bf16.msra.mxu0 0
    %490 = vmatprep.subr.bf16.mxu0 0
    %491 = vmatpush1.bf16.msra.mxu0 0
    %492 = vmatprep.subr.bf16.mxu0 0
    %493 = vmatpush1.bf16.msra.mxu0 0
    %494 = vmatprep.subr.bf16.mxu0 0
    %495 = vmatpush1.bf16.msra.mxu0 0
    %496 = vmatprep.mubr.bf16.mxu0 0
    %497 = vmatmul.mubr.bf16.gmra.mrb[0].mxu0 %v462
    %v498 = vpop.f32.mrb[0].mxu0
    %v499 = vadd.f32 0.0, %v498
    %v500 = vpop.f32.mrb[0].mxu0
    %v501 = vpop.f32.mrb[0].mxu0
    %v502 = vpop.f32.mrb[0].mxu0
    %503 = vdwg.mxu0
    %vm504 = vcmask 523264
    %v506 = vsel %vm504, %v444, 0
    %508 = vmatprep.subr.bf16.mxu0 0
    %509 = vmatpush1.bf16.msra.mxu0 %v300
    %510 = vmatprep.subr.bf16.mxu0 0
    %511 = vmatpush1.bf16.msra.mxu0 %v301
    %512 = vmatprep.subr.bf16.mxu0 0
    %513 = vmatpush1.bf16.msra.mxu0 %v302
    %514 = vmatprep.subr.bf16.mxu0 0
    %515 = vmatpush1.bf16.msra.mxu0 %v303
    %516 = vmatprep.subr.bf16.mxu0 0
    %517 = vmatpush1.bf16.msra.mxu0 0
    %518 = vmatprep.subr.bf16.mxu0 0
    %519 = vmatpush1.bf16.msra.mxu0 0
    %520 = vmatprep.subr.bf16.mxu0 0
    %521 = vmatpush1.bf16.msra.mxu0 0
    %522 = vmatprep.subr.bf16.mxu0 0
    %523 = vmatpush1.bf16.msra.mxu0 0
    %524 = vmatprep.subr.bf16.mxu0 0
    %525 = vmatpush1.bf16.msra.mxu0 0
    %526 = vmatprep.subr.bf16.mxu0 0
    %527 = vmatpush1.bf16.msra.mxu0 0
    %528 = vmatprep.subr.bf16.mxu0 0
    %529 = vmatpush1.bf16.msra.mxu0 0
    %530 = vmatprep.subr.bf16.mxu0 0
    %531 = vmatpush1.bf16.msra.mxu0 0
    %532 = vmatprep.subr.bf16.mxu0 0
    %533 = vmatpush1.bf16.msra.mxu0 0
    %534 = vmatprep.subr.bf16.mxu0 0
    %535 = vmatpush1.bf16.msra.mxu0 0
    %536 = vmatprep.subr.bf16.mxu0 0
    %537 = vmatpush1.bf16.msra.mxu0 0
    %538 = vmatprep.subr.bf16.mxu0 0
    %539 = vmatpush1.bf16.msra.mxu0 0
    %540 = vmatprep.mubr.bf16.mxu0 0
    %541 = vmatmul.mubr.bf16.gmra.mrb[0].mxu0 %v506
    %v542 = vpop.f32.mrb[0].mxu0
    %v543 = vadd.f32 %v499, %v542
    %v544 = vpop.f32.mrb[0].mxu0
    %v545 = vpop.f32.mrb[0].mxu0
    %v546 = vpop.f32.mrb[0].mxu0
    %547 = vdwg.mxu0
    %v548 = vadd.f32 %v543, %v130
    %v549 = vtanh.pop %v548
    %v550 = vpack.c.bf16 %v549, %v549
    %s551 = scalar_lea.vmem %s3, 16
    %v552 = vld [vmem:[%s551] sm:$0xf]
    %v553 = vld [vmem:[%s551 + $0x4] sm:$0xf]
    %v554 = vld [vmem:[%s551 + $0x8] sm:$0xf]
    %v555 = vld [vmem:[%s551 + $0xc] sm:$0xf]
    %s556 = scalar_lea.vmem %s4, 16
    %v557 = vld [vmem:[%s556] sm:$0xf]
    %v558 = vld [vmem:[%s556 + $0x4] sm:$0xf]
    %v559 = vld [vmem:[%s556 + $0x8] sm:$0xf]
    %v560 = vld [vmem:[%s556 + $0xc] sm:$0xf]
    %v565 = vunpack.c.l.b16 %v557
    %v566 = vunpack.c.l.b16 %v558
    %v567 = vunpack.c.l.b16 %v559
    %v568 = vunpack.c.l.b16 %v560
    %v569 = vpack.c.b16 %v566, %v565
    %v570 = vpack.c.b16 %v568, %v567
    %v574 = vsel %vm222, %v433, 0
    %576 = vmatprep.subr.bf16.mxu0 0
    %577 = vmatpush1.bf16.msra.mxu0 %v569
    %578 = vmatprep.subr.bf16.mxu0 0
    %579 = vmatpush1.bf16.msra.mxu0 %v570
    %580 = vmatprep.subr.bf16.mxu0 0
    %581 = vmatpush1.bf16.msra.mxu0 0
    %582 = vmatprep.subr.bf16.mxu0 0
    %583 = vmatpush1.bf16.msra.mxu0 0
    %584 = vmatprep.subr.bf16.mxu0 0
    %585 = vmatpush1.bf16.msra.mxu0 0
    %586 = vmatprep.subr.bf16.mxu0 0
    %587 = vmatpush1.bf16.msra.mxu0 0
    %588 = vmatprep.subr.bf16.mxu0 0
    %589 = vmatpush1.bf16.msra.mxu0 0
    %590 = vmatprep.subr.bf16.mxu0 0
    %591 = vmatpush1.bf16.msra.mxu0 0
    %592 = vmatprep.subr.bf16.mxu0 0
    %593 = vmatpush1.bf16.msra.mxu0 0
    %594 = vmatprep.subr.bf16.mxu0 0
    %595 = vmatpush1.bf16.msra.mxu0 0
    %596 = vmatprep.subr.bf16.mxu0 0
    %597 = vmatpush1.bf16.msra.mxu0 0
    %598 = vmatprep.subr.bf16.mxu0 0
    %599 = vmatpush1.bf16.msra.mxu0 0
    %600 = vmatprep.subr.bf16.mxu0 0
    %601 = vmatpush1.bf16.msra.mxu0 0
    %602 = vmatprep.subr.bf16.mxu0 0
    %603 = vmatpush1.bf16.msra.mxu0 0
    %604 = vmatprep.subr.bf16.mxu0 0
    %605 = vmatpush1.bf16.msra.mxu0 0
    %606 = vmatprep.subr.bf16.mxu0 0
    %607 = vmatpush1.bf16.msra.mxu0 0
    %608 = vmatprep.mubr.bf16.mxu0 0
    %609 = vmatmul.mubr.bf16.gmra.mrb[0].mxu0 %v574
    %v610 = vpop.f32.mrb[0].mxu0
    %v611 = vadd.f32 0.0, %v610
    %v612 = vpop.f32.mrb[0].mxu0
    %v613 = vpop.f32.mrb[0].mxu0
    %v614 = vpop.f32.mrb[0].mxu0
    %615 = vdwg.mxu0
    %v620 = vunpack.c.l.b16 %v552
    %v621 = vunpack.c.l.b16 %v553
    %v622 = vunpack.c.l.b16 %v554
    %v623 = vunpack.c.l.b16 %v555
    %v624 = vpack.c.b16 %v621, %v620
    %v625 = vpack.c.b16 %v623, %v622
    %v629 = vsel %vm222, %v550, 0
    %631 = vmatprep.subr.bf16.mxu0 0
    %632 = vmatpush1.bf16.msra.mxu0 %v624
    %633 = vmatprep.subr.bf16.mxu0 0
    %634 = vmatpush1.bf16.msra.mxu0 %v625
    %635 = vmatprep.subr.bf16.mxu0 0
    %636 = vmatpush1.bf16.msra.mxu0 0
    %637 = vmatprep.subr.bf16.mxu0 0
    %638 = vmatpush1.bf16.msra.mxu0 0
    %639 = vmatprep.subr.bf16.mxu0 0
    %640 = vmatpush1.bf16.msra.mxu0 0
    %641 = vmatprep.subr.bf16.mxu0 0
    %642 = vmatpush1.bf16.msra.mxu0 0
    %643 = vmatprep.subr.bf16.mxu0 0
    %644 = vmatpush1.bf16.msra.mxu0 0
    %645 = vmatprep.subr.bf16.mxu0 0
    %646 = vmatpush1.bf16.msra.mxu0 0
    %647 = vmatprep.subr.bf16.mxu0 0
    %648 = vmatpush1.bf16.msra.mxu0 0
    %649 = vmatprep.subr.bf16.mxu0 0
    %650 = vmatpush1.bf16.msra.mxu0 0
    %651 = vmatprep.subr.bf16.mxu0 0
    %652 = vmatpush1.bf16.msra.mxu0 0
    %653 = vmatprep.subr.bf16.mxu0 0
    %654 = vmatpush1.bf16.msra.mxu0 0
    %655 = vmatprep.subr.bf16.mxu0 0
    %656 = vmatpush1.bf16.msra.mxu0 0
    %657 = vmatprep.subr.bf16.mxu0 0
    %658 = vmatpush1.bf16.msra.mxu0 0
    %659 = vmatprep.subr.bf16.mxu0 0
    %660 = vmatpush1.bf16.msra.mxu0 0
    %661 = vmatprep.subr.bf16.mxu0 0
    %662 = vmatpush1.bf16.msra.mxu0 0
    %663 = vmatprep.mubr.bf16.mxu0 0
    %664 = vmatmul.mubr.bf16.gmra.mrb[0].mxu0 %v629
    %v665 = vpop.f32.mrb[0].mxu0
    %v666 = vadd.f32 %v611, %v665
    %v667 = vpop.f32.mrb[0].mxu0
    %v668 = vpop.f32.mrb[0].mxu0
    %v669 = vpop.f32.mrb[0].mxu0
    %670 = vdwg.mxu0
    %v671 = vadd.f32 %v666, %v138
    %v672 = vtanh.pop %v671
    %v673 = vpack.c.bf16 %v672, %v672
    %s674 = scalar_lea.vmem %s3, 32
    %v675 = vld [vmem:[%s674] sm:$0xf]
    %v676 = vld [vmem:[%s674 + $0x4] sm:$0xf]
    %v677 = vld [vmem:[%s674 + $0x8] sm:$0xf]
    %v678 = vld [vmem:[%s674 + $0xc] sm:$0xf]
    %s679 = scalar_lea.vmem %s4, 32
    %v680 = vld [vmem:[%s679] sm:$0xf]
    %v681 = vld [vmem:[%s679 + $0x4] sm:$0xf]
    %v682 = vld [vmem:[%s679 + $0x8] sm:$0xf]
    %v683 = vld [vmem:[%s679 + $0xc] sm:$0xf]
    %v688 = vunpack.c.l.b16 %v680
    %v689 = vunpack.c.l.b16 %v681
    %v690 = vunpack.c.l.b16 %v682
    %v691 = vunpack.c.l.b16 %v683
    %v692 = vpack.c.b16 %v689, %v688
    %v693 = vpack.c.b16 %v691, %v690
    %v697 = vsel %vm222, %v436, 0
    %699 = vmatprep.subr.bf16.mxu0 0
    %700 = vmatpush1.bf16.msra.mxu0 %v692
    %701 = vmatprep.subr.bf16.mxu0 0
    %702 = vmatpush1.bf16.msra.mxu0 %v693
    %703 = vmatprep.subr.bf16.mxu0 0
    %704 = vmatpush1.bf16.msra.mxu0 0
    %705 = vmatprep.subr.bf16.mxu0 0
    %706 = vmatpush1.bf16.msra.mxu0 0
    %707 = vmatprep.subr.bf16.mxu0 0
    %708 = vmatpush1.bf16.msra.mxu0 0
    %709 = vmatprep.subr.bf16.mxu0 0
    %710 = vmatpush1.bf16.msra.mxu0 0
    %711 = vmatprep.subr.bf16.mxu0 0
    %712 = vmatpush1.bf16.msra.mxu0 0
    %713 = vmatprep.subr.bf16.mxu0 0
    %714 = vmatpush1.bf16.msra.mxu0 0
    %715 = vmatprep.subr.bf16.mxu0 0
    %716 = vmatpush1.bf16.msra.mxu0 0
    %717 = vmatprep.subr.bf16.mxu0 0
    %718 = vmatpush1.bf16.msra.mxu0 0
    %719 = vmatprep.subr.bf16.mxu0 0
    %720 = vmatpush1.bf16.msra.mxu0 0
    %721 = vmatprep.subr.bf16.mxu0 0
    %722 = vmatpush1.bf16.msra.mxu0 0
    %723 = vmatprep.subr.bf16.mxu0 0
    %724 = vmatpush1.bf16.msra.mxu0 0
    %725 = vmatprep.subr.bf16.mxu0 0
    %726 = vmatpush1.bf16.msra.mxu0 0
    %727 = vmatprep.subr.bf16.mxu0 0
    %728 = vmatpush1.bf16.msra.mxu0 0
    %729 = vmatprep.subr.bf16.mxu0 0
    %730 = vmatpush1.bf16.msra.mxu0 0
    %731 = vmatprep.mubr.bf16.mxu0 0
    %732 = vmatmul.mubr.bf16.gmra.mrb[0].mxu0 %v697
    %v733 = vpop.f32.mrb[0].mxu0
    %v734 = vadd.f32 0.0, %v733
    %v735 = vpop.f32.mrb[0].mxu0
    %v736 = vpop.f32.mrb[0].mxu0
    %v737 = vpop.f32.mrb[0].mxu0
    %738 = vdwg.mxu0
    %v743 = vunpack.c.l.b16 %v675
    %v744 = vunpack.c.l.b16 %v676
    %v745 = vunpack.c.l.b16 %v677
    %v746 = vunpack.c.l.b16 %v678
    %v747 = vpack.c.b16 %v744, %v743
    %v748 = vpack.c.b16 %v746, %v745
    %v752 = vsel %vm222, %v673, 0
    %754 = vmatprep.subr.bf16.mxu0 0
    %755 = vmatpush1.bf16.msra.mxu0 %v747
    %756 = vmatprep.subr.bf16.mxu0 0
    %757 = vmatpush1.bf16.msra.mxu0 %v748
    %758 = vmatprep.subr.bf16.mxu0 0
    %759 = vmatpush1.bf16.msra.mxu0 0
    %760 = vmatprep.subr.bf16.mxu0 0
    %761 = vmatpush1.bf16.msra.mxu0 0
    %762 = vmatprep.subr.bf16.mxu0 0
    %763 = vmatpush1.bf16.msra.mxu0 0
    %764 = vmatprep.subr.bf16.mxu0 0
    %765 = vmatpush1.bf16.msra.mxu0 0
    %766 = vmatprep.subr.bf16.mxu0 0
    %767 = vmatpush1.bf16.msra.mxu0 0
    %768 = vmatprep.subr.bf16.mxu0 0
    %769 = vmatpush1.bf16.msra.mxu0 0
    %770 = vmatprep.subr.bf16.mxu0 0
    %771 = vmatpush1.bf16.msra.mxu0 0
    %772 = vmatprep.subr.bf16.mxu0 0
    %773 = vmatpush1.bf16.msra.mxu0 0
    %774 = vmatprep.subr.bf16.mxu0 0
    %775 = vmatpush1.bf16.msra.mxu0 0
    %776 = vmatprep.subr.bf16.mxu0 0
    %777 = vmatpush1.bf16.msra.mxu0 0
    %778 = vmatprep.subr.bf16.mxu0 0
    %779 = vmatpush1.bf16.msra.mxu0 0
    %780 = vmatprep.subr.bf16.mxu0 0
    %781 = vmatpush1.bf16.msra.mxu0 0
    %782 = vmatprep.subr.bf16.mxu0 0
    %783 = vmatpush1.bf16.msra.mxu0 0
    %784 = vmatprep.subr.bf16.mxu0 0
    %785 = vmatpush1.bf16.msra.mxu0 0
    %786 = vmatprep.mubr.bf16.mxu0 0
    %787 = vmatmul.mubr.bf16.gmra.mrb[0].mxu0 %v752
    %v788 = vpop.f32.mrb[0].mxu0
    %v789 = vadd.f32 %v734, %v788
    %v790 = vpop.f32.mrb[0].mxu0
    %v791 = vpop.f32.mrb[0].mxu0
    %v792 = vpop.f32.mrb[0].mxu0
    %793 = vdwg.mxu0
    %v794 = vadd.f32 %v789, %v146
    %v795 = vtanh.pop %v794
    %v796 = vpack.c.bf16 %v795, %v795
    %797 = vset.pattern.permute.xlu0 1
    %798 = vperm.xlu0 %797, %v437
    %v799 = vpop.permute.xlu0 %798
    %vm800 = vcmp.eq.s32.totalorder %v799, %v124
    %v801 = vsel %vm800, 1, 0
    %v802 = vcvt.s32.f32 %v801
    %v803 = vpack.c.bf16 %v802, %v802
    %804 = vmatprep.subr.bf16.mxu0 0
    %805 = vmatpush1.bf16.msra.mxu0 %v457
    %806 = vmatprep.subr.bf16.mxu0 0
    %807 = vmatpush1.bf16.msra.mxu0 %v458
    %808 = vmatprep.subr.bf16.mxu0 0
    %809 = vmatpush1.bf16.msra.mxu0 0
    %810 = vmatprep.subr.bf16.mxu0 0
    %811 = vmatpush1.bf16.msra.mxu0 0
    %812 = vmatprep.subr.bf16.mxu0 0
    %813 = vmatpush1.bf16.msra.mxu0 0
    %814 = vmatprep.subr.bf16.mxu0 0
    %815 = vmatpush1.bf16.msra.mxu0 0
    %816 = vmatprep.subr.bf16.mxu0 0
    %817 = vmatpush1.bf16.msra.mxu0 0
    %818 = vmatprep.subr.bf16.mxu0 0
    %819 = vmatpush1.bf16.msra.mxu0 0
    %820 = vmatprep.subr.bf16.mxu0 0
    %821 = vmatpush1.bf16.msra.mxu0 0
    %822 = vmatprep.subr.bf16.mxu0 0
    %823 = vmatpush1.bf16.msra.mxu0 0
    %824 = vmatprep.subr.bf16.mxu0 0
    %825 = vmatpush1.bf16.msra.mxu0 0
    %826 = vmatprep.subr.bf16.mxu0 0
    %827 = vmatpush1.bf16.msra.mxu0 0
    %828 = vmatprep.subr.bf16.mxu0 0
    %829 = vmatpush1.bf16.msra.mxu0 0
    %830 = vmatprep.subr.bf16.mxu0 0
    %831 = vmatpush1.bf16.msra.mxu0 0
    %832 = vmatprep.subr.bf16.mxu0 0
    %833 = vmatpush1.bf16.msra.mxu0 0
    %834 = vmatprep.subr.bf16.mxu0 0
    %835 = vmatpush1.bf16.msra.mxu0 0
    %836 = vmatprep.mubr.bf16.mxu0 0
    %837 = vmatmul.mubr.bf16.gmra.mrb[0].mxu0 %v629
    %v838 = vpop.f32.mrb[0].mxu0
    %v839 = vadd.f32 0.0, %v838
    %v840 = vpop.f32.mrb[0].mxu0
    %v841 = vpop.f32.mrb[0].mxu0
    %v842 = vpop.f32.mrb[0].mxu0
    %843 = vdwg.mxu0
    %v845 = vsel %vm504, %v803, 0
    %847 = vmatprep.subr.bf16.mxu0 0
    %848 = vmatpush1.bf16.msra.mxu0 %v300
    %849 = vmatprep.subr.bf16.mxu0 0
    %850 = vmatpush1.bf16.msra.mxu0 %v301
    %851 = vmatprep.subr.bf16.mxu0 0
    %852 = vmatpush1.bf16.msra.mxu0 %v302
    %853 = vmatprep.subr.bf16.mxu0 0
    %854 = vmatpush1.bf16.msra.mxu0 %v303
    %855 = vmatprep.subr.bf16.mxu0 0
    %856 = vmatpush1.bf16.msra.mxu0 0
    %857 = vmatprep.subr.bf16.mxu0 0
    %858 = vmatpush1.bf16.msra.mxu0 0
    %859 = vmatprep.subr.bf16.mxu0 0
    %860 = vmatpush1.bf16.msra.mxu0 0
    %861 = vmatprep.subr.bf16.mxu0 0
    %862 = vmatpush1.bf16.msra.mxu0 0
    %863 = vmatprep.subr.bf16.mxu0 0
    %864 = vmatpush1.bf16.msra.mxu0 0
    %865 = vmatprep.subr.bf16.mxu0 0
    %866 = vmatpush1.bf16.msra.mxu0 0
    %867 = vmatprep.subr.bf16.mxu0 0
    %868 = vmatpush1.bf16.msra.mxu0 0
    %869 = vmatprep.subr.bf16.mxu0 0
    %870 = vmatpush1.bf16.msra.mxu0 0
    %871 = vmatprep.subr.bf16.mxu0 0
    %872 = vmatpush1.bf16.msra.mxu0 0
    %873 = vmatprep.subr.bf16.mxu0 0
    %874 = vmatpush1.bf16.msra.mxu0 0
    %875 = vmatprep.subr.bf16.mxu0 0
    %876 = vmatpush1.bf16.msra.mxu0 0
    %877 = vmatprep.subr.bf16.mxu0 0
    %878 = vmatpush1.bf16.msra.mxu0 0
    %879 = vmatprep.mubr.bf16.mxu0 0
    %880 = vmatmul.mubr.bf16.gmra.mrb[0].mxu0 %v845
    %v881 = vpop.f32.mrb[0].mxu0
    %v882 = vadd.f32 %v839, %v881
    %v883 = vpop.f32.mrb[0].mxu0
    %v884 = vpop.f32.mrb[0].mxu0
    %v885 = vpop.f32.mrb[0].mxu0
    %886 = vdwg.mxu0
    %v887 = vadd.f32 %v882, %v130
    %v888 = vtanh.pop %v887
    %v889 = vpack.c.bf16 %v888, %v888
    %890 = vmatprep.subr.bf16.mxu0 0
    %891 = vmatpush1.bf16.msra.mxu0 %v569
    %892 = vmatprep.subr.bf16.mxu0 0
    %893 = vmatpush1.bf16.msra.mxu0 %v570
    %894 = vmatprep.subr.bf16.mxu0 0
    %895 = vmatpush1.bf16.msra.mxu0 0
    %896 = vmatprep.subr.bf16.mxu0 0
    %897 = vmatpush1.bf16.msra.mxu0 0
    %898 = vmatprep.subr.bf16.mxu0 0
    %899 = vmatpush1.bf16.msra.mxu0 0
    %900 = vmatprep.subr.bf16.mxu0 0
    %901 = vmatpush1.bf16.msra.mxu0 0
    %902 = vmatprep.subr.bf16.mxu0 0
    %903 = vmatpush1.bf16.msra.mxu0 0
    %904 = vmatprep.subr.bf16.mxu0 0
    %905 = vmatpush1.bf16.msra.mxu0 0
    %906 = vmatprep.subr.bf16.mxu0 0
    %907 = vmatpush1.bf16.msra.mxu0 0
    %908 = vmatprep.subr.bf16.mxu0 0
    %909 = vmatpush1.bf16.msra.mxu0 0
    %910 = vmatprep.subr.bf16.mxu0 0
    %911 = vmatpush1.bf16.msra.mxu0 0
    %912 = vmatprep.subr.bf16.mxu0 0
    %913 = vmatpush1.bf16.msra.mxu0 0
    %914 = vmatprep.subr.bf16.mxu0 0
    %915 = vmatpush1.bf16.msra.mxu0 0
    %916 = vmatprep.subr.bf16.mxu0 0
    %917 = vmatpush1.bf16.msra.mxu0 0
    %918 = vmatprep.subr.bf16.mxu0 0
    %919 = vmatpush1.bf16.msra.mxu0 0
    %920 = vmatprep.subr.bf16.mxu0 0
    %921 = vmatpush1.bf16.msra.mxu0 0
    %922 = vmatprep.mubr.bf16.mxu0 0
    %923 = vmatmul.mubr.bf16.gmra.mrb[0].mxu0 %v752
    %v924 = vpop.f32.mrb[0].mxu0
    %v925 = vadd.f32 0.0, %v924
    %v926 = vpop.f32.mrb[0].mxu0
    %v927 = vpop.f32.mrb[0].mxu0
    %v928 = vpop.f32.mrb[0].mxu0
    %929 = vdwg.mxu0
    %v931 = vsel %vm222, %v889, 0
    %933 = vmatprep.subr.bf16.mxu0 0
    %934 = vmatpush1.bf16.msra.mxu0 %v624
    %935 = vmatprep.subr.bf16.mxu0 0
    %936 = vmatpush1.bf16.msra.mxu0 %v625
    %937 = vmatprep.subr.bf16.mxu0 0
    %938 = vmatpush1.bf16.msra.mxu0 0
    %939 = vmatprep.subr.bf16.mxu0 0
    %940 = vmatpush1.bf16.msra.mxu0 0
    %941 = vmatprep.subr.bf16.mxu0 0
    %942 = vmatpush1.bf16.msra.mxu0 0
    %943 = vmatprep.subr.bf16.mxu0 0
    %944 = vmatpush1.bf16.msra.mxu0 0
    %945 = vmatprep.subr.bf16.mxu0 0
    %946 = vmatpush1.bf16.msra.mxu0 0
    %947 = vmatprep.subr.bf16.mxu0 0
    %948 = vmatpush1.bf16.msra.mxu0 0
    %949 = vmatprep.subr.bf16.mxu0 0
    %950 = vmatpush1.bf16.msra.mxu0 0
    %951 = vmatprep.subr.bf16.mxu0 0
    %952 = vmatpush1.bf16.msra.mxu0 0
    %953 = vmatprep.subr.bf16.mxu0 0
    %954 = vmatpush1.bf16.msra.mxu0 0
    %955 = vmatprep.subr.bf16.mxu0 0
    %956 = vmatpush1.bf16.msra.mxu0 0
    %957 = vmatprep.subr.bf16.mxu0 0
    %958 = vmatpush1.bf16.msra.mxu0 0
    %959 = vmatprep.subr.bf16.mxu0 0
    %960 = vmatpush1.bf16.msra.mxu0 0
    %961 = vmatprep.subr.bf16.mxu0 0
    %962 = vmatpush1.bf16.msra.mxu0 0
    %963 = vmatprep.subr.bf16.mxu0 0
    %964 = vmatpush1.bf16.msra.mxu0 0
    %965 = vmatprep.mubr.bf16.mxu0 0
    %966 = vmatmul.mubr.bf16.gmra.mrb[0].mxu0 %v931
    %v967 = vpop.f32.mrb[0].mxu0
    %v968 = vadd.f32 %v925, %v967
    %v969 = vpop.f32.mrb[0].mxu0
    %v970 = vpop.f32.mrb[0].mxu0
    %v971 = vpop.f32.mrb[0].mxu0
    %972 = vdwg.mxu0
    %v973 = vadd.f32 %v968, %v138
    %v974 = vtanh.pop %v973
    %v975 = vpack.c.bf16 %v974, %v974
    %v977 = vsel %vm222, %v796, 0
    %979 = vmatprep.subr.bf16.mxu0 0
    %980 = vmatpush1.bf16.msra.mxu0 %v692
    %981 = vmatprep.subr.bf16.mxu0 0
    %982 = vmatpush1.bf16.msra.mxu0 %v693
    %983 = vmatprep.subr.bf16.mxu0 0
    %984 = vmatpush1.bf16.msra.mxu0 0
    %985 = vmatprep.subr.bf16.mxu0 0
    %986 = vmatpush1.bf16.msra.mxu0 0
    %987 = vmatprep.subr.bf16.mxu0 0
    %988 = vmatpush1.bf16.msra.mxu0 0
    %989 = vmatprep.subr.bf16.mxu0 0
    %990 = vmatpush1.bf16.msra.mxu0 0
    %991 = vmatprep.subr.bf16.mxu0 0
    %992 = vmatpush1.bf16.msra.mxu0 0
    %993 = vmatprep.subr.bf16.mxu0 0
    %994 = vmatpush1.bf16.msra.mxu0 0
    %995 = vmatprep.subr.bf16.mxu0 0
    %996 = vmatpush1.bf16.msra.mxu0 0
    %997 = vmatprep.subr.bf16.mxu0 0
    %998 = vmatpush1.bf16.msra.mxu0 0
    %999 = vmatprep.subr.bf16.mxu0 0
    %1000 = vmatpush1.bf16.msra.mxu0 0
    %1001 = vmatprep.subr.bf16.mxu0 0
    %1002 = vmatpush1.bf16.msra.mxu0 0
    %1003 = vmatprep.subr.bf16.mxu0 0
    %1004 = vmatpush1.bf16.msra.mxu0 0
    %1005 = vmatprep.subr.bf16.mxu0 0
    %1006 = vmatpush1.bf16.msra.mxu0 0
    %1007 = vmatprep.subr.bf16.mxu0 0
    %1008 = vmatpush1.bf16.msra.mxu0 0
    %1009 = vmatprep.subr.bf16.mxu0 0
    %1010 = vmatpush1.bf16.msra.mxu0 0
    %1011 = vmatprep.mubr.bf16.mxu0 0
    %1012 = vmatmul.mubr.bf16.gmra.mrb[0].mxu0 %v977
    %v1013 = vpop.f32.mrb[0].mxu0
    %v1014 = vadd.f32 0.0, %v1013
    %v1015 = vpop.f32.mrb[0].mxu0
    %v1016 = vpop.f32.mrb[0].mxu0
    %v1017 = vpop.f32.mrb[0].mxu0
    %1018 = vdwg.mxu0
    %v1020 = vsel %vm222, %v975, 0
    %1022 = vmatprep.subr.bf16.mxu0 0
    %1023 = vmatpush1.bf16.msra.mxu0 %v747
    %1024 = vmatprep.subr.bf16.mxu0 0
    %1025 = vmatpush1.bf16.msra.mxu0 %v748
    %1026 = vmatprep.subr.bf16.mxu0 0
    %1027 = vmatpush1.bf16.msra.mxu0 0
    %1028 = vmatprep.subr.bf16.mxu0 0
    %1029 = vmatpush1.bf16.msra.mxu0 0
    %1030 = vmatprep.subr.bf16.mxu0 0
    %1031 = vmatpush1.bf16.msra.mxu0 0
    %1032 = vmatprep.subr.bf16.mxu0 0
    %1033 = vmatpush1.bf16.msra.mxu0 0
    %1034 = vmatprep.subr.bf16.mxu0 0
    %1035 = vmatpush1.bf16.msra.mxu0 0
    %1036 = vmatprep.subr.bf16.mxu0 0
    %1037 = vmatpush1.bf16.msra.mxu0 0
    %1038 = vmatprep.subr.bf16.mxu0 0
    %1039 = vmatpush1.bf16.msra.mxu0 0
    %1040 = vmatprep.subr.bf16.mxu0 0
    %1041 = vmatpush1.bf16.msra.mxu0 0
    %1042 = vmatprep.subr.bf16.mxu0 0
    %1043 = vmatpush1.bf16.msra.mxu0 0
    %1044 = vmatprep.subr.bf16.mxu0 0
    %1045 = vmatpush1.bf16.msra.mxu0 0
    %1046 = vmatprep.subr.bf16.mxu0 0
    %1047 = vmatpush1.bf16.msra.mxu0 0
    %1048 = vmatprep.subr.bf16.mxu0 0
    %1049 = vmatpush1.bf16.msra.mxu0 0
    %1050 = vmatprep.subr.bf16.mxu0 0
    %1051 = vmatpush1.bf16.msra.mxu0 0
    %1052 = vmatprep.subr.bf16.mxu0 0
    %1053 = vmatpush1.bf16.msra.mxu0 0
    %1054 = vmatprep.mubr.bf16.mxu0 0
    %1055 = vmatmul.mubr.bf16.gmra.mrb[0].mxu0 %v1020
    %v1056 = vpop.f32.mrb[0].mxu0
    %v1057 = vadd.f32 %v1014, %v1056
    %v1058 = vpop.f32.mrb[0].mxu0
    %v1059 = vpop.f32.mrb[0].mxu0
    %v1060 = vpop.f32.mrb[0].mxu0
    %1061 = vdwg.mxu0
    %v1062 = vadd.f32 %v1057, %v146
    %v1063 = vtanh.pop %v1062
    %v1064 = vpack.c.bf16 %v1063, %v1063
    %1065 = vset.pattern.permute.xlu0 2
    %1066 = vperm.xlu0 %1065, %v437
    %v1067 = vpop.permute.xlu0 %1066
    %vm1068 = vcmp.eq.s32.totalorder %v1067, %v124
    %v1069 = vsel %vm1068, 1, 0
    %v1070 = vcvt.s32.f32 %v1069
    %v1071 = vpack.c.bf16 %v1070, %v1070
    %1072 = vmatprep.subr.bf16.mxu0 0
    %1073 = vmatpush1.bf16.msra.mxu0 %v457
    %1074 = vmatprep.subr.bf16.mxu0 0
    %1075 = vmatpush1.bf16.msra.mxu0 %v458
    %1076 = vmatprep.subr.bf16.mxu0 0
    %1077 = vmatpush1.bf16.msra.mxu0 0
    %1078 = vmatprep.subr.bf16.mxu0 0
    %1079 = vmatpush1.bf16.msra.mxu0 0
    %1080 = vmatprep.subr.bf16.mxu0 0
    %1081 = vmatpush1.bf16.msra.mxu0 0
    %1082 = vmatprep.subr.bf16.mxu0 0
    %1083 = vmatpush1.bf16.msra.mxu0 0
    %1084 = vmatprep.subr.bf16.mxu0 0
    %1085 = vmatpush1.bf16.msra.mxu0 0
    %1086 = vmatprep.subr.bf16.mxu0 0
    %1087 = vmatpush1.bf16.msra.mxu0 0
    %1088 = vmatprep.subr.bf16.mxu0 0
    %1089 = vmatpush1.bf16.msra.mxu0 0
    %1090 = vmatprep.subr.bf16.mxu0 0
    %1091 = vmatpush1.bf16.msra.mxu0 0
    %1092 = vmatprep.subr.bf16.mxu0 0
    %1093 = vmatpush1.bf16.msra.mxu0 0
    %1094 = vmatprep.subr.bf16.mxu0 0
    %1095 = vmatpush1.bf16.msra.mxu0 0
    %1096 = vmatprep.subr.bf16.mxu0 0
    %1097 = vmatpush1.bf16.msra.mxu0 0
    %1098 = vmatprep.subr.bf16.mxu0 0
    %1099 = vmatpush1.bf16.msra.mxu0 0
    %1100 = vmatprep.subr.bf16.mxu0 0
    %1101 = vmatpush1.bf16.msra.mxu0 0
    %1102 = vmatprep.subr.bf16.mxu0 0
    %1103 = vmatpush1.bf16.msra.mxu0 0
    %1104 = vmatprep.mubr.bf16.mxu0 0
    %1105 = vmatmul.mubr.bf16.gmra.mrb[0].mxu0 %v931
    %v1106 = vpop.f32.mrb[0].mxu0
    %v1107 = vadd.f32 0.0, %v1106
    %v1108 = vpop.f32.mrb[0].mxu0
    %v1109 = vpop.f32.mrb[0].mxu0
    %v1110 = vpop.f32.mrb[0].mxu0
    %1111 = vdwg.mxu0
    %v1113 = vsel %vm504, %v1071, 0
    %1115 = vmatprep.subr.bf16.mxu0 0
    %1116 = vmatpush1.bf16.msra.mxu0 %v300
    %1117 = vmatprep.subr.bf16.mxu0 0
    %1118 = vmatpush1.bf16.msra.mxu0 %v301
    %1119 = vmatprep.subr.bf16.mxu0 0
    %1120 = vmatpush1.bf16.msra.mxu0 %v302
    %1121 = vmatprep.subr.bf16.mxu0 0
    %1122 = vmatpush1.bf16.msra.mxu0 %v303
    %1123 = vmatprep.subr.bf16.mxu0 0
    %1124 = vmatpush1.bf16.msra.mxu0 0
    %1125 = vmatprep.subr.bf16.mxu0 0
    %1126 = vmatpush1.bf16.msra.mxu0 0
    %1127 = vmatprep.subr.bf16.mxu0 0
    %1128 = vmatpush1.bf16.msra.mxu0 0
    %1129 = vmatprep.subr.bf16.mxu0 0
    %1130 = vmatpush1.bf16.msra.mxu0 0
    %1131 = vmatprep.subr.bf16.mxu0 0
    %1132 = vmatpush1.bf16.msra.mxu0 0
    %1133 = vmatprep.subr.bf16.mxu0 0
    %1134 = vmatpush1.bf16.msra.mxu0 0
    %1135 = vmatprep.subr.bf16.mxu0 0
    %1136 = vmatpush1.bf16.msra.mxu0 0
    %1137 = vmatprep.subr.bf16.mxu0 0
    %1138 = vmatpush1.bf16.msra.mxu0 0
    %1139 = vmatprep.subr.bf16.mxu0 0
    %1140 = vmatpush1.bf16.msra.mxu0 0
    %1141 = vmatprep.subr.bf16.mxu0 0
    %1142 = vmatpush1.bf16.msra.mxu0 0
    %1143 = vmatprep.subr.bf16.mxu0 0
    %1144 = vmatpush1.bf16.msra.mxu0 0
    %1145 = vmatprep.subr.bf16.mxu0 0
    %1146 = vmatpush1.bf16.msra.mxu0 0
    %1147 = vmatprep.mubr.bf16.mxu0 0
    %1148 = vmatmul.mubr.bf16.gmra.mrb[0].mxu0 %v1113
    %v1149 = vpop.f32.mrb[0].mxu0
    %v1150 = vadd.f32 %v1107, %v1149
    %v1151 = vpop.f32.mrb[0].mxu0
    %v1152 = vpop.f32.mrb[0].mxu0
    %v1153 = vpop.f32.mrb[0].mxu0
    %1154 = vdwg.mxu0
    %v1155 = vadd.f32 %v1150, %v130
    %v1156 = vtanh.pop %v1155
    %v1157 = vpack.c.bf16 %v1156, %v1156
    %1158 = vmatprep.subr.bf16.mxu0 0
    %1159 = vmatpush1.bf16.msra.mxu0 %v569
    %1160 = vmatprep.subr.bf16.mxu0 0
    %1161 = vmatpush1.bf16.msra.mxu0 %v570
    %1162 = vmatprep.subr.bf16.mxu0 0
    %1163 = vmatpush1.bf16.msra.mxu0 0
    %1164 = vmatprep.subr.bf16.mxu0 0
    %1165 = vmatpush1.bf16.msra.mxu0 0
    %1166 = vmatprep.subr.bf16.mxu0 0
    %1167 = vmatpush1.bf16.msra.mxu0 0
    %1168 = vmatprep.subr.bf16.mxu0 0
    %1169 = vmatpush1.bf16.msra.mxu0 0
    %1170 = vmatprep.subr.bf16.mxu0 0
    %1171 = vmatpush1.bf16.msra.mxu0 0
    %1172 = vmatprep.subr.bf16.mxu0 0
    %1173 = vmatpush1.bf16.msra.mxu0 0
    %1174 = vmatprep.subr.bf16.mxu0 0
    %1175 = vmatpush1.bf16.msra.mxu0 0
    %1176 = vmatprep.subr.bf16.mxu0 0
    %1177 = vmatpush1.bf16.msra.mxu0 0
    %1178 = vmatprep.subr.bf16.mxu0 0
    %1179 = vmatpush1.bf16.msra.mxu0 0
    %1180 = vmatprep.subr.bf16.mxu0 0
    %1181 = vmatpush1.bf16.msra.mxu0 0
    %1182 = vmatprep.subr.bf16.mxu0 0
    %1183 = vmatpush1.bf16.msra.mxu0 0
    %1184 = vmatprep.subr.bf16.mxu0 0
    %1185 = vmatpush1.bf16.msra.mxu0 0
    %1186 = vmatprep.subr.bf16.mxu0 0
    %1187 = vmatpush1.bf16.msra.mxu0 0
    %1188 = vmatprep.subr.bf16.mxu0 0
    %1189 = vmatpush1.bf16.msra.mxu0 0
    %1190 = vmatprep.mubr.bf16.mxu0 0
    %1191 = vmatmul.mubr.bf16.gmra.mrb[0].mxu0 %v1020
    %v1192 = vpop.f32.mrb[0].mxu0
    %v1193 = vadd.f32 0.0, %v1192
    %v1194 = vpop.f32.mrb[0].mxu0
    %v1195 = vpop.f32.mrb[0].mxu0
    %v1196 = vpop.f32.mrb[0].mxu0
    %1197 = vdwg.mxu0
    %v1199 = vsel %vm222, %v1157, 0
    %1201 = vmatprep.subr.bf16.mxu0 0
    %1202 = vmatpush1.bf16.msra.mxu0 %v624
    %1203 = vmatprep.subr.bf16.mxu0 0
    %1204 = vmatpush1.bf16.msra.mxu0 %v625
    %1205 = vmatprep.subr.bf16.mxu0 0
    %1206 = vmatpush1.bf16.msra.mxu0 0
    %1207 = vmatprep.subr.bf16.mxu0 0
    %1208 = vmatpush1.bf16.msra.mxu0 0
    %1209 = vmatprep.subr.bf16.mxu0 0
    %1210 = vmatpush1.bf16.msra.mxu0 0
    %1211 = vmatprep.subr.bf16.mxu0 0
    %1212 = vmatpush1.bf16.msra.mxu0 0
    %1213 = vmatprep.subr.bf16.mxu0 0
    %1214 = vmatpush1.bf16.msra.mxu0 0
    %1215 = vmatprep.subr.bf16.mxu0 0
    %1216 = vmatpush1.bf16.msra.mxu0 0
    %1217 = vmatprep.subr.bf16.mxu0 0
    %1218 = vmatpush1.bf16.msra.mxu0 0
    %1219 = vmatprep.subr.bf16.mxu0 0
    %1220 = vmatpush1.bf16.msra.mxu0 0
    %1221 = vmatprep.subr.bf16.mxu0 0
    %1222 = vmatpush1.bf16.msra.mxu0 0
    %1223 = vmatprep.subr.bf16.mxu0 0
    %1224 = vmatpush1.bf16.msra.mxu0 0
    %1225 = vmatprep.subr.bf16.mxu0 0
    %1226 = vmatpush1.bf16.msra.mxu0 0
    %1227 = vmatprep.subr.bf16.mxu0 0
    %1228 = vmatpush1.bf16.msra.mxu0 0
    %1229 = vmatprep.subr.bf16.mxu0 0
    %1230 = vmatpush1.bf16.msra.mxu0 0
    %1231 = vmatprep.subr.bf16.mxu0 0
    %1232 = vmatpush1.bf16.msra.mxu0 0
    %1233 = vmatprep.mubr.bf16.mxu0 0
    %1234 = vmatmul.mubr.bf16.gmra.mrb[0].mxu0 %v1199
    %v1235 = vpop.f32.mrb[0].mxu0
    %v1236 = vadd.f32 %v1193, %v1235
    %v1237 = vpop.f32.mrb[0].mxu0
    %v1238 = vpop.f32.mrb[0].mxu0
    %v1239 = vpop.f32.mrb[0].mxu0
    %1240 = vdwg.mxu0
    %v1241 = vadd.f32 %v1236, %v138
    %v1242 = vtanh.pop %v1241
    %v1243 = vpack.c.bf16 %v1242, %v1242
    %v1245 = vsel %vm222, %v1064, 0
    %1247 = vmatprep.subr.bf16.mxu0 0
    %1248 = vmatpush1.bf16.msra.mxu0 %v692
    %1249 = vmatprep.subr.bf16.mxu0 0
    %1250 = vmatpush1.bf16.msra.mxu0 %v693
    %1251 = vmatprep.subr.bf16.mxu0 0
    %1252 = vmatpush1.bf16.msra.mxu0 0
    %1253 = vmatprep.subr.bf16.mxu0 0
    %1254 = vmatpush1.bf16.msra.mxu0 0
    %1255 = vmatprep.subr.bf16.mxu0 0
    %1256 = vmatpush1.bf16.msra.mxu0 0
    %1257 = vmatprep.subr.bf16.mxu0 0
    %1258 = vmatpush1.bf16.msra.mxu0 0
    %1259 = vmatprep.subr.bf16.mxu0 0
    %1260 = vmatpush1.bf16.msra.mxu0 0
    %1261 = vmatprep.subr.bf16.mxu0 0
    %1262 = vmatpush1.bf16.msra.mxu0 0
    %1263 = vmatprep.subr.bf16.mxu0 0
    %1264 = vmatpush1.bf16.msra.mxu0 0
    %1265 = vmatprep.subr.bf16.mxu0 0
    %1266 = vmatpush1.bf16.msra.mxu0 0
    %1267 = vmatprep.subr.bf16.mxu0 0
    %1268 = vmatpush1.bf16.msra.mxu0 0
    %1269 = vmatprep.subr.bf16.mxu0 0
    %1270 = vmatpush1.bf16.msra.mxu0 0
    %1271 = vmatprep.subr.bf16.mxu0 0
    %1272 = vmatpush1.bf16.msra.mxu0 0
    %1273 = vmatprep.subr.bf16.mxu0 0
    %1274 = vmatpush1.bf16.msra.mxu0 0
    %1275 = vmatprep.subr.bf16.mxu0 0
    %1276 = vmatpush1.bf16.msra.mxu0 0
    %1277 = vmatprep.subr.bf16.mxu0 0
    %1278 = vmatpush1.bf16.msra.mxu0 0
    %1279 = vmatprep.mubr.bf16.mxu0 0
    %1280 = vmatmul.mubr.bf16.gmra.mrb[0].mxu0 %v1245
    %v1281 = vpop.f32.mrb[0].mxu0
    %v1282 = vadd.f32 0.0, %v1281
    %v1283 = vpop.f32.mrb[0].mxu0
    %v1284 = vpop.f32.mrb[0].mxu0
    %v1285 = vpop.f32.mrb[0].mxu0
    %1286 = vdwg.mxu0
    %v1288 = vsel %vm222, %v1243, 0
    %1290 = vmatprep.subr.bf16.mxu0 0
    %1291 = vmatpush1.bf16.msra.mxu0 %v747
    %1292 = vmatprep.subr.bf16.mxu0 0
    %1293 = vmatpush1.bf16.msra.mxu0 %v748
    %1294 = vmatprep.subr.bf16.mxu0 0
    %1295 = vmatpush1.bf16.msra.mxu0 0
    %1296 = vmatprep.subr.bf16.mxu0 0
    %1297 = vmatpush1.bf16.msra.mxu0 0
    %1298 = vmatprep.subr.bf16.mxu0 0
    %1299 = vmatpush1.bf16.msra.mxu0 0
    %1300 = vmatprep.subr.bf16.mxu0 0
    %1301 = vmatpush1.bf16.msra.mxu0 0
    %1302 = vmatprep.subr.bf16.mxu0 0
    %1303 = vmatpush1.bf16.msra.mxu0 0
    %1304 = vmatprep.subr.bf16.mxu0 0
    %1305 = vmatpush1.bf16.msra.mxu0 0
    %1306 = vmatprep.subr.bf16.mxu0 0
    %1307 = vmatpush1.bf16.msra.mxu0 0
    %1308 = vmatprep.subr.bf16.mxu0 0
    %1309 = vmatpush1.bf16.msra.mxu0 0
    %1310 = vmatprep.subr.bf16.mxu0 0
    %1311 = vmatpush1.bf16.msra.mxu0 0
    %1312 = vmatprep.subr.bf16.mxu0 0
    %1313 = vmatpush1.bf16.msra.mxu0 0
    %1314 = vmatprep.subr.bf16.mxu0 0
    %1315 = vmatpush1.bf16.msra.mxu0 0
    %1316 = vmatprep.subr.bf16.mxu0 0
    %1317 = vmatpush1.bf16.msra.mxu0 0
    %1318 = vmatprep.subr.bf16.mxu0 0
    %1319 = vmatpush1.bf16.msra.mxu0 0
    %1320 = vmatprep.subr.bf16.mxu0 0
    %1321 = vmatpush1.bf16.msra.mxu0 0
    %1322 = vmatprep.mubr.bf16.mxu0 0
    %1323 = vmatmul.mubr.bf16.gmra.mrb[0].mxu0 %v1288
    %v1324 = vpop.f32.mrb[0].mxu0
    %v1325 = vadd.f32 %v1282, %v1324
    %v1326 = vpop.f32.mrb[0].mxu0
    %v1327 = vpop.f32.mrb[0].mxu0
    %v1328 = vpop.f32.mrb[0].mxu0
    %1329 = vdwg.mxu0
    %v1330 = vadd.f32 %v1325, %v146
    %v1331 = vtanh.pop %v1330
    %v1332 = vpack.c.bf16 %v1331, %v1331
    %1333 = vset.pattern.permute.xlu0 3
    %1334 = vperm.xlu0 %1333, %v437
    %v1335 = vpop.permute.xlu0 %1334
    %vm1336 = vcmp.eq.s32.totalorder %v1335, %v124
    %v1337 = vsel %vm1336, 1, 0
    %v1338 = vcvt.s32.f32 %v1337
    %v1339 = vpack.c.bf16 %v1338, %v1338
    %1340 = vmatprep.subr.bf16.mxu0 0
    %1341 = vmatpush1.bf16.msra.mxu0 %v457
    %1342 = vmatprep.subr.bf16.mxu0 0
    %1343 = vmatpush1.bf16.msra.mxu0 %v458
    %1344 = vmatprep.subr.bf16.mxu0 0
    %1345 = vmatpush1.bf16.msra.mxu0 0
    %1346 = vmatprep.subr.bf16.mxu0 0
    %1347 = vmatpush1.bf16.msra.mxu0 0
    %1348 = vmatprep.subr.bf16.mxu0 0
    %1349 = vmatpush1.bf16.msra.mxu0 0
    %1350 = vmatprep.subr.bf16.mxu0 0
    %1351 = vmatpush1.bf16.msra.mxu0 0
    %1352 = vmatprep.subr.bf16.mxu0 0
    %1353 = vmatpush1.bf16.msra.mxu0 0
    %1354 = vmatprep.subr.bf16.mxu0 0
    %1355 = vmatpush1.bf16.msra.mxu0 0
    %1356 = vmatprep.subr.bf16.mxu0 0
    %1357 = vmatpush1.bf16.msra.mxu0 0
    %1358 = vmatprep.subr.bf16.mxu0 0
    %1359 = vmatpush1.bf16.msra.mxu0 0
    %1360 = vmatprep.subr.bf16.mxu0 0
    %1361 = vmatpush1.bf16.msra.mxu0 0
    %1362 = vmatprep.subr.bf16.mxu0 0
    %1363 = vmatpush1.bf16.msra.mxu0 0
    %1364 = vmatprep.subr.bf16.mxu0 0
    %1365 = vmatpush1.bf16.msra.mxu0 0
    %1366 = vmatprep.subr.bf16.mxu0 0
    %1367 = vmatpush1.bf16.msra.mxu0 0
    %1368 = vmatprep.subr.bf16.mxu0 0
    %1369 = vmatpush1.bf16.msra.mxu0 0
    %1370 = vmatprep.subr.bf16.mxu0 0
    %1371 = vmatpush1.bf16.msra.mxu0 0
    %1372 = vmatprep.mubr.bf16.mxu0 0
    %1373 = vmatmul.mubr.bf16.gmra.mrb[0].mxu0 %v1199
    %v1374 = vpop.f32.mrb[0].mxu0
    %v1375 = vadd.f32 0.0, %v1374
    %v1376 = vpop.f32.mrb[0].mxu0
    %v1377 = vpop.f32.mrb[0].mxu0
    %v1378 = vpop.f32.mrb[0].mxu0
    %1379 = vdwg.mxu0
    %v1381 = vsel %vm504, %v1339, 0
    %1383 = vmatprep.subr.bf16.mxu0 0
    %1384 = vmatpush1.bf16.msra.mxu0 %v300
    %1385 = vmatprep.subr.bf16.mxu0 0
    %1386 = vmatpush1.bf16.msra.mxu0 %v301
    %1387 = vmatprep.subr.bf16.mxu0 0
    %1388 = vmatpush1.bf16.msra.mxu0 %v302
    %1389 = vmatprep.subr.bf16.mxu0 0
    %1390 = vmatpush1.bf16.msra.mxu0 %v303
    %1391 = vmatprep.subr.bf16.mxu0 0
    %1392 = vmatpush1.bf16.msra.mxu0 0
    %1393 = vmatprep.subr.bf16.mxu0 0
    %1394 = vmatpush1.bf16.msra.mxu0 0
    %1395 = vmatprep.subr.bf16.mxu0 0
    %1396 = vmatpush1.bf16.msra.mxu0 0
    %1397 = vmatprep.subr.bf16.mxu0 0
    %1398 = vmatpush1.bf16.msra.mxu0 0
    %1399 = vmatprep.subr.bf16.mxu0 0
    %1400 = vmatpush1.bf16.msra.mxu0 0
    %1401 = vmatprep.subr.bf16.mxu0 0
    %1402 = vmatpush1.bf16.msra.mxu0 0
    %1403 = vmatprep.subr.bf16.mxu0 0
    %1404 = vmatpush1.bf16.msra.mxu0 0
    %1405 = vmatprep.subr.bf16.mxu0 0
    %1406 = vmatpush1.bf16.msra.mxu0 0
    %1407 = vmatprep.subr.bf16.mxu0 0
    %1408 = vmatpush1.bf16.msra.mxu0 0
    %1409 = vmatprep.subr.bf16.mxu0 0
    %1410 = vmatpush1.bf16.msra.mxu0 0
    %1411 = vmatprep.subr.bf16.mxu0 0
    %1412 = vmatpush1.bf16.msra.mxu0 0
    %1413 = vmatprep.subr.bf16.mxu0 0
    %1414 = vmatpush1.bf16.msra.mxu0 0
    %1415 = vmatprep.mubr.bf16.mxu0 0
    %1416 = vmatmul.mubr.bf16.gmra.mrb[0].mxu0 %v1381
    %v1417 = vpop.f32.mrb[0].mxu0
    %v1418 = vadd.f32 %v1375, %v1417
    %v1419 = vpop.f32.mrb[0].mxu0
    %v1420 = vpop.f32.mrb[0].mxu0
    %v1421 = vpop.f32.mrb[0].mxu0
    %1422 = vdwg.mxu0
    %v1423 = vadd.f32 %v1418, %v130
    %v1424 = vtanh.pop %v1423
    %v1425 = vpack.c.bf16 %v1424, %v1424
    %1426 = vmatprep.subr.bf16.mxu0 0
    %1427 = vmatpush1.bf16.msra.mxu0 %v569
    %1428 = vmatprep.subr.bf16.mxu0 0
    %1429 = vmatpush1.bf16.msra.mxu0 %v570
    %1430 = vmatprep.subr.bf16.mxu0 0
    %1431 = vmatpush1.bf16.msra.mxu0 0
    %1432 = vmatprep.subr.bf16.mxu0 0
    %1433 = vmatpush1.bf16.msra.mxu0 0
    %1434 = vmatprep.subr.bf16.mxu0 0
    %1435 = vmatpush1.bf16.msra.mxu0 0
    %1436 = vmatprep.subr.bf16.mxu0 0
    %1437 = vmatpush1.bf16.msra.mxu0 0
    %1438 = vmatprep.subr.bf16.mxu0 0
    %1439 = vmatpush1.bf16.msra.mxu0 0
    %1440 = vmatprep.subr.bf16.mxu0 0
    %1441 = vmatpush1.bf16.msra.mxu0 0
    %1442 = vmatprep.subr.bf16.mxu0 0
    %1443 = vmatpush1.bf16.msra.mxu0 0
    %1444 = vmatprep.subr.bf16.mxu0 0
    %1445 = vmatpush1.bf16.msra.mxu0 0
    %1446 = vmatprep.subr.bf16.mxu0 0
    %1447 = vmatpush1.bf16.msra.mxu0 0
    %1448 = vmatprep.subr.bf16.mxu0 0
    %1449 = vmatpush1.bf16.msra.mxu0 0
    %1450 = vmatprep.subr.bf16.mxu0 0
    %1451 = vmatpush1.bf16.msra.mxu0 0
    %1452 = vmatprep.subr.bf16.mxu0 0
    %1453 = vmatpush1.bf16.msra.mxu0 0
    %1454 = vmatprep.subr.bf16.mxu0 0
    %1455 = vmatpush1.bf16.msra.mxu0 0
    %1456 = vmatprep.subr.bf16.mxu0 0
    %1457 = vmatpush1.bf16.msra.mxu0 0
    %1458 = vmatprep.mubr.bf16.mxu0 0
    %1459 = vmatmul.mubr.bf16.gmra.mrb[0].mxu0 %v1288
    %v1460 = vpop.f32.mrb[0].mxu0
    %v1461 = vadd.f32 0.0, %v1460
    %v1462 = vpop.f32.mrb[0].mxu0
    %v1463 = vpop.f32.mrb[0].mxu0
    %v1464 = vpop.f32.mrb[0].mxu0
    %1465 = vdwg.mxu0
    %v1467 = vsel %vm222, %v1425, 0
    %1469 = vmatprep.subr.bf16.mxu0 0
    %1470 = vmatpush1.bf16.msra.mxu0 %v624
    %1471 = vmatprep.subr.bf16.mxu0 0
    %1472 = vmatpush1.bf16.msra.mxu0 %v625
    %1473 = vmatprep.subr.bf16.mxu0 0
    %1474 = vmatpush1.bf16.msra.mxu0 0
    %1475 = vmatprep.subr.bf16.mxu0 0
    %1476 = vmatpush1.bf16.msra.mxu0 0
    %1477 = vmatprep.subr.bf16.mxu0 0
    %1478 = vmatpush1.bf16.msra.mxu0 0
    %1479 = vmatprep.subr.bf16.mxu0 0
    %1480 = vmatpush1.bf16.msra.mxu0 0
    %1481 = vmatprep.subr.bf16.mxu0 0
    %1482 = vmatpush1.bf16.msra.mxu0 0
    %1483 = vmatprep.subr.bf16.mxu0 0
    %1484 = vmatpush1.bf16.msra.mxu0 0
    %1485 = vmatprep.subr.bf16.mxu0 0
    %1486 = vmatpush1.bf16.msra.mxu0 0
    %1487 = vmatprep.subr.bf16.mxu0 0
    %1488 = vmatpush1.bf16.msra.mxu0 0
    %1489 = vmatprep.subr.bf16.mxu0 0
    %1490 = vmatpush1.bf16.msra.mxu0 0
    %1491 = vmatprep.subr.bf16.mxu0 0
    %1492 = vmatpush1.bf16.msra.mxu0 0
    %1493 = vmatprep.subr.bf16.mxu0 0
    %1494 = vmatpush1.bf16.msra.mxu0 0
    %1495 = vmatprep.subr.bf16.mxu0 0
    %1496 = vmatpush1.bf16.msra.mxu0 0
    %1497 = vmatprep.subr.bf16.mxu0 0
    %1498 = vmatpush1.bf16.msra.mxu0 0
    %1499 = vmatprep.subr.bf16.mxu0 0
    %1500 = vmatpush1.bf16.msra.mxu0 0
    %1501 = vmatprep.mubr.bf16.mxu0 0
    %1502 = vmatmul.mubr.bf16.gmra.mrb[0].mxu0 %v1467
    %v1503 = vpop.f32.mrb[0].mxu0
    %v1504 = vadd.f32 %v1461, %v1503
    %v1505 = vpop.f32.mrb[0].mxu0
    %v1506 = vpop.f32.mrb[0].mxu0
    %v1507 = vpop.f32.mrb[0].mxu0
    %1508 = vdwg.mxu0
    %v1509 = vadd.f32 %v1504, %v138
    %v1510 = vtanh.pop %v1509
    %v1511 = vpack.c.bf16 %v1510, %v1510
    %v1513 = vsel %vm222, %v1332, 0
    %1515 = vmatprep.subr.bf16.mxu0 0
    %1516 = vmatpush1.bf16.msra.mxu0 %v692
    %1517 = vmatprep.subr.bf16.mxu0 0
    %1518 = vmatpush1.bf16.msra.mxu0 %v693
    %1519 = vmatprep.subr.bf16.mxu0 0
    %1520 = vmatpush1.bf16.msra.mxu0 0
    %1521 = vmatprep.subr.bf16.mxu0 0
    %1522 = vmatpush1.bf16.msra.mxu0 0
    %1523 = vmatprep.subr.bf16.mxu0 0
    %1524 = vmatpush1.bf16.msra.mxu0 0
    %1525 = vmatprep.subr.bf16.mxu0 0
    %1526 = vmatpush1.bf16.msra.mxu0 0
    %1527 = vmatprep.subr.bf16.mxu0 0
    %1528 = vmatpush1.bf16.msra.mxu0 0
    %1529 = vmatprep.subr.bf16.mxu0 0
    %1530 = vmatpush1.bf16.msra.mxu0 0
    %1531 = vmatprep.subr.bf16.mxu0 0
    %1532 = vmatpush1.bf16.msra.mxu0 0
    %1533 = vmatprep.subr.bf16.mxu0 0
    %1534 = vmatpush1.bf16.msra.mxu0 0
    %1535 = vmatprep.subr.bf16.mxu0 0
    %1536 = vmatpush1.bf16.msra.mxu0 0
    %1537 = vmatprep.subr.bf16.mxu0 0
    %1538 = vmatpush1.bf16.msra.mxu0 0
    %1539 = vmatprep.subr.bf16.mxu0 0
    %1540 = vmatpush1.bf16.msra.mxu0 0
    %1541 = vmatprep.subr.bf16.mxu0 0
    %1542 = vmatpush1.bf16.msra.mxu0 0
    %1543 = vmatprep.subr.bf16.mxu0 0
    %1544 = vmatpush1.bf16.msra.mxu0 0
    %1545 = vmatprep.subr.bf16.mxu0 0
    %1546 = vmatpush1.bf16.msra.mxu0 0
    %1547 = vmatprep.mubr.bf16.mxu0 0
    %1548 = vmatmul.mubr.bf16.gmra.mrb[0].mxu0 %v1513
    %v1549 = vpop.f32.mrb[0].mxu0
    %v1550 = vadd.f32 0.0, %v1549
    %v1551 = vpop.f32.mrb[0].mxu0
    %v1552 = vpop.f32.mrb[0].mxu0
    %v1553 = vpop.f32.mrb[0].mxu0
    %1554 = vdwg.mxu0
    %v1556 = vsel %vm222, %v1511, 0
    %1558 = vmatprep.subr.bf16.mxu0 0
    %1559 = vmatpush1.bf16.msra.mxu0 %v747
    %1560 = vmatprep.subr.bf16.mxu0 0
    %1561 = vmatpush1.bf16.msra.mxu0 %v748
    %1562 = vmatprep.subr.bf16.mxu0 0
    %1563 = vmatpush1.bf16.msra.mxu0 0
    %1564 = vmatprep.subr.bf16.mxu0 0
    %1565 = vmatpush1.bf16.msra.mxu0 0
    %1566 = vmatprep.subr.bf16.mxu0 0
    %1567 = vmatpush1.bf16.msra.mxu0 0
    %1568 = vmatprep.subr.bf16.mxu0 0
    %1569 = vmatpush1.bf16.msra.mxu0 0
    %1570 = vmatprep.subr.bf16.mxu0 0
    %1571 = vmatpush1.bf16.msra.mxu0 0
    %1572 = vmatprep.subr.bf16.mxu0 0
    %1573 = vmatpush1.bf16.msra.mxu0 0
    %1574 = vmatprep.subr.bf16.mxu0 0
    %1575 = vmatpush1.bf16.msra.mxu0 0
    %1576 = vmatprep.subr.bf16.mxu0 0
    %1577 = vmatpush1.bf16.msra.mxu0 0
    %1578 = vmatprep.subr.bf16.mxu0 0
    %1579 = vmatpush1.bf16.msra.mxu0 0
    %1580 = vmatprep.subr.bf16.mxu0 0
    %1581 = vmatpush1.bf16.msra.mxu0 0
    %1582 = vmatprep.subr.bf16.mxu0 0
    %1583 = vmatpush1.bf16.msra.mxu0 0
    %1584 = vmatprep.subr.bf16.mxu0 0
    %1585 = vmatpush1.bf16.msra.mxu0 0
    %1586 = vmatprep.subr.bf16.mxu0 0
    %1587 = vmatpush1.bf16.msra.mxu0 0
    %1588 = vmatprep.subr.bf16.mxu0 0
    %1589 = vmatpush1.bf16.msra.mxu0 0
    %1590 = vmatprep.mubr.bf16.mxu0 0
    %1591 = vmatmul.mubr.bf16.gmra.mrb[0].mxu0 %v1556
    %v1592 = vpop.f32.mrb[0].mxu0
    %v1593 = vadd.f32 %v1550, %v1592
    %v1594 = vpop.f32.mrb[0].mxu0
    %v1595 = vpop.f32.mrb[0].mxu0
    %v1596 = vpop.f32.mrb[0].mxu0
    %1597 = vdwg.mxu0
    %v1598 = vadd.f32 %v1593, %v146
    %v1599 = vtanh.pop %v1598
    %v1600 = vpack.c.bf16 %v1599, %v1599
    %1601 = vset.pattern.permute.xlu0 4
    %1602 = vperm.xlu0 %1601, %v437
    %v1603 = vpop.permute.xlu0 %1602
    %vm1604 = vcmp.eq.s32.totalorder %v1603, %v124
    %v1605 = vsel %vm1604, 1, 0
    %v1606 = vcvt.s32.f32 %v1605
    %v1607 = vpack.c.bf16 %v1606, %v1606
    %1608 = vmatprep.subr.bf16.mxu0 0
    %1609 = vmatpush1.bf16.msra.mxu0 %v457
    %1610 = vmatprep.subr.bf16.mxu0 0
    %1611 = vmatpush1.bf16.msra.mxu0 %v458
    %1612 = vmatprep.subr.bf16.mxu0 0
    %1613 = vmatpush1.bf16.msra.mxu0 0
    %1614 = vmatprep.subr.bf16.mxu0 0
    %1615 = vmatpush1.bf16.msra.mxu0 0
    %1616 = vmatprep.subr.bf16.mxu0 0
    %1617 = vmatpush1.bf16.msra.mxu0 0
    %1618 = vmatprep.subr.bf16.mxu0 0
    %1619 = vmatpush1.bf16.msra.mxu0 0
    %1620 = vmatprep.subr.bf16.mxu0 0
    %1621 = vmatpush1.bf16.msra.mxu0 0
    %1622 = vmatprep.subr.bf16.mxu0 0
    %1623 = vmatpush1.bf16.msra.mxu0 0
    %1624 = vmatprep.subr.bf16.mxu0 0
    %1625 = vmatpush1.bf16.msra.mxu0 0
    %1626 = vmatprep.subr.bf16.mxu0 0
    %1627 = vmatpush1.bf16.msra.mxu0 0
    %1628 = vmatprep.subr.bf16.mxu0 0
    %1629 = vmatpush1.bf16.msra.mxu0 0
    %1630 = vmatprep.subr.bf16.mxu0 0
    %1631 = vmatpush1.bf16.msra.mxu0 0
    %1632 = vmatprep.subr.bf16.mxu0 0
    %1633 = vmatpush1.bf16.msra.mxu0 0
    %1634 = vmatprep.subr.bf16.mxu0 0
    %1635 = vmatpush1.bf16.msra.mxu0 0
    %1636 = vmatprep.subr.bf16.mxu0 0
    %1637 = vmatpush1.bf16.msra.mxu0 0
    %1638 = vmatprep.subr.bf16.mxu0 0
    %1639 = vmatpush1.bf16.msra.mxu0 0
    %1640 = vmatprep.mubr.bf16.mxu0 0
    %1641 = vmatmul.mubr.bf16.gmra.mrb[0].mxu0 %v1467
    %v1642 = vpop.f32.mrb[0].mxu0
    %v1643 = vadd.f32 0.0, %v1642
    %v1644 = vpop.f32.mrb[0].mxu0
    %v1645 = vpop.f32.mrb[0].mxu0
    %v1646 = vpop.f32.mrb[0].mxu0
    %1647 = vdwg.mxu0
    %v1649 = vsel %vm504, %v1607, 0
    %1651 = vmatprep.subr.bf16.mxu0 0
    %1652 = vmatpush1.bf16.msra.mxu0 %v300
    %1653 = vmatprep.subr.bf16.mxu0 0
    %1654 = vmatpush1.bf16.msra.mxu0 %v301
    %1655 = vmatprep.subr.bf16.mxu0 0
    %1656 = vmatpush1.bf16.msra.mxu0 %v302
    %1657 = vmatprep.subr.bf16.mxu0 0
    %1658 = vmatpush1.bf16.msra.mxu0 %v303
    %1659 = vmatprep.subr.bf16.mxu0 0
    %1660 = vmatpush1.bf16.msra.mxu0 0
    %1661 = vmatprep.subr.bf16.mxu0 0
    %1662 = vmatpush1.bf16.msra.mxu0 0
    %1663 = vmatprep.subr.bf16.mxu0 0
    %1664 = vmatpush1.bf16.msra.mxu0 0
    %1665 = vmatprep.subr.bf16.mxu0 0
    %1666 = vmatpush1.bf16.msra.mxu0 0
    %1667 = vmatprep.subr.bf16.mxu0 0
    %1668 = vmatpush1.bf16.msra.mxu0 0
    %1669 = vmatprep.subr.bf16.mxu0 0
    %1670 = vmatpush1.bf16.msra.mxu0 0
    %1671 = vmatprep.subr.bf16.mxu0 0
    %1672 = vmatpush1.bf16.msra.mxu0 0
    %1673 = vmatprep.subr.bf16.mxu0 0
    %1674 = vmatpush1.bf16.msra.mxu0 0
    %1675 = vmatprep.subr.bf16.mxu0 0
    %1676 = vmatpush1.bf16.msra.mxu0 0
    %1677 = vmatprep.subr.bf16.mxu0 0
    %1678 = vmatpush1.bf16.msra.mxu0 0
    %1679 = vmatprep.subr.bf16.mxu0 0
    %1680 = vmatpush1.bf16.msra.mxu0 0
    %1681 = vmatprep.subr.bf16.mxu0 0
    %1682 = vmatpush1.bf16.msra.mxu0 0
    %1683 = vmatprep.mubr.bf16.mxu0 0
    %1684 = vmatmul.mubr.bf16.gmra.mrb[0].mxu0 %v1649
    %v1685 = vpop.f32.mrb[0].mxu0
    %v1686 = vadd.f32 %v1643, %v1685
    %v1687 = vpop.f32.mrb[0].mxu0
    %v1688 = vpop.f32.mrb[0].mxu0
    %v1689 = vpop.f32.mrb[0].mxu0
    %1690 = vdwg.mxu0
    %v1691 = vadd.f32 %v1686, %v130
    %v1692 = vtanh.pop %v1691
    %v1693 = vpack.c.bf16 %v1692, %v1692
    %1694 = vmatprep.subr.bf16.mxu0 0
    %1695 = vmatpush1.bf16.msra.mxu0 %v569
    %1696 = vmatprep.subr.bf16.mxu0 0
    %1697 = vmatpush1.bf16.msra.mxu0 %v570
    %1698 = vmatprep.subr.bf16.mxu0 0
    %1699 = vmatpush1.bf16.msra.mxu0 0
    %1700 = vmatprep.subr.bf16.mxu0 0
    %1701 = vmatpush1.bf16.msra.mxu0 0
    %1702 = vmatprep.subr.bf16.mxu0 0
    %1703 = vmatpush1.bf16.msra.mxu0 0
    %1704 = vmatprep.subr.bf16.mxu0 0
    %1705 = vmatpush1.bf16.msra.mxu0 0
    %1706 = vmatprep.subr.bf16.mxu0 0
    %1707 = vmatpush1.bf16.msra.mxu0 0
    %1708 = vmatprep.subr.bf16.mxu0 0
    %1709 = vmatpush1.bf16.msra.mxu0 0
    %1710 = vmatprep.subr.bf16.mxu0 0
    %1711 = vmatpush1.bf16.msra.mxu0 0
    %1712 = vmatprep.subr.bf16.mxu0 0
    %1713 = vmatpush1.bf16.msra.mxu0 0
    %1714 = vmatprep.subr.bf16.mxu0 0
    %1715 = vmatpush1.bf16.msra.mxu0 0
    %1716 = vmatprep.subr.bf16.mxu0 0
    %1717 = vmatpush1.bf16.msra.mxu0 0
    %1718 = vmatprep.subr.bf16.mxu0 0
    %1719 = vmatpush1.bf16.msra.mxu0 0
    %1720 = vmatprep.subr.bf16.mxu0 0
    %1721 = vmatpush1.bf16.msra.mxu0 0
    %1722 = vmatprep.subr.bf16.mxu0 0
    %1723 = vmatpush1.bf16.msra.mxu0 0
    %1724 = vmatprep.subr.bf16.mxu0 0
    %1725 = vmatpush1.bf16.msra.mxu0 0
    %1726 = vmatprep.mubr.bf16.mxu0 0
    %1727 = vmatmul.mubr.bf16.gmra.mrb[0].mxu0 %v1556
    %v1728 = vpop.f32.mrb[0].mxu0
    %v1729 = vadd.f32 0.0, %v1728
    %v1730 = vpop.f32.mrb[0].mxu0
    %v1731 = vpop.f32.mrb[0].mxu0
    %v1732 = vpop.f32.mrb[0].mxu0
    %1733 = vdwg.mxu0
    %v1735 = vsel %vm222, %v1693, 0
    %1737 = vmatprep.subr.bf16.mxu0 0
    %1738 = vmatpush1.bf16.msra.mxu0 %v624
    %1739 = vmatprep.subr.bf16.mxu0 0
    %1740 = vmatpush1.bf16.msra.mxu0 %v625
    %1741 = vmatprep.subr.bf16.mxu0 0
    %1742 = vmatpush1.bf16.msra.mxu0 0
    %1743 = vmatprep.subr.bf16.mxu0 0
    %1744 = vmatpush1.bf16.msra.mxu0 0
    %1745 = vmatprep.subr.bf16.mxu0 0
    %1746 = vmatpush1.bf16.msra.mxu0 0
    %1747 = vmatprep.subr.bf16.mxu0 0
    %1748 = vmatpush1.bf16.msra.mxu0 0
    %1749 = vmatprep.subr.bf16.mxu0 0
    %1750 = vmatpush1.bf16.msra.mxu0 0
    %1751 = vmatprep.subr.bf16.mxu0 0
    %1752 = vmatpush1.bf16.msra.mxu0 0
    %1753 = vmatprep.subr.bf16.mxu0 0
    %1754 = vmatpush1.bf16.msra.mxu0 0
    %1755 = vmatprep.subr.bf16.mxu0 0
    %1756 = vmatpush1.bf16.msra.mxu0 0
    %1757 = vmatprep.subr.bf16.mxu0 0
    %1758 = vmatpush1.bf16.msra.mxu0 0
    %1759 = vmatprep.subr.bf16.mxu0 0
    %1760 = vmatpush1.bf16.msra.mxu0 0
    %1761 = vmatprep.subr.bf16.mxu0 0
    %1762 = vmatpush1.bf16.msra.mxu0 0
    %1763 = vmatprep.subr.bf16.mxu0 0
    %1764 = vmatpush1.bf16.msra.mxu0 0
    %1765 = vmatprep.subr.bf16.mxu0 0
    %1766 = vmatpush1.bf16.msra.mxu0 0
    %1767 = vmatprep.subr.bf16.mxu0 0
    %1768 = vmatpush1.bf16.msra.mxu0 0
    %1769 = vmatprep.mubr.bf16.mxu0 0
    %1770 = vmatmul.mubr.bf16.gmra.mrb[0].mxu0 %v1735
    %v1771 = vpop.f32.mrb[0].mxu0
    %v1772 = vadd.f32 %v1729, %v1771
    %v1773 = vpop.f32.mrb[0].mxu0
    %v1774 = vpop.f32.mrb[0].mxu0
    %v1775 = vpop.f32.mrb[0].mxu0
    %1776 = vdwg.mxu0
    %v1777 = vadd.f32 %v1772, %v138
    %v1778 = vtanh.pop %v1777
    %v1779 = vpack.c.bf16 %v1778, %v1778
    %v1781 = vsel %vm222, %v1600, 0
    %1783 = vmatprep.subr.bf16.mxu0 0
    %1784 = vmatpush1.bf16.msra.mxu0 %v692
    %1785 = vmatprep.subr.bf16.mxu0 0
    %1786 = vmatpush1.bf16.msra.mxu0 %v693
    %1787 = vmatprep.subr.bf16.mxu0 0
    %1788 = vmatpush1.bf16.msra.mxu0 0
    %1789 = vmatprep.subr.bf16.mxu0 0
    %1790 = vmatpush1.bf16.msra.mxu0 0
    %1791 = vmatprep.subr.bf16.mxu0 0
    %1792 = vmatpush1.bf16.msra.mxu0 0
    %1793 = vmatprep.subr.bf16.mxu0 0
    %1794 = vmatpush1.bf16.msra.mxu0 0
    %1795 = vmatprep.subr.bf16.mxu0 0
    %1796 = vmatpush1.bf16.msra.mxu0 0
    %1797 = vmatprep.subr.bf16.mxu0 0
    %1798 = vmatpush1.bf16.msra.mxu0 0
    %1799 = vmatprep.subr.bf16.mxu0 0
    %1800 = vmatpush1.bf16.msra.mxu0 0
    %1801 = vmatprep.subr.bf16.mxu0 0
    %1802 = vmatpush1.bf16.msra.mxu0 0
    %1803 = vmatprep.subr.bf16.mxu0 0
    %1804 = vmatpush1.bf16.msra.mxu0 0
    %1805 = vmatprep.subr.bf16.mxu0 0
    %1806 = vmatpush1.bf16.msra.mxu0 0
    %1807 = vmatprep.subr.bf16.mxu0 0
    %1808 = vmatpush1.bf16.msra.mxu0 0
    %1809 = vmatprep.subr.bf16.mxu0 0
    %1810 = vmatpush1.bf16.msra.mxu0 0
    %1811 = vmatprep.subr.bf16.mxu0 0
    %1812 = vmatpush1.bf16.msra.mxu0 0
    %1813 = vmatprep.subr.bf16.mxu0 0
    %1814 = vmatpush1.bf16.msra.mxu0 0
    %1815 = vmatprep.mubr.bf16.mxu0 0
    %1816 = vmatmul.mubr.bf16.gmra.mrb[0].mxu0 %v1781
    %v1817 = vpop.f32.mrb[0].mxu0
    %v1818 = vadd.f32 0.0, %v1817
    %v1819 = vpop.f32.mrb[0].mxu0
    %v1820 = vpop.f32.mrb[0].mxu0
    %v1821 = vpop.f32.mrb[0].mxu0
    %1822 = vdwg.mxu0
    %v1824 = vsel %vm222, %v1779, 0
    %1826 = vmatprep.subr.bf16.mxu0 0
    %1827 = vmatpush1.bf16.msra.mxu0 %v747
    %1828 = vmatprep.subr.bf16.mxu0 0
    %1829 = vmatpush1.bf16.msra.mxu0 %v748
    %1830 = vmatprep.subr.bf16.mxu0 0
    %1831 = vmatpush1.bf16.msra.mxu0 0
    %1832 = vmatprep.subr.bf16.mxu0 0
    %1833 = vmatpush1.bf16.msra.mxu0 0
    %1834 = vmatprep.subr.bf16.mxu0 0
    %1835 = vmatpush1.bf16.msra.mxu0 0
    %1836 = vmatprep.subr.bf16.mxu0 0
    %1837 = vmatpush1.bf16.msra.mxu0 0
    %1838 = vmatprep.subr.bf16.mxu0 0
    %1839 = vmatpush1.bf16.msra.mxu0 0
    %1840 = vmatprep.subr.bf16.mxu0 0
    %1841 = vmatpush1.bf16.msra.mxu0 0
    %1842 = vmatprep.subr.bf16.mxu0 0
    %1843 = vmatpush1.bf16.msra.mxu0 0
    %1844 = vmatprep.subr.bf16.mxu0 0
    %1845 = vmatpush1.bf16.msra.mxu0 0
    %1846 = vmatprep.subr.bf16.mxu0 0
    %1847 = vmatpush1.bf16.msra.mxu0 0
    %1848 = vmatprep.subr.bf16.mxu0 0
    %1849 = vmatpush1.bf16.msra.mxu0 0
    %1850 = vmatprep.subr.bf16.mxu0 0
    %1851 = vmatpush1.bf16.msra.mxu0 0
    %1852 = vmatprep.subr.bf16.mxu0 0
    %1853 = vmatpush1.bf16.msra.mxu0 0
    %1854 = vmatprep.subr.bf16.mxu0 0
    %1855 = vmatpush1.bf16.msra.mxu0 0
    %1856 = vmatprep.subr.bf16.mxu0 0
    %1857 = vmatpush1.bf16.msra.mxu0 0
    %1858 = vmatprep.mubr.bf16.mxu0 0
    %1859 = vmatmul.mubr.bf16.gmra.mrb[0].mxu0 %v1824
    %v1860 = vpop.f32.mrb[0].mxu0
    %v1861 = vadd.f32 %v1818, %v1860
    %v1862 = vpop.f32.mrb[0].mxu0
    %v1863 = vpop.f32.mrb[0].mxu0
    %v1864 = vpop.f32.mrb[0].mxu0
    %1865 = vdwg.mxu0
    %v1866 = vadd.f32 %v1861, %v146
    %v1867 = vtanh.pop %v1866
    %v1868 = vpack.c.bf16 %v1867, %v1867
    %1869 = vset.pattern.permute.xlu0 5
    %1870 = vperm.xlu0 %1869, %v437
    %v1871 = vpop.permute.xlu0 %1870
    %vm1872 = vcmp.eq.s32.totalorder %v1871, %v124
    %v1873 = vsel %vm1872, 1, 0
    %v1874 = vcvt.s32.f32 %v1873
    %v1875 = vpack.c.bf16 %v1874, %v1874
    %1876 = vmatprep.subr.bf16.mxu0 0
    %1877 = vmatpush1.bf16.msra.mxu0 %v457
    %1878 = vmatprep.subr.bf16.mxu0 0
    %1879 = vmatpush1.bf16.msra.mxu0 %v458
    %1880 = vmatprep.subr.bf16.mxu0 0
    %1881 = vmatpush1.bf16.msra.mxu0 0
    %1882 = vmatprep.subr.bf16.mxu0 0
    %1883 = vmatpush1.bf16.msra.mxu0 0
    %1884 = vmatprep.subr.bf16.mxu0 0
    %1885 = vmatpush1.bf16.msra.mxu0 0
    %1886 = vmatprep.subr.bf16.mxu0 0
    %1887 = vmatpush1.bf16.msra.mxu0 0
    %1888 = vmatprep.subr.bf16.mxu0 0
    %1889 = vmatpush1.bf16.msra.mxu0 0
    %1890 = vmatprep.subr.bf16.mxu0 0
    %1891 = vmatpush1.bf16.msra.mxu0 0
    %1892 = vmatprep.subr.bf16.mxu0 0
    %1893 = vmatpush1.bf16.msra.mxu0 0
    %1894 = vmatprep.subr.bf16.mxu0 0
    %1895 = vmatpush1.bf16.msra.mxu0 0
    %1896 = vmatprep.subr.bf16.mxu0 0
    %1897 = vmatpush1.bf16.msra.mxu0 0
    %1898 = vmatprep.subr.bf16.mxu0 0
    %1899 = vmatpush1.bf16.msra.mxu0 0
    %1900 = vmatprep.subr.bf16.mxu0 0
    %1901 = vmatpush1.bf16.msra.mxu0 0
    %1902 = vmatprep.subr.bf16.mxu0 0
    %1903 = vmatpush1.bf16.msra.mxu0 0
    %1904 = vmatprep.subr.bf16.mxu0 0
    %1905 = vmatpush1.bf16.msra.mxu0 0
    %1906 = vmatprep.subr.bf16.mxu0 0
    %1907 = vmatpush1.bf16.msra.mxu0 0
    %1908 = vmatprep.mubr.bf16.mxu0 0
    %1909 = vmatmul.mubr.bf16.gmra.mrb[0].mxu0 %v1735
    %v1910 = vpop.f32.mrb[0].mxu0
    %v1911 = vadd.f32 0.0, %v1910
    %v1912 = vpop.f32.mrb[0].mxu0
    %v1913 = vpop.f32.mrb[0].mxu0
    %v1914 = vpop.f32.mrb[0].mxu0
    %1915 = vdwg.mxu0
    %v1917 = vsel %vm504, %v1875, 0
    %1919 = vmatprep.subr.bf16.mxu0 0
    %1920 = vmatpush1.bf16.msra.mxu0 %v300
    %1921 = vmatprep.subr.bf16.mxu0 0
    %1922 = vmatpush1.bf16.msra.mxu0 %v301
    %1923 = vmatprep.subr.bf16.mxu0 0
    %1924 = vmatpush1.bf16.msra.mxu0 %v302
    %1925 = vmatprep.subr.bf16.mxu0 0
    %1926 = vmatpush1.bf16.msra.mxu0 %v303
    %1927 = vmatprep.subr.bf16.mxu0 0
    %1928 = vmatpush1.bf16.msra.mxu0 0
    %1929 = vmatprep.subr.bf16.mxu0 0
    %1930 = vmatpush1.bf16.msra.mxu0 0
    %1931 = vmatprep.subr.bf16.mxu0 0
    %1932 = vmatpush1.bf16.msra.mxu0 0
    %1933 = vmatprep.subr.bf16.mxu0 0
    %1934 = vmatpush1.bf16.msra.mxu0 0
    %1935 = vmatprep.subr.bf16.mxu0 0
    %1936 = vmatpush1.bf16.msra.mxu0 0
    %1937 = vmatprep.subr.bf16.mxu0 0
    %1938 = vmatpush1.bf16.msra.mxu0 0
    %1939 = vmatprep.subr.bf16.mxu0 0
    %1940 = vmatpush1.bf16.msra.mxu0 0
    %1941 = vmatprep.subr.bf16.mxu0 0
    %1942 = vmatpush1.bf16.msra.mxu0 0
    %1943 = vmatprep.subr.bf16.mxu0 0
    %1944 = vmatpush1.bf16.msra.mxu0 0
    %1945 = vmatprep.subr.bf16.mxu0 0
    %1946 = vmatpush1.bf16.msra.mxu0 0
    %1947 = vmatprep.subr.bf16.mxu0 0
    %1948 = vmatpush1.bf16.msra.mxu0 0
    %1949 = vmatprep.subr.bf16.mxu0 0
    %1950 = vmatpush1.bf16.msra.mxu0 0
    %1951 = vmatprep.mubr.bf16.mxu0 0
    %1952 = vmatmul.mubr.bf16.gmra.mrb[0].mxu0 %v1917
    %v1953 = vpop.f32.mrb[0].mxu0
    %v1954 = vadd.f32 %v1911, %v1953
    %v1955 = vpop.f32.mrb[0].mxu0
    %v1956 = vpop.f32.mrb[0].mxu0
    %v1957 = vpop.f32.mrb[0].mxu0
    %1958 = vdwg.mxu0
    %v1959 = vadd.f32 %v1954, %v130
    %v1960 = vtanh.pop %v1959
    %v1961 = vpack.c.bf16 %v1960, %v1960
    %1962 = vmatprep.subr.bf16.mxu0 0
    %1963 = vmatpush1.bf16.msra.mxu0 %v569
    %1964 = vmatprep.subr.bf16.mxu0 0
    %1965 = vmatpush1.bf16.msra.mxu0 %v570
    %1966 = vmatprep.subr.bf16.mxu0 0
    %1967 = vmatpush1.bf16.msra.mxu0 0
    %1968 = vmatprep.subr.bf16.mxu0 0
    %1969 = vmatpush1.bf16.msra.mxu0 0
    %1970 = vmatprep.subr.bf16.mxu0 0
    %1971 = vmatpush1.bf16.msra.mxu0 0
    %1972 = vmatprep.subr.bf16.mxu0 0
    %1973 = vmatpush1.bf16.msra.mxu0 0
    %1974 = vmatprep.subr.bf16.mxu0 0
    %1975 = vmatpush1.bf16.msra.mxu0 0
    %1976 = vmatprep.subr.bf16.mxu0 0
    %1977 = vmatpush1.bf16.msra.mxu0 0
    %1978 = vmatprep.subr.bf16.mxu0 0
    %1979 = vmatpush1.bf16.msra.mxu0 0
    %1980 = vmatprep.subr.bf16.mxu0 0
    %1981 = vmatpush1.bf16.msra.mxu0 0
    %1982 = vmatprep.subr.bf16.mxu0 0
    %1983 = vmatpush1.bf16.msra.mxu0 0
    %1984 = vmatprep.subr.bf16.mxu0 0
    %1985 = vmatpush1.bf16.msra.mxu0 0
    %1986 = vmatprep.subr.bf16.mxu0 0
    %1987 = vmatpush1.bf16.msra.mxu0 0
    %1988 = vmatprep.subr.bf16.mxu0 0
    %1989 = vmatpush1.bf16.msra.mxu0 0
    %1990 = vmatprep.subr.bf16.mxu0 0
    %1991 = vmatpush1.bf16.msra.mxu0 0
    %1992 = vmatprep.subr.bf16.mxu0 0
    %1993 = vmatpush1.bf16.msra.mxu0 0
    %1994 = vmatprep.mubr.bf16.mxu0 0
    %1995 = vmatmul.mubr.bf16.gmra.mrb[0].mxu0 %v1824
    %v1996 = vpop.f32.mrb[0].mxu0
    %v1997 = vadd.f32 0.0, %v1996
    %v1998 = vpop.f32.mrb[0].mxu0
    %v1999 = vpop.f32.mrb[0].mxu0
    %v2000 = vpop.f32.mrb[0].mxu0
    %2001 = vdwg.mxu0
    %v2003 = vsel %vm222, %v1961, 0
    %2005 = vmatprep.subr.bf16.mxu0 0
    %2006 = vmatpush1.bf16.msra.mxu0 %v624
    %2007 = vmatprep.subr.bf16.mxu0 0
    %2008 = vmatpush1.bf16.msra.mxu0 %v625
    %2009 = vmatprep.subr.bf16.mxu0 0
    %2010 = vmatpush1.bf16.msra.mxu0 0
    %2011 = vmatprep.subr.bf16.mxu0 0
    %2012 = vmatpush1.bf16.msra.mxu0 0
    %2013 = vmatprep.subr.bf16.mxu0 0
    %2014 = vmatpush1.bf16.msra.mxu0 0
    %2015 = vmatprep.subr.bf16.mxu0 0
    %2016 = vmatpush1.bf16.msra.mxu0 0
    %2017 = vmatprep.subr.bf16.mxu0 0
    %2018 = vmatpush1.bf16.msra.mxu0 0
    %2019 = vmatprep.subr.bf16.mxu0 0
    %2020 = vmatpush1.bf16.msra.mxu0 0
    %2021 = vmatprep.subr.bf16.mxu0 0
    %2022 = vmatpush1.bf16.msra.mxu0 0
    %2023 = vmatprep.subr.bf16.mxu0 0
    %2024 = vmatpush1.bf16.msra.mxu0 0
    %2025 = vmatprep.subr.bf16.mxu0 0
    %2026 = vmatpush1.bf16.msra.mxu0 0
    %2027 = vmatprep.subr.bf16.mxu0 0
    %2028 = vmatpush1.bf16.msra.mxu0 0
    %2029 = vmatprep.subr.bf16.mxu0 0
    %2030 = vmatpush1.bf16.msra.mxu0 0
    %2031 = vmatprep.subr.bf16.mxu0 0
    %2032 = vmatpush1.bf16.msra.mxu0 0
    %2033 = vmatprep.subr.bf16.mxu0 0
    %2034 = vmatpush1.bf16.msra.mxu0 0
    %2035 = vmatprep.subr.bf16.mxu0 0
    %2036 = vmatpush1.bf16.msra.mxu0 0
    %2037 = vmatprep.mubr.bf16.mxu0 0
    %2038 = vmatmul.mubr.bf16.gmra.mrb[0].mxu0 %v2003
    %v2039 = vpop.f32.mrb[0].mxu0
    %v2040 = vadd.f32 %v1997, %v2039
    %v2041 = vpop.f32.mrb[0].mxu0
    %v2042 = vpop.f32.mrb[0].mxu0
    %v2043 = vpop.f32.mrb[0].mxu0
    %2044 = vdwg.mxu0
    %v2045 = vadd.f32 %v2040, %v138
    %v2046 = vtanh.pop %v2045
    %v2047 = vpack.c.bf16 %v2046, %v2046
    %v2049 = vsel %vm222, %v1868, 0
    %2051 = vmatprep.subr.bf16.mxu0 0
    %2052 = vmatpush1.bf16.msra.mxu0 %v692
    %2053 = vmatprep.subr.bf16.mxu0 0
    %2054 = vmatpush1.bf16.msra.mxu0 %v693
    %2055 = vmatprep.subr.bf16.mxu0 0
    %2056 = vmatpush1.bf16.msra.mxu0 0
    %2057 = vmatprep.subr.bf16.mxu0 0
    %2058 = vmatpush1.bf16.msra.mxu0 0
    %2059 = vmatprep.subr.bf16.mxu0 0
    %2060 = vmatpush1.bf16.msra.mxu0 0
    %2061 = vmatprep.subr.bf16.mxu0 0
    %2062 = vmatpush1.bf16.msra.mxu0 0
    %2063 = vmatprep.subr.bf16.mxu0 0
    %2064 = vmatpush1.bf16.msra.mxu0 0
    %2065 = vmatprep.subr.bf16.mxu0 0
    %2066 = vmatpush1.bf16.msra.mxu0 0
    %2067 = vmatprep.subr.bf16.mxu0 0
    %2068 = vmatpush1.bf16.msra.mxu0 0
    %2069 = vmatprep.subr.bf16.mxu0 0
    %2070 = vmatpush1.bf16.msra.mxu0 0
    %2071 = vmatprep.subr.bf16.mxu0 0
    %2072 = vmatpush1.bf16.msra.mxu0 0
    %2073 = vmatprep.subr.bf16.mxu0 0
    %2074 = vmatpush1.bf16.msra.mxu0 0
    %2075 = vmatprep.subr.bf16.mxu0 0
    %2076 = vmatpush1.bf16.msra.mxu0 0
    %2077 = vmatprep.subr.bf16.mxu0 0
    %2078 = vmatpush1.bf16.msra.mxu0 0
    %2079 = vmatprep.subr.bf16.mxu0 0
    %2080 = vmatpush1.bf16.msra.mxu0 0
    %2081 = vmatprep.subr.bf16.mxu0 0
    %2082 = vmatpush1.bf16.msra.mxu0 0
    %2083 = vmatprep.mubr.bf16.mxu0 0
    %2084 = vmatmul.mubr.bf16.gmra.mrb[0].mxu0 %v2049
    %v2085 = vpop.f32.mrb[0].mxu0
    %v2086 = vadd.f32 0.0, %v2085
    %v2087 = vpop.f32.mrb[0].mxu0
    %v2088 = vpop.f32.mrb[0].mxu0
    %v2089 = vpop.f32.mrb[0].mxu0
    %2090 = vdwg.mxu0
    %v2092 = vsel %vm222, %v2047, 0
    %2094 = vmatprep.subr.bf16.mxu0 0
    %2095 = vmatpush1.bf16.msra.mxu0 %v747
    %2096 = vmatprep.subr.bf16.mxu0 0
    %2097 = vmatpush1.bf16.msra.mxu0 %v748
    %2098 = vmatprep.subr.bf16.mxu0 0
    %2099 = vmatpush1.bf16.msra.mxu0 0
    %2100 = vmatprep.subr.bf16.mxu0 0
    %2101 = vmatpush1.bf16.msra.mxu0 0
    %2102 = vmatprep.subr.bf16.mxu0 0
    %2103 = vmatpush1.bf16.msra.mxu0 0
    %2104 = vmatprep.subr.bf16.mxu0 0
    %2105 = vmatpush1.bf16.msra.mxu0 0
    %2106 = vmatprep.subr.bf16.mxu0 0
    %2107 = vmatpush1.bf16.msra.mxu0 0
    %2108 = vmatprep.subr.bf16.mxu0 0
    %2109 = vmatpush1.bf16.msra.mxu0 0
    %2110 = vmatprep.subr.bf16.mxu0 0
    %2111 = vmatpush1.bf16.msra.mxu0 0
    %2112 = vmatprep.subr.bf16.mxu0 0
    %2113 = vmatpush1.bf16.msra.mxu0 0
    %2114 = vmatprep.subr.bf16.mxu0 0
    %2115 = vmatpush1.bf16.msra.mxu0 0
    %2116 = vmatprep.subr.bf16.mxu0 0
    %2117 = vmatpush1.bf16.msra.mxu0 0
    %2118 = vmatprep.subr.bf16.mxu0 0
    %2119 = vmatpush1.bf16.msra.mxu0 0
    %2120 = vmatprep.subr.bf16.mxu0 0
    %2121 = vmatpush1.bf16.msra.mxu0 0
    %2122 = vmatprep.subr.bf16.mxu0 0
    %2123 = vmatpush1.bf16.msra.mxu0 0
    %2124 = vmatprep.subr.bf16.mxu0 0
    %2125 = vmatpush1.bf16.msra.mxu0 0
    %2126 = vmatprep.mubr.bf16.mxu0 0
    %2127 = vmatmul.mubr.bf16.gmra.mrb[0].mxu0 %v2092
    %v2128 = vpop.f32.mrb[0].mxu0
    %v2129 = vadd.f32 %v2086, %v2128
    %v2130 = vpop.f32.mrb[0].mxu0
    %v2131 = vpop.f32.mrb[0].mxu0
    %v2132 = vpop.f32.mrb[0].mxu0
    %2133 = vdwg.mxu0
    %v2134 = vadd.f32 %v2129, %v146
    %v2135 = vtanh.pop %v2134
    %v2136 = vpack.c.bf16 %v2135, %v2135
    %2137 = vset.pattern.permute.xlu0 6
    %2138 = vperm.xlu0 %2137, %v437
    %v2139 = vpop.permute.xlu0 %2138
    %vm2140 = vcmp.eq.s32.totalorder %v2139, %v124
    %v2141 = vsel %vm2140, 1, 0
    %v2142 = vcvt.s32.f32 %v2141
    %v2143 = vpack.c.bf16 %v2142, %v2142
    %2144 = vmatprep.subr.bf16.mxu0 0
    %2145 = vmatpush1.bf16.msra.mxu0 %v457
    %2146 = vmatprep.subr.bf16.mxu0 0
    %2147 = vmatpush1.bf16.msra.mxu0 %v458
    %2148 = vmatprep.subr.bf16.mxu0 0
    %2149 = vmatpush1.bf16.msra.mxu0 0
    %2150 = vmatprep.subr.bf16.mxu0 0
    %2151 = vmatpush1.bf16.msra.mxu0 0
    %2152 = vmatprep.subr.bf16.mxu0 0
    %2153 = vmatpush1.bf16.msra.mxu0 0
    %2154 = vmatprep.subr.bf16.mxu0 0
    %2155 = vmatpush1.bf16.msra.mxu0 0
    %2156 = vmatprep.subr.bf16.mxu0 0
    %2157 = vmatpush1.bf16.msra.mxu0 0
    %2158 = vmatprep.subr.bf16.mxu0 0
    %2159 = vmatpush1.bf16.msra.mxu0 0
    %2160 = vmatprep.subr.bf16.mxu0 0
    %2161 = vmatpush1.bf16.msra.mxu0 0
    %2162 = vmatprep.subr.bf16.mxu0 0
    %2163 = vmatpush1.bf16.msra.mxu0 0
    %2164 = vmatprep.subr.bf16.mxu0 0
    %2165 = vmatpush1.bf16.msra.mxu0 0
    %2166 = vmatprep.subr.bf16.mxu0 0
    %2167 = vmatpush1.bf16.msra.mxu0 0
    %2168 = vmatprep.subr.bf16.mxu0 0
    %2169 = vmatpush1.bf16.msra.mxu0 0
    %2170 = vmatprep.subr.bf16.mxu0 0
    %2171 = vmatpush1.bf16.msra.mxu0 0
    %2172 = vmatprep.subr.bf16.mxu0 0
    %2173 = vmatpush1.bf16.msra.mxu0 0
    %2174 = vmatprep.subr.bf16.mxu0 0
    %2175 = vmatpush1.bf16.msra.mxu0 0
    %2176 = vmatprep.mubr.bf16.mxu0 0
    %2177 = vmatmul.mubr.bf16.gmra.mrb[0].mxu0 %v2003
    %v2178 = vpop.f32.mrb[0].mxu0
    %v2179 = vadd.f32 0.0, %v2178
    %v2180 = vpop.f32.mrb[0].mxu0
    %v2181 = vpop.f32.mrb[0].mxu0
    %v2182 = vpop.f32.mrb[0].mxu0
    %2183 = vdwg.mxu0
    %v2185 = vsel %vm504, %v2143, 0
    %2187 = vmatprep.subr.bf16.mxu0 0
    %2188 = vmatpush1.bf16.msra.mxu0 %v300
    %2189 = vmatprep.subr.bf16.mxu0 0
    %2190 = vmatpush1.bf16.msra.mxu0 %v301
    %2191 = vmatprep.subr.bf16.mxu0 0
    %2192 = vmatpush1.bf16.msra.mxu0 %v302
    %2193 = vmatprep.subr.bf16.mxu0 0
    %2194 = vmatpush1.bf16.msra.mxu0 %v303
    %2195 = vmatprep.subr.bf16.mxu0 0
    %2196 = vmatpush1.bf16.msra.mxu0 0
    %2197 = vmatprep.subr.bf16.mxu0 0
    %2198 = vmatpush1.bf16.msra.mxu0 0
    %2199 = vmatprep.subr.bf16.mxu0 0
    %2200 = vmatpush1.bf16.msra.mxu0 0
    %2201 = vmatprep.subr.bf16.mxu0 0
    %2202 = vmatpush1.bf16.msra.mxu0 0
    %2203 = vmatprep.subr.bf16.mxu0 0
    %2204 = vmatpush1.bf16.msra.mxu0 0
    %2205 = vmatprep.subr.bf16.mxu0 0
    %2206 = vmatpush1.bf16.msra.mxu0 0
    %2207 = vmatprep.subr.bf16.mxu0 0
    %2208 = vmatpush1.bf16.msra.mxu0 0
    %2209 = vmatprep.subr.bf16.mxu0 0
    %2210 = vmatpush1.bf16.msra.mxu0 0
    %2211 = vmatprep.subr.bf16.mxu0 0
    %2212 = vmatpush1.bf16.msra.mxu0 0
    %2213 = vmatprep.subr.bf16.mxu0 0
    %2214 = vmatpush1.bf16.msra.mxu0 0
    %2215 = vmatprep.subr.bf16.mxu0 0
    %2216 = vmatpush1.bf16.msra.mxu0 0
    %2217 = vmatprep.subr.bf16.mxu0 0
    %2218 = vmatpush1.bf16.msra.mxu0 0
    %2219 = vmatprep.mubr.bf16.mxu0 0
    %2220 = vmatmul.mubr.bf16.gmra.mrb[0].mxu0 %v2185
    %v2221 = vpop.f32.mrb[0].mxu0
    %v2222 = vadd.f32 %v2179, %v2221
    %v2223 = vpop.f32.mrb[0].mxu0
    %v2224 = vpop.f32.mrb[0].mxu0
    %v2225 = vpop.f32.mrb[0].mxu0
    %2226 = vdwg.mxu0
    %v2227 = vadd.f32 %v2222, %v130
    %v2228 = vtanh.pop %v2227
    %v2229 = vpack.c.bf16 %v2228, %v2228
    %2230 = vmatprep.subr.bf16.mxu0 0
    %2231 = vmatpush1.bf16.msra.mxu0 %v569
    %2232 = vmatprep.subr.bf16.mxu0 0
    %2233 = vmatpush1.bf16.msra.mxu0 %v570
    %2234 = vmatprep.subr.bf16.mxu0 0
    %2235 = vmatpush1.bf16.msra.mxu0 0
    %2236 = vmatprep.subr.bf16.mxu0 0
    %2237 = vmatpush1.bf16.msra.mxu0 0
    %2238 = vmatprep.subr.bf16.mxu0 0
    %2239 = vmatpush1.bf16.msra.mxu0 0
    %2240 = vmatprep.subr.bf16.mxu0 0
    %2241 = vmatpush1.bf16.msra.mxu0 0
    %2242 = vmatprep.subr.bf16.mxu0 0
    %2243 = vmatpush1.bf16.msra.mxu0 0
    %2244 = vmatprep.subr.bf16.mxu0 0
    %2245 = vmatpush1.bf16.msra.mxu0 0
    %2246 = vmatprep.subr.bf16.mxu0 0
    %2247 = vmatpush1.bf16.msra.mxu0 0
    %2248 = vmatprep.subr.bf16.mxu0 0
    %2249 = vmatpush1.bf16.msra.mxu0 0
    %2250 = vmatprep.subr.bf16.mxu0 0
    %2251 = vmatpush1.bf16.msra.mxu0 0
    %2252 = vmatprep.subr.bf16.mxu0 0
    %2253 = vmatpush1.bf16.msra.mxu0 0
    %2254 = vmatprep.subr.bf16.mxu0 0
    %2255 = vmatpush1.bf16.msra.mxu0 0
    %2256 = vmatprep.subr.bf16.mxu0 0
    %2257 = vmatpush1.bf16.msra.mxu0 0
    %2258 = vmatprep.subr.bf16.mxu0 0
    %2259 = vmatpush1.bf16.msra.mxu0 0
    %2260 = vmatprep.subr.bf16.mxu0 0
    %2261 = vmatpush1.bf16.msra.mxu0 0
    %2262 = vmatprep.mubr.bf16.mxu0 0
    %2263 = vmatmul.mubr.bf16.gmra.mrb[0].mxu0 %v2092
    %v2264 = vpop.f32.mrb[0].mxu0
    %v2265 = vadd.f32 0.0, %v2264
    %v2266 = vpop.f32.mrb[0].mxu0
    %v2267 = vpop.f32.mrb[0].mxu0
    %v2268 = vpop.f32.mrb[0].mxu0
    %2269 = vdwg.mxu0
    %v2271 = vsel %vm222, %v2229, 0
    %2273 = vmatprep.subr.bf16.mxu0 0
    %2274 = vmatpush1.bf16.msra.mxu0 %v624
    %2275 = vmatprep.subr.bf16.mxu0 0
    %2276 = vmatpush1.bf16.msra.mxu0 %v625
    %2277 = vmatprep.subr.bf16.mxu0 0
    %2278 = vmatpush1.bf16.msra.mxu0 0
    %2279 = vmatprep.subr.bf16.mxu0 0
    %2280 = vmatpush1.bf16.msra.mxu0 0
    %2281 = vmatprep.subr.bf16.mxu0 0
    %2282 = vmatpush1.bf16.msra.mxu0 0
    %2283 = vmatprep.subr.bf16.mxu0 0
    %2284 = vmatpush1.bf16.msra.mxu0 0
    %2285 = vmatprep.subr.bf16.mxu0 0
    %2286 = vmatpush1.bf16.msra.mxu0 0
    %2287 = vmatprep.subr.bf16.mxu0 0
    %2288 = vmatpush1.bf16.msra.mxu0 0
    %2289 = vmatprep.subr.bf16.mxu0 0
    %2290 = vmatpush1.bf16.msra.mxu0 0
    %2291 = vmatprep.subr.bf16.mxu0 0
    %2292 = vmatpush1.bf16.msra.mxu0 0
    %2293 = vmatprep.subr.bf16.mxu0 0
    %2294 = vmatpush1.bf16.msra.mxu0 0
    %2295 = vmatprep.subr.bf16.mxu0 0
    %2296 = vmatpush1.bf16.msra.mxu0 0
    %2297 = vmatprep.subr.bf16.mxu0 0
    %2298 = vmatpush1.bf16.msra.mxu0 0
    %2299 = vmatprep.subr.bf16.mxu0 0
    %2300 = vmatpush1.bf16.msra.mxu0 0
    %2301 = vmatprep.subr.bf16.mxu0 0
    %2302 = vmatpush1.bf16.msra.mxu0 0
    %2303 = vmatprep.subr.bf16.mxu0 0
    %2304 = vmatpush1.bf16.msra.mxu0 0
    %2305 = vmatprep.mubr.bf16.mxu0 0
    %2306 = vmatmul.mubr.bf16.gmra.mrb[0].mxu0 %v2271
    %v2307 = vpop.f32.mrb[0].mxu0
    %v2308 = vadd.f32 %v2265, %v2307
    %v2309 = vpop.f32.mrb[0].mxu0
    %v2310 = vpop.f32.mrb[0].mxu0
    %v2311 = vpop.f32.mrb[0].mxu0
    %2312 = vdwg.mxu0
    %v2313 = vadd.f32 %v2308, %v138
    %v2314 = vtanh.pop %v2313
    %v2315 = vpack.c.bf16 %v2314, %v2314
    %v2317 = vsel %vm222, %v2136, 0
    %2319 = vmatprep.subr.bf16.mxu0 0
    %2320 = vmatpush1.bf16.msra.mxu0 %v692
    %2321 = vmatprep.subr.bf16.mxu0 0
    %2322 = vmatpush1.bf16.msra.mxu0 %v693
    %2323 = vmatprep.subr.bf16.mxu0 0
    %2324 = vmatpush1.bf16.msra.mxu0 0
    %2325 = vmatprep.subr.bf16.mxu0 0
    %2326 = vmatpush1.bf16.msra.mxu0 0
    %2327 = vmatprep.subr.bf16.mxu0 0
    %2328 = vmatpush1.bf16.msra.mxu0 0
    %2329 = vmatprep.subr.bf16.mxu0 0
    %2330 = vmatpush1.bf16.msra.mxu0 0
    %2331 = vmatprep.subr.bf16.mxu0 0
    %2332 = vmatpush1.bf16.msra.mxu0 0
    %2333 = vmatprep.subr.bf16.mxu0 0
    %2334 = vmatpush1.bf16.msra.mxu0 0
    %2335 = vmatprep.subr.bf16.mxu0 0
    %2336 = vmatpush1.bf16.msra.mxu0 0
    %2337 = vmatprep.subr.bf16.mxu0 0
    %2338 = vmatpush1.bf16.msra.mxu0 0
    %2339 = vmatprep.subr.bf16.mxu0 0
    %2340 = vmatpush1.bf16.msra.mxu0 0
    %2341 = vmatprep.subr.bf16.mxu0 0
    %2342 = vmatpush1.bf16.msra.mxu0 0
    %2343 = vmatprep.subr.bf16.mxu0 0
    %2344 = vmatpush1.bf16.msra.mxu0 0
    %2345 = vmatprep.subr.bf16.mxu0 0
    %2346 = vmatpush1.bf16.msra.mxu0 0
    %2347 = vmatprep.subr.bf16.mxu0 0
    %2348 = vmatpush1.bf16.msra.mxu0 0
    %2349 = vmatprep.subr.bf16.mxu0 0
    %2350 = vmatpush1.bf16.msra.mxu0 0
    %2351 = vmatprep.mubr.bf16.mxu0 0
    %2352 = vmatmul.mubr.bf16.gmra.mrb[0].mxu0 %v2317
    %v2353 = vpop.f32.mrb[0].mxu0
    %v2354 = vadd.f32 0.0, %v2353
    %v2355 = vpop.f32.mrb[0].mxu0
    %v2356 = vpop.f32.mrb[0].mxu0
    %v2357 = vpop.f32.mrb[0].mxu0
    %2358 = vdwg.mxu0
    %v2360 = vsel %vm222, %v2315, 0
    %2362 = vmatprep.subr.bf16.mxu0 0
    %2363 = vmatpush1.bf16.msra.mxu0 %v747
    %2364 = vmatprep.subr.bf16.mxu0 0
    %2365 = vmatpush1.bf16.msra.mxu0 %v748
    %2366 = vmatprep.subr.bf16.mxu0 0
    %2367 = vmatpush1.bf16.msra.mxu0 0
    %2368 = vmatprep.subr.bf16.mxu0 0
    %2369 = vmatpush1.bf16.msra.mxu0 0
    %2370 = vmatprep.subr.bf16.mxu0 0
    %2371 = vmatpush1.bf16.msra.mxu0 0
    %2372 = vmatprep.subr.bf16.mxu0 0
    %2373 = vmatpush1.bf16.msra.mxu0 0
    %2374 = vmatprep.subr.bf16.mxu0 0
    %2375 = vmatpush1.bf16.msra.mxu0 0
    %2376 = vmatprep.subr.bf16.mxu0 0
    %2377 = vmatpush1.bf16.msra.mxu0 0
    %2378 = vmatprep.subr.bf16.mxu0 0
    %2379 = vmatpush1.bf16.msra.mxu0 0
    %2380 = vmatprep.subr.bf16.mxu0 0
    %2381 = vmatpush1.bf16.msra.mxu0 0
    %2382 = vmatprep.subr.bf16.mxu0 0
    %2383 = vmatpush1.bf16.msra.mxu0 0
    %2384 = vmatprep.subr.bf16.mxu0 0
    %2385 = vmatpush1.bf16.msra.mxu0 0
    %2386 = vmatprep.subr.bf16.mxu0 0
    %2387 = vmatpush1.bf16.msra.mxu0 0
    %2388 = vmatprep.subr.bf16.mxu0 0
    %2389 = vmatpush1.bf16.msra.mxu0 0
    %2390 = vmatprep.subr.bf16.mxu0 0
    %2391 = vmatpush1.bf16.msra.mxu0 0
    %2392 = vmatprep.subr.bf16.mxu0 0
    %2393 = vmatpush1.bf16.msra.mxu0 0
    %2394 = vmatprep.mubr.bf16.mxu0 0
    %2395 = vmatmul.mubr.bf16.gmra.mrb[0].mxu0 %v2360
    %v2396 = vpop.f32.mrb[0].mxu0
    %v2397 = vadd.f32 %v2354, %v2396
    %v2398 = vpop.f32.mrb[0].mxu0
    %v2399 = vpop.f32.mrb[0].mxu0
    %v2400 = vpop.f32.mrb[0].mxu0
    %2401 = vdwg.mxu0
    %v2402 = vadd.f32 %v2397, %v146
    %v2403 = vtanh.pop %v2402
    %v2404 = vpack.c.bf16 %v2403, %v2403
    %2405 = vset.pattern.permute.xlu0 7
    %2406 = vperm.xlu0 %2405, %v437
    %v2407 = vpop.permute.xlu0 %2406
    %vm2408 = vcmp.eq.s32.totalorder %v2407, %v124
    %v2409 = vsel %vm2408, 1, 0
    %v2410 = vcvt.s32.f32 %v2409
    %v2411 = vpack.c.bf16 %v2410, %v2410
    %2412 = vmatprep.subr.bf16.mxu0 0
    %2413 = vmatpush1.bf16.msra.mxu0 %v457
    %2414 = vmatprep.subr.bf16.mxu0 0
    %2415 = vmatpush1.bf16.msra.mxu0 %v458
    %2416 = vmatprep.subr.bf16.mxu0 0
    %2417 = vmatpush1.bf16.msra.mxu0 0
    %2418 = vmatprep.subr.bf16.mxu0 0
    %2419 = vmatpush1.bf16.msra.mxu0 0
    %2420 = vmatprep.subr.bf16.mxu0 0
    %2421 = vmatpush1.bf16.msra.mxu0 0
    %2422 = vmatprep.subr.bf16.mxu0 0
    %2423 = vmatpush1.bf16.msra.mxu0 0
    %2424 = vmatprep.subr.bf16.mxu0 0
    %2425 = vmatpush1.bf16.msra.mxu0 0
    %2426 = vmatprep.subr.bf16.mxu0 0
    %2427 = vmatpush1.bf16.msra.mxu0 0
    %2428 = vmatprep.subr.bf16.mxu0 0
    %2429 = vmatpush1.bf16.msra.mxu0 0
    %2430 = vmatprep.subr.bf16.mxu0 0
    %2431 = vmatpush1.bf16.msra.mxu0 0
    %2432 = vmatprep.subr.bf16.mxu0 0
    %2433 = vmatpush1.bf16.msra.mxu0 0
    %2434 = vmatprep.subr.bf16.mxu0 0
    %2435 = vmatpush1.bf16.msra.mxu0 0
    %2436 = vmatprep.subr.bf16.mxu0 0
    %2437 = vmatpush1.bf16.msra.mxu0 0
    %2438 = vmatprep.subr.bf16.mxu0 0
    %2439 = vmatpush1.bf16.msra.mxu0 0
    %2440 = vmatprep.subr.bf16.mxu0 0
    %2441 = vmatpush1.bf16.msra.mxu0 0
    %2442 = vmatprep.subr.bf16.mxu0 0
    %2443 = vmatpush1.bf16.msra.mxu0 0
    %2444 = vmatprep.mubr.bf16.mxu0 0
    %2445 = vmatmul.mubr.bf16.gmra.mrb[0].mxu0 %v2271
    %v2446 = vpop.f32.mrb[0].mxu0
    %v2447 = vadd.f32 0.0, %v2446
    %v2448 = vpop.f32.mrb[0].mxu0
    %v2449 = vpop.f32.mrb[0].mxu0
    %v2450 = vpop.f32.mrb[0].mxu0
    %2451 = vdwg.mxu0
    %v2453 = vsel %vm504, %v2411, 0
    %2455 = vmatprep.subr.bf16.mxu0 0
    %2456 = vmatpush1.bf16.msra.mxu0 %v300
    %2457 = vmatprep.subr.bf16.mxu0 0
    %2458 = vmatpush1.bf16.msra.mxu0 %v301
    %2459 = vmatprep.subr.bf16.mxu0 0
    %2460 = vmatpush1.bf16.msra.mxu0 %v302
    %2461 = vmatprep.subr.bf16.mxu0 0
    %2462 = vmatpush1.bf16.msra.mxu0 %v303
    %2463 = vmatprep.subr.bf16.mxu0 0
    %2464 = vmatpush1.bf16.msra.mxu0 0
    %2465 = vmatprep.subr.bf16.mxu0 0
    %2466 = vmatpush1.bf16.msra.mxu0 0
    %2467 = vmatprep.subr.bf16.mxu0 0
    %2468 = vmatpush1.bf16.msra.mxu0 0
    %2469 = vmatprep.subr.bf16.mxu0 0
    %2470 = vmatpush1.bf16.msra.mxu0 0
    %2471 = vmatprep.subr.bf16.mxu0 0
    %2472 = vmatpush1.bf16.msra.mxu0 0
    %2473 = vmatprep.subr.bf16.mxu0 0
    %2474 = vmatpush1.bf16.msra.mxu0 0
    %2475 = vmatprep.subr.bf16.mxu0 0
    %2476 = vmatpush1.bf16.msra.mxu0 0
    %2477 = vmatprep.subr.bf16.mxu0 0
    %2478 = vmatpush1.bf16.msra.mxu0 0
    %2479 = vmatprep.subr.bf16.mxu0 0
    %2480 = vmatpush1.bf16.msra.mxu0 0
    %2481 = vmatprep.subr.bf16.mxu0 0
    %2482 = vmatpush1.bf16.msra.mxu0 0
    %2483 = vmatprep.subr.bf16.mxu0 0
    %2484 = vmatpush1.bf16.msra.mxu0 0
    %2485 = vmatprep.subr.bf16.mxu0 0
    %2486 = vmatpush1.bf16.msra.mxu0 0
    %2487 = vmatprep.mubr.bf16.mxu0 0
    %2488 = vmatmul.mubr.bf16.gmra.mrb[0].mxu0 %v2453
    %v2489 = vpop.f32.mrb[0].mxu0
    %v2490 = vadd.f32 %v2447, %v2489
    %v2491 = vpop.f32.mrb[0].mxu0
    %v2492 = vpop.f32.mrb[0].mxu0
    %v2493 = vpop.f32.mrb[0].mxu0
    %2494 = vdwg.mxu0
    %v2495 = vadd.f32 %v2490, %v130
    %v2496 = vtanh.pop %v2495
    %v2497 = vpack.c.bf16 %v2496, %v2496
    %2498 = vmatprep.subr.bf16.mxu0 0
    %2499 = vmatpush1.bf16.msra.mxu0 %v569
    %2500 = vmatprep.subr.bf16.mxu0 0
    %2501 = vmatpush1.bf16.msra.mxu0 %v570
    %2502 = vmatprep.subr.bf16.mxu0 0
    %2503 = vmatpush1.bf16.msra.mxu0 0
    %2504 = vmatprep.subr.bf16.mxu0 0
    %2505 = vmatpush1.bf16.msra.mxu0 0
    %2506 = vmatprep.subr.bf16.mxu0 0
    %2507 = vmatpush1.bf16.msra.mxu0 0
    %2508 = vmatprep.subr.bf16.mxu0 0
    %2509 = vmatpush1.bf16.msra.mxu0 0
    %2510 = vmatprep.subr.bf16.mxu0 0
    %2511 = vmatpush1.bf16.msra.mxu0 0
    %2512 = vmatprep.subr.bf16.mxu0 0
    %2513 = vmatpush1.bf16.msra.mxu0 0
    %2514 = vmatprep.subr.bf16.mxu0 0
    %2515 = vmatpush1.bf16.msra.mxu0 0
    %2516 = vmatprep.subr.bf16.mxu0 0
    %2517 = vmatpush1.bf16.msra.mxu0 0
    %2518 = vmatprep.subr.bf16.mxu0 0
    %2519 = vmatpush1.bf16.msra.mxu0 0
    %2520 = vmatprep.subr.bf16.mxu0 0
    %2521 = vmatpush1.bf16.msra.mxu0 0
    %2522 = vmatprep.subr.bf16.mxu0 0
    %2523 = vmatpush1.bf16.msra.mxu0 0
    %2524 = vmatprep.subr.bf16.mxu0 0
    %2525 = vmatpush1.bf16.msra.mxu0 0
    %2526 = vmatprep.subr.bf16.mxu0 0
    %2527 = vmatpush1.bf16.msra.mxu0 0
    %2528 = vmatprep.subr.bf16.mxu0 0
    %2529 = vmatpush1.bf16.msra.mxu0 0
    %2530 = vmatprep.mubr.bf16.mxu0 0
    %2531 = vmatmul.mubr.bf16.gmra.mrb[0].mxu0 %v2360
    %v2532 = vpop.f32.mrb[0].mxu0
    %v2533 = vadd.f32 0.0, %v2532
    %v2534 = vpop.f32.mrb[0].mxu0
    %v2535 = vpop.f32.mrb[0].mxu0
    %v2536 = vpop.f32.mrb[0].mxu0
    %2537 = vdwg.mxu0
    %v2539 = vsel %vm222, %v2497, 0
    %2541 = vmatprep.subr.bf16.mxu0 0
    %2542 = vmatpush1.bf16.msra.mxu0 %v624
    %2543 = vmatprep.subr.bf16.mxu0 0
    %2544 = vmatpush1.bf16.msra.mxu0 %v625
    %2545 = vmatprep.subr.bf16.mxu0 0
    %2546 = vmatpush1.bf16.msra.mxu0 0
    %2547 = vmatprep.subr.bf16.mxu0 0
    %2548 = vmatpush1.bf16.msra.mxu0 0
    %2549 = vmatprep.subr.bf16.mxu0 0
    %2550 = vmatpush1.bf16.msra.mxu0 0
    %2551 = vmatprep.subr.bf16.mxu0 0
    %2552 = vmatpush1.bf16.msra.mxu0 0
    %2553 = vmatprep.subr.bf16.mxu0 0
    %2554 = vmatpush1.bf16.msra.mxu0 0
    %2555 = vmatprep.subr.bf16.mxu0 0
    %2556 = vmatpush1.bf16.msra.mxu0 0
    %2557 = vmatprep.subr.bf16.mxu0 0
    %2558 = vmatpush1.bf16.msra.mxu0 0
    %2559 = vmatprep.subr.bf16.mxu0 0
    %2560 = vmatpush1.bf16.msra.mxu0 0
    %2561 = vmatprep.subr.bf16.mxu0 0
    %2562 = vmatpush1.bf16.msra.mxu0 0
    %2563 = vmatprep.subr.bf16.mxu0 0
    %2564 = vmatpush1.bf16.msra.mxu0 0
    %2565 = vmatprep.subr.bf16.mxu0 0
    %2566 = vmatpush1.bf16.msra.mxu0 0
    %2567 = vmatprep.subr.bf16.mxu0 0
    %2568 = vmatpush1.bf16.msra.mxu0 0
    %2569 = vmatprep.subr.bf16.mxu0 0
    %2570 = vmatpush1.bf16.msra.mxu0 0
    %2571 = vmatprep.subr.bf16.mxu0 0
    %2572 = vmatpush1.bf16.msra.mxu0 0
    %2573 = vmatprep.mubr.bf16.mxu0 0
    %2574 = vmatmul.mubr.bf16.gmra.mrb[0].mxu0 %v2539
    %v2575 = vpop.f32.mrb[0].mxu0
    %v2576 = vadd.f32 %v2533, %v2575
    %v2577 = vpop.f32.mrb[0].mxu0
    %v2578 = vpop.f32.mrb[0].mxu0
    %v2579 = vpop.f32.mrb[0].mxu0
    %2580 = vdwg.mxu0
    %v2581 = vadd.f32 %v2576, %v138
    %v2582 = vtanh.pop %v2581
    %v2583 = vpack.c.bf16 %v2582, %v2582
    %v2585 = vsel %vm222, %v2404, 0
    %2587 = vmatprep.subr.bf16.mxu0 0
    %2588 = vmatpush1.bf16.msra.mxu0 %v692
    %2589 = vmatprep.subr.bf16.mxu0 0
    %2590 = vmatpush1.bf16.msra.mxu0 %v693
    %2591 = vmatprep.subr.bf16.mxu0 0
    %2592 = vmatpush1.bf16.msra.mxu0 0
    %2593 = vmatprep.subr.bf16.mxu0 0
    %2594 = vmatpush1.bf16.msra.mxu0 0
    %2595 = vmatprep.subr.bf16.mxu0 0
    %2596 = vmatpush1.bf16.msra.mxu0 0
    %2597 = vmatprep.subr.bf16.mxu0 0
    %2598 = vmatpush1.bf16.msra.mxu0 0
    %2599 = vmatprep.subr.bf16.mxu0 0
    %2600 = vmatpush1.bf16.msra.mxu0 0
    %2601 = vmatprep.subr.bf16.mxu0 0
    %2602 = vmatpush1.bf16.msra.mxu0 0
    %2603 = vmatprep.subr.bf16.mxu0 0
    %2604 = vmatpush1.bf16.msra.mxu0 0
    %2605 = vmatprep.subr.bf16.mxu0 0
    %2606 = vmatpush1.bf16.msra.mxu0 0
    %2607 = vmatprep.subr.bf16.mxu0 0
    %2608 = vmatpush1.bf16.msra.mxu0 0
    %2609 = vmatprep.subr.bf16.mxu0 0
    %2610 = vmatpush1.bf16.msra.mxu0 0
    %2611 = vmatprep.subr.bf16.mxu0 0
    %2612 = vmatpush1.bf16.msra.mxu0 0
    %2613 = vmatprep.subr.bf16.mxu0 0
    %2614 = vmatpush1.bf16.msra.mxu0 0
    %2615 = vmatprep.subr.bf16.mxu0 0
    %2616 = vmatpush1.bf16.msra.mxu0 0
    %2617 = vmatprep.subr.bf16.mxu0 0
    %2618 = vmatpush1.bf16.msra.mxu0 0
    %2619 = vmatprep.mubr.bf16.mxu0 0
    %2620 = vmatmul.mubr.bf16.gmra.mrb[0].mxu0 %v2585
    %v2621 = vpop.f32.mrb[0].mxu0
    %v2622 = vadd.f32 0.0, %v2621
    %v2623 = vpop.f32.mrb[0].mxu0
    %v2624 = vpop.f32.mrb[0].mxu0
    %v2625 = vpop.f32.mrb[0].mxu0
    %2626 = vdwg.mxu0
    %v2628 = vsel %vm222, %v2583, 0
    %2630 = vmatprep.subr.bf16.mxu0 0
    %2631 = vmatpush1.bf16.msra.mxu0 %v747
    %2632 = vmatprep.subr.bf16.mxu0 0
    %2633 = vmatpush1.bf16.msra.mxu0 %v748
    %2634 = vmatprep.subr.bf16.mxu0 0
    %2635 = vmatpush1.bf16.msra.mxu0 0
    %2636 = vmatprep.subr.bf16.mxu0 0
    %2637 = vmatpush1.bf16.msra.mxu0 0
    %2638 = vmatprep.subr.bf16.mxu0 0
    %2639 = vmatpush1.bf16.msra.mxu0 0
    %2640 = vmatprep.subr.bf16.mxu0 0
    %2641 = vmatpush1.bf16.msra.mxu0 0
    %2642 = vmatprep.subr.bf16.mxu0 0
    %2643 = vmatpush1.bf16.msra.mxu0 0
    %2644 = vmatprep.subr.bf16.mxu0 0
    %2645 = vmatpush1.bf16.msra.mxu0 0
    %2646 = vmatprep.subr.bf16.mxu0 0
    %2647 = vmatpush1.bf16.msra.mxu0 0
    %2648 = vmatprep.subr.bf16.mxu0 0
    %2649 = vmatpush1.bf16.msra.mxu0 0
    %2650 = vmatprep.subr.bf16.mxu0 0
    %2651 = vmatpush1.bf16.msra.mxu0 0
    %2652 = vmatprep.subr.bf16.mxu0 0
    %2653 = vmatpush1.bf16.msra.mxu0 0
    %2654 = vmatprep.subr.bf16.mxu0 0
    %2655 = vmatpush1.bf16.msra.mxu0 0
    %2656 = vmatprep.subr.bf16.mxu0 0
    %2657 = vmatpush1.bf16.msra.mxu0 0
    %2658 = vmatprep.subr.bf16.mxu0 0
    %2659 = vmatpush1.bf16.msra.mxu0 0
    %2660 = vmatprep.subr.bf16.mxu0 0
    %2661 = vmatpush1.bf16.msra.mxu0 0
    %2662 = vmatprep.mubr.bf16.mxu0 0
    %2663 = vmatmul.mubr.bf16.gmra.mrb[0].mxu0 %v2628
    %v2664 = vpop.f32.mrb[0].mxu0
    %v2665 = vadd.f32 %v2622, %v2664
    %v2666 = vpop.f32.mrb[0].mxu0
    %v2667 = vpop.f32.mrb[0].mxu0
    %v2668 = vpop.f32.mrb[0].mxu0
    %2669 = vdwg.mxu0
    %v2670 = vadd.f32 %v2665, %v146
    %v2671 = vtanh.pop %v2670
    %v2672 = vpack.c.bf16 %v2671, %v2671
    %vm2673 = vcmp.eq.s32.totalorder %v124, 0
    %v2674 = vsel %vm2673, 1, 0
    %v2675 = vcvt.s32.f32 %v2674
    %v2676 = vpack.c.bf16 %v2675, %v2675
    %v2677 = vld [vmem:[#allocation10] sm:$0xf]
    %v2678 = vld [vmem:[#allocation10 + $0x4] sm:$0xf]
    %v2679 = vld [vmem:[#allocation10 + $0x8] sm:$0xf]
    %v2680 = vld [vmem:[#allocation10 + $0xc] sm:$0xf]
    %v2685 = vunpack.c.l.b16 %v2677
    %v2686 = vunpack.c.l.b16 %v2678
    %v2687 = vunpack.c.l.b16 %v2679
    %v2688 = vunpack.c.l.b16 %v2680
    %v2689 = vpack.c.b16 %v2686, %v2685
    %v2690 = vpack.c.b16 %v2688, %v2687
    %2693 = vmatprep.subr.bf16.mxu0 0
    %2694 = vmatpush1.bf16.msra.mxu0 %v2689
    %2695 = vmatprep.subr.bf16.mxu0 0
    %2696 = vmatpush1.bf16.msra.mxu0 %v2690
    %2697 = vmatprep.subr.bf16.mxu0 0
    %2698 = vmatpush1.bf16.msra.mxu0 0
    %2699 = vmatprep.subr.bf16.mxu0 0
    %2700 = vmatpush1.bf16.msra.mxu0 0
    %2701 = vmatprep.subr.bf16.mxu0 0
    %2702 = vmatpush1.bf16.msra.mxu0 0
    %2703 = vmatprep.subr.bf16.mxu0 0
    %2704 = vmatpush1.bf16.msra.mxu0 0
    %2705 = vmatprep.subr.bf16.mxu0 0
    %2706 = vmatpush1.bf16.msra.mxu0 0
    %2707 = vmatprep.subr.bf16.mxu0 0
    %2708 = vmatpush1.bf16.msra.mxu0 0
    %2709 = vmatprep.subr.bf16.mxu0 0
    %2710 = vmatpush1.bf16.msra.mxu0 0
    %2711 = vmatprep.subr.bf16.mxu0 0
    %2712 = vmatpush1.bf16.msra.mxu0 0
    %2713 = vmatprep.subr.bf16.mxu0 0
    %2714 = vmatpush1.bf16.msra.mxu0 0
    %2715 = vmatprep.subr.bf16.mxu0 0
    %2716 = vmatpush1.bf16.msra.mxu0 0
    %2717 = vmatprep.subr.bf16.mxu0 0
    %2718 = vmatpush1.bf16.msra.mxu0 0
    %2719 = vmatprep.subr.bf16.mxu0 0
    %2720 = vmatpush1.bf16.msra.mxu0 0
    %2721 = vmatprep.subr.bf16.mxu0 0
    %2722 = vmatpush1.bf16.msra.mxu0 0
    %2723 = vmatprep.subr.bf16.mxu0 0
    %2724 = vmatpush1.bf16.msra.mxu0 0
    %2725 = vmatprep.mubr.bf16.mxu0 0
    %2726 = vmatmul.mubr.bf16.gmra.mrb[0].mxu0 %v2539
    %v2727 = vpop.f32.mrb[0].mxu0
    %v2728 = vadd.f32 0.0, %v2727
    %v2729 = vpop.f32.mrb[0].mxu0
    %v2730 = vpop.f32.mrb[0].mxu0
    %v2731 = vpop.f32.mrb[0].mxu0
    %2732 = vdwg.mxu0
    %v2734 = vsel %vm504, %v2676, 0
    %2736 = vmatprep.subr.bf16.mxu0 0
    %2737 = vmatpush1.bf16.msra.mxu0 %v425
    %2738 = vmatprep.subr.bf16.mxu0 0
    %2739 = vmatpush1.bf16.msra.mxu0 %v426
    %2740 = vmatprep.subr.bf16.mxu0 0
    %2741 = vmatpush1.bf16.msra.mxu0 %v427
    %2742 = vmatprep.subr.bf16.mxu0 0
    %2743 = vmatpush1.bf16.msra.mxu0 %v428
    %2744 = vmatprep.subr.bf16.mxu0 0
    %2745 = vmatpush1.bf16.msra.mxu0 0
    %2746 = vmatprep.subr.bf16.mxu0 0
    %2747 = vmatpush1.bf16.msra.mxu0 0
    %2748 = vmatprep.subr.bf16.mxu0 0
    %2749 = vmatpush1.bf16.msra.mxu0 0
    %2750 = vmatprep.subr.bf16.mxu0 0
    %2751 = vmatpush1.bf16.msra.mxu0 0
    %2752 = vmatprep.subr.bf16.mxu0 0
    %2753 = vmatpush1.bf16.msra.mxu0 0
    %2754 = vmatprep.subr.bf16.mxu0 0
    %2755 = vmatpush1.bf16.msra.mxu0 0
    %2756 = vmatprep.subr.bf16.mxu0 0
    %2757 = vmatpush1.bf16.msra.mxu0 0
    %2758 = vmatprep.subr.bf16.mxu0 0
    %2759 = vmatpush1.bf16.msra.mxu0 0
    %2760 = vmatprep.subr.bf16.mxu0 0
    %2761 = vmatpush1.bf16.msra.mxu0 0
    %2762 = vmatprep.subr.bf16.mxu0 0
    %2763 = vmatpush1.bf16.msra.mxu0 0
    %2764 = vmatprep.subr.bf16.mxu0 0
    %2765 = vmatpush1.bf16.msra.mxu0 0
    %2766 = vmatprep.subr.bf16.mxu0 0
    %2767 = vmatpush1.bf16.msra.mxu0 0
    %2768 = vmatprep.mubr.bf16.mxu0 0
    %2769 = vmatmul.mubr.bf16.gmra.mrb[0].mxu0 %v2734
    %v2770 = vpop.f32.mrb[0].mxu0
    %v2771 = vadd.f32 %v2728, %v2770
    %v2772 = vpop.f32.mrb[0].mxu0
    %v2773 = vpop.f32.mrb[0].mxu0
    %v2774 = vpop.f32.mrb[0].mxu0
    %2775 = vdwg.mxu0
    %v2776 = vadd.f32 %v2771, %v153
    %v2777 = vtanh.pop %v2776
    %v2778 = vpack.c.bf16 %v2777, %v2777
    %s2779 = scalar_lea.vmem [#allocation8], 16
    %v2780 = vld [vmem:[%s2779] sm:$0xf]
    %v2781 = vld [vmem:[%s2779 + $0x4] sm:$0xf]
    %v2782 = vld [vmem:[%s2779 + $0x8] sm:$0xf]
    %v2783 = vld [vmem:[%s2779 + $0xc] sm:$0xf]
    %s2784 = scalar_lea.vmem [#allocation10], 16
    %v2785 = vld [vmem:[%s2784] sm:$0xf]
    %v2786 = vld [vmem:[%s2784 + $0x4] sm:$0xf]
    %v2787 = vld [vmem:[%s2784 + $0x8] sm:$0xf]
    %v2788 = vld [vmem:[%s2784 + $0xc] sm:$0xf]
    %v2793 = vunpack.c.l.b16 %v2785
    %v2794 = vunpack.c.l.b16 %v2786
    %v2795 = vunpack.c.l.b16 %v2787
    %v2796 = vunpack.c.l.b16 %v2788
    %v2797 = vpack.c.b16 %v2794, %v2793
    %v2798 = vpack.c.b16 %v2796, %v2795
    %2801 = vmatprep.subr.bf16.mxu0 0
    %2802 = vmatpush1.bf16.msra.mxu0 %v2797
    %2803 = vmatprep.subr.bf16.mxu0 0
    %2804 = vmatpush1.bf16.msra.mxu0 %v2798
    %2805 = vmatprep.subr.bf16.mxu0 0
    %2806 = vmatpush1.bf16.msra.mxu0 0
    %2807 = vmatprep.subr.bf16.mxu0 0
    %2808 = vmatpush1.bf16.msra.mxu0 0
    %2809 = vmatprep.subr.bf16.mxu0 0
    %2810 = vmatpush1.bf16.msra.mxu0 0
    %2811 = vmatprep.subr.bf16.mxu0 0
    %2812 = vmatpush1.bf16.msra.mxu0 0
    %2813 = vmatprep.subr.bf16.mxu0 0
    %2814 = vmatpush1.bf16.msra.mxu0 0
    %2815 = vmatprep.subr.bf16.mxu0 0
    %2816 = vmatpush1.bf16.msra.mxu0 0
    %2817 = vmatprep.subr.bf16.mxu0 0
    %2818 = vmatpush1.bf16.msra.mxu0 0
    %2819 = vmatprep.subr.bf16.mxu0 0
    %2820 = vmatpush1.bf16.msra.mxu0 0
    %2821 = vmatprep.subr.bf16.mxu0 0
    %2822 = vmatpush1.bf16.msra.mxu0 0
    %2823 = vmatprep.subr.bf16.mxu0 0
    %2824 = vmatpush1.bf16.msra.mxu0 0
    %2825 = vmatprep.subr.bf16.mxu0 0
    %2826 = vmatpush1.bf16.msra.mxu0 0
    %2827 = vmatprep.subr.bf16.mxu0 0
    %2828 = vmatpush1.bf16.msra.mxu0 0
    %2829 = vmatprep.subr.bf16.mxu0 0
    %2830 = vmatpush1.bf16.msra.mxu0 0
    %2831 = vmatprep.subr.bf16.mxu0 0
    %2832 = vmatpush1.bf16.msra.mxu0 0
    %2833 = vmatprep.mubr.bf16.mxu0 0
    %2834 = vmatmul.mubr.bf16.gmra.mrb[0].mxu0 %v2628
    %v2835 = vpop.f32.mrb[0].mxu0
    %v2836 = vadd.f32 0.0, %v2835
    %v2837 = vpop.f32.mrb[0].mxu0
    %v2838 = vpop.f32.mrb[0].mxu0
    %v2839 = vpop.f32.mrb[0].mxu0
    %2840 = vdwg.mxu0
    %v2845 = vunpack.c.l.b16 %v2780
    %v2846 = vunpack.c.l.b16 %v2781
    %v2847 = vunpack.c.l.b16 %v2782
    %v2848 = vunpack.c.l.b16 %v2783
    %v2849 = vpack.c.b16 %v2846, %v2845
    %v2850 = vpack.c.b16 %v2848, %v2847
    %v2854 = vsel %vm222, %v2778, 0
    %2856 = vmatprep.subr.bf16.mxu0 0
    %2857 = vmatpush1.bf16.msra.mxu0 %v2849
    %2858 = vmatprep.subr.bf16.mxu0 0
    %2859 = vmatpush1.bf16.msra.mxu0 %v2850
    %2860 = vmatprep.subr.bf16.mxu0 0
    %2861 = vmatpush1.bf16.msra.mxu0 0
    %2862 = vmatprep.subr.bf16.mxu0 0
    %2863 = vmatpush1.bf16.msra.mxu0 0
    %2864 = vmatprep.subr.bf16.mxu0 0
    %2865 = vmatpush1.bf16.msra.mxu0 0
    %2866 = vmatprep.subr.bf16.mxu0 0
    %2867 = vmatpush1.bf16.msra.mxu0 0
    %2868 = vmatprep.subr.bf16.mxu0 0
    %2869 = vmatpush1.bf16.msra.mxu0 0
    %2870 = vmatprep.subr.bf16.mxu0 0
    %2871 = vmatpush1.bf16.msra.mxu0 0
    %2872 = vmatprep.subr.bf16.mxu0 0
    %2873 = vmatpush1.bf16.msra.mxu0 0
    %2874 = vmatprep.subr.bf16.mxu0 0
    %2875 = vmatpush1.bf16.msra.mxu0 0
    %2876 = vmatprep.subr.bf16.mxu0 0
    %2877 = vmatpush1.bf16.msra.mxu0 0
    %2878 = vmatprep.subr.bf16.mxu0 0
    %2879 = vmatpush1.bf16.msra.mxu0 0
    %2880 = vmatprep.subr.bf16.mxu0 0
    %2881 = vmatpush1.bf16.msra.mxu0 0
    %2882 = vmatprep.subr.bf16.mxu0 0
    %2883 = vmatpush1.bf16.msra.mxu0 0
    %2884 = vmatprep.subr.bf16.mxu0 0
    %2885 = vmatpush1.bf16.msra.mxu0 0
    %2886 = vmatprep.subr.bf16.mxu0 0
    %2887 = vmatpush1.bf16.msra.mxu0 0
    %2888 = vmatprep.mubr.bf16.mxu0 0
    %2889 = vmatmul.mubr.bf16.gmra.mrb[0].mxu0 %v2854
    %v2890 = vpop.f32.mrb[0].mxu0
    %v2891 = vadd.f32 %v2836, %v2890
    %v2892 = vpop.f32.mrb[0].mxu0
    %v2893 = vpop.f32.mrb[0].mxu0
    %v2894 = vpop.f32.mrb[0].mxu0
    %2895 = vdwg.mxu0
    %v2896 = vadd.f32 %v2891, %v161
    %v2897 = vtanh.pop %v2896
    %v2898 = vpack.c.bf16 %v2897, %v2897
    %s2899 = scalar_lea.vmem [#allocation8], 32
    %v2900 = vld [vmem:[%s2899] sm:$0xf]
    %v2901 = vld [vmem:[%s2899 + $0x4] sm:$0xf]
    %v2902 = vld [vmem:[%s2899 + $0x8] sm:$0xf]
    %v2903 = vld [vmem:[%s2899 + $0xc] sm:$0xf]
    %s2904 = scalar_lea.vmem [#allocation10], 32
    %v2905 = vld [vmem:[%s2904] sm:$0xf]
    %v2906 = vld [vmem:[%s2904 + $0x4] sm:$0xf]
    %v2907 = vld [vmem:[%s2904 + $0x8] sm:$0xf]
    %v2908 = vld [vmem:[%s2904 + $0xc] sm:$0xf]
    %v2913 = vunpack.c.l.b16 %v2905
    %v2914 = vunpack.c.l.b16 %v2906
    %v2915 = vunpack.c.l.b16 %v2907
    %v2916 = vunpack.c.l.b16 %v2908
    %v2917 = vpack.c.b16 %v2914, %v2913
    %v2918 = vpack.c.b16 %v2916, %v2915
    %v2922 = vsel %vm222, %v2672, 0
    %2924 = vmatprep.subr.bf16.mxu0 0
    %2925 = vmatpush1.bf16.msra.mxu0 %v2917
    %2926 = vmatprep.subr.bf16.mxu0 0
    %2927 = vmatpush1.bf16.msra.mxu0 %v2918
    %2928 = vmatprep.subr.bf16.mxu0 0
    %2929 = vmatpush1.bf16.msra.mxu0 0
    %2930 = vmatprep.subr.bf16.mxu0 0
    %2931 = vmatpush1.bf16.msra.mxu0 0
    %2932 = vmatprep.subr.bf16.mxu0 0
    %2933 = vmatpush1.bf16.msra.mxu0 0
    %2934 = vmatprep.subr.bf16.mxu0 0
    %2935 = vmatpush1.bf16.msra.mxu0 0
    %2936 = vmatprep.subr.bf16.mxu0 0
    %2937 = vmatpush1.bf16.msra.mxu0 0
    %2938 = vmatprep.subr.bf16.mxu0 0
    %2939 = vmatpush1.bf16.msra.mxu0 0
    %2940 = vmatprep.subr.bf16.mxu0 0
    %2941 = vmatpush1.bf16.msra.mxu0 0
    %2942 = vmatprep.subr.bf16.mxu0 0
    %2943 = vmatpush1.bf16.msra.mxu0 0
    %2944 = vmatprep.subr.bf16.mxu0 0
    %2945 = vmatpush1.bf16.msra.mxu0 0
    %2946 = vmatprep.subr.bf16.mxu0 0
    %2947 = vmatpush1.bf16.msra.mxu0 0
    %2948 = vmatprep.subr.bf16.mxu0 0
    %2949 = vmatpush1.bf16.msra.mxu0 0
    %2950 = vmatprep.subr.bf16.mxu0 0
    %2951 = vmatpush1.bf16.msra.mxu0 0
    %2952 = vmatprep.subr.bf16.mxu0 0
    %2953 = vmatpush1.bf16.msra.mxu0 0
    %2954 = vmatprep.subr.bf16.mxu0 0
    %2955 = vmatpush1.bf16.msra.mxu0 0
    %2956 = vmatprep.mubr.bf16.mxu0 0
    %2957 = vmatmul.mubr.bf16.gmra.mrb[0].mxu0 %v2922
    %v2958 = vpop.f32.mrb[0].mxu0
    %v2959 = vadd.f32 0.0, %v2958
    %v2960 = vpop.f32.mrb[0].mxu0
    %v2961 = vpop.f32.mrb[0].mxu0
    %v2962 = vpop.f32.mrb[0].mxu0
    %2963 = vdwg.mxu0
    %v2968 = vunpack.c.l.b16 %v2900
    %v2969 = vunpack.c.l.b16 %v2901
    %v2970 = vunpack.c.l.b16 %v2902
    %v2971 = vunpack.c.l.b16 %v2903
    %v2972 = vpack.c.b16 %v2969, %v2968
    %v2973 = vpack.c.b16 %v2971, %v2970
    %v2977 = vsel %vm222, %v2898, 0
    %2979 = vmatprep.subr.bf16.mxu0 0
    %2980 = vmatpush1.bf16.msra.mxu0 %v2972
    %2981 = vmatprep.subr.bf16.mxu0 0
    %2982 = vmatpush1.bf16.msra.mxu0 %v2973
    %2983 = vmatprep.subr.bf16.mxu0 0
    %2984 = vmatpush1.bf16.msra.mxu0 0
    %2985 = vmatprep.subr.bf16.mxu0 0
    %2986 = vmatpush1.bf16.msra.mxu0 0
    %2987 = vmatprep.subr.bf16.mxu0 0
    %2988 = vmatpush1.bf16.msra.mxu0 0
    %2989 = vmatprep.subr.bf16.mxu0 0
    %2990 = vmatpush1.bf16.msra.mxu0 0
    %2991 = vmatprep.subr.bf16.mxu0 0
    %2992 = vmatpush1.bf16.msra.mxu0 0
    %2993 = vmatprep.subr.bf16.mxu0 0
    %2994 = vmatpush1.bf16.msra.mxu0 0
    %2995 = vmatprep.subr.bf16.mxu0 0
    %2996 = vmatpush1.bf16.msra.mxu0 0
    %2997 = vmatprep.subr.bf16.mxu0 0
    %2998 = vmatpush1.bf16.msra.mxu0 0
    %2999 = vmatprep.subr.bf16.mxu0 0
    %3000 = vmatpush1.bf16.msra.mxu0 0
    %3001 = vmatprep.subr.bf16.mxu0 0
    %3002 = vmatpush1.bf16.msra.mxu0 0
    %3003 = vmatprep.subr.bf16.mxu0 0
    %3004 = vmatpush1.bf16.msra.mxu0 0
    %3005 = vmatprep.subr.bf16.mxu0 0
    %3006 = vmatpush1.bf16.msra.mxu0 0
    %3007 = vmatprep.subr.bf16.mxu0 0
    %3008 = vmatpush1.bf16.msra.mxu0 0
    %3009 = vmatprep.subr.bf16.mxu0 0
    %3010 = vmatpush1.bf16.msra.mxu0 0
    %3011 = vmatprep.mubr.bf16.mxu0 0
    %3012 = vmatmul.mubr.bf16.gmra.mrb[0].mxu0 %v2977
    %v3013 = vpop.f32.mrb[0].mxu0
    %v3014 = vadd.f32 %v2959, %v3013
    %v3015 = vpop.f32.mrb[0].mxu0
    %v3016 = vpop.f32.mrb[0].mxu0
    %v3017 = vpop.f32.mrb[0].mxu0
    %3018 = vdwg.mxu0
    %v3019 = vadd.f32 %v3014, %v169
    %v3020 = vtanh.pop %v3019
    %v3021 = vpack.c.bf16 %v3020, %v3020
    %v3022 = vld [vmem:[%s10] sm:$0xf]
    %v3023 = vld [vmem:[%s10 + $0x4] sm:$0xf]
    %v3024 = vld [vmem:[%s10 + $0x8] sm:$0xf]
    %v3025 = vld [vmem:[%s10 + $0xc] sm:$0xf]
    %v3030 = vunpack.c.l.b16 %v3022
    %v3031 = vunpack.c.l.b16 %v3023
    %v3032 = vunpack.c.l.b16 %v3024
    %v3033 = vunpack.c.l.b16 %v3025
    %v3034 = vpack.c.b16 %v3031, %v3030
    %v3035 = vpack.c.b16 %v3033, %v3032
    %v3039 = vsel %vm222, %v3021, 0
    %3041 = vmatprep.subr.bf16.mxu0 0
    %3042 = vmatpush1.bf16.msra.mxu0 %v3034
    %3043 = vmatprep.subr.bf16.mxu0 0
    %3044 = vmatpush1.bf16.msra.mxu0 %v3035
    %3045 = vmatprep.subr.bf16.mxu0 0
    %3046 = vmatpush1.bf16.msra.mxu0 0
    %3047 = vmatprep.subr.bf16.mxu0 0
    %3048 = vmatpush1.bf16.msra.mxu0 0
    %3049 = vmatprep.subr.bf16.mxu0 0
    %3050 = vmatpush1.bf16.msra.mxu0 0
    %3051 = vmatprep.subr.bf16.mxu0 0
    %3052 = vmatpush1.bf16.msra.mxu0 0
    %3053 = vmatprep.subr.bf16.mxu0 0
    %3054 = vmatpush1.bf16.msra.mxu0 0
    %3055 = vmatprep.subr.bf16.mxu0 0
    %3056 = vmatpush1.bf16.msra.mxu0 0
    %3057 = vmatprep.subr.bf16.mxu0 0
    %3058 = vmatpush1.bf16.msra.mxu0 0
    %3059 = vmatprep.subr.bf16.mxu0 0
    %3060 = vmatpush1.bf16.msra.mxu0 0
    %3061 = vmatprep.subr.bf16.mxu0 0
    %3062 = vmatpush1.bf16.msra.mxu0 0
    %3063 = vmatprep.subr.bf16.mxu0 0
    %3064 = vmatpush1.bf16.msra.mxu0 0
    %3065 = vmatprep.subr.bf16.mxu0 0
    %3066 = vmatpush1.bf16.msra.mxu0 0
    %3067 = vmatprep.subr.bf16.mxu0 0
    %3068 = vmatpush1.bf16.msra.mxu0 0
    %3069 = vmatprep.subr.bf16.mxu0 0
    %3070 = vmatpush1.bf16.msra.mxu0 0
    %3071 = vmatprep.subr.bf16.mxu0 0
    %3072 = vmatpush1.bf16.msra.mxu0 0
    %3073 = vmatprep.mubr.bf16.mxu0 0
    %3074 = vmatmul.mubr.bf16.gmra.mrb[0].mxu0 %v3039
    %v3075 = vpop.f32.mrb[0].mxu0
    %v3076 = vadd.f32 %v176, %v3075
    %v3077 = vpop.f32.mrb[0].mxu0
    %v3078 = vpop.f32.mrb[0].mxu0
    %v3079 = vpop.f32.mrb[0].mxu0
    %3080 = vdwg.mxu0
    %v3081 = vsel %vm504, %v3076, -inf
    %3082 = vmax.xlane.f32.xlu0 %v3081
    %v3083 = vpop.xlane.xlu0 %3082
    %vm3084 = vcmp.eq.f32.partialorder %v3076, %v3083
    %v3085 = vsel %vm3084, 1, 0
    %v3086 = vcvt.s32.f32 %v3085
    %v3087 = vpack.c.bf16 %v3086, %v3086
    %v3088 = vsel %vm3084, %v124, 64
    %v3089 = vsel %vm504, %v3088, 2147483647
    %v3090 = vand.u32 %v3089, 65535
    %v3091 = vshra.s32 %v3089, 16
    %v3092 = vcvt.s32.f32 %v3090
    %v3093 = vcvt.s32.f32 %v3091
    %3094 = vmin.xlane.f32.xlu0 %v3093
    %v3095 = vpop.xlane.xlu0 %3094
    %vm3096 = vcmp.eq.f32.partialorder %v3093, %v3095
    %v3097 = vsel %vm3096, %v3092, inf
    %3098 = vmin.xlane.f32.xlu0 %v3097
    %v3099 = vpop.xlane.xlu0 %3098
    %v3100 = vcvt.f32.s32 %v3099
    %v3101 = vcvt.f32.s32 %v3095
    %v3102 = vshll.u32 %v3101, 16
    %v3103 = vadd.s32 %v3102, %v3100
    %3104 = vmatprep.subr.bf16.mxu0 0
    %3105 = vmatpush1.bf16.msra.mxu0 %v2689
    %3106 = vmatprep.subr.bf16.mxu0 0
    %3107 = vmatpush1.bf16.msra.mxu0 %v2690
    %3108 = vmatprep.subr.bf16.mxu0 0
    %3109 = vmatpush1.bf16.msra.mxu0 0
    %3110 = vmatprep.subr.bf16.mxu0 0
    %3111 = vmatpush1.bf16.msra.mxu0 0
    %3112 = vmatprep.subr.bf16.mxu0 0
    %3113 = vmatpush1.bf16.msra.mxu0 0
    %3114 = vmatprep.subr.bf16.mxu0 0
    %3115 = vmatpush1.bf16.msra.mxu0 0
    %3116 = vmatprep.subr.bf16.mxu0 0
    %3117 = vmatpush1.bf16.msra.mxu0 0
    %3118 = vmatprep.subr.bf16.mxu0 0
    %3119 = vmatpush1.bf16.msra.mxu0 0
    %3120 = vmatprep.subr.bf16.mxu0 0
    %3121 = vmatpush1.bf16.msra.mxu0 0
    %3122 = vmatprep.subr.bf16.mxu0 0
    %3123 = vmatpush1.bf16.msra.mxu0 0
    %3124 = vmatprep.subr.bf16.mxu0 0
    %3125 = vmatpush1.bf16.msra.mxu0 0
    %3126 = vmatprep.subr.bf16.mxu0 0
    %3127 = vmatpush1.bf16.msra.mxu0 0
    %3128 = vmatprep.subr.bf16.mxu0 0
    %3129 = vmatpush1.bf16.msra.mxu0 0
    %3130 = vmatprep.subr.bf16.mxu0 0
    %3131 = vmatpush1.bf16.msra.mxu0 0
    %3132 = vmatprep.subr.bf16.mxu0 0
    %3133 = vmatpush1.bf16.msra.mxu0 0
    %3134 = vmatprep.subr.bf16.mxu0 0
    %3135 = vmatpush1.bf16.msra.mxu0 0
    %3136 = vmatprep.mubr.bf16.mxu0 0
    %3137 = vmatmul.mubr.bf16.gmra.mrb[0].mxu0 %v2854
    %v3138 = vpop.f32.mrb[0].mxu0
    %v3139 = vadd.f32 0.0, %v3138
    %v3140 = vpop.f32.mrb[0].mxu0
    %v3141 = vpop.f32.mrb[0].mxu0
    %v3142 = vpop.f32.mrb[0].mxu0
    %3143 = vdwg.mxu0
    %v3145 = vsel %vm504, %v3087, 0
    %3147 = vmatprep.subr.bf16.mxu0 0
    %3148 = vmatpush1.bf16.msra.mxu0 %v425
    %3149 = vmatprep.subr.bf16.mxu0 0
    %3150 = vmatpush1.bf16.msra.mxu0 %v426
    %3151 = vmatprep.subr.bf16.mxu0 0
    %3152 = vmatpush1.bf16.msra.mxu0 %v427
    %3153 = vmatprep.subr.bf16.mxu0 0
    %3154 = vmatpush1.bf16.msra.mxu0 %v428
    %3155 = vmatprep.subr.bf16.mxu0 0
    %3156 = vmatpush1.bf16.msra.mxu0 0
    %3157 = vmatprep.subr.bf16.mxu0 0
    %3158 = vmatpush1.bf16.msra.mxu0 0
    %3159 = vmatprep.subr.bf16.mxu0 0
    %3160 = vmatpush1.bf16.msra.mxu0 0
    %3161 = vmatprep.subr.bf16.mxu0 0
    %3162 = vmatpush1.bf16.msra.mxu0 0
    %3163 = vmatprep.subr.bf16.mxu0 0
    %3164 = vmatpush1.bf16.msra.mxu0 0
    %3165 = vmatprep.subr.bf16.mxu0 0
    %3166 = vmatpush1.bf16.msra.mxu0 0
    %3167 = vmatprep.subr.bf16.mxu0 0
    %3168 = vmatpush1.bf16.msra.mxu0 0
    %3169 = vmatprep.subr.bf16.mxu0 0
    %3170 = vmatpush1.bf16.msra.mxu0 0
    %3171 = vmatprep.subr.bf16.mxu0 0
    %3172 = vmatpush1.bf16.msra.mxu0 0
    %3173 = vmatprep.subr.bf16.mxu0 0
    %3174 = vmatpush1.bf16.msra.mxu0 0
    %3175 = vmatprep.subr.bf16.mxu0 0
    %3176 = vmatpush1.bf16.msra.mxu0 0
    %3177 = vmatprep.subr.bf16.mxu0 0
    %3178 = vmatpush1.bf16.msra.mxu0 0
    %3179 = vmatprep.mubr.bf16.mxu0 0
    %3180 = vmatmul.mubr.bf16.gmra.mrb[0].mxu0 %v3145
    %v3181 = vpop.f32.mrb[0].mxu0
    %v3182 = vadd.f32 %v3139, %v3181
    %v3183 = vpop.f32.mrb[0].mxu0
    %v3184 = vpop.f32.mrb[0].mxu0
    %v3185 = vpop.f32.mrb[0].mxu0
    %3186 = vdwg.mxu0
    %v3187 = vadd.f32 %v3182, %v153
    %v3188 = vtanh.pop %v3187
    %v3189 = vpack.c.bf16 %v3188, %v3188
    %3190 = vmatprep.subr.bf16.mxu0 0
    %3191 = vmatpush1.bf16.msra.mxu0 %v2797
    %3192 = vmatprep.subr.bf16.mxu0 0
    %3193 = vmatpush1.bf16.msra.mxu0 %v2798
    %3194 = vmatprep.subr.bf16.mxu0 0
    %3195 = vmatpush1.bf16.msra.mxu0 0
    %3196 = vmatprep.subr.bf16.mxu0 0
    %3197 = vmatpush1.bf16.msra.mxu0 0
    %3198 = vmatprep.subr.bf16.mxu0 0
    %3199 = vmatpush1.bf16.msra.mxu0 0
    %3200 = vmatprep.subr.bf16.mxu0 0
    %3201 = vmatpush1.bf16.msra.mxu0 0
    %3202 = vmatprep.subr.bf16.mxu0 0
    %3203 = vmatpush1.bf16.msra.mxu0 0
    %3204 = vmatprep.subr.bf16.mxu0 0
    %3205 = vmatpush1.bf16.msra.mxu0 0
    %3206 = vmatprep.subr.bf16.mxu0 0
    %3207 = vmatpush1.bf16.msra.mxu0 0
    %3208 = vmatprep.subr.bf16.mxu0 0
    %3209 = vmatpush1.bf16.msra.mxu0 0
    %3210 = vmatprep.subr.bf16.mxu0 0
    %3211 = vmatpush1.bf16.msra.mxu0 0
    %3212 = vmatprep.subr.bf16.mxu0 0
    %3213 = vmatpush1.bf16.msra.mxu0 0
    %3214 = vmatprep.subr.bf16.mxu0 0
    %3215 = vmatpush1.bf16.msra.mxu0 0
    %3216 = vmatprep.subr.bf16.mxu0 0
    %3217 = vmatpush1.bf16.msra.mxu0 0
    %3218 = vmatprep.subr.bf16.mxu0 0
    %3219 = vmatpush1.bf16.msra.mxu0 0
    %3220 = vmatprep.subr.bf16.mxu0 0
    %3221 = vmatpush1.bf16.msra.mxu0 0
    %3222 = vmatprep.mubr.bf16.mxu0 0
    %3223 = vmatmul.mubr.bf16.gmra.mrb[0].mxu0 %v2977
    %v3224 = vpop.f32.mrb[0].mxu0
    %v3225 = vadd.f32 0.0, %v3224
    %v3226 = vpop.f32.mrb[0].mxu0
    %v3227 = vpop.f32.mrb[0].mxu0
    %v3228 = vpop.f32.mrb[0].mxu0
    %3229 = vdwg.mxu0
    %v3231 = vsel %vm222, %v3189, 0
    %3233 = vmatprep.subr.bf16.mxu0 0
    %3234 = vmatpush1.bf16.msra.mxu0 %v2849
    %3235 = vmatprep.subr.bf16.mxu0 0
    %3236 = vmatpush1.bf16.msra.mxu0 %v2850
    %3237 = vmatprep.subr.bf16.mxu0 0
    %3238 = vmatpush1.bf16.msra.mxu0 0
    %3239 = vmatprep.subr.bf16.mxu0 0
    %3240 = vmatpush1.bf16.msra.mxu0 0
    %3241 = vmatprep.subr.bf16.mxu0 0
    %3242 = vmatpush1.bf16.msra.mxu0 0
    %3243 = vmatprep.subr.bf16.mxu0 0
    %3244 = vmatpush1.bf16.msra.mxu0 0
    %3245 = vmatprep.subr.bf16.mxu0 0
    %3246 = vmatpush1.bf16.msra.mxu0 0
    %3247 = vmatprep.subr.bf16.mxu0 0
    %3248 = vmatpush1.bf16.msra.mxu0 0
    %3249 = vmatprep.subr.bf16.mxu0 0
    %3250 = vmatpush1.bf16.msra.mxu0 0
    %3251 = vmatprep.subr.bf16.mxu0 0
    %3252 = vmatpush1.bf16.msra.mxu0 0
    %3253 = vmatprep.subr.bf16.mxu0 0
    %3254 = vmatpush1.bf16.msra.mxu0 0
    %3255 = vmatprep.subr.bf16.mxu0 0
    %3256 = vmatpush1.bf16.msra.mxu0 0
    %3257 = vmatprep.subr.bf16.mxu0 0
    %3258 = vmatpush1.bf16.msra.mxu0 0
    %3259 = vmatprep.subr.bf16.mxu0 0
    %3260 = vmatpush1.bf16.msra.mxu0 0
    %3261 = vmatprep.subr.bf16.mxu0 0
    %3262 = vmatpush1.bf16.msra.mxu0 0
    %3263 = vmatprep.subr.bf16.mxu0 0
    %3264 = vmatpush1.bf16.msra.mxu0 0
    %3265 = vmatprep.mubr.bf16.mxu0 0
    %3266 = vmatmul.mubr.bf16.gmra.mrb[0].mxu0 %v3231
    %v3267 = vpop.f32.mrb[0].mxu0
    %v3268 = vadd.f32 %v3225, %v3267
    %v3269 = vpop.f32.mrb[0].mxu0
    %v3270 = vpop.f32.mrb[0].mxu0
    %v3271 = vpop.f32.mrb[0].mxu0
    %3272 = vdwg.mxu0
    %v3273 = vadd.f32 %v3268, %v161
    %v3274 = vtanh.pop %v3273
    %v3275 = vpack.c.bf16 %v3274, %v3274
    %3276 = vmatprep.subr.bf16.mxu0 0
    %3277 = vmatpush1.bf16.msra.mxu0 %v2917
    %3278 = vmatprep.subr.bf16.mxu0 0
    %3279 = vmatpush1.bf16.msra.mxu0 %v2918
    %3280 = vmatprep.subr.bf16.mxu0 0
    %3281 = vmatpush1.bf16.msra.mxu0 0
    %3282 = vmatprep.subr.bf16.mxu0 0
    %3283 = vmatpush1.bf16.msra.mxu0 0
    %3284 = vmatprep.subr.bf16.mxu0 0
    %3285 = vmatpush1.bf16.msra.mxu0 0
    %3286 = vmatprep.subr.bf16.mxu0 0
    %3287 = vmatpush1.bf16.msra.mxu0 0
    %3288 = vmatprep.subr.bf16.mxu0 0
    %3289 = vmatpush1.bf16.msra.mxu0 0
    %3290 = vmatprep.subr.bf16.mxu0 0
    %3291 = vmatpush1.bf16.msra.mxu0 0
    %3292 = vmatprep.subr.bf16.mxu0 0
    %3293 = vmatpush1.bf16.msra.mxu0 0
    %3294 = vmatprep.subr.bf16.mxu0 0
    %3295 = vmatpush1.bf16.msra.mxu0 0
    %3296 = vmatprep.subr.bf16.mxu0 0
    %3297 = vmatpush1.bf16.msra.mxu0 0
    %3298 = vmatprep.subr.bf16.mxu0 0
    %3299 = vmatpush1.bf16.msra.mxu0 0
    %3300 = vmatprep.subr.bf16.mxu0 0
    %3301 = vmatpush1.bf16.msra.mxu0 0
    %3302 = vmatprep.subr.bf16.mxu0 0
    %3303 = vmatpush1.bf16.msra.mxu0 0
    %3304 = vmatprep.subr.bf16.mxu0 0
    %3305 = vmatpush1.bf16.msra.mxu0 0
    %3306 = vmatprep.subr.bf16.mxu0 0
    %3307 = vmatpush1.bf16.msra.mxu0 0
    %3308 = vmatprep.mubr.bf16.mxu0 0
    %3309 = vmatmul.mubr.bf16.gmra.mrb[0].mxu0 %v3039
    %v3310 = vpop.f32.mrb[0].mxu0
    %v3311 = vadd.f32 0.0, %v3310
    %v3312 = vpop.f32.mrb[0].mxu0
    %v3313 = vpop.f32.mrb[0].mxu0
    %v3314 = vpop.f32.mrb[0].mxu0
    %3315 = vdwg.mxu0
    %v3317 = vsel %vm222, %v3275, 0
    %3319 = vmatprep.subr.bf16.mxu0 0
    %3320 = vmatpush1.bf16.msra.mxu0 %v2972
    %3321 = vmatprep.subr.bf16.mxu0 0
    %3322 = vmatpush1.bf16.msra.mxu0 %v2973
    %3323 = vmatprep.subr.bf16.mxu0 0
    %3324 = vmatpush1.bf16.msra.mxu0 0
    %3325 = vmatprep.subr.bf16.mxu0 0
    %3326 = vmatpush1.bf16.msra.mxu0 0
    %3327 = vmatprep.subr.bf16.mxu0 0
    %3328 = vmatpush1.bf16.msra.mxu0 0
    %3329 = vmatprep.subr.bf16.mxu0 0
    %3330 = vmatpush1.bf16.msra.mxu0 0
    %3331 = vmatprep.subr.bf16.mxu0 0
    %3332 = vmatpush1.bf16.msra.mxu0 0
    %3333 = vmatprep.subr.bf16.mxu0 0
    %3334 = vmatpush1.bf16.msra.mxu0 0
    %3335 = vmatprep.subr.bf16.mxu0 0
    %3336 = vmatpush1.bf16.msra.mxu0 0
    %3337 = vmatprep.subr.bf16.mxu0 0
    %3338 = vmatpush1.bf16.msra.mxu0 0
    %3339 = vmatprep.subr.bf16.mxu0 0
    %3340 = vmatpush1.bf16.msra.mxu0 0
    %3341 = vmatprep.subr.bf16.mxu0 0
    %3342 = vmatpush1.bf16.msra.mxu0 0
    %3343 = vmatprep.subr.bf16.mxu0 0
    %3344 = vmatpush1.bf16.msra.mxu0 0
    %3345 = vmatprep.subr.bf16.mxu0 0
    %3346 = vmatpush1.bf16.msra.mxu0 0
    %3347 = vmatprep.subr.bf16.mxu0 0
    %3348 = vmatpush1.bf16.msra.mxu0 0
    %3349 = vmatprep.subr.bf16.mxu0 0
    %3350 = vmatpush1.bf16.msra.mxu0 0
    %3351 = vmatprep.mubr.bf16.mxu0 0
    %3352 = vmatmul.mubr.bf16.gmra.mrb[0].mxu0 %v3317
    %v3353 = vpop.f32.mrb[0].mxu0
    %v3354 = vadd.f32 %v3311, %v3353
    %v3355 = vpop.f32.mrb[0].mxu0
    %v3356 = vpop.f32.mrb[0].mxu0
    %v3357 = vpop.f32.mrb[0].mxu0
    %3358 = vdwg.mxu0
    %v3359 = vadd.f32 %v3354, %v169
    %v3360 = vtanh.pop %v3359
    %v3361 = vpack.c.bf16 %v3360, %v3360
    %v3363 = vsel %vm222, %v3361, 0
    %3365 = vmatprep.subr.bf16.mxu0 0
    %3366 = vmatpush1.bf16.msra.mxu0 %v3034
    %3367 = vmatprep.subr.bf16.mxu0 0
    %3368 = vmatpush1.bf16.msra.mxu0 %v3035
    %3369 = vmatprep.subr.bf16.mxu0 0
    %3370 = vmatpush1.bf16.msra.mxu0 0
    %3371 = vmatprep.subr.bf16.mxu0 0
    %3372 = vmatpush1.bf16.msra.mxu0 0
    %3373 = vmatprep.subr.bf16.mxu0 0
    %3374 = vmatpush1.bf16.msra.mxu0 0
    %3375 = vmatprep.subr.bf16.mxu0 0
    %3376 = vmatpush1.bf16.msra.mxu0 0
    %3377 = vmatprep.subr.bf16.mxu0 0
    %3378 = vmatpush1.bf16.msra.mxu0 0
    %3379 = vmatprep.subr.bf16.mxu0 0
    %3380 = vmatpush1.bf16.msra.mxu0 0
    %3381 = vmatprep.subr.bf16.mxu0 0
    %3382 = vmatpush1.bf16.msra.mxu0 0
    %3383 = vmatprep.subr.bf16.mxu0 0
    %3384 = vmatpush1.bf16.msra.mxu0 0
    %3385 = vmatprep.subr.bf16.mxu0 0
    %3386 = vmatpush1.bf16.msra.mxu0 0
    %3387 = vmatprep.subr.bf16.mxu0 0
    %3388 = vmatpush1.bf16.msra.mxu0 0
    %3389 = vmatprep.subr.bf16.mxu0 0
    %3390 = vmatpush1.bf16.msra.mxu0 0
    %3391 = vmatprep.subr.bf16.mxu0 0
    %3392 = vmatpush1.bf16.msra.mxu0 0
    %3393 = vmatprep.subr.bf16.mxu0 0
    %3394 = vmatpush1.bf16.msra.mxu0 0
    %3395 = vmatprep.subr.bf16.mxu0 0
    %3396 = vmatpush1.bf16.msra.mxu0 0
    %3397 = vmatprep.mubr.bf16.mxu0 0
    %3398 = vmatmul.mubr.bf16.gmra.mrb[0].mxu0 %v3363
    %v3399 = vpop.f32.mrb[0].mxu0
    %v3400 = vadd.f32 %v176, %v3399
    %v3401 = vpop.f32.mrb[0].mxu0
    %v3402 = vpop.f32.mrb[0].mxu0
    %v3403 = vpop.f32.mrb[0].mxu0
    %3404 = vdwg.mxu0
    %v3405 = vsel %vm504, %v3400, -inf
    %3406 = vmax.xlane.f32.xlu0 %v3405
    %v3407 = vpop.xlane.xlu0 %3406
    %vm3408 = vcmp.eq.f32.partialorder %v3400, %v3407
    %v3409 = vsel %vm3408, 1, 0
    %v3410 = vcvt.s32.f32 %v3409
    %v3411 = vpack.c.bf16 %v3410, %v3410
    %v3412 = vsel %vm3408, %v124, 64
    %v3413 = vsel %vm504, %v3412, 2147483647
    %v3414 = vand.u32 %v3413, 65535
    %v3415 = vshra.s32 %v3413, 16
    %v3416 = vcvt.s32.f32 %v3414
    %v3417 = vcvt.s32.f32 %v3415
    %3418 = vmin.xlane.f32.xlu0 %v3417
    %v3419 = vpop.xlane.xlu0 %3418
    %vm3420 = vcmp.eq.f32.partialorder %v3417, %v3419
    %v3421 = vsel %vm3420, %v3416, inf
    %3422 = vmin.xlane.f32.xlu0 %v3421
    %v3423 = vpop.xlane.xlu0 %3422
    %v3424 = vcvt.f32.s32 %v3423
    %v3425 = vcvt.f32.s32 %v3419
    %v3426 = vshll.u32 %v3425, 16
    %v3427 = vadd.s32 %v3426, %v3424
    %3428 = vmatprep.subr.bf16.mxu0 0
    %3429 = vmatpush1.bf16.msra.mxu0 %v2689
    %3430 = vmatprep.subr.bf16.mxu0 0
    %3431 = vmatpush1.bf16.msra.mxu0 %v2690
    %3432 = vmatprep.subr.bf16.mxu0 0
    %3433 = vmatpush1.bf16.msra.mxu0 0
    %3434 = vmatprep.subr.bf16.mxu0 0
    %3435 = vmatpush1.bf16.msra.mxu0 0
    %3436 = vmatprep.subr.bf16.mxu0 0
    %3437 = vmatpush1.bf16.msra.mxu0 0
    %3438 = vmatprep.subr.bf16.mxu0 0
    %3439 = vmatpush1.bf16.msra.mxu0 0
    %3440 = vmatprep.subr.bf16.mxu0 0
    %3441 = vmatpush1.bf16.msra.mxu0 0
    %3442 = vmatprep.subr.bf16.mxu0 0
    %3443 = vmatpush1.bf16.msra.mxu0 0
    %3444 = vmatprep.subr.bf16.mxu0 0
    %3445 = vmatpush1.bf16.msra.mxu0 0
    %3446 = vmatprep.subr.bf16.mxu0 0
    %3447 = vmatpush1.bf16.msra.mxu0 0
    %3448 = vmatprep.subr.bf16.mxu0 0
    %3449 = vmatpush1.bf16.msra.mxu0 0
    %3450 = vmatprep.subr.bf16.mxu0 0
    %3451 = vmatpush1.bf16.msra.mxu0 0
    %3452 = vmatprep.subr.bf16.mxu0 0
    %3453 = vmatpush1.bf16.msra.mxu0 0
    %3454 = vmatprep.subr.bf16.mxu0 0
    %3455 = vmatpush1.bf16.msra.mxu0 0
    %3456 = vmatprep.subr.bf16.mxu0 0
    %3457 = vmatpush1.bf16.msra.mxu0 0
    %3458 = vmatprep.subr.bf16.mxu0 0
    %3459 = vmatpush1.bf16.msra.mxu0 0
    %3460 = vmatprep.mubr.bf16.mxu0 0
    %3461 = vmatmul.mubr.bf16.gmra.mrb[0].mxu0 %v3231
    %v3462 = vpop.f32.mrb[0].mxu0
    %v3463 = vadd.f32 0.0, %v3462
    %v3464 = vpop.f32.mrb[0].mxu0
    %v3465 = vpop.f32.mrb[0].mxu0
    %v3466 = vpop.f32.mrb[0].mxu0
    %3467 = vdwg.mxu0
    %v3469 = vsel %vm504, %v3411, 0
    %3471 = vmatprep.subr.bf16.mxu0 0
    %3472 = vmatpush1.bf16.msra.mxu0 %v425
    %3473 = vmatprep.subr.bf16.mxu0 0
    %3474 = vmatpush1.bf16.msra.mxu0 %v426
    %3475 = vmatprep.subr.bf16.mxu0 0
    %3476 = vmatpush1.bf16.msra.mxu0 %v427
    %3477 = vmatprep.subr.bf16.mxu0 0
    %3478 = vmatpush1.bf16.msra.mxu0 %v428
    %3479 = vmatprep.subr.bf16.mxu0 0
    %3480 = vmatpush1.bf16.msra.mxu0 0
    %3481 = vmatprep.subr.bf16.mxu0 0
    %3482 = vmatpush1.bf16.msra.mxu0 0
    %3483 = vmatprep.subr.bf16.mxu0 0
    %3484 = vmatpush1.bf16.msra.mxu0 0
    %3485 = vmatprep.subr.bf16.mxu0 0
    %3486 = vmatpush1.bf16.msra.mxu0 0
    %3487 = vmatprep.subr.bf16.mxu0 0
    %3488 = vmatpush1.bf16.msra.mxu0 0
    %3489 = vmatprep.subr.bf16.mxu0 0
    %3490 = vmatpush1.bf16.msra.mxu0 0
    %3491 = vmatprep.subr.bf16.mxu0 0
    %3492 = vmatpush1.bf16.msra.mxu0 0
    %3493 = vmatprep.subr.bf16.mxu0 0
    %3494 = vmatpush1.bf16.msra.mxu0 0
    %3495 = vmatprep.subr.bf16.mxu0 0
    %3496 = vmatpush1.bf16.msra.mxu0 0
    %3497 = vmatprep.subr.bf16.mxu0 0
    %3498 = vmatpush1.bf16.msra.mxu0 0
    %3499 = vmatprep.subr.bf16.mxu0 0
    %3500 = vmatpush1.bf16.msra.mxu0 0
    %3501 = vmatprep.subr.bf16.mxu0 0
    %3502 = vmatpush1.bf16.msra.mxu0 0
    %3503 = vmatprep.mubr.bf16.mxu0 0
    %3504 = vmatmul.mubr.bf16.gmra.mrb[0].mxu0 %v3469
    %v3505 = vpop.f32.mrb[0].mxu0
    %v3506 = vadd.f32 %v3463, %v3505
    %v3507 = vpop.f32.mrb[0].mxu0
    %v3508 = vpop.f32.mrb[0].mxu0
    %v3509 = vpop.f32.mrb[0].mxu0
    %3510 = vdwg.mxu0
    %v3511 = vadd.f32 %v3506, %v153
    %v3512 = vtanh.pop %v3511
    %v3513 = vpack.c.bf16 %v3512, %v3512
    %3514 = vmatprep.subr.bf16.mxu0 0
    %3515 = vmatpush1.bf16.msra.mxu0 %v2797
    %3516 = vmatprep.subr.bf16.mxu0 0
    %3517 = vmatpush1.bf16.msra.mxu0 %v2798
    %3518 = vmatprep.subr.bf16.mxu0 0
    %3519 = vmatpush1.bf16.msra.mxu0 0
    %3520 = vmatprep.subr.bf16.mxu0 0
    %3521 = vmatpush1.bf16.msra.mxu0 0
    %3522 = vmatprep.subr.bf16.mxu0 0
    %3523 = vmatpush1.bf16.msra.mxu0 0
    %3524 = vmatprep.subr.bf16.mxu0 0
    %3525 = vmatpush1.bf16.msra.mxu0 0
    %3526 = vmatprep.subr.bf16.mxu0 0
    %3527 = vmatpush1.bf16.msra.mxu0 0
    %3528 = vmatprep.subr.bf16.mxu0 0
    %3529 = vmatpush1.bf16.msra.mxu0 0
    %3530 = vmatprep.subr.bf16.mxu0 0
    %3531 = vmatpush1.bf16.msra.mxu0 0
    %3532 = vmatprep.subr.bf16.mxu0 0
    %3533 = vmatpush1.bf16.msra.mxu0 0
    %3534 = vmatprep.subr.bf16.mxu0 0
    %3535 = vmatpush1.bf16.msra.mxu0 0
    %3536 = vmatprep.subr.bf16.mxu0 0
    %3537 = vmatpush1.bf16.msra.mxu0 0
    %3538 = vmatprep.subr.bf16.mxu0 0
    %3539 = vmatpush1.bf16.msra.mxu0 0
    %3540 = vmatprep.subr.bf16.mxu0 0
    %3541 = vmatpush1.bf16.msra.mxu0 0
    %3542 = vmatprep.subr.bf16.mxu0 0
    %3543 = vmatpush1.bf16.msra.mxu0 0
    %3544 = vmatprep.subr.bf16.mxu0 0
    %3545 = vmatpush1.bf16.msra.mxu0 0
    %3546 = vmatprep.mubr.bf16.mxu0 0
    %3547 = vmatmul.mubr.bf16.gmra.mrb[0].mxu0 %v3317
    %v3548 = vpop.f32.mrb[0].mxu0
    %v3549 = vadd.f32 0.0, %v3548
    %v3550 = vpop.f32.mrb[0].mxu0
    %v3551 = vpop.f32.mrb[0].mxu0
    %v3552 = vpop.f32.mrb[0].mxu0
    %3553 = vdwg.mxu0
    %v3555 = vsel %vm222, %v3513, 0
    %3557 = vmatprep.subr.bf16.mxu0 0
    %3558 = vmatpush1.bf16.msra.mxu0 %v2849
    %3559 = vmatprep.subr.bf16.mxu0 0
    %3560 = vmatpush1.bf16.msra.mxu0 %v2850
    %3561 = vmatprep.subr.bf16.mxu0 0
    %3562 = vmatpush1.bf16.msra.mxu0 0
    %3563 = vmatprep.subr.bf16.mxu0 0
    %3564 = vmatpush1.bf16.msra.mxu0 0
    %3565 = vmatprep.subr.bf16.mxu0 0
    %3566 = vmatpush1.bf16.msra.mxu0 0
    %3567 = vmatprep.subr.bf16.mxu0 0
    %3568 = vmatpush1.bf16.msra.mxu0 0
    %3569 = vmatprep.subr.bf16.mxu0 0
    %3570 = vmatpush1.bf16.msra.mxu0 0
    %3571 = vmatprep.subr.bf16.mxu0 0
    %3572 = vmatpush1.bf16.msra.mxu0 0
    %3573 = vmatprep.subr.bf16.mxu0 0
    %3574 = vmatpush1.bf16.msra.mxu0 0
    %3575 = vmatprep.subr.bf16.mxu0 0
    %3576 = vmatpush1.bf16.msra.mxu0 0
    %3577 = vmatprep.subr.bf16.mxu0 0
    %3578 = vmatpush1.bf16.msra.mxu0 0
    %3579 = vmatprep.subr.bf16.mxu0 0
    %3580 = vmatpush1.bf16.msra.mxu0 0
    %3581 = vmatprep.subr.bf16.mxu0 0
    %3582 = vmatpush1.bf16.msra.mxu0 0
    %3583 = vmatprep.subr.bf16.mxu0 0
    %3584 = vmatpush1.bf16.msra.mxu0 0
    %3585 = vmatprep.subr.bf16.mxu0 0
    %3586 = vmatpush1.bf16.msra.mxu0 0
    %3587 = vmatprep.subr.bf16.mxu0 0
    %3588 = vmatpush1.bf16.msra.mxu0 0
    %3589 = vmatprep.mubr.bf16.mxu0 0
    %3590 = vmatmul.mubr.bf16.gmra.mrb[0].mxu0 %v3555
    %v3591 = vpop.f32.mrb[0].mxu0
    %v3592 = vadd.f32 %v3549, %v3591
    %v3593 = vpop.f32.mrb[0].mxu0
    %v3594 = vpop.f32.mrb[0].mxu0
    %v3595 = vpop.f32.mrb[0].mxu0
    %3596 = vdwg.mxu0
    %v3597 = vadd.f32 %v3592, %v161
    %v3598 = vtanh.pop %v3597
    %v3599 = vpack.c.bf16 %v3598, %v3598
    %3600 = vmatprep.subr.bf16.mxu0 0
    %3601 = vmatpush1.bf16.msra.mxu0 %v2917
    %3602 = vmatprep.subr.bf16.mxu0 0
    %3603 = vmatpush1.bf16.msra.mxu0 %v2918
    %3604 = vmatprep.subr.bf16.mxu0 0
    %3605 = vmatpush1.bf16.msra.mxu0 0
    %3606 = vmatprep.subr.bf16.mxu0 0
    %3607 = vmatpush1.bf16.msra.mxu0 0
    %3608 = vmatprep.subr.bf16.mxu0 0
    %3609 = vmatpush1.bf16.msra.mxu0 0
    %3610 = vmatprep.subr.bf16.mxu0 0
    %3611 = vmatpush1.bf16.msra.mxu0 0
    %3612 = vmatprep.subr.bf16.mxu0 0
    %3613 = vmatpush1.bf16.msra.mxu0 0
    %3614 = vmatprep.subr.bf16.mxu0 0
    %3615 = vmatpush1.bf16.msra.mxu0 0
    %3616 = vmatprep.subr.bf16.mxu0 0
    %3617 = vmatpush1.bf16.msra.mxu0 0
    %3618 = vmatprep.subr.bf16.mxu0 0
    %3619 = vmatpush1.bf16.msra.mxu0 0
    %3620 = vmatprep.subr.bf16.mxu0 0
    %3621 = vmatpush1.bf16.msra.mxu0 0
    %3622 = vmatprep.subr.bf16.mxu0 0
    %3623 = vmatpush1.bf16.msra.mxu0 0
    %3624 = vmatprep.subr.bf16.mxu0 0
    %3625 = vmatpush1.bf16.msra.mxu0 0
    %3626 = vmatprep.subr.bf16.mxu0 0
    %3627 = vmatpush1.bf16.msra.mxu0 0
    %3628 = vmatprep.subr.bf16.mxu0 0
    %3629 = vmatpush1.bf16.msra.mxu0 0
    %3630 = vmatprep.subr.bf16.mxu0 0
    %3631 = vmatpush1.bf16.msra.mxu0 0
    %3632 = vmatprep.mubr.bf16.mxu0 0
    %3633 = vmatmul.mubr.bf16.gmra.mrb[0].mxu0 %v3363
    %v3634 = vpop.f32.mrb[0].mxu0
    %v3635 = vadd.f32 0.0, %v3634
    %v3636 = vpop.f32.mrb[0].mxu0
    %v3637 = vpop.f32.mrb[0].mxu0
    %v3638 = vpop.f32.mrb[0].mxu0
    %3639 = vdwg.mxu0
    %v3641 = vsel %vm222, %v3599, 0
    %3643 = vmatprep.subr.bf16.mxu0 0
    %3644 = vmatpush1.bf16.msra.mxu0 %v2972
    %3645 = vmatprep.subr.bf16.mxu0 0
    %3646 = vmatpush1.bf16.msra.mxu0 %v2973
    %3647 = vmatprep.subr.bf16.mxu0 0
    %3648 = vmatpush1.bf16.msra.mxu0 0
    %3649 = vmatprep.subr.bf16.mxu0 0
    %3650 = vmatpush1.bf16.msra.mxu0 0
    %3651 = vmatprep.subr.bf16.mxu0 0
    %3652 = vmatpush1.bf16.msra.mxu0 0
    %3653 = vmatprep.subr.bf16.mxu0 0
    %3654 = vmatpush1.bf16.msra.mxu0 0
    %3655 = vmatprep.subr.bf16.mxu0 0
    %3656 = vmatpush1.bf16.msra.mxu0 0
    %3657 = vmatprep.subr.bf16.mxu0 0
    %3658 = vmatpush1.bf16.msra.mxu0 0
    %3659 = vmatprep.subr.bf16.mxu0 0
    %3660 = vmatpush1.bf16.msra.mxu0 0
    %3661 = vmatprep.subr.bf16.mxu0 0
    %3662 = vmatpush1.bf16.msra.mxu0 0
    %3663 = vmatprep.subr.bf16.mxu0 0
    %3664 = vmatpush1.bf16.msra.mxu0 0
    %3665 = vmatprep.subr.bf16.mxu0 0
    %3666 = vmatpush1.bf16.msra.mxu0 0
    %3667 = vmatprep.subr.bf16.mxu0 0
    %3668 = vmatpush1.bf16.msra.mxu0 0
    %3669 = vmatprep.subr.bf16.mxu0 0
    %3670 = vmatpush1.bf16.msra.mxu0 0
    %3671 = vmatprep.subr.bf16.mxu0 0
    %3672 = vmatpush1.bf16.msra.mxu0 0
    %3673 = vmatprep.subr.bf16.mxu0 0
    %3674 = vmatpush1.bf16.msra.mxu0 0
    %3675 = vmatprep.mubr.bf16.mxu0 0
    %3676 = vmatmul.mubr.bf16.gmra.mrb[0].mxu0 %v3641
    %v3677 = vpop.f32.mrb[0].mxu0
    %v3678 = vadd.f32 %v3635, %v3677
    %v3679 = vpop.f32.mrb[0].mxu0
    %v3680 = vpop.f32.mrb[0].mxu0
    %v3681 = vpop.f32.mrb[0].mxu0
    %3682 = vdwg.mxu0
    %v3683 = vadd.f32 %v3678, %v169
    %v3684 = vtanh.pop %v3683
    %v3685 = vpack.c.bf16 %v3684, %v3684
    %v3687 = vsel %vm222, %v3685, 0
    %3689 = vmatprep.subr.bf16.mxu0 0
    %3690 = vmatpush1.bf16.msra.mxu0 %v3034
    %3691 = vmatprep.subr.bf16.mxu0 0
    %3692 = vmatpush1.bf16.msra.mxu0 %v3035
    %3693 = vmatprep.subr.bf16.mxu0 0
    %3694 = vmatpush1.bf16.msra.mxu0 0
    %3695 = vmatprep.subr.bf16.mxu0 0
    %3696 = vmatpush1.bf16.msra.mxu0 0
    %3697 = vmatprep.subr.bf16.mxu0 0
    %3698 = vmatpush1.bf16.msra.mxu0 0
    %3699 = vmatprep.subr.bf16.mxu0 0
    %3700 = vmatpush1.bf16.msra.mxu0 0
    %3701 = vmatprep.subr.bf16.mxu0 0
    %3702 = vmatpush1.bf16.msra.mxu0 0
    %3703 = vmatprep.subr.bf16.mxu0 0
    %3704 = vmatpush1.bf16.msra.mxu0 0
    %3705 = vmatprep.subr.bf16.mxu0 0
    %3706 = vmatpush1.bf16.msra.mxu0 0
    %3707 = vmatprep.subr.bf16.mxu0 0
    %3708 = vmatpush1.bf16.msra.mxu0 0
    %3709 = vmatprep.subr.bf16.mxu0 0
    %3710 = vmatpush1.bf16.msra.mxu0 0
    %3711 = vmatprep.subr.bf16.mxu0 0
    %3712 = vmatpush1.bf16.msra.mxu0 0
    %3713 = vmatprep.subr.bf16.mxu0 0
    %3714 = vmatpush1.bf16.msra.mxu0 0
    %3715 = vmatprep.subr.bf16.mxu0 0
    %3716 = vmatpush1.bf16.msra.mxu0 0
    %3717 = vmatprep.subr.bf16.mxu0 0
    %3718 = vmatpush1.bf16.msra.mxu0 0
    %3719 = vmatprep.subr.bf16.mxu0 0
    %3720 = vmatpush1.bf16.msra.mxu0 0
    %3721 = vmatprep.mubr.bf16.mxu0 0
    %3722 = vmatmul.mubr.bf16.gmra.mrb[0].mxu0 %v3687
    %v3723 = vpop.f32.mrb[0].mxu0
    %v3724 = vadd.f32 %v176, %v3723
    %v3725 = vpop.f32.mrb[0].mxu0
    %v3726 = vpop.f32.mrb[0].mxu0
    %v3727 = vpop.f32.mrb[0].mxu0
    %3728 = vdwg.mxu0
    %v3729 = vsel %vm504, %v3724, -inf
    %3730 = vmax.xlane.f32.xlu0 %v3729
    %v3731 = vpop.xlane.xlu0 %3730
    %vm3732 = vcmp.eq.f32.partialorder %v3724, %v3731
    %v3733 = vsel %vm3732, 1, 0
    %v3734 = vcvt.s32.f32 %v3733
    %v3735 = vpack.c.bf16 %v3734, %v3734
    %v3736 = vsel %vm3732, %v124, 64
    %v3737 = vsel %vm504, %v3736, 2147483647
    %v3738 = vand.u32 %v3737, 65535
    %v3739 = vshra.s32 %v3737, 16
    %v3740 = vcvt.s32.f32 %v3738
    %v3741 = vcvt.s32.f32 %v3739
    %3742 = vmin.xlane.f32.xlu0 %v3741
    %v3743 = vpop.xlane.xlu0 %3742
    %vm3744 = vcmp.eq.f32.partialorder %v3741, %v3743
    %v3745 = vsel %vm3744, %v3740, inf
    %3746 = vmin.xlane.f32.xlu0 %v3745
    %v3747 = vpop.xlane.xlu0 %3746
    %v3748 = vcvt.f32.s32 %v3747
    %v3749 = vcvt.f32.s32 %v3743
    %v3750 = vshll.u32 %v3749, 16
    %v3751 = vadd.s32 %v3750, %v3748
    %3752 = vmatprep.subr.bf16.mxu0 0
    %3753 = vmatpush1.bf16.msra.mxu0 %v2689
    %3754 = vmatprep.subr.bf16.mxu0 0
    %3755 = vmatpush1.bf16.msra.mxu0 %v2690
    %3756 = vmatprep.subr.bf16.mxu0 0
    %3757 = vmatpush1.bf16.msra.mxu0 0
    %3758 = vmatprep.subr.bf16.mxu0 0
    %3759 = vmatpush1.bf16.msra.mxu0 0
    %3760 = vmatprep.subr.bf16.mxu0 0
    %3761 = vmatpush1.bf16.msra.mxu0 0
    %3762 = vmatprep.subr.bf16.mxu0 0
    %3763 = vmatpush1.bf16.msra.mxu0 0
    %3764 = vmatprep.subr.bf16.mxu0 0
    %3765 = vmatpush1.bf16.msra.mxu0 0
    %3766 = vmatprep.subr.bf16.mxu0 0
    %3767 = vmatpush1.bf16.msra.mxu0 0
    %3768 = vmatprep.subr.bf16.mxu0 0
    %3769 = vmatpush1.bf16.msra.mxu0 0
    %3770 = vmatprep.subr.bf16.mxu0 0
    %3771 = vmatpush1.bf16.msra.mxu0 0
    %3772 = vmatprep.subr.bf16.mxu0 0
    %3773 = vmatpush1.bf16.msra.mxu0 0
    %3774 = vmatprep.subr.bf16.mxu0 0
    %3775 = vmatpush1.bf16.msra.mxu0 0
    %3776 = vmatprep.subr.bf16.mxu0 0
    %3777 = vmatpush1.bf16.msra.mxu0 0
    %3778 = vmatprep.subr.bf16.mxu0 0
    %3779 = vmatpush1.bf16.msra.mxu0 0
    %3780 = vmatprep.subr.bf16.mxu0 0
    %3781 = vmatpush1.bf16.msra.mxu0 0
    %3782 = vmatprep.subr.bf16.mxu0 0
    %3783 = vmatpush1.bf16.msra.mxu0 0
    %3784 = vmatprep.mubr.bf16.mxu0 0
    %3785 = vmatmul.mubr.bf16.gmra.mrb[0].mxu0 %v3555
    %v3786 = vpop.f32.mrb[0].mxu0
    %v3787 = vadd.f32 0.0, %v3786
    %v3788 = vpop.f32.mrb[0].mxu0
    %v3789 = vpop.f32.mrb[0].mxu0
    %v3790 = vpop.f32.mrb[0].mxu0
    %3791 = vdwg.mxu0
    %v3793 = vsel %vm504, %v3735, 0
    %3795 = vmatprep.subr.bf16.mxu0 0
    %3796 = vmatpush1.bf16.msra.mxu0 %v425
    %3797 = vmatprep.subr.bf16.mxu0 0
    %3798 = vmatpush1.bf16.msra.mxu0 %v426
    %3799 = vmatprep.subr.bf16.mxu0 0
    %3800 = vmatpush1.bf16.msra.mxu0 %v427
    %3801 = vmatprep.subr.bf16.mxu0 0
    %3802 = vmatpush1.bf16.msra.mxu0 %v428
    %3803 = vmatprep.subr.bf16.mxu0 0
    %3804 = vmatpush1.bf16.msra.mxu0 0
    %3805 = vmatprep.subr.bf16.mxu0 0
    %3806 = vmatpush1.bf16.msra.mxu0 0
    %3807 = vmatprep.subr.bf16.mxu0 0
    %3808 = vmatpush1.bf16.msra.mxu0 0
    %3809 = vmatprep.subr.bf16.mxu0 0
    %3810 = vmatpush1.bf16.msra.mxu0 0
    %3811 = vmatprep.subr.bf16.mxu0 0
    %3812 = vmatpush1.bf16.msra.mxu0 0
    %3813 = vmatprep.subr.bf16.mxu0 0
    %3814 = vmatpush1.bf16.msra.mxu0 0
    %3815 = vmatprep.subr.bf16.mxu0 0
    %3816 = vmatpush1.bf16.msra.mxu0 0
    %3817 = vmatprep.subr.bf16.mxu0 0
    %3818 = vmatpush1.bf16.msra.mxu0 0
    %3819 = vmatprep.subr.bf16.mxu0 0
    %3820 = vmatpush1.bf16.msra.mxu0 0
    %3821 = vmatprep.subr.bf16.mxu0 0
    %3822 = vmatpush1.bf16.msra.mxu0 0
    %3823 = vmatprep.subr.bf16.mxu0 0
    %3824 = vmatpush1.bf16.msra.mxu0 0
    %3825 = vmatprep.subr.bf16.mxu0 0
    %3826 = vmatpush1.bf16.msra.mxu0 0
    %3827 = vmatprep.mubr.bf16.mxu0 0
    %3828 = vmatmul.mubr.bf16.gmra.mrb[0].mxu0 %v3793
    %v3829 = vpop.f32.mrb[0].mxu0
    %v3830 = vadd.f32 %v3787, %v3829
    %v3831 = vpop.f32.mrb[0].mxu0
    %v3832 = vpop.f32.mrb[0].mxu0
    %v3833 = vpop.f32.mrb[0].mxu0
    %3834 = vdwg.mxu0
    %v3835 = vadd.f32 %v3830, %v153
    %v3836 = vtanh.pop %v3835
    %v3837 = vpack.c.bf16 %v3836, %v3836
    %3838 = vmatprep.subr.bf16.mxu0 0
    %3839 = vmatpush1.bf16.msra.mxu0 %v2797
    %3840 = vmatprep.subr.bf16.mxu0 0
    %3841 = vmatpush1.bf16.msra.mxu0 %v2798
    %3842 = vmatprep.subr.bf16.mxu0 0
    %3843 = vmatpush1.bf16.msra.mxu0 0
    %3844 = vmatprep.subr.bf16.mxu0 0
    %3845 = vmatpush1.bf16.msra.mxu0 0
    %3846 = vmatprep.subr.bf16.mxu0 0
    %3847 = vmatpush1.bf16.msra.mxu0 0
    %3848 = vmatprep.subr.bf16.mxu0 0
    %3849 = vmatpush1.bf16.msra.mxu0 0
    %3850 = vmatprep.subr.bf16.mxu0 0
    %3851 = vmatpush1.bf16.msra.mxu0 0
    %3852 = vmatprep.subr.bf16.mxu0 0
    %3853 = vmatpush1.bf16.msra.mxu0 0
    %3854 = vmatprep.subr.bf16.mxu0 0
    %3855 = vmatpush1.bf16.msra.mxu0 0
    %3856 = vmatprep.subr.bf16.mxu0 0
    %3857 = vmatpush1.bf16.msra.mxu0 0
    %3858 = vmatprep.subr.bf16.mxu0 0
    %3859 = vmatpush1.bf16.msra.mxu0 0
    %3860 = vmatprep.subr.bf16.mxu0 0
    %3861 = vmatpush1.bf16.msra.mxu0 0
    %3862 = vmatprep.subr.bf16.mxu0 0
    %3863 = vmatpush1.bf16.msra.mxu0 0
    %3864 = vmatprep.subr.bf16.mxu0 0
    %3865 = vmatpush1.bf16.msra.mxu0 0
    %3866 = vmatprep.subr.bf16.mxu0 0
    %3867 = vmatpush1.bf16.msra.mxu0 0
    %3868 = vmatprep.subr.bf16.mxu0 0
    %3869 = vmatpush1.bf16.msra.mxu0 0
    %3870 = vmatprep.mubr.bf16.mxu0 0
    %3871 = vmatmul.mubr.bf16.gmra.mrb[0].mxu0 %v3641
    %v3872 = vpop.f32.mrb[0].mxu0
    %v3873 = vadd.f32 0.0, %v3872
    %v3874 = vpop.f32.mrb[0].mxu0
    %v3875 = vpop.f32.mrb[0].mxu0
    %v3876 = vpop.f32.mrb[0].mxu0
    %3877 = vdwg.mxu0
    %v3879 = vsel %vm222, %v3837, 0
    %3881 = vmatprep.subr.bf16.mxu0 0
    %3882 = vmatpush1.bf16.msra.mxu0 %v2849
    %3883 = vmatprep.subr.bf16.mxu0 0
    %3884 = vmatpush1.bf16.msra.mxu0 %v2850
    %3885 = vmatprep.subr.bf16.mxu0 0
    %3886 = vmatpush1.bf16.msra.mxu0 0
    %3887 = vmatprep.subr.bf16.mxu0 0
    %3888 = vmatpush1.bf16.msra.mxu0 0
    %3889 = vmatprep.subr.bf16.mxu0 0
    %3890 = vmatpush1.bf16.msra.mxu0 0
    %3891 = vmatprep.subr.bf16.mxu0 0
    %3892 = vmatpush1.bf16.msra.mxu0 0
    %3893 = vmatprep.subr.bf16.mxu0 0
    %3894 = vmatpush1.bf16.msra.mxu0 0
    %3895 = vmatprep.subr.bf16.mxu0 0
    %3896 = vmatpush1.bf16.msra.mxu0 0
    %3897 = vmatprep.subr.bf16.mxu0 0
    %3898 = vmatpush1.bf16.msra.mxu0 0
    %3899 = vmatprep.subr.bf16.mxu0 0
    %3900 = vmatpush1.bf16.msra.mxu0 0
    %3901 = vmatprep.subr.bf16.mxu0 0
    %3902 = vmatpush1.bf16.msra.mxu0 0
    %3903 = vmatprep.subr.bf16.mxu0 0
    %3904 = vmatpush1.bf16.msra.mxu0 0
    %3905 = vmatprep.subr.bf16.mxu0 0
    %3906 = vmatpush1.bf16.msra.mxu0 0
    %3907 = vmatprep.subr.bf16.mxu0 0
    %3908 = vmatpush1.bf16.msra.mxu0 0
    %3909 = vmatprep.subr.bf16.mxu0 0
    %3910 = vmatpush1.bf16.msra.mxu0 0
    %3911 = vmatprep.subr.bf16.mxu0 0
    %3912 = vmatpush1.bf16.msra.mxu0 0
    %3913 = vmatprep.mubr.bf16.mxu0 0
    %3914 = vmatmul.mubr.bf16.gmra.mrb[0].mxu0 %v3879
    %v3915 = vpop.f32.mrb[0].mxu0
    %v3916 = vadd.f32 %v3873, %v3915
    %v3917 = vpop.f32.mrb[0].mxu0
    %v3918 = vpop.f32.mrb[0].mxu0
    %v3919 = vpop.f32.mrb[0].mxu0
    %3920 = vdwg.mxu0
    %v3921 = vadd.f32 %v3916, %v161
    %v3922 = vtanh.pop %v3921
    %v3923 = vpack.c.bf16 %v3922, %v3922
    %3924 = vmatprep.subr.bf16.mxu0 0
    %3925 = vmatpush1.bf16.msra.mxu0 %v2917
    %3926 = vmatprep.subr.bf16.mxu0 0
    %3927 = vmatpush1.bf16.msra.mxu0 %v2918
    %3928 = vmatprep.subr.bf16.mxu0 0
    %3929 = vmatpush1.bf16.msra.mxu0 0
    %3930 = vmatprep.subr.bf16.mxu0 0
    %3931 = vmatpush1.bf16.msra.mxu0 0
    %3932 = vmatprep.subr.bf16.mxu0 0
    %3933 = vmatpush1.bf16.msra.mxu0 0
    %3934 = vmatprep.subr.bf16.mxu0 0
    %3935 = vmatpush1.bf16.msra.mxu0 0
    %3936 = vmatprep.subr.bf16.mxu0 0
    %3937 = vmatpush1.bf16.msra.mxu0 0
    %3938 = vmatprep.subr.bf16.mxu0 0
    %3939 = vmatpush1.bf16.msra.mxu0 0
    %3940 = vmatprep.subr.bf16.mxu0 0
    %3941 = vmatpush1.bf16.msra.mxu0 0
    %3942 = vmatprep.subr.bf16.mxu0 0
    %3943 = vmatpush1.bf16.msra.mxu0 0
    %3944 = vmatprep.subr.bf16.mxu0 0
    %3945 = vmatpush1.bf16.msra.mxu0 0
    %3946 = vmatprep.subr.bf16.mxu0 0
    %3947 = vmatpush1.bf16.msra.mxu0 0
    %3948 = vmatprep.subr.bf16.mxu0 0
    %3949 = vmatpush1.bf16.msra.mxu0 0
    %3950 = vmatprep.subr.bf16.mxu0 0
    %3951 = vmatpush1.bf16.msra.mxu0 0
    %3952 = vmatprep.subr.bf16.mxu0 0
    %3953 = vmatpush1.bf16.msra.mxu0 0
    %3954 = vmatprep.subr.bf16.mxu0 0
    %3955 = vmatpush1.bf16.msra.mxu0 0
    %3956 = vmatprep.mubr.bf16.mxu0 0
    %3957 = vmatmul.mubr.bf16.gmra.mrb[0].mxu0 %v3687
    %v3958 = vpop.f32.mrb[0].mxu0
    %v3959 = vadd.f32 0.0, %v3958
    %v3960 = vpop.f32.mrb[0].mxu0
    %v3961 = vpop.f32.mrb[0].mxu0
    %v3962 = vpop.f32.mrb[0].mxu0
    %3963 = vdwg.mxu0
    %v3965 = vsel %vm222, %v3923, 0
    %3967 = vmatprep.subr.bf16.mxu0 0
    %3968 = vmatpush1.bf16.msra.mxu0 %v2972
    %3969 = vmatprep.subr.bf16.mxu0 0
    %3970 = vmatpush1.bf16.msra.mxu0 %v2973
    %3971 = vmatprep.subr.bf16.mxu0 0
    %3972 = vmatpush1.bf16.msra.mxu0 0
    %3973 = vmatprep.subr.bf16.mxu0 0
    %3974 = vmatpush1.bf16.msra.mxu0 0
    %3975 = vmatprep.subr.bf16.mxu0 0
    %3976 = vmatpush1.bf16.msra.mxu0 0
    %3977 = vmatprep.subr.bf16.mxu0 0
    %3978 = vmatpush1.bf16.msra.mxu0 0
    %3979 = vmatprep.subr.bf16.mxu0 0
    %3980 = vmatpush1.bf16.msra.mxu0 0
    %3981 = vmatprep.subr.bf16.mxu0 0
    %3982 = vmatpush1.bf16.msra.mxu0 0
    %3983 = vmatprep.subr.bf16.mxu0 0
    %3984 = vmatpush1.bf16.msra.mxu0 0
    %3985 = vmatprep.subr.bf16.mxu0 0
    %3986 = vmatpush1.bf16.msra.mxu0 0
    %3987 = vmatprep.subr.bf16.mxu0 0
    %3988 = vmatpush1.bf16.msra.mxu0 0
    %3989 = vmatprep.subr.bf16.mxu0 0
    %3990 = vmatpush1.bf16.msra.mxu0 0
    %3991 = vmatprep.subr.bf16.mxu0 0
    %3992 = vmatpush1.bf16.msra.mxu0 0
    %3993 = vmatprep.subr.bf16.mxu0 0
    %3994 = vmatpush1.bf16.msra.mxu0 0
    %3995 = vmatprep.subr.bf16.mxu0 0
    %3996 = vmatpush1.bf16.msra.mxu0 0
    %3997 = vmatprep.subr.bf16.mxu0 0
    %3998 = vmatpush1.bf16.msra.mxu0 0
    %3999 = vmatprep.mubr.bf16.mxu0 0
    %4000 = vmatmul.mubr.bf16.gmra.mrb[0].mxu0 %v3965
    %v4001 = vpop.f32.mrb[0].mxu0
    %v4002 = vadd.f32 %v3959, %v4001
    %v4003 = vpop.f32.mrb[0].mxu0
    %v4004 = vpop.f32.mrb[0].mxu0
    %v4005 = vpop.f32.mrb[0].mxu0
    %4006 = vdwg.mxu0
    %v4007 = vadd.f32 %v4002, %v169
    %v4008 = vtanh.pop %v4007
    %v4009 = vpack.c.bf16 %v4008, %v4008
    %v4011 = vsel %vm222, %v4009, 0
    %4013 = vmatprep.subr.bf16.mxu0 0
    %4014 = vmatpush1.bf16.msra.mxu0 %v3034
    %4015 = vmatprep.subr.bf16.mxu0 0
    %4016 = vmatpush1.bf16.msra.mxu0 %v3035
    %4017 = vmatprep.subr.bf16.mxu0 0
    %4018 = vmatpush1.bf16.msra.mxu0 0
    %4019 = vmatprep.subr.bf16.mxu0 0
    %4020 = vmatpush1.bf16.msra.mxu0 0
    %4021 = vmatprep.subr.bf16.mxu0 0
    %4022 = vmatpush1.bf16.msra.mxu0 0
    %4023 = vmatprep.subr.bf16.mxu0 0
    %4024 = vmatpush1.bf16.msra.mxu0 0
    %4025 = vmatprep.subr.bf16.mxu0 0
    %4026 = vmatpush1.bf16.msra.mxu0 0
    %4027 = vmatprep.subr.bf16.mxu0 0
    %4028 = vmatpush1.bf16.msra.mxu0 0
    %4029 = vmatprep.subr.bf16.mxu0 0
    %4030 = vmatpush1.bf16.msra.mxu0 0
    %4031 = vmatprep.subr.bf16.mxu0 0
    %4032 = vmatpush1.bf16.msra.mxu0 0
    %4033 = vmatprep.subr.bf16.mxu0 0
    %4034 = vmatpush1.bf16.msra.mxu0 0
    %4035 = vmatprep.subr.bf16.mxu0 0
    %4036 = vmatpush1.bf16.msra.mxu0 0
    %4037 = vmatprep.subr.bf16.mxu0 0
    %4038 = vmatpush1.bf16.msra.mxu0 0
    %4039 = vmatprep.subr.bf16.mxu0 0
    %4040 = vmatpush1.bf16.msra.mxu0 0
    %4041 = vmatprep.subr.bf16.mxu0 0
    %4042 = vmatpush1.bf16.msra.mxu0 0
    %4043 = vmatprep.subr.bf16.mxu0 0
    %4044 = vmatpush1.bf16.msra.mxu0 0
    %4045 = vmatprep.mubr.bf16.mxu0 0
    %4046 = vmatmul.mubr.bf16.gmra.mrb[0].mxu0 %v4011
    %v4047 = vpop.f32.mrb[0].mxu0
    %v4048 = vadd.f32 %v176, %v4047
    %v4049 = vpop.f32.mrb[0].mxu0
    %v4050 = vpop.f32.mrb[0].mxu0
    %v4051 = vpop.f32.mrb[0].mxu0
    %4052 = vdwg.mxu0
    %v4053 = vsel %vm504, %v4048, -inf
    %4054 = vmax.xlane.f32.xlu0 %v4053
    %v4055 = vpop.xlane.xlu0 %4054
    %vm4056 = vcmp.eq.f32.partialorder %v4048, %v4055
    %v4057 = vsel %vm4056, 1, 0
    %v4058 = vcvt.s32.f32 %v4057
    %v4059 = vpack.c.bf16 %v4058, %v4058
    %v4060 = vsel %vm4056, %v124, 64
    %v4061 = vsel %vm504, %v4060, 2147483647
    %v4062 = vand.u32 %v4061, 65535
    %v4063 = vshra.s32 %v4061, 16
    %v4064 = vcvt.s32.f32 %v4062
    %v4065 = vcvt.s32.f32 %v4063
    %4066 = vmin.xlane.f32.xlu0 %v4065
    %v4067 = vpop.xlane.xlu0 %4066
    %vm4068 = vcmp.eq.f32.partialorder %v4065, %v4067
    %v4069 = vsel %vm4068, %v4064, inf
    %4070 = vmin.xlane.f32.xlu0 %v4069
    %v4071 = vpop.xlane.xlu0 %4070
    %v4072 = vcvt.f32.s32 %v4071
    %v4073 = vcvt.f32.s32 %v4067
    %v4074 = vshll.u32 %v4073, 16
    %v4075 = vadd.s32 %v4074, %v4072
    %4076 = vmatprep.subr.bf16.mxu0 0
    %4077 = vmatpush1.bf16.msra.mxu0 %v2689
    %4078 = vmatprep.subr.bf16.mxu0 0
    %4079 = vmatpush1.bf16.msra.mxu0 %v2690
    %4080 = vmatprep.subr.bf16.mxu0 0
    %4081 = vmatpush1.bf16.msra.mxu0 0
    %4082 = vmatprep.subr.bf16.mxu0 0
    %4083 = vmatpush1.bf16.msra.mxu0 0
    %4084 = vmatprep.subr.bf16.mxu0 0
    %4085 = vmatpush1.bf16.msra.mxu0 0
    %4086 = vmatprep.subr.bf16.mxu0 0
    %4087 = vmatpush1.bf16.msra.mxu0 0
    %4088 = vmatprep.subr.bf16.mxu0 0
    %4089 = vmatpush1.bf16.msra.mxu0 0
    %4090 = vmatprep.subr.bf16.mxu0 0
    %4091 = vmatpush1.bf16.msra.mxu0 0
    %4092 = vmatprep.subr.bf16.mxu0 0
    %4093 = vmatpush1.bf16.msra.mxu0 0
    %4094 = vmatprep.subr.bf16.mxu0 0
    %4095 = vmatpush1.bf16.msra.mxu0 0
    %4096 = vmatprep.subr.bf16.mxu0 0
    %4097 = vmatpush1.bf16.msra.mxu0 0
    %4098 = vmatprep.subr.bf16.mxu0 0
    %4099 = vmatpush1.bf16.msra.mxu0 0
    %4100 = vmatprep.subr.bf16.mxu0 0
    %4101 = vmatpush1.bf16.msra.mxu0 0
    %4102 = vmatprep.subr.bf16.mxu0 0
    %4103 = vmatpush1.bf16.msra.mxu0 0
    %4104 = vmatprep.subr.bf16.mxu0 0
    %4105 = vmatpush1.bf16.msra.mxu0 0
    %4106 = vmatprep.subr.bf16.mxu0 0
    %4107 = vmatpush1.bf16.msra.mxu0 0
    %4108 = vmatprep.mubr.bf16.mxu0 0
    %4109 = vmatmul.mubr.bf16.gmra.mrb[0].mxu0 %v3879
    %v4110 = vpop.f32.mrb[0].mxu0
    %v4111 = vadd.f32 0.0, %v4110
    %v4112 = vpop.f32.mrb[0].mxu0
    %v4113 = vpop.f32.mrb[0].mxu0
    %v4114 = vpop.f32.mrb[0].mxu0
    %4115 = vdwg.mxu0
    %v4117 = vsel %vm504, %v4059, 0
    %4119 = vmatprep.subr.bf16.mxu0 0
    %4120 = vmatpush1.bf16.msra.mxu0 %v425
    %4121 = vmatprep.subr.bf16.mxu0 0
    %4122 = vmatpush1.bf16.msra.mxu0 %v426
    %4123 = vmatprep.subr.bf16.mxu0 0
    %4124 = vmatpush1.bf16.msra.mxu0 %v427
    %4125 = vmatprep.subr.bf16.mxu0 0
    %4126 = vmatpush1.bf16.msra.mxu0 %v428
    %4127 = vmatprep.subr.bf16.mxu0 0
    %4128 = vmatpush1.bf16.msra.mxu0 0
    %4129 = vmatprep.subr.bf16.mxu0 0
    %4130 = vmatpush1.bf16.msra.mxu0 0
    %4131 = vmatprep.subr.bf16.mxu0 0
    %4132 = vmatpush1.bf16.msra.mxu0 0
    %4133 = vmatprep.subr.bf16.mxu0 0
    %4134 = vmatpush1.bf16.msra.mxu0 0
    %4135 = vmatprep.subr.bf16.mxu0 0
    %4136 = vmatpush1.bf16.msra.mxu0 0
    %4137 = vmatprep.subr.bf16.mxu0 0
    %4138 = vmatpush1.bf16.msra.mxu0 0
    %4139 = vmatprep.subr.bf16.mxu0 0
    %4140 = vmatpush1.bf16.msra.mxu0 0
    %4141 = vmatprep.subr.bf16.mxu0 0
    %4142 = vmatpush1.bf16.msra.mxu0 0
    %4143 = vmatprep.subr.bf16.mxu0 0
    %4144 = vmatpush1.bf16.msra.mxu0 0
    %4145 = vmatprep.subr.bf16.mxu0 0
    %4146 = vmatpush1.bf16.msra.mxu0 0
    %4147 = vmatprep.subr.bf16.mxu0 0
    %4148 = vmatpush1.bf16.msra.mxu0 0
    %4149 = vmatprep.subr.bf16.mxu0 0
    %4150 = vmatpush1.bf16.msra.mxu0 0
    %4151 = vmatprep.mubr.bf16.mxu0 0
    %4152 = vmatmul.mubr.bf16.gmra.mrb[0].mxu0 %v4117
    %v4153 = vpop.f32.mrb[0].mxu0
    %v4154 = vadd.f32 %v4111, %v4153
    %v4155 = vpop.f32.mrb[0].mxu0
    %v4156 = vpop.f32.mrb[0].mxu0
    %v4157 = vpop.f32.mrb[0].mxu0
    %4158 = vdwg.mxu0
    %v4159 = vadd.f32 %v4154, %v153
    %v4160 = vtanh.pop %v4159
    %v4161 = vpack.c.bf16 %v4160, %v4160
    %4162 = vmatprep.subr.bf16.mxu0 0
    %4163 = vmatpush1.bf16.msra.mxu0 %v2797
    %4164 = vmatprep.subr.bf16.mxu0 0
    %4165 = vmatpush1.bf16.msra.mxu0 %v2798
    %4166 = vmatprep.subr.bf16.mxu0 0
    %4167 = vmatpush1.bf16.msra.mxu0 0
    %4168 = vmatprep.subr.bf16.mxu0 0
    %4169 = vmatpush1.bf16.msra.mxu0 0
    %4170 = vmatprep.subr.bf16.mxu0 0
    %4171 = vmatpush1.bf16.msra.mxu0 0
    %4172 = vmatprep.subr.bf16.mxu0 0
    %4173 = vmatpush1.bf16.msra.mxu0 0
    %4174 = vmatprep.subr.bf16.mxu0 0
    %4175 = vmatpush1.bf16.msra.mxu0 0
    %4176 = vmatprep.subr.bf16.mxu0 0
    %4177 = vmatpush1.bf16.msra.mxu0 0
    %4178 = vmatprep.subr.bf16.mxu0 0
    %4179 = vmatpush1.bf16.msra.mxu0 0
    %4180 = vmatprep.subr.bf16.mxu0 0
    %4181 = vmatpush1.bf16.msra.mxu0 0
    %4182 = vmatprep.subr.bf16.mxu0 0
    %4183 = vmatpush1.bf16.msra.mxu0 0
    %4184 = vmatprep.subr.bf16.mxu0 0
    %4185 = vmatpush1.bf16.msra.mxu0 0
    %4186 = vmatprep.subr.bf16.mxu0 0
    %4187 = vmatpush1.bf16.msra.mxu0 0
    %4188 = vmatprep.subr.bf16.mxu0 0
    %4189 = vmatpush1.bf16.msra.mxu0 0
    %4190 = vmatprep.subr.bf16.mxu0 0
    %4191 = vmatpush1.bf16.msra.mxu0 0
    %4192 = vmatprep.subr.bf16.mxu0 0
    %4193 = vmatpush1.bf16.msra.mxu0 0
    %4194 = vmatprep.mubr.bf16.mxu0 0
    %4195 = vmatmul.mubr.bf16.gmra.mrb[0].mxu0 %v3965
    %v4196 = vpop.f32.mrb[0].mxu0
    %v4197 = vadd.f32 0.0, %v4196
    %v4198 = vpop.f32.mrb[0].mxu0
    %v4199 = vpop.f32.mrb[0].mxu0
    %v4200 = vpop.f32.mrb[0].mxu0
    %4201 = vdwg.mxu0
    %v4203 = vsel %vm222, %v4161, 0
    %4205 = vmatprep.subr.bf16.mxu0 0
    %4206 = vmatpush1.bf16.msra.mxu0 %v2849
    %4207 = vmatprep.subr.bf16.mxu0 0
    %4208 = vmatpush1.bf16.msra.mxu0 %v2850
    %4209 = vmatprep.subr.bf16.mxu0 0
    %4210 = vmatpush1.bf16.msra.mxu0 0
    %4211 = vmatprep.subr.bf16.mxu0 0
    %4212 = vmatpush1.bf16.msra.mxu0 0
    %4213 = vmatprep.subr.bf16.mxu0 0
    %4214 = vmatpush1.bf16.msra.mxu0 0
    %4215 = vmatprep.subr.bf16.mxu0 0
    %4216 = vmatpush1.bf16.msra.mxu0 0
    %4217 = vmatprep.subr.bf16.mxu0 0
    %4218 = vmatpush1.bf16.msra.mxu0 0
    %4219 = vmatprep.subr.bf16.mxu0 0
    %4220 = vmatpush1.bf16.msra.mxu0 0
    %4221 = vmatprep.subr.bf16.mxu0 0
    %4222 = vmatpush1.bf16.msra.mxu0 0
    %4223 = vmatprep.subr.bf16.mxu0 0
    %4224 = vmatpush1.bf16.msra.mxu0 0
    %4225 = vmatprep.subr.bf16.mxu0 0
    %4226 = vmatpush1.bf16.msra.mxu0 0
    %4227 = vmatprep.subr.bf16.mxu0 0
    %4228 = vmatpush1.bf16.msra.mxu0 0
    %4229 = vmatprep.subr.bf16.mxu0 0
    %4230 = vmatpush1.bf16.msra.mxu0 0
    %4231 = vmatprep.subr.bf16.mxu0 0
    %4232 = vmatpush1.bf16.msra.mxu0 0
    %4233 = vmatprep.subr.bf16.mxu0 0
    %4234 = vmatpush1.bf16.msra.mxu0 0
    %4235 = vmatprep.subr.bf16.mxu0 0
    %4236 = vmatpush1.bf16.msra.mxu0 0
    %4237 = vmatprep.mubr.bf16.mxu0 0
    %4238 = vmatmul.mubr.bf16.gmra.mrb[0].mxu0 %v4203
    %v4239 = vpop.f32.mrb[0].mxu0
    %v4240 = vadd.f32 %v4197, %v4239
    %v4241 = vpop.f32.mrb[0].mxu0
    %v4242 = vpop.f32.mrb[0].mxu0
    %v4243 = vpop.f32.mrb[0].mxu0
    %4244 = vdwg.mxu0
    %v4245 = vadd.f32 %v4240, %v161
    %v4246 = vtanh.pop %v4245
    %v4247 = vpack.c.bf16 %v4246, %v4246
    %4248 = vmatprep.subr.bf16.mxu0 0
    %4249 = vmatpush1.bf16.msra.mxu0 %v2917
    %4250 = vmatprep.subr.bf16.mxu0 0
    %4251 = vmatpush1.bf16.msra.mxu0 %v2918
    %4252 = vmatprep.subr.bf16.mxu0 0
    %4253 = vmatpush1.bf16.msra.mxu0 0
    %4254 = vmatprep.subr.bf16.mxu0 0
    %4255 = vmatpush1.bf16.msra.mxu0 0
    %4256 = vmatprep.subr.bf16.mxu0 0
    %4257 = vmatpush1.bf16.msra.mxu0 0
    %4258 = vmatprep.subr.bf16.mxu0 0
    %4259 = vmatpush1.bf16.msra.mxu0 0
    %4260 = vmatprep.subr.bf16.mxu0 0
    %4261 = vmatpush1.bf16.msra.mxu0 0
    %4262 = vmatprep.subr.bf16.mxu0 0
    %4263 = vmatpush1.bf16.msra.mxu0 0
    %4264 = vmatprep.subr.bf16.mxu0 0
    %4265 = vmatpush1.bf16.msra.mxu0 0
    %4266 = vmatprep.subr.bf16.mxu0 0
    %4267 = vmatpush1.bf16.msra.mxu0 0
    %4268 = vmatprep.subr.bf16.mxu0 0
    %4269 = vmatpush1.bf16.msra.mxu0 0
    %4270 = vmatprep.subr.bf16.mxu0 0
    %4271 = vmatpush1.bf16.msra.mxu0 0
    %4272 = vmatprep.subr.bf16.mxu0 0
    %4273 = vmatpush1.bf16.msra.mxu0 0
    %4274 = vmatprep.subr.bf16.mxu0 0
    %4275 = vmatpush1.bf16.msra.mxu0 0
    %4276 = vmatprep.subr.bf16.mxu0 0
    %4277 = vmatpush1.bf16.msra.mxu0 0
    %4278 = vmatprep.subr.bf16.mxu0 0
    %4279 = vmatpush1.bf16.msra.mxu0 0
    %4280 = vmatprep.mubr.bf16.mxu0 0
    %4281 = vmatmul.mubr.bf16.gmra.mrb[0].mxu0 %v4011
    %v4282 = vpop.f32.mrb[0].mxu0
    %v4283 = vadd.f32 0.0, %v4282
    %v4284 = vpop.f32.mrb[0].mxu0
    %v4285 = vpop.f32.mrb[0].mxu0
    %v4286 = vpop.f32.mrb[0].mxu0
    %4287 = vdwg.mxu0
    %v4289 = vsel %vm222, %v4247, 0
    %4291 = vmatprep.subr.bf16.mxu0 0
    %4292 = vmatpush1.bf16.msra.mxu0 %v2972
    %4293 = vmatprep.subr.bf16.mxu0 0
    %4294 = vmatpush1.bf16.msra.mxu0 %v2973
    %4295 = vmatprep.subr.bf16.mxu0 0
    %4296 = vmatpush1.bf16.msra.mxu0 0
    %4297 = vmatprep.subr.bf16.mxu0 0
    %4298 = vmatpush1.bf16.msra.mxu0 0
    %4299 = vmatprep.subr.bf16.mxu0 0
    %4300 = vmatpush1.bf16.msra.mxu0 0
    %4301 = vmatprep.subr.bf16.mxu0 0
    %4302 = vmatpush1.bf16.msra.mxu0 0
    %4303 = vmatprep.subr.bf16.mxu0 0
    %4304 = vmatpush1.bf16.msra.mxu0 0
    %4305 = vmatprep.subr.bf16.mxu0 0
    %4306 = vmatpush1.bf16.msra.mxu0 0
    %4307 = vmatprep.subr.bf16.mxu0 0
    %4308 = vmatpush1.bf16.msra.mxu0 0
    %4309 = vmatprep.subr.bf16.mxu0 0
    %4310 = vmatpush1.bf16.msra.mxu0 0
    %4311 = vmatprep.subr.bf16.mxu0 0
    %4312 = vmatpush1.bf16.msra.mxu0 0
    %4313 = vmatprep.subr.bf16.mxu0 0
    %4314 = vmatpush1.bf16.msra.mxu0 0
    %4315 = vmatprep.subr.bf16.mxu0 0
    %4316 = vmatpush1.bf16.msra.mxu0 0
    %4317 = vmatprep.subr.bf16.mxu0 0
    %4318 = vmatpush1.bf16.msra.mxu0 0
    %4319 = vmatprep.subr.bf16.mxu0 0
    %4320 = vmatpush1.bf16.msra.mxu0 0
    %4321 = vmatprep.subr.bf16.mxu0 0
    %4322 = vmatpush1.bf16.msra.mxu0 0
    %4323 = vmatprep.mubr.bf16.mxu0 0
    %4324 = vmatmul.mubr.bf16.gmra.mrb[0].mxu0 %v4289
    %v4325 = vpop.f32.mrb[0].mxu0
    %v4326 = vadd.f32 %v4283, %v4325
    %v4327 = vpop.f32.mrb[0].mxu0
    %v4328 = vpop.f32.mrb[0].mxu0
    %v4329 = vpop.f32.mrb[0].mxu0
    %4330 = vdwg.mxu0
    %v4331 = vadd.f32 %v4326, %v169
    %v4332 = vtanh.pop %v4331
    %v4333 = vpack.c.bf16 %v4332, %v4332
    %v4335 = vsel %vm222, %v4333, 0
    %4337 = vmatprep.subr.bf16.mxu0 0
    %4338 = vmatpush1.bf16.msra.mxu0 %v3034
    %4339 = vmatprep.subr.bf16.mxu0 0
    %4340 = vmatpush1.bf16.msra.mxu0 %v3035
    %4341 = vmatprep.subr.bf16.mxu0 0
    %4342 = vmatpush1.bf16.msra.mxu0 0
    %4343 = vmatprep.subr.bf16.mxu0 0
    %4344 = vmatpush1.bf16.msra.mxu0 0
    %4345 = vmatprep.subr.bf16.mxu0 0
    %4346 = vmatpush1.bf16.msra.mxu0 0
    %4347 = vmatprep.subr.bf16.mxu0 0
    %4348 = vmatpush1.bf16.msra.mxu0 0
    %4349 = vmatprep.subr.bf16.mxu0 0
    %4350 = vmatpush1.bf16.msra.mxu0 0
    %4351 = vmatprep.subr.bf16.mxu0 0
    %4352 = vmatpush1.bf16.msra.mxu0 0
    %4353 = vmatprep.subr.bf16.mxu0 0
    %4354 = vmatpush1.bf16.msra.mxu0 0
    %4355 = vmatprep.subr.bf16.mxu0 0
    %4356 = vmatpush1.bf16.msra.mxu0 0
    %4357 = vmatprep.subr.bf16.mxu0 0
    %4358 = vmatpush1.bf16.msra.mxu0 0
    %4359 = vmatprep.subr.bf16.mxu0 0
    %4360 = vmatpush1.bf16.msra.mxu0 0
    %4361 = vmatprep.subr.bf16.mxu0 0
    %4362 = vmatpush1.bf16.msra.mxu0 0
    %4363 = vmatprep.subr.bf16.mxu0 0
    %4364 = vmatpush1.bf16.msra.mxu0 0
    %4365 = vmatprep.subr.bf16.mxu0 0
    %4366 = vmatpush1.bf16.msra.mxu0 0
    %4367 = vmatprep.subr.bf16.mxu0 0
    %4368 = vmatpush1.bf16.msra.mxu0 0
    %4369 = vmatprep.mubr.bf16.mxu0 0
    %4370 = vmatmul.mubr.bf16.gmra.mrb[0].mxu0 %v4335
    %v4371 = vpop.f32.mrb[0].mxu0
    %v4372 = vadd.f32 %v176, %v4371
    %v4373 = vpop.f32.mrb[0].mxu0
    %v4374 = vpop.f32.mrb[0].mxu0
    %v4375 = vpop.f32.mrb[0].mxu0
    %4376 = vdwg.mxu0
    %v4377 = vsel %vm504, %v4372, -inf
    %4378 = vmax.xlane.f32.xlu0 %v4377
    %v4379 = vpop.xlane.xlu0 %4378
    %vm4380 = vcmp.eq.f32.partialorder %v4372, %v4379
    %v4381 = vsel %vm4380, 1, 0
    %v4382 = vcvt.s32.f32 %v4381
    %v4383 = vpack.c.bf16 %v4382, %v4382
    %v4384 = vsel %vm4380, %v124, 64
    %v4385 = vsel %vm504, %v4384, 2147483647
    %v4386 = vand.u32 %v4385, 65535
    %v4387 = vshra.s32 %v4385, 16
    %v4388 = vcvt.s32.f32 %v4386
    %v4389 = vcvt.s32.f32 %v4387
    %4390 = vmin.xlane.f32.xlu0 %v4389
    %v4391 = vpop.xlane.xlu0 %4390
    %vm4392 = vcmp.eq.f32.partialorder %v4389, %v4391
    %v4393 = vsel %vm4392, %v4388, inf
    %4394 = vmin.xlane.f32.xlu0 %v4393
    %v4395 = vpop.xlane.xlu0 %4394
    %v4396 = vcvt.f32.s32 %v4395
    %v4397 = vcvt.f32.s32 %v4391
    %v4398 = vshll.u32 %v4397, 16
    %v4399 = vadd.s32 %v4398, %v4396
    %4400 = vmatprep.subr.bf16.mxu0 0
    %4401 = vmatpush1.bf16.msra.mxu0 %v2689
    %4402 = vmatprep.subr.bf16.mxu0 0
    %4403 = vmatpush1.bf16.msra.mxu0 %v2690
    %4404 = vmatprep.subr.bf16.mxu0 0
    %4405 = vmatpush1.bf16.msra.mxu0 0
    %4406 = vmatprep.subr.bf16.mxu0 0
    %4407 = vmatpush1.bf16.msra.mxu0 0
    %4408 = vmatprep.subr.bf16.mxu0 0
    %4409 = vmatpush1.bf16.msra.mxu0 0
    %4410 = vmatprep.subr.bf16.mxu0 0
    %4411 = vmatpush1.bf16.msra.mxu0 0
    %4412 = vmatprep.subr.bf16.mxu0 0
    %4413 = vmatpush1.bf16.msra.mxu0 0
    %4414 = vmatprep.subr.bf16.mxu0 0
    %4415 = vmatpush1.bf16.msra.mxu0 0
    %4416 = vmatprep.subr.bf16.mxu0 0
    %4417 = vmatpush1.bf16.msra.mxu0 0
    %4418 = vmatprep.subr.bf16.mxu0 0
    %4419 = vmatpush1.bf16.msra.mxu0 0
    %4420 = vmatprep.subr.bf16.mxu0 0
    %4421 = vmatpush1.bf16.msra.mxu0 0
    %4422 = vmatprep.subr.bf16.mxu0 0
    %4423 = vmatpush1.bf16.msra.mxu0 0
    %4424 = vmatprep.subr.bf16.mxu0 0
    %4425 = vmatpush1.bf16.msra.mxu0 0
    %4426 = vmatprep.subr.bf16.mxu0 0
    %4427 = vmatpush1.bf16.msra.mxu0 0
    %4428 = vmatprep.subr.bf16.mxu0 0
    %4429 = vmatpush1.bf16.msra.mxu0 0
    %4430 = vmatprep.subr.bf16.mxu0 0
    %4431 = vmatpush1.bf16.msra.mxu0 0
    %4432 = vmatprep.mubr.bf16.mxu0 0
    %4433 = vmatmul.mubr.bf16.gmra.mrb[0].mxu0 %v4203
    %v4434 = vpop.f32.mrb[0].mxu0
    %v4435 = vadd.f32 0.0, %v4434
    %v4436 = vpop.f32.mrb[0].mxu0
    %v4437 = vpop.f32.mrb[0].mxu0
    %v4438 = vpop.f32.mrb[0].mxu0
    %4439 = vdwg.mxu0
    %v4441 = vsel %vm504, %v4383, 0
    %4443 = vmatprep.subr.bf16.mxu0 0
    %4444 = vmatpush1.bf16.msra.mxu0 %v425
    %4445 = vmatprep.subr.bf16.mxu0 0
    %4446 = vmatpush1.bf16.msra.mxu0 %v426
    %4447 = vmatprep.subr.bf16.mxu0 0
    %4448 = vmatpush1.bf16.msra.mxu0 %v427
    %4449 = vmatprep.subr.bf16.mxu0 0
    %4450 = vmatpush1.bf16.msra.mxu0 %v428
    %4451 = vmatprep.subr.bf16.mxu0 0
    %4452 = vmatpush1.bf16.msra.mxu0 0
    %4453 = vmatprep.subr.bf16.mxu0 0
    %4454 = vmatpush1.bf16.msra.mxu0 0
    %4455 = vmatprep.subr.bf16.mxu0 0
    %4456 = vmatpush1.bf16.msra.mxu0 0
    %4457 = vmatprep.subr.bf16.mxu0 0
    %4458 = vmatpush1.bf16.msra.mxu0 0
    %4459 = vmatprep.subr.bf16.mxu0 0
    %4460 = vmatpush1.bf16.msra.mxu0 0
    %4461 = vmatprep.subr.bf16.mxu0 0
    %4462 = vmatpush1.bf16.msra.mxu0 0
    %4463 = vmatprep.subr.bf16.mxu0 0
    %4464 = vmatpush1.bf16.msra.mxu0 0
    %4465 = vmatprep.subr.bf16.mxu0 0
    %4466 = vmatpush1.bf16.msra.mxu0 0
    %4467 = vmatprep.subr.bf16.mxu0 0
    %4468 = vmatpush1.bf16.msra.mxu0 0
    %4469 = vmatprep.subr.bf16.mxu0 0
    %4470 = vmatpush1.bf16.msra.mxu0 0
    %4471 = vmatprep.subr.bf16.mxu0 0
    %4472 = vmatpush1.bf16.msra.mxu0 0
    %4473 = vmatprep.subr.bf16.mxu0 0
    %4474 = vmatpush1.bf16.msra.mxu0 0
    %4475 = vmatprep.mubr.bf16.mxu0 0
    %4476 = vmatmul.mubr.bf16.gmra.mrb[0].mxu0 %v4441
    %v4477 = vpop.f32.mrb[0].mxu0
    %v4478 = vadd.f32 %v4435, %v4477
    %v4479 = vpop.f32.mrb[0].mxu0
    %v4480 = vpop.f32.mrb[0].mxu0
    %v4481 = vpop.f32.mrb[0].mxu0
    %4482 = vdwg.mxu0
    %v4483 = vadd.f32 %v4478, %v153
    %v4484 = vtanh.pop %v4483
    %v4485 = vpack.c.bf16 %v4484, %v4484
    %4486 = vmatprep.subr.bf16.mxu0 0
    %4487 = vmatpush1.bf16.msra.mxu0 %v2797
    %4488 = vmatprep.subr.bf16.mxu0 0
    %4489 = vmatpush1.bf16.msra.mxu0 %v2798
    %4490 = vmatprep.subr.bf16.mxu0 0
    %4491 = vmatpush1.bf16.msra.mxu0 0
    %4492 = vmatprep.subr.bf16.mxu0 0
    %4493 = vmatpush1.bf16.msra.mxu0 0
    %4494 = vmatprep.subr.bf16.mxu0 0
    %4495 = vmatpush1.bf16.msra.mxu0 0
    %4496 = vmatprep.subr.bf16.mxu0 0
    %4497 = vmatpush1.bf16.msra.mxu0 0
    %4498 = vmatprep.subr.bf16.mxu0 0
    %4499 = vmatpush1.bf16.msra.mxu0 0
    %4500 = vmatprep.subr.bf16.mxu0 0
    %4501 = vmatpush1.bf16.msra.mxu0 0
    %4502 = vmatprep.subr.bf16.mxu0 0
    %4503 = vmatpush1.bf16.msra.mxu0 0
    %4504 = vmatprep.subr.bf16.mxu0 0
    %4505 = vmatpush1.bf16.msra.mxu0 0
    %4506 = vmatprep.subr.bf16.mxu0 0
    %4507 = vmatpush1.bf16.msra.mxu0 0
    %4508 = vmatprep.subr.bf16.mxu0 0
    %4509 = vmatpush1.bf16.msra.mxu0 0
    %4510 = vmatprep.subr.bf16.mxu0 0
    %4511 = vmatpush1.bf16.msra.mxu0 0
    %4512 = vmatprep.subr.bf16.mxu0 0
    %4513 = vmatpush1.bf16.msra.mxu0 0
    %4514 = vmatprep.subr.bf16.mxu0 0
    %4515 = vmatpush1.bf16.msra.mxu0 0
    %4516 = vmatprep.subr.bf16.mxu0 0
    %4517 = vmatpush1.bf16.msra.mxu0 0
    %4518 = vmatprep.mubr.bf16.mxu0 0
    %4519 = vmatmul.mubr.bf16.gmra.mrb[0].mxu0 %v4289
    %v4520 = vpop.f32.mrb[0].mxu0
    %v4521 = vadd.f32 0.0, %v4520
    %v4522 = vpop.f32.mrb[0].mxu0
    %v4523 = vpop.f32.mrb[0].mxu0
    %v4524 = vpop.f32.mrb[0].mxu0
    %4525 = vdwg.mxu0
    %v4527 = vsel %vm222, %v4485, 0
    %4529 = vmatprep.subr.bf16.mxu0 0
    %4530 = vmatpush1.bf16.msra.mxu0 %v2849
    %4531 = vmatprep.subr.bf16.mxu0 0
    %4532 = vmatpush1.bf16.msra.mxu0 %v2850
    %4533 = vmatprep.subr.bf16.mxu0 0
    %4534 = vmatpush1.bf16.msra.mxu0 0
    %4535 = vmatprep.subr.bf16.mxu0 0
    %4536 = vmatpush1.bf16.msra.mxu0 0
    %4537 = vmatprep.subr.bf16.mxu0 0
    %4538 = vmatpush1.bf16.msra.mxu0 0
    %4539 = vmatprep.subr.bf16.mxu0 0
    %4540 = vmatpush1.bf16.msra.mxu0 0
    %4541 = vmatprep.subr.bf16.mxu0 0
    %4542 = vmatpush1.bf16.msra.mxu0 0
    %4543 = vmatprep.subr.bf16.mxu0 0
    %4544 = vmatpush1.bf16.msra.mxu0 0
    %4545 = vmatprep.subr.bf16.mxu0 0
    %4546 = vmatpush1.bf16.msra.mxu0 0
    %4547 = vmatprep.subr.bf16.mxu0 0
    %4548 = vmatpush1.bf16.msra.mxu0 0
    %4549 = vmatprep.subr.bf16.mxu0 0
    %4550 = vmatpush1.bf16.msra.mxu0 0
    %4551 = vmatprep.subr.bf16.mxu0 0
    %4552 = vmatpush1.bf16.msra.mxu0 0
    %4553 = vmatprep.subr.bf16.mxu0 0
    %4554 = vmatpush1.bf16.msra.mxu0 0
    %4555 = vmatprep.subr.bf16.mxu0 0
    %4556 = vmatpush1.bf16.msra.mxu0 0
    %4557 = vmatprep.subr.bf16.mxu0 0
    %4558 = vmatpush1.bf16.msra.mxu0 0
    %4559 = vmatprep.subr.bf16.mxu0 0
    %4560 = vmatpush1.bf16.msra.mxu0 0
    %4561 = vmatprep.mubr.bf16.mxu0 0
    %4562 = vmatmul.mubr.bf16.gmra.mrb[0].mxu0 %v4527
    %v4563 = vpop.f32.mrb[0].mxu0
    %v4564 = vadd.f32 %v4521, %v4563
    %v4565 = vpop.f32.mrb[0].mxu0
    %v4566 = vpop.f32.mrb[0].mxu0
    %v4567 = vpop.f32.mrb[0].mxu0
    %4568 = vdwg.mxu0
    %v4569 = vadd.f32 %v4564, %v161
    %v4570 = vtanh.pop %v4569
    %v4571 = vpack.c.bf16 %v4570, %v4570
    %4572 = vmatprep.subr.bf16.mxu0 0
    %4573 = vmatpush1.bf16.msra.mxu0 %v2917
    %4574 = vmatprep.subr.bf16.mxu0 0
    %4575 = vmatpush1.bf16.msra.mxu0 %v2918
    %4576 = vmatprep.subr.bf16.mxu0 0
    %4577 = vmatpush1.bf16.msra.mxu0 0
    %4578 = vmatprep.subr.bf16.mxu0 0
    %4579 = vmatpush1.bf16.msra.mxu0 0
    %4580 = vmatprep.subr.bf16.mxu0 0
    %4581 = vmatpush1.bf16.msra.mxu0 0
    %4582 = vmatprep.subr.bf16.mxu0 0
    %4583 = vmatpush1.bf16.msra.mxu0 0
    %4584 = vmatprep.subr.bf16.mxu0 0
    %4585 = vmatpush1.bf16.msra.mxu0 0
    %4586 = vmatprep.subr.bf16.mxu0 0
    %4587 = vmatpush1.bf16.msra.mxu0 0
    %4588 = vmatprep.subr.bf16.mxu0 0
    %4589 = vmatpush1.bf16.msra.mxu0 0
    %4590 = vmatprep.subr.bf16.mxu0 0
    %4591 = vmatpush1.bf16.msra.mxu0 0
    %4592 = vmatprep.subr.bf16.mxu0 0
    %4593 = vmatpush1.bf16.msra.mxu0 0
    %4594 = vmatprep.subr.bf16.mxu0 0
    %4595 = vmatpush1.bf16.msra.mxu0 0
    %4596 = vmatprep.subr.bf16.mxu0 0
    %4597 = vmatpush1.bf16.msra.mxu0 0
    %4598 = vmatprep.subr.bf16.mxu0 0
    %4599 = vmatpush1.bf16.msra.mxu0 0
    %4600 = vmatprep.subr.bf16.mxu0 0
    %4601 = vmatpush1.bf16.msra.mxu0 0
    %4602 = vmatprep.subr.bf16.mxu0 0
    %4603 = vmatpush1.bf16.msra.mxu0 0
    %4604 = vmatprep.mubr.bf16.mxu0 0
    %4605 = vmatmul.mubr.bf16.gmra.mrb[0].mxu0 %v4335
    %v4606 = vpop.f32.mrb[0].mxu0
    %v4607 = vadd.f32 0.0, %v4606
    %v4608 = vpop.f32.mrb[0].mxu0
    %v4609 = vpop.f32.mrb[0].mxu0
    %v4610 = vpop.f32.mrb[0].mxu0
    %4611 = vdwg.mxu0
    %v4613 = vsel %vm222, %v4571, 0
    %4615 = vmatprep.subr.bf16.mxu0 0
    %4616 = vmatpush1.bf16.msra.mxu0 %v2972
    %4617 = vmatprep.subr.bf16.mxu0 0
    %4618 = vmatpush1.bf16.msra.mxu0 %v2973
    %4619 = vmatprep.subr.bf16.mxu0 0
    %4620 = vmatpush1.bf16.msra.mxu0 0
    %4621 = vmatprep.subr.bf16.mxu0 0
    %4622 = vmatpush1.bf16.msra.mxu0 0
    %4623 = vmatprep.subr.bf16.mxu0 0
    %4624 = vmatpush1.bf16.msra.mxu0 0
    %4625 = vmatprep.subr.bf16.mxu0 0
    %4626 = vmatpush1.bf16.msra.mxu0 0
    %4627 = vmatprep.subr.bf16.mxu0 0
    %4628 = vmatpush1.bf16.msra.mxu0 0
    %4629 = vmatprep.subr.bf16.mxu0 0
    %4630 = vmatpush1.bf16.msra.mxu0 0
    %4631 = vmatprep.subr.bf16.mxu0 0
    %4632 = vmatpush1.bf16.msra.mxu0 0
    %4633 = vmatprep.subr.bf16.mxu0 0
    %4634 = vmatpush1.bf16.msra.mxu0 0
    %4635 = vmatprep.subr.bf16.mxu0 0
    %4636 = vmatpush1.bf16.msra.mxu0 0
    %4637 = vmatprep.subr.bf16.mxu0 0
    %4638 = vmatpush1.bf16.msra.mxu0 0
    %4639 = vmatprep.subr.bf16.mxu0 0
    %4640 = vmatpush1.bf16.msra.mxu0 0
    %4641 = vmatprep.subr.bf16.mxu0 0
    %4642 = vmatpush1.bf16.msra.mxu0 0
    %4643 = vmatprep.subr.bf16.mxu0 0
    %4644 = vmatpush1.bf16.msra.mxu0 0
    %4645 = vmatprep.subr.bf16.mxu0 0
    %4646 = vmatpush1.bf16.msra.mxu0 0
    %4647 = vmatprep.mubr.bf16.mxu0 0
    %4648 = vmatmul.mubr.bf16.gmra.mrb[0].mxu0 %v4613
    %v4649 = vpop.f32.mrb[0].mxu0
    %v4650 = vadd.f32 %v4607, %v4649
    %v4651 = vpop.f32.mrb[0].mxu0
    %v4652 = vpop.f32.mrb[0].mxu0
    %v4653 = vpop.f32.mrb[0].mxu0
    %4654 = vdwg.mxu0
    %v4655 = vadd.f32 %v4650, %v169
    %v4656 = vtanh.pop %v4655
    %v4657 = vpack.c.bf16 %v4656, %v4656
    %v4659 = vsel %vm222, %v4657, 0
    %4661 = vmatprep.subr.bf16.mxu0 0
    %4662 = vmatpush1.bf16.msra.mxu0 %v3034
    %4663 = vmatprep.subr.bf16.mxu0 0
    %4664 = vmatpush1.bf16.msra.mxu0 %v3035
    %4665 = vmatprep.subr.bf16.mxu0 0
    %4666 = vmatpush1.bf16.msra.mxu0 0
    %4667 = vmatprep.subr.bf16.mxu0 0
    %4668 = vmatpush1.bf16.msra.mxu0 0
    %4669 = vmatprep.subr.bf16.mxu0 0
    %4670 = vmatpush1.bf16.msra.mxu0 0
    %4671 = vmatprep.subr.bf16.mxu0 0
    %4672 = vmatpush1.bf16.msra.mxu0 0
    %4673 = vmatprep.subr.bf16.mxu0 0
    %4674 = vmatpush1.bf16.msra.mxu0 0
    %4675 = vmatprep.subr.bf16.mxu0 0
    %4676 = vmatpush1.bf16.msra.mxu0 0
    %4677 = vmatprep.subr.bf16.mxu0 0
    %4678 = vmatpush1.bf16.msra.mxu0 0
    %4679 = vmatprep.subr.bf16.mxu0 0
    %4680 = vmatpush1.bf16.msra.mxu0 0
    %4681 = vmatprep.subr.bf16.mxu0 0
    %4682 = vmatpush1.bf16.msra.mxu0 0
    %4683 = vmatprep.subr.bf16.mxu0 0
    %4684 = vmatpush1.bf16.msra.mxu0 0
    %4685 = vmatprep.subr.bf16.mxu0 0
    %4686 = vmatpush1.bf16.msra.mxu0 0
    %4687 = vmatprep.subr.bf16.mxu0 0
    %4688 = vmatpush1.bf16.msra.mxu0 0
    %4689 = vmatprep.subr.bf16.mxu0 0
    %4690 = vmatpush1.bf16.msra.mxu0 0
    %4691 = vmatprep.subr.bf16.mxu0 0
    %4692 = vmatpush1.bf16.msra.mxu0 0
    %4693 = vmatprep.mubr.bf16.mxu0 0
    %4694 = vmatmul.mubr.bf16.gmra.mrb[0].mxu0 %v4659
    %v4695 = vpop.f32.mrb[0].mxu0
    %v4696 = vadd.f32 %v176, %v4695
    %v4697 = vpop.f32.mrb[0].mxu0
    %v4698 = vpop.f32.mrb[0].mxu0
    %v4699 = vpop.f32.mrb[0].mxu0
    %4700 = vdwg.mxu0
    %v4701 = vsel %vm504, %v4696, -inf
    %4702 = vmax.xlane.f32.xlu0 %v4701
    %v4703 = vpop.xlane.xlu0 %4702
    %vm4704 = vcmp.eq.f32.partialorder %v4696, %v4703
    %v4705 = vsel %vm4704, 1, 0
    %v4706 = vcvt.s32.f32 %v4705
    %v4707 = vpack.c.bf16 %v4706, %v4706
    %v4708 = vsel %vm4704, %v124, 64
    %v4709 = vsel %vm504, %v4708, 2147483647
    %v4710 = vand.u32 %v4709, 65535
    %v4711 = vshra.s32 %v4709, 16
    %v4712 = vcvt.s32.f32 %v4710
    %v4713 = vcvt.s32.f32 %v4711
    %4714 = vmin.xlane.f32.xlu0 %v4713
    %v4715 = vpop.xlane.xlu0 %4714
    %vm4716 = vcmp.eq.f32.partialorder %v4713, %v4715
    %v4717 = vsel %vm4716, %v4712, inf
    %4718 = vmin.xlane.f32.xlu0 %v4717
    %v4719 = vpop.xlane.xlu0 %4718
    %v4720 = vcvt.f32.s32 %v4719
    %v4721 = vcvt.f32.s32 %v4715
    %v4722 = vshll.u32 %v4721, 16
    %v4723 = vadd.s32 %v4722, %v4720
    %4724 = vmatprep.subr.bf16.mxu0 0
    %4725 = vmatpush1.bf16.msra.mxu0 %v2689
    %4726 = vmatprep.subr.bf16.mxu0 0
    %4727 = vmatpush1.bf16.msra.mxu0 %v2690
    %4728 = vmatprep.subr.bf16.mxu0 0
    %4729 = vmatpush1.bf16.msra.mxu0 0
    %4730 = vmatprep.subr.bf16.mxu0 0
    %4731 = vmatpush1.bf16.msra.mxu0 0
    %4732 = vmatprep.subr.bf16.mxu0 0
    %4733 = vmatpush1.bf16.msra.mxu0 0
    %4734 = vmatprep.subr.bf16.mxu0 0
    %4735 = vmatpush1.bf16.msra.mxu0 0
    %4736 = vmatprep.subr.bf16.mxu0 0
    %4737 = vmatpush1.bf16.msra.mxu0 0
    %4738 = vmatprep.subr.bf16.mxu0 0
    %4739 = vmatpush1.bf16.msra.mxu0 0
    %4740 = vmatprep.subr.bf16.mxu0 0
    %4741 = vmatpush1.bf16.msra.mxu0 0
    %4742 = vmatprep.subr.bf16.mxu0 0
    %4743 = vmatpush1.bf16.msra.mxu0 0
    %4744 = vmatprep.subr.bf16.mxu0 0
    %4745 = vmatpush1.bf16.msra.mxu0 0
    %4746 = vmatprep.subr.bf16.mxu0 0
    %4747 = vmatpush1.bf16.msra.mxu0 0
    %4748 = vmatprep.subr.bf16.mxu0 0
    %4749 = vmatpush1.bf16.msra.mxu0 0
    %4750 = vmatprep.subr.bf16.mxu0 0
    %4751 = vmatpush1.bf16.msra.mxu0 0
    %4752 = vmatprep.subr.bf16.mxu0 0
    %4753 = vmatpush1.bf16.msra.mxu0 0
    %4754 = vmatprep.subr.bf16.mxu0 0
    %4755 = vmatpush1.bf16.msra.mxu0 0
    %4756 = vmatprep.mubr.bf16.mxu0 0
    %4757 = vmatmul.mubr.bf16.gmra.mrb[0].mxu0 %v4527
    %v4758 = vpop.f32.mrb[0].mxu0
    %v4759 = vadd.f32 0.0, %v4758
    %v4760 = vpop.f32.mrb[0].mxu0
    %v4761 = vpop.f32.mrb[0].mxu0
    %v4762 = vpop.f32.mrb[0].mxu0
    %4763 = vdwg.mxu0
    %v4765 = vsel %vm504, %v4707, 0
    %4767 = vmatprep.subr.bf16.mxu0 0
    %4768 = vmatpush1.bf16.msra.mxu0 %v425
    %4769 = vmatprep.subr.bf16.mxu0 0
    %4770 = vmatpush1.bf16.msra.mxu0 %v426
    %4771 = vmatprep.subr.bf16.mxu0 0
    %4772 = vmatpush1.bf16.msra.mxu0 %v427
    %4773 = vmatprep.subr.bf16.mxu0 0
    %4774 = vmatpush1.bf16.msra.mxu0 %v428
    %4775 = vmatprep.subr.bf16.mxu0 0
    %4776 = vmatpush1.bf16.msra.mxu0 0
    %4777 = vmatprep.subr.bf16.mxu0 0
    %4778 = vmatpush1.bf16.msra.mxu0 0
    %4779 = vmatprep.subr.bf16.mxu0 0
    %4780 = vmatpush1.bf16.msra.mxu0 0
    %4781 = vmatprep.subr.bf16.mxu0 0
    %4782 = vmatpush1.bf16.msra.mxu0 0
    %4783 = vmatprep.subr.bf16.mxu0 0
    %4784 = vmatpush1.bf16.msra.mxu0 0
    %4785 = vmatprep.subr.bf16.mxu0 0
    %4786 = vmatpush1.bf16.msra.mxu0 0
    %4787 = vmatprep.subr.bf16.mxu0 0
    %4788 = vmatpush1.bf16.msra.mxu0 0
    %4789 = vmatprep.subr.bf16.mxu0 0
    %4790 = vmatpush1.bf16.msra.mxu0 0
    %4791 = vmatprep.subr.bf16.mxu0 0
    %4792 = vmatpush1.bf16.msra.mxu0 0
    %4793 = vmatprep.subr.bf16.mxu0 0
    %4794 = vmatpush1.bf16.msra.mxu0 0
    %4795 = vmatprep.subr.bf16.mxu0 0
    %4796 = vmatpush1.bf16.msra.mxu0 0
    %4797 = vmatprep.subr.bf16.mxu0 0
    %4798 = vmatpush1.bf16.msra.mxu0 0
    %4799 = vmatprep.mubr.bf16.mxu0 0
    %4800 = vmatmul.mubr.bf16.gmra.mrb[0].mxu0 %v4765
    %v4801 = vpop.f32.mrb[0].mxu0
    %v4802 = vadd.f32 %v4759, %v4801
    %v4803 = vpop.f32.mrb[0].mxu0
    %v4804 = vpop.f32.mrb[0].mxu0
    %v4805 = vpop.f32.mrb[0].mxu0
    %4806 = vdwg.mxu0
    %v4807 = vadd.f32 %v4802, %v153
    %v4808 = vtanh.pop %v4807
    %v4809 = vpack.c.bf16 %v4808, %v4808
    %4810 = vmatprep.subr.bf16.mxu0 0
    %4811 = vmatpush1.bf16.msra.mxu0 %v2797
    %4812 = vmatprep.subr.bf16.mxu0 0
    %4813 = vmatpush1.bf16.msra.mxu0 %v2798
    %4814 = vmatprep.subr.bf16.mxu0 0
    %4815 = vmatpush1.bf16.msra.mxu0 0
    %4816 = vmatprep.subr.bf16.mxu0 0
    %4817 = vmatpush1.bf16.msra.mxu0 0
    %4818 = vmatprep.subr.bf16.mxu0 0
    %4819 = vmatpush1.bf16.msra.mxu0 0
    %4820 = vmatprep.subr.bf16.mxu0 0
    %4821 = vmatpush1.bf16.msra.mxu0 0
    %4822 = vmatprep.subr.bf16.mxu0 0
    %4823 = vmatpush1.bf16.msra.mxu0 0
    %4824 = vmatprep.subr.bf16.mxu0 0
    %4825 = vmatpush1.bf16.msra.mxu0 0
    %4826 = vmatprep.subr.bf16.mxu0 0
    %4827 = vmatpush1.bf16.msra.mxu0 0
    %4828 = vmatprep.subr.bf16.mxu0 0
    %4829 = vmatpush1.bf16.msra.mxu0 0
    %4830 = vmatprep.subr.bf16.mxu0 0
    %4831 = vmatpush1.bf16.msra.mxu0 0
    %4832 = vmatprep.subr.bf16.mxu0 0
    %4833 = vmatpush1.bf16.msra.mxu0 0
    %4834 = vmatprep.subr.bf16.mxu0 0
    %4835 = vmatpush1.bf16.msra.mxu0 0
    %4836 = vmatprep.subr.bf16.mxu0 0
    %4837 = vmatpush1.bf16.msra.mxu0 0
    %4838 = vmatprep.subr.bf16.mxu0 0
    %4839 = vmatpush1.bf16.msra.mxu0 0
    %4840 = vmatprep.subr.bf16.mxu0 0
    %4841 = vmatpush1.bf16.msra.mxu0 0
    %4842 = vmatprep.mubr.bf16.mxu0 0
    %4843 = vmatmul.mubr.bf16.gmra.mrb[0].mxu0 %v4613
    %v4844 = vpop.f32.mrb[0].mxu0
    %v4845 = vadd.f32 0.0, %v4844
    %v4846 = vpop.f32.mrb[0].mxu0
    %v4847 = vpop.f32.mrb[0].mxu0
    %v4848 = vpop.f32.mrb[0].mxu0
    %4849 = vdwg.mxu0
    %v4851 = vsel %vm222, %v4809, 0
    %4853 = vmatprep.subr.bf16.mxu0 0
    %4854 = vmatpush1.bf16.msra.mxu0 %v2849
    %4855 = vmatprep.subr.bf16.mxu0 0
    %4856 = vmatpush1.bf16.msra.mxu0 %v2850
    %4857 = vmatprep.subr.bf16.mxu0 0
    %4858 = vmatpush1.bf16.msra.mxu0 0
    %4859 = vmatprep.subr.bf16.mxu0 0
    %4860 = vmatpush1.bf16.msra.mxu0 0
    %4861 = vmatprep.subr.bf16.mxu0 0
    %4862 = vmatpush1.bf16.msra.mxu0 0
    %4863 = vmatprep.subr.bf16.mxu0 0
    %4864 = vmatpush1.bf16.msra.mxu0 0
    %4865 = vmatprep.subr.bf16.mxu0 0
    %4866 = vmatpush1.bf16.msra.mxu0 0
    %4867 = vmatprep.subr.bf16.mxu0 0
    %4868 = vmatpush1.bf16.msra.mxu0 0
    %4869 = vmatprep.subr.bf16.mxu0 0
    %4870 = vmatpush1.bf16.msra.mxu0 0
    %4871 = vmatprep.subr.bf16.mxu0 0
    %4872 = vmatpush1.bf16.msra.mxu0 0
    %4873 = vmatprep.subr.bf16.mxu0 0
    %4874 = vmatpush1.bf16.msra.mxu0 0
    %4875 = vmatprep.subr.bf16.mxu0 0
    %4876 = vmatpush1.bf16.msra.mxu0 0
    %4877 = vmatprep.subr.bf16.mxu0 0
    %4878 = vmatpush1.bf16.msra.mxu0 0
    %4879 = vmatprep.subr.bf16.mxu0 0
    %4880 = vmatpush1.bf16.msra.mxu0 0
    %4881 = vmatprep.subr.bf16.mxu0 0
    %4882 = vmatpush1.bf16.msra.mxu0 0
    %4883 = vmatprep.subr.bf16.mxu0 0
    %4884 = vmatpush1.bf16.msra.mxu0 0
    %4885 = vmatprep.mubr.bf16.mxu0 0
    %4886 = vmatmul.mubr.bf16.gmra.mrb[0].mxu0 %v4851
    %v4887 = vpop.f32.mrb[0].mxu0
    %v4888 = vadd.f32 %v4845, %v4887
    %v4889 = vpop.f32.mrb[0].mxu0
    %v4890 = vpop.f32.mrb[0].mxu0
    %v4891 = vpop.f32.mrb[0].mxu0
    %4892 = vdwg.mxu0
    %v4893 = vadd.f32 %v4888, %v161
    %v4894 = vtanh.pop %v4893
    %v4895 = vpack.c.bf16 %v4894, %v4894
    %4896 = vmatprep.subr.bf16.mxu0 0
    %4897 = vmatpush1.bf16.msra.mxu0 %v2917
    %4898 = vmatprep.subr.bf16.mxu0 0
    %4899 = vmatpush1.bf16.msra.mxu0 %v2918
    %4900 = vmatprep.subr.bf16.mxu0 0
    %4901 = vmatpush1.bf16.msra.mxu0 0
    %4902 = vmatprep.subr.bf16.mxu0 0
    %4903 = vmatpush1.bf16.msra.mxu0 0
    %4904 = vmatprep.subr.bf16.mxu0 0
    %4905 = vmatpush1.bf16.msra.mxu0 0
    %4906 = vmatprep.subr.bf16.mxu0 0
    %4907 = vmatpush1.bf16.msra.mxu0 0
    %4908 = vmatprep.subr.bf16.mxu0 0
    %4909 = vmatpush1.bf16.msra.mxu0 0
    %4910 = vmatprep.subr.bf16.mxu0 0
    %4911 = vmatpush1.bf16.msra.mxu0 0
    %4912 = vmatprep.subr.bf16.mxu0 0
    %4913 = vmatpush1.bf16.msra.mxu0 0
    %4914 = vmatprep.subr.bf16.mxu0 0
    %4915 = vmatpush1.bf16.msra.mxu0 0
    %4916 = vmatprep.subr.bf16.mxu0 0
    %4917 = vmatpush1.bf16.msra.mxu0 0
    %4918 = vmatprep.subr.bf16.mxu0 0
    %4919 = vmatpush1.bf16.msra.mxu0 0
    %4920 = vmatprep.subr.bf16.mxu0 0
    %4921 = vmatpush1.bf16.msra.mxu0 0
    %4922 = vmatprep.subr.bf16.mxu0 0
    %4923 = vmatpush1.bf16.msra.mxu0 0
    %4924 = vmatprep.subr.bf16.mxu0 0
    %4925 = vmatpush1.bf16.msra.mxu0 0
    %4926 = vmatprep.subr.bf16.mxu0 0
    %4927 = vmatpush1.bf16.msra.mxu0 0
    %4928 = vmatprep.mubr.bf16.mxu0 0
    %4929 = vmatmul.mubr.bf16.gmra.mrb[0].mxu0 %v4659
    %v4930 = vpop.f32.mrb[0].mxu0
    %v4931 = vadd.f32 0.0, %v4930
    %v4932 = vpop.f32.mrb[0].mxu0
    %v4933 = vpop.f32.mrb[0].mxu0
    %v4934 = vpop.f32.mrb[0].mxu0
    %4935 = vdwg.mxu0
    %v4937 = vsel %vm222, %v4895, 0
    %4939 = vmatprep.subr.bf16.mxu0 0
    %4940 = vmatpush1.bf16.msra.mxu0 %v2972
    %4941 = vmatprep.subr.bf16.mxu0 0
    %4942 = vmatpush1.bf16.msra.mxu0 %v2973
    %4943 = vmatprep.subr.bf16.mxu0 0
    %4944 = vmatpush1.bf16.msra.mxu0 0
    %4945 = vmatprep.subr.bf16.mxu0 0
    %4946 = vmatpush1.bf16.msra.mxu0 0
    %4947 = vmatprep.subr.bf16.mxu0 0
    %4948 = vmatpush1.bf16.msra.mxu0 0
    %4949 = vmatprep.subr.bf16.mxu0 0
    %4950 = vmatpush1.bf16.msra.mxu0 0
    %4951 = vmatprep.subr.bf16.mxu0 0
    %4952 = vmatpush1.bf16.msra.mxu0 0
    %4953 = vmatprep.subr.bf16.mxu0 0
    %4954 = vmatpush1.bf16.msra.mxu0 0
    %4955 = vmatprep.subr.bf16.mxu0 0
    %4956 = vmatpush1.bf16.msra.mxu0 0
    %4957 = vmatprep.subr.bf16.mxu0 0
    %4958 = vmatpush1.bf16.msra.mxu0 0
    %4959 = vmatprep.subr.bf16.mxu0 0
    %4960 = vmatpush1.bf16.msra.mxu0 0
    %4961 = vmatprep.subr.bf16.mxu0 0
    %4962 = vmatpush1.bf16.msra.mxu0 0
    %4963 = vmatprep.subr.bf16.mxu0 0
    %4964 = vmatpush1.bf16.msra.mxu0 0
    %4965 = vmatprep.subr.bf16.mxu0 0
    %4966 = vmatpush1.bf16.msra.mxu0 0
    %4967 = vmatprep.subr.bf16.mxu0 0
    %4968 = vmatpush1.bf16.msra.mxu0 0
    %4969 = vmatprep.subr.bf16.mxu0 0
    %4970 = vmatpush1.bf16.msra.mxu0 0
    %4971 = vmatprep.mubr.bf16.mxu0 0
    %4972 = vmatmul.mubr.bf16.gmra.mrb[0].mxu0 %v4937
    %v4973 = vpop.f32.mrb[0].mxu0
    %v4974 = vadd.f32 %v4931, %v4973
    %v4975 = vpop.f32.mrb[0].mxu0
    %v4976 = vpop.f32.mrb[0].mxu0
    %v4977 = vpop.f32.mrb[0].mxu0
    %4978 = vdwg.mxu0
    %v4979 = vadd.f32 %v4974, %v169
    %v4980 = vtanh.pop %v4979
    %v4981 = vpack.c.bf16 %v4980, %v4980
    %v4983 = vsel %vm222, %v4981, 0
    %4985 = vmatprep.subr.bf16.mxu0 0
    %4986 = vmatpush1.bf16.msra.mxu0 %v3034
    %4987 = vmatprep.subr.bf16.mxu0 0
    %4988 = vmatpush1.bf16.msra.mxu0 %v3035
    %4989 = vmatprep.subr.bf16.mxu0 0
    %4990 = vmatpush1.bf16.msra.mxu0 0
    %4991 = vmatprep.subr.bf16.mxu0 0
    %4992 = vmatpush1.bf16.msra.mxu0 0
    %4993 = vmatprep.subr.bf16.mxu0 0
    %4994 = vmatpush1.bf16.msra.mxu0 0
    %4995 = vmatprep.subr.bf16.mxu0 0
    %4996 = vmatpush1.bf16.msra.mxu0 0
    %4997 = vmatprep.subr.bf16.mxu0 0
    %4998 = vmatpush1.bf16.msra.mxu0 0
    %4999 = vmatprep.subr.bf16.mxu0 0
    %5000 = vmatpush1.bf16.msra.mxu0 0
    %5001 = vmatprep.subr.bf16.mxu0 0
    %5002 = vmatpush1.bf16.msra.mxu0 0
    %5003 = vmatprep.subr.bf16.mxu0 0
    %5004 = vmatpush1.bf16.msra.mxu0 0
    %5005 = vmatprep.subr.bf16.mxu0 0
    %5006 = vmatpush1.bf16.msra.mxu0 0
    %5007 = vmatprep.subr.bf16.mxu0 0
    %5008 = vmatpush1.bf16.msra.mxu0 0
    %5009 = vmatprep.subr.bf16.mxu0 0
    %5010 = vmatpush1.bf16.msra.mxu0 0
    %5011 = vmatprep.subr.bf16.mxu0 0
    %5012 = vmatpush1.bf16.msra.mxu0 0
    %5013 = vmatprep.subr.bf16.mxu0 0
    %5014 = vmatpush1.bf16.msra.mxu0 0
    %5015 = vmatprep.subr.bf16.mxu0 0
    %5016 = vmatpush1.bf16.msra.mxu0 0
    %5017 = vmatprep.mubr.bf16.mxu0 0
    %5018 = vmatmul.mubr.bf16.gmra.mrb[0].mxu0 %v4983
    %v5019 = vpop.f32.mrb[0].mxu0
    %v5020 = vadd.f32 %v176, %v5019
    %v5021 = vpop.f32.mrb[0].mxu0
    %v5022 = vpop.f32.mrb[0].mxu0
    %v5023 = vpop.f32.mrb[0].mxu0
    %5024 = vdwg.mxu0
    %v5025 = vsel %vm504, %v5020, -inf
    %5026 = vmax.xlane.f32.xlu0 %v5025
    %v5027 = vpop.xlane.xlu0 %5026
    %vm5028 = vcmp.eq.f32.partialorder %v5020, %v5027
    %v5029 = vsel %vm5028, 1, 0
    %v5030 = vcvt.s32.f32 %v5029
    %v5031 = vpack.c.bf16 %v5030, %v5030
    %v5032 = vsel %vm5028, %v124, 64
    %v5033 = vsel %vm504, %v5032, 2147483647
    %v5034 = vand.u32 %v5033, 65535
    %v5035 = vshra.s32 %v5033, 16
    %v5036 = vcvt.s32.f32 %v5034
    %v5037 = vcvt.s32.f32 %v5035
    %5038 = vmin.xlane.f32.xlu0 %v5037
    %v5039 = vpop.xlane.xlu0 %5038
    %vm5040 = vcmp.eq.f32.partialorder %v5037, %v5039
    %v5041 = vsel %vm5040, %v5036, inf
    %5042 = vmin.xlane.f32.xlu0 %v5041
    %v5043 = vpop.xlane.xlu0 %5042
    %v5044 = vcvt.f32.s32 %v5043
    %v5045 = vcvt.f32.s32 %v5039
    %v5046 = vshll.u32 %v5045, 16
    %v5047 = vadd.s32 %v5046, %v5044
    %5048 = vmatprep.subr.bf16.mxu0 0
    %5049 = vmatpush1.bf16.msra.mxu0 %v2689
    %5050 = vmatprep.subr.bf16.mxu0 0
    %5051 = vmatpush1.bf16.msra.mxu0 %v2690
    %5052 = vmatprep.subr.bf16.mxu0 0
    %5053 = vmatpush1.bf16.msra.mxu0 0
    %5054 = vmatprep.subr.bf16.mxu0 0
    %5055 = vmatpush1.bf16.msra.mxu0 0
    %5056 = vmatprep.subr.bf16.mxu0 0
    %5057 = vmatpush1.bf16.msra.mxu0 0
    %5058 = vmatprep.subr.bf16.mxu0 0
    %5059 = vmatpush1.bf16.msra.mxu0 0
    %5060 = vmatprep.subr.bf16.mxu0 0
    %5061 = vmatpush1.bf16.msra.mxu0 0
    %5062 = vmatprep.subr.bf16.mxu0 0
    %5063 = vmatpush1.bf16.msra.mxu0 0
    %5064 = vmatprep.subr.bf16.mxu0 0
    %5065 = vmatpush1.bf16.msra.mxu0 0
    %5066 = vmatprep.subr.bf16.mxu0 0
    %5067 = vmatpush1.bf16.msra.mxu0 0
    %5068 = vmatprep.subr.bf16.mxu0 0
    %5069 = vmatpush1.bf16.msra.mxu0 0
    %5070 = vmatprep.subr.bf16.mxu0 0
    %5071 = vmatpush1.bf16.msra.mxu0 0
    %5072 = vmatprep.subr.bf16.mxu0 0
    %5073 = vmatpush1.bf16.msra.mxu0 0
    %5074 = vmatprep.subr.bf16.mxu0 0
    %5075 = vmatpush1.bf16.msra.mxu0 0
    %5076 = vmatprep.subr.bf16.mxu0 0
    %5077 = vmatpush1.bf16.msra.mxu0 0
    %5078 = vmatprep.subr.bf16.mxu0 0
    %5079 = vmatpush1.bf16.msra.mxu0 0
    %5080 = vmatprep.mubr.bf16.mxu0 0
    %5081 = vmatmul.mubr.bf16.gmra.mrb[0].mxu0 %v4851
    %v5082 = vpop.f32.mrb[0].mxu0
    %v5083 = vadd.f32 0.0, %v5082
    %v5084 = vpop.f32.mrb[0].mxu0
    %v5085 = vpop.f32.mrb[0].mxu0
    %v5086 = vpop.f32.mrb[0].mxu0
    %5087 = vdwg.mxu0
    %v5089 = vsel %vm504, %v5031, 0
    %5091 = vmatprep.subr.bf16.mxu0 0
    %5092 = vmatpush1.bf16.msra.mxu0 %v425
    %5093 = vmatprep.subr.bf16.mxu0 0
    %5094 = vmatpush1.bf16.msra.mxu0 %v426
    %5095 = vmatprep.subr.bf16.mxu0 0
    %5096 = vmatpush1.bf16.msra.mxu0 %v427
    %5097 = vmatprep.subr.bf16.mxu0 0
    %5098 = vmatpush1.bf16.msra.mxu0 %v428
    %5099 = vmatprep.subr.bf16.mxu0 0
    %5100 = vmatpush1.bf16.msra.mxu0 0
    %5101 = vmatprep.subr.bf16.mxu0 0
    %5102 = vmatpush1.bf16.msra.mxu0 0
    %5103 = vmatprep.subr.bf16.mxu0 0
    %5104 = vmatpush1.bf16.msra.mxu0 0
    %5105 = vmatprep.subr.bf16.mxu0 0
    %5106 = vmatpush1.bf16.msra.mxu0 0
    %5107 = vmatprep.subr.bf16.mxu0 0
    %5108 = vmatpush1.bf16.msra.mxu0 0
    %5109 = vmatprep.subr.bf16.mxu0 0
    %5110 = vmatpush1.bf16.msra.mxu0 0
    %5111 = vmatprep.subr.bf16.mxu0 0
    %5112 = vmatpush1.bf16.msra.mxu0 0
    %5113 = vmatprep.subr.bf16.mxu0 0
    %5114 = vmatpush1.bf16.msra.mxu0 0
    %5115 = vmatprep.subr.bf16.mxu0 0
    %5116 = vmatpush1.bf16.msra.mxu0 0
    %5117 = vmatprep.subr.bf16.mxu0 0
    %5118 = vmatpush1.bf16.msra.mxu0 0
    %5119 = vmatprep.subr.bf16.mxu0 0
    %5120 = vmatpush1.bf16.msra.mxu0 0
    %5121 = vmatprep.subr.bf16.mxu0 0
    %5122 = vmatpush1.bf16.msra.mxu0 0
    %5123 = vmatprep.mubr.bf16.mxu0 0
    %5124 = vmatmul.mubr.bf16.gmra.mrb[0].mxu0 %v5089
    %v5125 = vpop.f32.mrb[0].mxu0
    %v5126 = vadd.f32 %v5083, %v5125
    %v5127 = vpop.f32.mrb[0].mxu0
    %v5128 = vpop.f32.mrb[0].mxu0
    %v5129 = vpop.f32.mrb[0].mxu0
    %5130 = vdwg.mxu0
    %v5131 = vadd.f32 %v5126, %v153
    %v5132 = vtanh.pop %v5131
    %v5133 = vpack.c.bf16 %v5132, %v5132
    %5134 = vmatprep.subr.bf16.mxu0 0
    %5135 = vmatpush1.bf16.msra.mxu0 %v2797
    %5136 = vmatprep.subr.bf16.mxu0 0
    %5137 = vmatpush1.bf16.msra.mxu0 %v2798
    %5138 = vmatprep.subr.bf16.mxu0 0
    %5139 = vmatpush1.bf16.msra.mxu0 0
    %5140 = vmatprep.subr.bf16.mxu0 0
    %5141 = vmatpush1.bf16.msra.mxu0 0
    %5142 = vmatprep.subr.bf16.mxu0 0
    %5143 = vmatpush1.bf16.msra.mxu0 0
    %5144 = vmatprep.subr.bf16.mxu0 0
    %5145 = vmatpush1.bf16.msra.mxu0 0
    %5146 = vmatprep.subr.bf16.mxu0 0
    %5147 = vmatpush1.bf16.msra.mxu0 0
    %5148 = vmatprep.subr.bf16.mxu0 0
    %5149 = vmatpush1.bf16.msra.mxu0 0
    %5150 = vmatprep.subr.bf16.mxu0 0
    %5151 = vmatpush1.bf16.msra.mxu0 0
    %5152 = vmatprep.subr.bf16.mxu0 0
    %5153 = vmatpush1.bf16.msra.mxu0 0
    %5154 = vmatprep.subr.bf16.mxu0 0
    %5155 = vmatpush1.bf16.msra.mxu0 0
    %5156 = vmatprep.subr.bf16.mxu0 0
    %5157 = vmatpush1.bf16.msra.mxu0 0
    %5158 = vmatprep.subr.bf16.mxu0 0
    %5159 = vmatpush1.bf16.msra.mxu0 0
    %5160 = vmatprep.subr.bf16.mxu0 0
    %5161 = vmatpush1.bf16.msra.mxu0 0
    %5162 = vmatprep.subr.bf16.mxu0 0
    %5163 = vmatpush1.bf16.msra.mxu0 0
    %5164 = vmatprep.subr.bf16.mxu0 0
    %5165 = vmatpush1.bf16.msra.mxu0 0
    %5166 = vmatprep.mubr.bf16.mxu0 0
    %5167 = vmatmul.mubr.bf16.gmra.mrb[0].mxu0 %v4937
    %v5168 = vpop.f32.mrb[0].mxu0
    %v5169 = vadd.f32 0.0, %v5168
    %v5170 = vpop.f32.mrb[0].mxu0
    %v5171 = vpop.f32.mrb[0].mxu0
    %v5172 = vpop.f32.mrb[0].mxu0
    %5173 = vdwg.mxu0
    %v5175 = vsel %vm222, %v5133, 0
    %5177 = vmatprep.subr.bf16.mxu0 0
    %5178 = vmatpush1.bf16.msra.mxu0 %v2849
    %5179 = vmatprep.subr.bf16.mxu0 0
    %5180 = vmatpush1.bf16.msra.mxu0 %v2850
    %5181 = vmatprep.subr.bf16.mxu0 0
    %5182 = vmatpush1.bf16.msra.mxu0 0
    %5183 = vmatprep.subr.bf16.mxu0 0
    %5184 = vmatpush1.bf16.msra.mxu0 0
    %5185 = vmatprep.subr.bf16.mxu0 0
    %5186 = vmatpush1.bf16.msra.mxu0 0
    %5187 = vmatprep.subr.bf16.mxu0 0
    %5188 = vmatpush1.bf16.msra.mxu0 0
    %5189 = vmatprep.subr.bf16.mxu0 0
    %5190 = vmatpush1.bf16.msra.mxu0 0
    %5191 = vmatprep.subr.bf16.mxu0 0
    %5192 = vmatpush1.bf16.msra.mxu0 0
    %5193 = vmatprep.subr.bf16.mxu0 0
    %5194 = vmatpush1.bf16.msra.mxu0 0
    %5195 = vmatprep.subr.bf16.mxu0 0
    %5196 = vmatpush1.bf16.msra.mxu0 0
    %5197 = vmatprep.subr.bf16.mxu0 0
    %5198 = vmatpush1.bf16.msra.mxu0 0
    %5199 = vmatprep.subr.bf16.mxu0 0
    %5200 = vmatpush1.bf16.msra.mxu0 0
    %5201 = vmatprep.subr.bf16.mxu0 0
    %5202 = vmatpush1.bf16.msra.mxu0 0
    %5203 = vmatprep.subr.bf16.mxu0 0
    %5204 = vmatpush1.bf16.msra.mxu0 0
    %5205 = vmatprep.subr.bf16.mxu0 0
    %5206 = vmatpush1.bf16.msra.mxu0 0
    %5207 = vmatprep.subr.bf16.mxu0 0
    %5208 = vmatpush1.bf16.msra.mxu0 0
    %5209 = vmatprep.mubr.bf16.mxu0 0
    %5210 = vmatmul.mubr.bf16.gmra.mrb[0].mxu0 %v5175
    %v5211 = vpop.f32.mrb[0].mxu0
    %v5212 = vadd.f32 %v5169, %v5211
    %v5213 = vpop.f32.mrb[0].mxu0
    %v5214 = vpop.f32.mrb[0].mxu0
    %v5215 = vpop.f32.mrb[0].mxu0
    %5216 = vdwg.mxu0
    %v5217 = vadd.f32 %v5212, %v161
    %v5218 = vtanh.pop %v5217
    %v5219 = vpack.c.bf16 %v5218, %v5218
    %5220 = vmatprep.subr.bf16.mxu0 0
    %5221 = vmatpush1.bf16.msra.mxu0 %v2917
    %5222 = vmatprep.subr.bf16.mxu0 0
    %5223 = vmatpush1.bf16.msra.mxu0 %v2918
    %5224 = vmatprep.subr.bf16.mxu0 0
    %5225 = vmatpush1.bf16.msra.mxu0 0
    %5226 = vmatprep.subr.bf16.mxu0 0
    %5227 = vmatpush1.bf16.msra.mxu0 0
    %5228 = vmatprep.subr.bf16.mxu0 0
    %5229 = vmatpush1.bf16.msra.mxu0 0
    %5230 = vmatprep.subr.bf16.mxu0 0
    %5231 = vmatpush1.bf16.msra.mxu0 0
    %5232 = vmatprep.subr.bf16.mxu0 0
    %5233 = vmatpush1.bf16.msra.mxu0 0
    %5234 = vmatprep.subr.bf16.mxu0 0
    %5235 = vmatpush1.bf16.msra.mxu0 0
    %5236 = vmatprep.subr.bf16.mxu0 0
    %5237 = vmatpush1.bf16.msra.mxu0 0
    %5238 = vmatprep.subr.bf16.mxu0 0
    %5239 = vmatpush1.bf16.msra.mxu0 0
    %5240 = vmatprep.subr.bf16.mxu0 0
    %5241 = vmatpush1.bf16.msra.mxu0 0
    %5242 = vmatprep.subr.bf16.mxu0 0
    %5243 = vmatpush1.bf16.msra.mxu0 0
    %5244 = vmatprep.subr.bf16.mxu0 0
    %5245 = vmatpush1.bf16.msra.mxu0 0
    %5246 = vmatprep.subr.bf16.mxu0 0
    %5247 = vmatpush1.bf16.msra.mxu0 0
    %5248 = vmatprep.subr.bf16.mxu0 0
    %5249 = vmatpush1.bf16.msra.mxu0 0
    %5250 = vmatprep.subr.bf16.mxu0 0
    %5251 = vmatpush1.bf16.msra.mxu0 0
    %5252 = vmatprep.mubr.bf16.mxu0 0
    %5253 = vmatmul.mubr.bf16.gmra.mrb[0].mxu0 %v4983
    %v5254 = vpop.f32.mrb[0].mxu0
    %v5255 = vadd.f32 0.0, %v5254
    %v5256 = vpop.f32.mrb[0].mxu0
    %v5257 = vpop.f32.mrb[0].mxu0
    %v5258 = vpop.f32.mrb[0].mxu0
    %5259 = vdwg.mxu0
    %v5261 = vsel %vm222, %v5219, 0
    %5263 = vmatprep.subr.bf16.mxu0 0
    %5264 = vmatpush1.bf16.msra.mxu0 %v2972
    %5265 = vmatprep.subr.bf16.mxu0 0
    %5266 = vmatpush1.bf16.msra.mxu0 %v2973
    %5267 = vmatprep.subr.bf16.mxu0 0
    %5268 = vmatpush1.bf16.msra.mxu0 0
    %5269 = vmatprep.subr.bf16.mxu0 0
    %5270 = vmatpush1.bf16.msra.mxu0 0
    %5271 = vmatprep.subr.bf16.mxu0 0
    %5272 = vmatpush1.bf16.msra.mxu0 0
    %5273 = vmatprep.subr.bf16.mxu0 0
    %5274 = vmatpush1.bf16.msra.mxu0 0
    %5275 = vmatprep.subr.bf16.mxu0 0
    %5276 = vmatpush1.bf16.msra.mxu0 0
    %5277 = vmatprep.subr.bf16.mxu0 0
    %5278 = vmatpush1.bf16.msra.mxu0 0
    %5279 = vmatprep.subr.bf16.mxu0 0
    %5280 = vmatpush1.bf16.msra.mxu0 0
    %5281 = vmatprep.subr.bf16.mxu0 0
    %5282 = vmatpush1.bf16.msra.mxu0 0
    %5283 = vmatprep.subr.bf16.mxu0 0
    %5284 = vmatpush1.bf16.msra.mxu0 0
    %5285 = vmatprep.subr.bf16.mxu0 0
    %5286 = vmatpush1.bf16.msra.mxu0 0
    %5287 = vmatprep.subr.bf16.mxu0 0
    %5288 = vmatpush1.bf16.msra.mxu0 0
    %5289 = vmatprep.subr.bf16.mxu0 0
    %5290 = vmatpush1.bf16.msra.mxu0 0
    %5291 = vmatprep.subr.bf16.mxu0 0
    %5292 = vmatpush1.bf16.msra.mxu0 0
    %5293 = vmatprep.subr.bf16.mxu0 0
    %5294 = vmatpush1.bf16.msra.mxu0 0
    %5295 = vmatprep.mubr.bf16.mxu0 0
    %5296 = vmatmul.mubr.bf16.gmra.mrb[0].mxu0 %v5261
    %v5297 = vpop.f32.mrb[0].mxu0
    %v5298 = vadd.f32 %v5255, %v5297
    %v5299 = vpop.f32.mrb[0].mxu0
    %v5300 = vpop.f32.mrb[0].mxu0
    %v5301 = vpop.f32.mrb[0].mxu0
    %5302 = vdwg.mxu0
    %v5303 = vadd.f32 %v5298, %v169
    %v5304 = vtanh.pop %v5303
    %v5305 = vpack.c.bf16 %v5304, %v5304
    %v5307 = vsel %vm222, %v5305, 0
    %5309 = vmatprep.subr.bf16.mxu0 0
    %5310 = vmatpush1.bf16.msra.mxu0 %v3034
    %5311 = vmatprep.subr.bf16.mxu0 0
    %5312 = vmatpush1.bf16.msra.mxu0 %v3035
    %5313 = vmatprep.subr.bf16.mxu0 0
    %5314 = vmatpush1.bf16.msra.mxu0 0
    %5315 = vmatprep.subr.bf16.mxu0 0
    %5316 = vmatpush1.bf16.msra.mxu0 0
    %5317 = vmatprep.subr.bf16.mxu0 0
    %5318 = vmatpush1.bf16.msra.mxu0 0
    %5319 = vmatprep.subr.bf16.mxu0 0
    %5320 = vmatpush1.bf16.msra.mxu0 0
    %5321 = vmatprep.subr.bf16.mxu0 0
    %5322 = vmatpush1.bf16.msra.mxu0 0
    %5323 = vmatprep.subr.bf16.mxu0 0
    %5324 = vmatpush1.bf16.msra.mxu0 0
    %5325 = vmatprep.subr.bf16.mxu0 0
    %5326 = vmatpush1.bf16.msra.mxu0 0
    %5327 = vmatprep.subr.bf16.mxu0 0
    %5328 = vmatpush1.bf16.msra.mxu0 0
    %5329 = vmatprep.subr.bf16.mxu0 0
    %5330 = vmatpush1.bf16.msra.mxu0 0
    %5331 = vmatprep.subr.bf16.mxu0 0
    %5332 = vmatpush1.bf16.msra.mxu0 0
    %5333 = vmatprep.subr.bf16.mxu0 0
    %5334 = vmatpush1.bf16.msra.mxu0 0
    %5335 = vmatprep.subr.bf16.mxu0 0
    %5336 = vmatpush1.bf16.msra.mxu0 0
    %5337 = vmatprep.subr.bf16.mxu0 0
    %5338 = vmatpush1.bf16.msra.mxu0 0
    %5339 = vmatprep.subr.bf16.mxu0 0
    %5340 = vmatpush1.bf16.msra.mxu0 0
    %5341 = vmatprep.mubr.bf16.mxu0 0
    %5342 = vmatmul.mubr.bf16.gmra.mrb[0].mxu0 %v5307
    %v5343 = vpop.f32.mrb[0].mxu0
    %v5344 = vadd.f32 %v176, %v5343
    %v5345 = vpop.f32.mrb[0].mxu0
    %v5346 = vpop.f32.mrb[0].mxu0
    %v5347 = vpop.f32.mrb[0].mxu0
    %5348 = vdwg.mxu0
    %v5349 = vsel %vm504, %v5344, -inf
    %5350 = vmax.xlane.f32.xlu0 %v5349
    %v5351 = vpop.xlane.xlu0 %5350
    %vm5352 = vcmp.eq.f32.partialorder %v5344, %v5351
    %v5353 = vsel %vm5352, 1, 0
    %v5354 = vcvt.s32.f32 %v5353
    %v5355 = vpack.c.bf16 %v5354, %v5354
    %v5356 = vsel %vm5352, %v124, 64
    %v5357 = vsel %vm504, %v5356, 2147483647
    %v5358 = vand.u32 %v5357, 65535
    %v5359 = vshra.s32 %v5357, 16
    %v5360 = vcvt.s32.f32 %v5358
    %v5361 = vcvt.s32.f32 %v5359
    %5362 = vmin.xlane.f32.xlu0 %v5361
    %v5363 = vpop.xlane.xlu0 %5362
    %vm5364 = vcmp.eq.f32.partialorder %v5361, %v5363
    %v5365 = vsel %vm5364, %v5360, inf
    %5366 = vmin.xlane.f32.xlu0 %v5365
    %v5367 = vpop.xlane.xlu0 %5366
    %v5368 = vcvt.f32.s32 %v5367
    %v5369 = vcvt.f32.s32 %v5363
    %v5370 = vshll.u32 %v5369, 16
    %v5371 = vadd.s32 %v5370, %v5368
    %5372 = vmatprep.subr.bf16.mxu0 0
    %5373 = vmatpush1.bf16.msra.mxu0 %v2689
    %5374 = vmatprep.subr.bf16.mxu0 0
    %5375 = vmatpush1.bf16.msra.mxu0 %v2690
    %5376 = vmatprep.subr.bf16.mxu0 0
    %5377 = vmatpush1.bf16.msra.mxu0 0
    %5378 = vmatprep.subr.bf16.mxu0 0
    %5379 = vmatpush1.bf16.msra.mxu0 0
    %5380 = vmatprep.subr.bf16.mxu0 0
    %5381 = vmatpush1.bf16.msra.mxu0 0
    %5382 = vmatprep.subr.bf16.mxu0 0
    %5383 = vmatpush1.bf16.msra.mxu0 0
    %5384 = vmatprep.subr.bf16.mxu0 0
    %5385 = vmatpush1.bf16.msra.mxu0 0
    %5386 = vmatprep.subr.bf16.mxu0 0
    %5387 = vmatpush1.bf16.msra.mxu0 0
    %5388 = vmatprep.subr.bf16.mxu0 0
    %5389 = vmatpush1.bf16.msra.mxu0 0
    %5390 = vmatprep.subr.bf16.mxu0 0
    %5391 = vmatpush1.bf16.msra.mxu0 0
    %5392 = vmatprep.subr.bf16.mxu0 0
    %5393 = vmatpush1.bf16.msra.mxu0 0
    %5394 = vmatprep.subr.bf16.mxu0 0
    %5395 = vmatpush1.bf16.msra.mxu0 0
    %5396 = vmatprep.subr.bf16.mxu0 0
    %5397 = vmatpush1.bf16.msra.mxu0 0
    %5398 = vmatprep.subr.bf16.mxu0 0
    %5399 = vmatpush1.bf16.msra.mxu0 0
    %5400 = vmatprep.subr.bf16.mxu0 0
    %5401 = vmatpush1.bf16.msra.mxu0 0
    %5402 = vmatprep.subr.bf16.mxu0 0
    %5403 = vmatpush1.bf16.msra.mxu0 0
    %5404 = vmatprep.mubr.bf16.mxu0 0
    %5405 = vmatmul.mubr.bf16.gmra.mrb[0].mxu0 %v5175
    %v5406 = vpop.f32.mrb[0].mxu0
    %v5407 = vadd.f32 0.0, %v5406
    %v5408 = vpop.f32.mrb[0].mxu0
    %v5409 = vpop.f32.mrb[0].mxu0
    %v5410 = vpop.f32.mrb[0].mxu0
    %5411 = vdwg.mxu0
    %v5413 = vsel %vm504, %v5355, 0
    %5415 = vmatprep.subr.bf16.mxu0 0
    %5416 = vmatpush1.bf16.msra.mxu0 %v425
    %5417 = vmatprep.subr.bf16.mxu0 0
    %5418 = vmatpush1.bf16.msra.mxu0 %v426
    %5419 = vmatprep.subr.bf16.mxu0 0
    %5420 = vmatpush1.bf16.msra.mxu0 %v427
    %5421 = vmatprep.subr.bf16.mxu0 0
    %5422 = vmatpush1.bf16.msra.mxu0 %v428
    %5423 = vmatprep.subr.bf16.mxu0 0
    %5424 = vmatpush1.bf16.msra.mxu0 0
    %5425 = vmatprep.subr.bf16.mxu0 0
    %5426 = vmatpush1.bf16.msra.mxu0 0
    %5427 = vmatprep.subr.bf16.mxu0 0
    %5428 = vmatpush1.bf16.msra.mxu0 0
    %5429 = vmatprep.subr.bf16.mxu0 0
    %5430 = vmatpush1.bf16.msra.mxu0 0
    %5431 = vmatprep.subr.bf16.mxu0 0
    %5432 = vmatpush1.bf16.msra.mxu0 0
    %5433 = vmatprep.subr.bf16.mxu0 0
    %5434 = vmatpush1.bf16.msra.mxu0 0
    %5435 = vmatprep.subr.bf16.mxu0 0
    %5436 = vmatpush1.bf16.msra.mxu0 0
    %5437 = vmatprep.subr.bf16.mxu0 0
    %5438 = vmatpush1.bf16.msra.mxu0 0
    %5439 = vmatprep.subr.bf16.mxu0 0
    %5440 = vmatpush1.bf16.msra.mxu0 0
    %5441 = vmatprep.subr.bf16.mxu0 0
    %5442 = vmatpush1.bf16.msra.mxu0 0
    %5443 = vmatprep.subr.bf16.mxu0 0
    %5444 = vmatpush1.bf16.msra.mxu0 0
    %5445 = vmatprep.subr.bf16.mxu0 0
    %5446 = vmatpush1.bf16.msra.mxu0 0
    %5447 = vmatprep.mubr.bf16.mxu0 0
    %5448 = vmatmul.mubr.bf16.gmra.mrb[0].mxu0 %v5413
    %v5449 = vpop.f32.mrb[0].mxu0
    %v5450 = vadd.f32 %v5407, %v5449
    %v5451 = vpop.f32.mrb[0].mxu0
    %v5452 = vpop.f32.mrb[0].mxu0
    %v5453 = vpop.f32.mrb[0].mxu0
    %5454 = vdwg.mxu0
    %v5455 = vadd.f32 %v5450, %v153
    %v5456 = vtanh.pop %v5455
    %v5457 = vpack.c.bf16 %v5456, %v5456
    %5458 = vmatprep.subr.bf16.mxu0 0
    %5459 = vmatpush1.bf16.msra.mxu0 %v2797
    %5460 = vmatprep.subr.bf16.mxu0 0
    %5461 = vmatpush1.bf16.msra.mxu0 %v2798
    %5462 = vmatprep.subr.bf16.mxu0 0
    %5463 = vmatpush1.bf16.msra.mxu0 0
    %5464 = vmatprep.subr.bf16.mxu0 0
    %5465 = vmatpush1.bf16.msra.mxu0 0
    %5466 = vmatprep.subr.bf16.mxu0 0
    %5467 = vmatpush1.bf16.msra.mxu0 0
    %5468 = vmatprep.subr.bf16.mxu0 0
    %5469 = vmatpush1.bf16.msra.mxu0 0
    %5470 = vmatprep.subr.bf16.mxu0 0
    %5471 = vmatpush1.bf16.msra.mxu0 0
    %5472 = vmatprep.subr.bf16.mxu0 0
    %5473 = vmatpush1.bf16.msra.mxu0 0
    %5474 = vmatprep.subr.bf16.mxu0 0
    %5475 = vmatpush1.bf16.msra.mxu0 0
    %5476 = vmatprep.subr.bf16.mxu0 0
    %5477 = vmatpush1.bf16.msra.mxu0 0
    %5478 = vmatprep.subr.bf16.mxu0 0
    %5479 = vmatpush1.bf16.msra.mxu0 0
    %5480 = vmatprep.subr.bf16.mxu0 0
    %5481 = vmatpush1.bf16.msra.mxu0 0
    %5482 = vmatprep.subr.bf16.mxu0 0
    %5483 = vmatpush1.bf16.msra.mxu0 0
    %5484 = vmatprep.subr.bf16.mxu0 0
    %5485 = vmatpush1.bf16.msra.mxu0 0
    %5486 = vmatprep.subr.bf16.mxu0 0
    %5487 = vmatpush1.bf16.msra.mxu0 0
    %5488 = vmatprep.subr.bf16.mxu0 0
    %5489 = vmatpush1.bf16.msra.mxu0 0
    %5490 = vmatprep.mubr.bf16.mxu0 0
    %5491 = vmatmul.mubr.bf16.gmra.mrb[0].mxu0 %v5261
    %v5492 = vpop.f32.mrb[0].mxu0
    %v5493 = vadd.f32 0.0, %v5492
    %v5494 = vpop.f32.mrb[0].mxu0
    %v5495 = vpop.f32.mrb[0].mxu0
    %v5496 = vpop.f32.mrb[0].mxu0
    %5497 = vdwg.mxu0
    %v5499 = vsel %vm222, %v5457, 0
    %5501 = vmatprep.subr.bf16.mxu0 0
    %5502 = vmatpush1.bf16.msra.mxu0 %v2849
    %5503 = vmatprep.subr.bf16.mxu0 0
    %5504 = vmatpush1.bf16.msra.mxu0 %v2850
    %5505 = vmatprep.subr.bf16.mxu0 0
    %5506 = vmatpush1.bf16.msra.mxu0 0
    %5507 = vmatprep.subr.bf16.mxu0 0
    %5508 = vmatpush1.bf16.msra.mxu0 0
    %5509 = vmatprep.subr.bf16.mxu0 0
    %5510 = vmatpush1.bf16.msra.mxu0 0
    %5511 = vmatprep.subr.bf16.mxu0 0
    %5512 = vmatpush1.bf16.msra.mxu0 0
    %5513 = vmatprep.subr.bf16.mxu0 0
    %5514 = vmatpush1.bf16.msra.mxu0 0
    %5515 = vmatprep.subr.bf16.mxu0 0
    %5516 = vmatpush1.bf16.msra.mxu0 0
    %5517 = vmatprep.subr.bf16.mxu0 0
    %5518 = vmatpush1.bf16.msra.mxu0 0
    %5519 = vmatprep.subr.bf16.mxu0 0
    %5520 = vmatpush1.bf16.msra.mxu0 0
    %5521 = vmatprep.subr.bf16.mxu0 0
    %5522 = vmatpush1.bf16.msra.mxu0 0
    %5523 = vmatprep.subr.bf16.mxu0 0
    %5524 = vmatpush1.bf16.msra.mxu0 0
    %5525 = vmatprep.subr.bf16.mxu0 0
    %5526 = vmatpush1.bf16.msra.mxu0 0
    %5527 = vmatprep.subr.bf16.mxu0 0
    %5528 = vmatpush1.bf16.msra.mxu0 0
    %5529 = vmatprep.subr.bf16.mxu0 0
    %5530 = vmatpush1.bf16.msra.mxu0 0
    %5531 = vmatprep.subr.bf16.mxu0 0
    %5532 = vmatpush1.bf16.msra.mxu0 0
    %5533 = vmatprep.mubr.bf16.mxu0 0
    %5534 = vmatmul.mubr.bf16.gmra.mrb[0].mxu0 %v5499
    %v5535 = vpop.f32.mrb[0].mxu0
    %v5536 = vadd.f32 %v5493, %v5535
    %v5537 = vpop.f32.mrb[0].mxu0
    %v5538 = vpop.f32.mrb[0].mxu0
    %v5539 = vpop.f32.mrb[0].mxu0
    %5540 = vdwg.mxu0
    %v5541 = vadd.f32 %v5536, %v161
    %v5542 = vtanh.pop %v5541
    %v5543 = vpack.c.bf16 %v5542, %v5542
    %5544 = vmatprep.subr.bf16.mxu0 0
    %5545 = vmatpush1.bf16.msra.mxu0 %v2917
    %5546 = vmatprep.subr.bf16.mxu0 0
    %5547 = vmatpush1.bf16.msra.mxu0 %v2918
    %5548 = vmatprep.subr.bf16.mxu0 0
    %5549 = vmatpush1.bf16.msra.mxu0 0
    %5550 = vmatprep.subr.bf16.mxu0 0
    %5551 = vmatpush1.bf16.msra.mxu0 0
    %5552 = vmatprep.subr.bf16.mxu0 0
    %5553 = vmatpush1.bf16.msra.mxu0 0
    %5554 = vmatprep.subr.bf16.mxu0 0
    %5555 = vmatpush1.bf16.msra.mxu0 0
    %5556 = vmatprep.subr.bf16.mxu0 0
    %5557 = vmatpush1.bf16.msra.mxu0 0
    %5558 = vmatprep.subr.bf16.mxu0 0
    %5559 = vmatpush1.bf16.msra.mxu0 0
    %5560 = vmatprep.subr.bf16.mxu0 0
    %5561 = vmatpush1.bf16.msra.mxu0 0
    %5562 = vmatprep.subr.bf16.mxu0 0
    %5563 = vmatpush1.bf16.msra.mxu0 0
    %5564 = vmatprep.subr.bf16.mxu0 0
    %5565 = vmatpush1.bf16.msra.mxu0 0
    %5566 = vmatprep.subr.bf16.mxu0 0
    %5567 = vmatpush1.bf16.msra.mxu0 0
    %5568 = vmatprep.subr.bf16.mxu0 0
    %5569 = vmatpush1.bf16.msra.mxu0 0
    %5570 = vmatprep.subr.bf16.mxu0 0
    %5571 = vmatpush1.bf16.msra.mxu0 0
    %5572 = vmatprep.subr.bf16.mxu0 0
    %5573 = vmatpush1.bf16.msra.mxu0 0
    %5574 = vmatprep.subr.bf16.mxu0 0
    %5575 = vmatpush1.bf16.msra.mxu0 0
    %5576 = vmatprep.mubr.bf16.mxu0 0
    %5577 = vmatmul.mubr.bf16.gmra.mrb[0].mxu0 %v5307
    %v5578 = vpop.f32.mrb[0].mxu0
    %v5579 = vadd.f32 0.0, %v5578
    %v5580 = vpop.f32.mrb[0].mxu0
    %v5581 = vpop.f32.mrb[0].mxu0
    %v5582 = vpop.f32.mrb[0].mxu0
    %5583 = vdwg.mxu0
    %v5585 = vsel %vm222, %v5543, 0
    %5587 = vmatprep.subr.bf16.mxu0 0
    %5588 = vmatpush1.bf16.msra.mxu0 %v2972
    %5589 = vmatprep.subr.bf16.mxu0 0
    %5590 = vmatpush1.bf16.msra.mxu0 %v2973
    %5591 = vmatprep.subr.bf16.mxu0 0
    %5592 = vmatpush1.bf16.msra.mxu0 0
    %5593 = vmatprep.subr.bf16.mxu0 0
    %5594 = vmatpush1.bf16.msra.mxu0 0
    %5595 = vmatprep.subr.bf16.mxu0 0
    %5596 = vmatpush1.bf16.msra.mxu0 0
    %5597 = vmatprep.subr.bf16.mxu0 0
    %5598 = vmatpush1.bf16.msra.mxu0 0
    %5599 = vmatprep.subr.bf16.mxu0 0
    %5600 = vmatpush1.bf16.msra.mxu0 0
    %5601 = vmatprep.subr.bf16.mxu0 0
    %5602 = vmatpush1.bf16.msra.mxu0 0
    %5603 = vmatprep.subr.bf16.mxu0 0
    %5604 = vmatpush1.bf16.msra.mxu0 0
    %5605 = vmatprep.subr.bf16.mxu0 0
    %5606 = vmatpush1.bf16.msra.mxu0 0
    %5607 = vmatprep.subr.bf16.mxu0 0
    %5608 = vmatpush1.bf16.msra.mxu0 0
    %5609 = vmatprep.subr.bf16.mxu0 0
    %5610 = vmatpush1.bf16.msra.mxu0 0
    %5611 = vmatprep.subr.bf16.mxu0 0
    %5612 = vmatpush1.bf16.msra.mxu0 0
    %5613 = vmatprep.subr.bf16.mxu0 0
    %5614 = vmatpush1.bf16.msra.mxu0 0
    %5615 = vmatprep.subr.bf16.mxu0 0
    %5616 = vmatpush1.bf16.msra.mxu0 0
    %5617 = vmatprep.subr.bf16.mxu0 0
    %5618 = vmatpush1.bf16.msra.mxu0 0
    %5619 = vmatprep.mubr.bf16.mxu0 0
    %5620 = vmatmul.mubr.bf16.gmra.mrb[0].mxu0 %v5585
    %v5621 = vpop.f32.mrb[0].mxu0
    %v5622 = vadd.f32 %v5579, %v5621
    %v5623 = vpop.f32.mrb[0].mxu0
    %v5624 = vpop.f32.mrb[0].mxu0
    %v5625 = vpop.f32.mrb[0].mxu0
    %5626 = vdwg.mxu0
    %v5627 = vadd.f32 %v5622, %v169
    %v5628 = vtanh.pop %v5627
    %v5629 = vpack.c.bf16 %v5628, %v5628
    %v5631 = vsel %vm222, %v5629, 0
    %5633 = vmatprep.subr.bf16.mxu0 0
    %5634 = vmatpush1.bf16.msra.mxu0 %v3034
    %5635 = vmatprep.subr.bf16.mxu0 0
    %5636 = vmatpush1.bf16.msra.mxu0 %v3035
    %5637 = vmatprep.subr.bf16.mxu0 0
    %5638 = vmatpush1.bf16.msra.mxu0 0
    %5639 = vmatprep.subr.bf16.mxu0 0
    %5640 = vmatpush1.bf16.msra.mxu0 0
    %5641 = vmatprep.subr.bf16.mxu0 0
    %5642 = vmatpush1.bf16.msra.mxu0 0
    %5643 = vmatprep.subr.bf16.mxu0 0
    %5644 = vmatpush1.bf16.msra.mxu0 0
    %5645 = vmatprep.subr.bf16.mxu0 0
    %5646 = vmatpush1.bf16.msra.mxu0 0
    %5647 = vmatprep.subr.bf16.mxu0 0
    %5648 = vmatpush1.bf16.msra.mxu0 0
    %5649 = vmatprep.subr.bf16.mxu0 0
    %5650 = vmatpush1.bf16.msra.mxu0 0
    %5651 = vmatprep.subr.bf16.mxu0 0
    %5652 = vmatpush1.bf16.msra.mxu0 0
    %5653 = vmatprep.subr.bf16.mxu0 0
    %5654 = vmatpush1.bf16.msra.mxu0 0
    %5655 = vmatprep.subr.bf16.mxu0 0
    %5656 = vmatpush1.bf16.msra.mxu0 0
    %5657 = vmatprep.subr.bf16.mxu0 0
    %5658 = vmatpush1.bf16.msra.mxu0 0
    %5659 = vmatprep.subr.bf16.mxu0 0
    %5660 = vmatpush1.bf16.msra.mxu0 0
    %5661 = vmatprep.subr.bf16.mxu0 0
    %5662 = vmatpush1.bf16.msra.mxu0 0
    %5663 = vmatprep.subr.bf16.mxu0 0
    %5664 = vmatpush1.bf16.msra.mxu0 0
    %5665 = vmatprep.mubr.bf16.mxu0 0
    %5666 = vmatmul.mubr.bf16.gmra.mrb[0].mxu0 %v5631
    %v5667 = vpop.f32.mrb[0].mxu0
    %v5668 = vadd.f32 %v176, %v5667
    %v5669 = vpop.f32.mrb[0].mxu0
    %v5670 = vpop.f32.mrb[0].mxu0
    %v5671 = vpop.f32.mrb[0].mxu0
    %5672 = vdwg.mxu0
    %v5673 = vsel %vm504, %v5668, -inf
    %5674 = vmax.xlane.f32.xlu0 %v5673
    %v5675 = vpop.xlane.xlu0 %5674
    %vm5676 = vcmp.eq.f32.partialorder %v5668, %v5675
    %v5677 = vsel %vm5676, 1, 0
    %v5678 = vcvt.s32.f32 %v5677
    %v5679 = vpack.c.bf16 %v5678, %v5678
    %v5680 = vsel %vm5676, %v124, 64
    %v5681 = vsel %vm504, %v5680, 2147483647
    %v5682 = vand.u32 %v5681, 65535
    %v5683 = vshra.s32 %v5681, 16
    %v5684 = vcvt.s32.f32 %v5682
    %v5685 = vcvt.s32.f32 %v5683
    %5686 = vmin.xlane.f32.xlu0 %v5685
    %v5687 = vpop.xlane.xlu0 %5686
    %vm5688 = vcmp.eq.f32.partialorder %v5685, %v5687
    %v5689 = vsel %vm5688, %v5684, inf
    %5690 = vmin.xlane.f32.xlu0 %v5689
    %v5691 = vpop.xlane.xlu0 %5690
    %v5692 = vcvt.f32.s32 %v5691
    %v5693 = vcvt.f32.s32 %v5687
    %v5694 = vshll.u32 %v5693, 16
    %v5695 = vadd.s32 %v5694, %v5692
    %5696 = vmatprep.subr.bf16.mxu0 0
    %5697 = vmatpush1.bf16.msra.mxu0 %v2689
    %5698 = vmatprep.subr.bf16.mxu0 0
    %5699 = vmatpush1.bf16.msra.mxu0 %v2690
    %5700 = vmatprep.subr.bf16.mxu0 0
    %5701 = vmatpush1.bf16.msra.mxu0 0
    %5702 = vmatprep.subr.bf16.mxu0 0
    %5703 = vmatpush1.bf16.msra.mxu0 0
    %5704 = vmatprep.subr.bf16.mxu0 0
    %5705 = vmatpush1.bf16.msra.mxu0 0
    %5706 = vmatprep.subr.bf16.mxu0 0
    %5707 = vmatpush1.bf16.msra.mxu0 0
    %5708 = vmatprep.subr.bf16.mxu0 0
    %5709 = vmatpush1.bf16.msra.mxu0 0
    %5710 = vmatprep.subr.bf16.mxu0 0
    %5711 = vmatpush1.bf16.msra.mxu0 0
    %5712 = vmatprep.subr.bf16.mxu0 0
    %5713 = vmatpush1.bf16.msra.mxu0 0
    %5714 = vmatprep.subr.bf16.mxu0 0
    %5715 = vmatpush1.bf16.msra.mxu0 0
    %5716 = vmatprep.subr.bf16.mxu0 0
    %5717 = vmatpush1.bf16.msra.mxu0 0
    %5718 = vmatprep.subr.bf16.mxu0 0
    %5719 = vmatpush1.bf16.msra.mxu0 0
    %5720 = vmatprep.subr.bf16.mxu0 0
    %5721 = vmatpush1.bf16.msra.mxu0 0
    %5722 = vmatprep.subr.bf16.mxu0 0
    %5723 = vmatpush1.bf16.msra.mxu0 0
    %5724 = vmatprep.subr.bf16.mxu0 0
    %5725 = vmatpush1.bf16.msra.mxu0 0
    %5726 = vmatprep.subr.bf16.mxu0 0
    %5727 = vmatpush1.bf16.msra.mxu0 0
    %5728 = vmatprep.mubr.bf16.mxu0 0
    %5729 = vmatmul.mubr.bf16.gmra.mrb[0].mxu0 %v5499
    %v5730 = vpop.f32.mrb[0].mxu0
    %v5731 = vadd.f32 0.0, %v5730
    %v5732 = vpop.f32.mrb[0].mxu0
    %v5733 = vpop.f32.mrb[0].mxu0
    %v5734 = vpop.f32.mrb[0].mxu0
    %5735 = vdwg.mxu0
    %v5737 = vsel %vm504, %v5679, 0
    %5739 = vmatprep.subr.bf16.mxu0 0
    %5740 = vmatpush1.bf16.msra.mxu0 %v425
    %5741 = vmatprep.subr.bf16.mxu0 0
    %5742 = vmatpush1.bf16.msra.mxu0 %v426
    %5743 = vmatprep.subr.bf16.mxu0 0
    %5744 = vmatpush1.bf16.msra.mxu0 %v427
    %5745 = vmatprep.subr.bf16.mxu0 0
    %5746 = vmatpush1.bf16.msra.mxu0 %v428
    %5747 = vmatprep.subr.bf16.mxu0 0
    %5748 = vmatpush1.bf16.msra.mxu0 0
    %5749 = vmatprep.subr.bf16.mxu0 0
    %5750 = vmatpush1.bf16.msra.mxu0 0
    %5751 = vmatprep.subr.bf16.mxu0 0
    %5752 = vmatpush1.bf16.msra.mxu0 0
    %5753 = vmatprep.subr.bf16.mxu0 0
    %5754 = vmatpush1.bf16.msra.mxu0 0
    %5755 = vmatprep.subr.bf16.mxu0 0
    %5756 = vmatpush1.bf16.msra.mxu0 0
    %5757 = vmatprep.subr.bf16.mxu0 0
    %5758 = vmatpush1.bf16.msra.mxu0 0
    %5759 = vmatprep.subr.bf16.mxu0 0
    %5760 = vmatpush1.bf16.msra.mxu0 0
    %5761 = vmatprep.subr.bf16.mxu0 0
    %5762 = vmatpush1.bf16.msra.mxu0 0
    %5763 = vmatprep.subr.bf16.mxu0 0
    %5764 = vmatpush1.bf16.msra.mxu0 0
    %5765 = vmatprep.subr.bf16.mxu0 0
    %5766 = vmatpush1.bf16.msra.mxu0 0
    %5767 = vmatprep.subr.bf16.mxu0 0
    %5768 = vmatpush1.bf16.msra.mxu0 0
    %5769 = vmatprep.subr.bf16.mxu0 0
    %5770 = vmatpush1.bf16.msra.mxu0 0
    %5771 = vmatprep.mubr.bf16.mxu0 0
    %5772 = vmatmul.mubr.bf16.gmra.mrb[0].mxu0 %v5737
    %v5773 = vpop.f32.mrb[0].mxu0
    %v5774 = vadd.f32 %v5731, %v5773
    %v5775 = vpop.f32.mrb[0].mxu0
    %v5776 = vpop.f32.mrb[0].mxu0
    %v5777 = vpop.f32.mrb[0].mxu0
    %5778 = vdwg.mxu0
    %v5779 = vadd.f32 %v5774, %v153
    %v5780 = vtanh.pop %v5779
    %v5781 = vpack.c.bf16 %v5780, %v5780
    %5782 = vmatprep.subr.bf16.mxu0 0
    %5783 = vmatpush1.bf16.msra.mxu0 %v2797
    %5784 = vmatprep.subr.bf16.mxu0 0
    %5785 = vmatpush1.bf16.msra.mxu0 %v2798
    %5786 = vmatprep.subr.bf16.mxu0 0
    %5787 = vmatpush1.bf16.msra.mxu0 0
    %5788 = vmatprep.subr.bf16.mxu0 0
    %5789 = vmatpush1.bf16.msra.mxu0 0
    %5790 = vmatprep.subr.bf16.mxu0 0
    %5791 = vmatpush1.bf16.msra.mxu0 0
    %5792 = vmatprep.subr.bf16.mxu0 0
    %5793 = vmatpush1.bf16.msra.mxu0 0
    %5794 = vmatprep.subr.bf16.mxu0 0
    %5795 = vmatpush1.bf16.msra.mxu0 0
    %5796 = vmatprep.subr.bf16.mxu0 0
    %5797 = vmatpush1.bf16.msra.mxu0 0
    %5798 = vmatprep.subr.bf16.mxu0 0
    %5799 = vmatpush1.bf16.msra.mxu0 0
    %5800 = vmatprep.subr.bf16.mxu0 0
    %5801 = vmatpush1.bf16.msra.mxu0 0
    %5802 = vmatprep.subr.bf16.mxu0 0
    %5803 = vmatpush1.bf16.msra.mxu0 0
    %5804 = vmatprep.subr.bf16.mxu0 0
    %5805 = vmatpush1.bf16.msra.mxu0 0
    %5806 = vmatprep.subr.bf16.mxu0 0
    %5807 = vmatpush1.bf16.msra.mxu0 0
    %5808 = vmatprep.subr.bf16.mxu0 0
    %5809 = vmatpush1.bf16.msra.mxu0 0
    %5810 = vmatprep.subr.bf16.mxu0 0
    %5811 = vmatpush1.bf16.msra.mxu0 0
    %5812 = vmatprep.subr.bf16.mxu0 0
    %5813 = vmatpush1.bf16.msra.mxu0 0
    %5814 = vmatprep.mubr.bf16.mxu0 0
    %5815 = vmatmul.mubr.bf16.gmra.mrb[0].mxu0 %v5585
    %v5816 = vpop.f32.mrb[0].mxu0
    %v5817 = vadd.f32 0.0, %v5816
    %v5818 = vpop.f32.mrb[0].mxu0
    %v5819 = vpop.f32.mrb[0].mxu0
    %v5820 = vpop.f32.mrb[0].mxu0
    %5821 = vdwg.mxu0
    %v5823 = vsel %vm222, %v5781, 0
    %5825 = vmatprep.subr.bf16.mxu0 0
    %5826 = vmatpush1.bf16.msra.mxu0 %v2849
    %5827 = vmatprep.subr.bf16.mxu0 0
    %5828 = vmatpush1.bf16.msra.mxu0 %v2850
    %5829 = vmatprep.subr.bf16.mxu0 0
    %5830 = vmatpush1.bf16.msra.mxu0 0
    %5831 = vmatprep.subr.bf16.mxu0 0
    %5832 = vmatpush1.bf16.msra.mxu0 0
    %5833 = vmatprep.subr.bf16.mxu0 0
    %5834 = vmatpush1.bf16.msra.mxu0 0
    %5835 = vmatprep.subr.bf16.mxu0 0
    %5836 = vmatpush1.bf16.msra.mxu0 0
    %5837 = vmatprep.subr.bf16.mxu0 0
    %5838 = vmatpush1.bf16.msra.mxu0 0
    %5839 = vmatprep.subr.bf16.mxu0 0
    %5840 = vmatpush1.bf16.msra.mxu0 0
    %5841 = vmatprep.subr.bf16.mxu0 0
    %5842 = vmatpush1.bf16.msra.mxu0 0
    %5843 = vmatprep.subr.bf16.mxu0 0
    %5844 = vmatpush1.bf16.msra.mxu0 0
    %5845 = vmatprep.subr.bf16.mxu0 0
    %5846 = vmatpush1.bf16.msra.mxu0 0
    %5847 = vmatprep.subr.bf16.mxu0 0
    %5848 = vmatpush1.bf16.msra.mxu0 0
    %5849 = vmatprep.subr.bf16.mxu0 0
    %5850 = vmatpush1.bf16.msra.mxu0 0
    %5851 = vmatprep.subr.bf16.mxu0 0
    %5852 = vmatpush1.bf16.msra.mxu0 0
    %5853 = vmatprep.subr.bf16.mxu0 0
    %5854 = vmatpush1.bf16.msra.mxu0 0
    %5855 = vmatprep.subr.bf16.mxu0 0
    %5856 = vmatpush1.bf16.msra.mxu0 0
    %5857 = vmatprep.mubr.bf16.mxu0 0
    %5858 = vmatmul.mubr.bf16.gmra.mrb[0].mxu0 %v5823
    %v5859 = vpop.f32.mrb[0].mxu0
    %v5860 = vadd.f32 %v5817, %v5859
    %v5861 = vpop.f32.mrb[0].mxu0
    %v5862 = vpop.f32.mrb[0].mxu0
    %v5863 = vpop.f32.mrb[0].mxu0
    %5864 = vdwg.mxu0
    %v5865 = vadd.f32 %v5860, %v161
    %v5866 = vtanh.pop %v5865
    %v5867 = vpack.c.bf16 %v5866, %v5866
    %5868 = vmatprep.subr.bf16.mxu0 0
    %5869 = vmatpush1.bf16.msra.mxu0 %v2917
    %5870 = vmatprep.subr.bf16.mxu0 0
    %5871 = vmatpush1.bf16.msra.mxu0 %v2918
    %5872 = vmatprep.subr.bf16.mxu0 0
    %5873 = vmatpush1.bf16.msra.mxu0 0
    %5874 = vmatprep.subr.bf16.mxu0 0
    %5875 = vmatpush1.bf16.msra.mxu0 0
    %5876 = vmatprep.subr.bf16.mxu0 0
    %5877 = vmatpush1.bf16.msra.mxu0 0
    %5878 = vmatprep.subr.bf16.mxu0 0
    %5879 = vmatpush1.bf16.msra.mxu0 0
    %5880 = vmatprep.subr.bf16.mxu0 0
    %5881 = vmatpush1.bf16.msra.mxu0 0
    %5882 = vmatprep.subr.bf16.mxu0 0
    %5883 = vmatpush1.bf16.msra.mxu0 0
    %5884 = vmatprep.subr.bf16.mxu0 0
    %5885 = vmatpush1.bf16.msra.mxu0 0
    %5886 = vmatprep.subr.bf16.mxu0 0
    %5887 = vmatpush1.bf16.msra.mxu0 0
    %5888 = vmatprep.subr.bf16.mxu0 0
    %5889 = vmatpush1.bf16.msra.mxu0 0
    %5890 = vmatprep.subr.bf16.mxu0 0
    %5891 = vmatpush1.bf16.msra.mxu0 0
    %5892 = vmatprep.subr.bf16.mxu0 0
    %5893 = vmatpush1.bf16.msra.mxu0 0
    %5894 = vmatprep.subr.bf16.mxu0 0
    %5895 = vmatpush1.bf16.msra.mxu0 0
    %5896 = vmatprep.subr.bf16.mxu0 0
    %5897 = vmatpush1.bf16.msra.mxu0 0
    %5898 = vmatprep.subr.bf16.mxu0 0
    %5899 = vmatpush1.bf16.msra.mxu0 0
    %5900 = vmatprep.mubr.bf16.mxu0 0
    %5901 = vmatmul.mubr.bf16.gmra.mrb[0].mxu0 %v5631
    %v5902 = vpop.f32.mrb[0].mxu0
    %v5903 = vadd.f32 0.0, %v5902
    %v5904 = vpop.f32.mrb[0].mxu0
    %v5905 = vpop.f32.mrb[0].mxu0
    %v5906 = vpop.f32.mrb[0].mxu0
    %5907 = vdwg.mxu0
    %v5909 = vsel %vm222, %v5867, 0
    %5911 = vmatprep.subr.bf16.mxu0 0
    %5912 = vmatpush1.bf16.msra.mxu0 %v2972
    %5913 = vmatprep.subr.bf16.mxu0 0
    %5914 = vmatpush1.bf16.msra.mxu0 %v2973
    %5915 = vmatprep.subr.bf16.mxu0 0
    %5916 = vmatpush1.bf16.msra.mxu0 0
    %5917 = vmatprep.subr.bf16.mxu0 0
    %5918 = vmatpush1.bf16.msra.mxu0 0
    %5919 = vmatprep.subr.bf16.mxu0 0
    %5920 = vmatpush1.bf16.msra.mxu0 0
    %5921 = vmatprep.subr.bf16.mxu0 0
    %5922 = vmatpush1.bf16.msra.mxu0 0
    %5923 = vmatprep.subr.bf16.mxu0 0
    %5924 = vmatpush1.bf16.msra.mxu0 0
    %5925 = vmatprep.subr.bf16.mxu0 0
    %5926 = vmatpush1.bf16.msra.mxu0 0
    %5927 = vmatprep.subr.bf16.mxu0 0
    %5928 = vmatpush1.bf16.msra.mxu0 0
    %5929 = vmatprep.subr.bf16.mxu0 0
    %5930 = vmatpush1.bf16.msra.mxu0 0
    %5931 = vmatprep.subr.bf16.mxu0 0
    %5932 = vmatpush1.bf16.msra.mxu0 0
    %5933 = vmatprep.subr.bf16.mxu0 0
    %5934 = vmatpush1.bf16.msra.mxu0 0
    %5935 = vmatprep.subr.bf16.mxu0 0
    %5936 = vmatpush1.bf16.msra.mxu0 0
    %5937 = vmatprep.subr.bf16.mxu0 0
    %5938 = vmatpush1.bf16.msra.mxu0 0
    %5939 = vmatprep.subr.bf16.mxu0 0
    %5940 = vmatpush1.bf16.msra.mxu0 0
    %5941 = vmatprep.subr.bf16.mxu0 0
    %5942 = vmatpush1.bf16.msra.mxu0 0
    %5943 = vmatprep.mubr.bf16.mxu0 0
    %5944 = vmatmul.mubr.bf16.gmra.mrb[0].mxu0 %v5909
    %v5945 = vpop.f32.mrb[0].mxu0
    %v5946 = vadd.f32 %v5903, %v5945
    %v5947 = vpop.f32.mrb[0].mxu0
    %v5948 = vpop.f32.mrb[0].mxu0
    %v5949 = vpop.f32.mrb[0].mxu0
    %5950 = vdwg.mxu0
    %v5951 = vadd.f32 %v5946, %v169
    %v5952 = vtanh.pop %v5951
    %v5953 = vpack.c.bf16 %v5952, %v5952
    %v5955 = vsel %vm222, %v5953, 0
    %5957 = vmatprep.subr.bf16.mxu0 0
    %5958 = vmatpush1.bf16.msra.mxu0 %v3034
    %5959 = vmatprep.subr.bf16.mxu0 0
    %5960 = vmatpush1.bf16.msra.mxu0 %v3035
    %5961 = vmatprep.subr.bf16.mxu0 0
    %5962 = vmatpush1.bf16.msra.mxu0 0
    %5963 = vmatprep.subr.bf16.mxu0 0
    %5964 = vmatpush1.bf16.msra.mxu0 0
    %5965 = vmatprep.subr.bf16.mxu0 0
    %5966 = vmatpush1.bf16.msra.mxu0 0
    %5967 = vmatprep.subr.bf16.mxu0 0
    %5968 = vmatpush1.bf16.msra.mxu0 0
    %5969 = vmatprep.subr.bf16.mxu0 0
    %5970 = vmatpush1.bf16.msra.mxu0 0
    %5971 = vmatprep.subr.bf16.mxu0 0
    %5972 = vmatpush1.bf16.msra.mxu0 0
    %5973 = vmatprep.subr.bf16.mxu0 0
    %5974 = vmatpush1.bf16.msra.mxu0 0
    %5975 = vmatprep.subr.bf16.mxu0 0
    %5976 = vmatpush1.bf16.msra.mxu0 0
    %5977 = vmatprep.subr.bf16.mxu0 0
    %5978 = vmatpush1.bf16.msra.mxu0 0
    %5979 = vmatprep.subr.bf16.mxu0 0
    %5980 = vmatpush1.bf16.msra.mxu0 0
    %5981 = vmatprep.subr.bf16.mxu0 0
    %5982 = vmatpush1.bf16.msra.mxu0 0
    %5983 = vmatprep.subr.bf16.mxu0 0
    %5984 = vmatpush1.bf16.msra.mxu0 0
    %5985 = vmatprep.subr.bf16.mxu0 0
    %5986 = vmatpush1.bf16.msra.mxu0 0
    %5987 = vmatprep.subr.bf16.mxu0 0
    %5988 = vmatpush1.bf16.msra.mxu0 0
    %5989 = vmatprep.mubr.bf16.mxu0 0
    %5990 = vmatmul.mubr.bf16.gmra.mrb[0].mxu0 %v5955
    %v5991 = vpop.f32.mrb[0].mxu0
    %v5992 = vadd.f32 %v176, %v5991
    %v5993 = vpop.f32.mrb[0].mxu0
    %v5994 = vpop.f32.mrb[0].mxu0
    %v5995 = vpop.f32.mrb[0].mxu0
    %5996 = vdwg.mxu0
    %v5997 = vsel %vm504, %v5992, -inf
    %5998 = vmax.xlane.f32.xlu0 %v5997
    %v5999 = vpop.xlane.xlu0 %5998
    %vm6000 = vcmp.eq.f32.partialorder %v5992, %v5999
    %v6001 = vsel %vm6000, %v124, 64
    %v6002 = vsel %vm504, %v6001, 2147483647
    %v6003 = vand.u32 %v6002, 65535
    %v6004 = vshra.s32 %v6002, 16
    %v6005 = vcvt.s32.f32 %v6003
    %v6006 = vcvt.s32.f32 %v6004
    %6007 = vmin.xlane.f32.xlu0 %v6006
    %v6008 = vpop.xlane.xlu0 %6007
    %vm6009 = vcmp.eq.f32.partialorder %v6006, %v6008
    %v6010 = vsel %vm6009, %v6005, inf
    %6011 = vmin.xlane.f32.xlu0 %v6010
    %v6012 = vpop.xlane.xlu0 %6011
    %v6013 = vcvt.f32.s32 %v6012
    %v6014 = vcvt.f32.s32 %v6008
    %v6015 = vshll.u32 %v6014, 16
    %v6016 = vadd.s32 %v6015, %v6013
    %vm6017 = vcmask 7168
    %v6018 = vsel %vm6017, %v3103, %v3427
    %vm6019 = vcmask 15360
    %v6020 = vsel %vm6019, %v6018, %v3751
    %vm6021 = vcmask 23552
    %v6022 = vsel %vm6021, %v6020, %v4075
    %vm6023 = vcmask 31744
    %v6024 = vsel %vm6023, %v6022, %v4399
    %vm6025 = vcmask 39936
    %v6026 = vsel %vm6025, %v6024, %v4723
    %vm6027 = vcmask 48128
    %v6028 = vsel %vm6027, %v6026, %v5047
    %vm6029 = vcmask 56320
    %v6030 = vsel %vm6029, %v6028, %v5371
    %vm6031 = vcmask 64512
    %v6032 = vsel %vm6031, %v6030, %v5695
    %vm6033 = vcmask 72704
    %v6034 = vsel %vm6033, %v6032, %v6016
    %vm6035 = vcmask 80896
    %6036 = vst.msk [vmem:[#allocation13] sm:$0xff] %vm6035, %v6034
    // Predicated region
    $region74: #{tpu_custom_call.1} parent=1 // pred_check
      _
    $region75: #{tpu_custom_call.1} parent=1 // pred_check_branch
      %6038 = sbr.rel (0) target = $region77
    $region76: #{tpu_custom_call.1} parent=1 // pred_region
      %s6040 = ssub.s32 128, 128
      %6041 = vsyncadd [#allocation4], %s6040
      %s6043 = sshll.u32 [#allocation13], 4
      %s6044 = int_to_ptr.vmem [resolvable:$true] %s6043
      %6046 = dma.vmem_to_hbm [thread:$0]  %s6044, 128, %s12, [#allocation4]
    $region77: #{tpu_custom_call.1} parent=1 // pred_fallthru
      _
    // Predicated region
    $region78: #{tpu_custom_call.1} parent=1 // pred_check
      _
    $region79: #{tpu_custom_call.1} parent=1 // pred_check_branch
      %6048 = sbr.rel (0) target = $region81
    $region80: #{tpu_custom_call.1} parent=1 // pred_region
      %6049 = dma.done [#allocation4], 128
    $region81: #{tpu_custom_call.1} parent=1 // pred_fallthru
      _
    %6050 = vsyncpa [#allocation3], 1
    %6051 = vsyncpa [#allocation6], 1
    %6052 = vsyncpa [#allocation9], 1
    %6053 = vsyncpa [#allocation12], 1
    %6054 = vsyncpa [#allocation4], 1

</llo_original>
